<compile_context>
chip_gen: v7x
topology: tpu7x:2x2x1
jax: 0.10.0
libtpu: 0.0.40
codegen_flags: <defaults>
</compile_context>

<pallas_src>
import functools
import math

import jax
import jax.numpy as jnp
from jax import lax
from jax.experimental import pallas as pl
from jax.experimental.pallas import tpu as pltpu

# ---------------- configuration (small synthetic shapes) ----------------
NUM_LAYERS = 2
NUM_HEADS = 4
HIDDEN = 32
FF = HIDDEN * 4             # 128 — lane-dense width used for the vector blob
DK = HIDDEN // NUM_HEADS    # 8
NUM_RELATIONS = 10          # len(relations2id)
R_PAD = 16                  # relation count padded to a multiple of 8 for the MXU
LQ, LC, LT = 3, 3, 2        # question / column / table lengths
S = LQ + LC + LT            # total sequence length (8)
EPS = 1e-5                  # nn.LayerNorm eps


def _layer_norm(x, g, b):
    # nn.LayerNorm: (x - mean) / sqrt(var + eps) * g + b   (biased variance)
    mean = jnp.mean(x, axis=-1, keepdims=True)
    var = jnp.mean((x - mean) ** 2, axis=-1, keepdims=True)
    return g * (x - mean) * jax.lax.rsqrt(var + EPS) + b


# ---------------- the Pallas kernel: whole encoder in one invocation ----------------
def rat_kernel(x0_ref, rel_ref, emb_ref, wh_ref, bh_ref, w1_ref, w2_ref,
               vecs_ref, out_ref):
    NH = NUM_HEADS
    x = x0_ref[...]                                       # (S, H) residual stream
    inv_sqrt_dk = 1.0 / math.sqrt(DK)

    # ---- fused relation gather: one-hot built once, emb matmuls per layer ----
    rel = rel_ref[...]                                    # (S, S) int32
    iota_r = lax.broadcasted_iota(jnp.int32, (S, S, R_PAD), 2)
    onehot = (rel[:, :, None] == iota_r).astype(jnp.float32)      # (S, S, R_PAD)
    oh2 = onehot.reshape(S * S, R_PAD)                    # leading-dim merge only

    for l in range(NUM_LAYERS):                           # static unroll (L=2)
        vv = vecs_ref[l]                                  # (8, FF) packed vectors
        ln1_g, ln1_b = vv[0:1, 0:HIDDEN], vv[1:2, 0:HIDDEN]
        bo = vv[2:3, 0:HIDDEN]
        ln2_g, ln2_b = vv[3:4, 0:HIDDEN], vv[4:5, 0:HIDDEN]
        b2 = vv[5:6, 0:HIDDEN]
        b1 = vv[6:7, :]                                   # (1, FF)

        emb_l = emb_ref[l]                                # (2, R_PAD, DK)
        relk = jnp.dot(oh2, emb_l[0],
                       preferred_element_type=jnp.float32).reshape(S, S, DK)
        relv = jnp.dot(oh2, emb_l[1],
                       preferred_element_type=jnp.float32).reshape(S, S, DK)

        # ---- relation-aware self-attention sublayer: x + MHA(LN(x)) ----
        xn = _layer_norm(x, ln1_g, ln1_b)                 # (S, H)
        wh_l = wh_ref[l]                                  # (4*NH, H, DK)
        xb = jnp.broadcast_to(xn[None], (3 * NH, S, HIDDEN))
        # head-batched q/k/v projection: (3NH,S,H) x (3NH,H,DK) -> (3NH,S,DK)
        qkv = lax.dot_general(xb, wh_l[0:3 * NH],
                              (((2,), (1,)), ((0,), (0,))),
                              preferred_element_type=jnp.float32) + bh_ref[l]
        qh = qkv[0:NH]                                    # (NH, S, DK)
        kh = qkv[NH:2 * NH]
        vh = qkv[2 * NH:3 * NH]

        # relative_attention_logits: q k^T + q . relation_k
        qk = lax.dot_general(qh, kh, (((2,), (2,)), ((0,), (0,))),
                             preferred_element_type=jnp.float32)   # (NH, S, S)
        qr = jnp.sum(qh[:, :, None, :] * relk[None, :, :, :], axis=-1)
        scores = (qk + qr) * inv_sqrt_dk
        m = jnp.max(scores, axis=-1, keepdims=True)
        p = jnp.exp(scores - m)
        attn = p * pl.reciprocal(jnp.sum(p, axis=-1, keepdims=True),
                                 approx=True)             # softmax (NH, S, S)

        # relative_attention_values: attn @ v + attn . relation_v
        ctx = lax.dot_general(attn, vh, (((2,), (1,)), ((0,), (0,))),
                              preferred_element_type=jnp.float32)  # (NH, S, DK)
        ctx = ctx + jnp.sum(attn[:, :, :, None] * relv[None, :, :, :], axis=2)

        # head-batched output projection (ctx_h @ W_o[rows_h]) and head sum
        contrib = lax.dot_general(ctx, wh_l[3 * NH:4 * NH],
                                  (((2,), (2,)), ((0,), (0,))),
                                  preferred_element_type=jnp.float32)  # (NH,S,H)
        x = x + jnp.sum(contrib, axis=0) + bo             # dropout = identity

        # ---- positionwise feed-forward sublayer: x + W2(relu(W1(LN(x)))) ----
        xn2 = _layer_norm(x, ln2_g, ln2_b)
        h1 = jnp.maximum(
            jnp.dot(xn2, w1_ref[l], preferred_element_type=jnp.float32) + b1, 0.0)
        x = x + jnp.dot(h1, w2_ref[l], preferred_element_type=jnp.float32) + b2

    # ---- final encoder LayerNorm, exactly once ----
    vf = vecs_ref[NUM_LAYERS]
    out_ref[...] = _layer_norm(x, vf[0:1, 0:HIDDEN], vf[1:2, 0:HIDDEN])


# ---------------- parameter packing (few lane-dense blobs) ----------------
def pack_params(p):
    L, H, NH = NUM_LAYERS, HIDDEN, NUM_HEADS

    def heads_in(w):          # (L,H,H) -> (L,NH,H,DK): per-head input-proj blocks
        return w.reshape(L, H, NH, DK).transpose(0, 2, 1, 3)

    wq_h, wk_h, wv_h = heads_in(p['wq']), heads_in(p['wk']), heads_in(p['wv'])
    # W_o^T per head: (L,NH,H,DK), block h holds wo[h*DK:(h+1)*DK, :].T
    wo_h = p['wo'].reshape(L, NH, DK, H).transpose(0, 1, 3, 2)
    wh = jnp.concatenate([wq_h, wk_h, wv_h, wo_h], axis=1)          # (L,4NH,H,DK)

    def heads_b(b):           # (L,1,H) -> (L,NH,1,DK)
        return b.reshape(L, 1, NH, DK).transpose(0, 2, 1, 3)

    bh = jnp.concatenate([heads_b(p['bq']), heads_b(p['bk']),
                          heads_b(p['bv'])], axis=1)                # (L,3NH,1,DK)

    emb = jnp.stack([p['rel_k_emb'], p['rel_v_emb']], axis=1)       # (L,2,R,DK)
    emb = jnp.pad(emb, ((0, 0), (0, 0), (0, R_PAD - NUM_RELATIONS), (0, 0)))

    def pad_h(v):             # (N,1,H) -> (N,1,FF) zero-padded lane-dense row
        return jnp.pad(v, ((0, 0), (0, 0), (0, FF - H)))

    layer_rows = jnp.concatenate(
        [pad_h(p['ln1_g']), pad_h(p['ln1_b']), pad_h(p['bo']),
         pad_h(p['ln2_g']), pad_h(p['ln2_b']), pad_h(p['b2']),
         p['b1'], jnp.zeros((L, 1, FF), jnp.float32)], axis=1)      # (L,8,FF)
    final_rows = jnp.concatenate(
        [pad_h(p['lnf_g']), pad_h(p['lnf_b']),
         jnp.zeros((1, 6, FF), jnp.float32)], axis=1)               # (1,8,FF)
    vecs = jnp.concatenate([layer_rows, final_rows], axis=0)        # (L+1,8,FF)
    return wh, bh, emb, vecs


# ---------------- pallas_call wrapper: single invocation, no grid ----------------
def rat_encoder(x0, relation, params):
    wh, bh, emb, vecs = pack_params(params)
    vmem = lambda: pl.BlockSpec(memory_space=pltpu.MemorySpace.VMEM)
    return pl.pallas_call(
        rat_kernel,
        out_shape=jax.ShapeDtypeStruct((S, HIDDEN), jnp.float32),
        in_specs=[vmem() for _ in range(8)],
        out_specs=vmem(),
    )(x0, relation, emb, wh, bh, params['w1'], params['w2'], vecs)


def rat_forward(q_enc, c_enc, t_enc, relation, params):
    """Mirrors RAT.forward_unbatched (relation gather happens inside the kernel)."""
    enc = jnp.concatenate([q_enc, c_enc, t_enc], axis=0)      # (S, 1, H)
    x0 = jnp.transpose(enc, (1, 0, 2))[0]                     # (S, H)
    out = rat_encoder(x0, relation.astype(jnp.int32), params) # (S, H)
    enc_new = out[None]                                       # (1, S, H)
    c_base = q_enc.shape[0]
    t_base = c_base + c_enc.shape[0]
    return enc_new[:, :c_base], enc_new[:, c_base:t_base], enc_new[:, t_base:]


# ---------------- deterministic parameter init ----------------
def init_params(key):
    ks = jax.random.split(key, 10)
    w = lambda k, shape: (0.02 * jax.random.normal(k, shape)).astype(jnp.float32)
    L, H, F, R, D = NUM_LAYERS, HIDDEN, FF, NUM_RELATIONS, DK
    zeros = lambda shape: jnp.zeros(shape, jnp.float32)
    ones = lambda shape: jnp.ones(shape, jnp.float32)
    return dict(
        rel_k_emb=w(ks[0], (L, R, D)), rel_v_emb=w(ks[1], (L, R, D)),
        ln1_g=ones((L, 1, H)), ln1_b=zeros((L, 1, H)),
        wq=w(ks[2], (L, H, H)), bq=zeros((L, 1, H)),
        wk=w(ks[3], (L, H, H)), bk=zeros((L, 1, H)),
        wv=w(ks[4], (L, H, H)), bv=zeros((L, 1, H)),
        wo=w(ks[5], (L, H, H)), bo=zeros((L, 1, H)),
        ln2_g=ones((L, 1, H)), ln2_b=zeros((L, 1, H)),
        w1=w(ks[6], (L, H, F)), b1=zeros((L, 1, F)),
        w2=w(ks[7], (L, F, H)), b2=zeros((L, 1, H)),
        lnf_g=ones((1, 1, H)), lnf_b=zeros((1, 1, H)),
    )


# ---------------- pure-JAX reference (same math) ----------------
def rat_forward_ref(q_enc, c_enc, t_enc, relation, p):
    hp = jax.lax.Precision.HIGHEST
    enc = jnp.concatenate([q_enc, c_enc, t_enc], axis=0)
    x = jnp.transpose(enc, (1, 0, 2))[0]

    def ln(x, g, b):
        mean = jnp.mean(x, -1, keepdims=True)
        var = jnp.mean((x - mean) ** 2, -1, keepdims=True)
        return g * (x - mean) / jnp.sqrt(var + EPS) + b

    for l in range(NUM_LAYERS):
        relk = p['rel_k_emb'][l][relation]
        relv = p['rel_v_emb'][l][relation]
        xn = ln(x, p['ln1_g'][l], p['ln1_b'][l])
        q = jnp.dot(xn, p['wq'][l], precision=hp) + p['bq'][l]
        k = jnp.dot(xn, p['wk'][l], precision=hp) + p['bk'][l]
        v = jnp.dot(xn, p['wv'][l], precision=hp) + p['bv'][l]
        qh = q.reshape(S, NUM_HEADS, DK)
        kh = k.reshape(S, NUM_HEADS, DK)
        vh = v.reshape(S, NUM_HEADS, DK)
        qk = jnp.einsum('ihd,jhd->hij', qh, kh, precision=hp)
        qr = jnp.einsum('ihd,ijd->hij', qh, relk, precision=hp)
        attn = jax.nn.softmax((qk + qr) / math.sqrt(DK), axis=-1)
        ctx = (jnp.einsum('hij,jhd->ihd', attn, vh, precision=hp)
               + jnp.einsum('hij,ijd->ihd', attn, relv, precision=hp))
        ctx = ctx.reshape(S, HIDDEN)
        x = x + jnp.dot(ctx, p['wo'][l], precision=hp) + p['bo'][l]
        xn2 = ln(x, p['ln2_g'][l], p['ln2_b'][l])
        h1 = jax.nn.relu(jnp.dot(xn2, p['w1'][l], precision=hp) + p['b1'][l])
        x = x + jnp.dot(h1, p['w2'][l], precision=hp) + p['b2'][l]
    x = ln(x, p['lnf_g'][0], p['lnf_b'][0])
    enc_new = x[None]
    c_base, t_base = q_enc.shape[0], q_enc.shape[0] + c_enc.shape[0]
    return enc_new[:, :c_base], enc_new[:, c_base:t_base], enc_new[:, t_base:]


if __name__ == "__main__":
    key = jax.random.PRNGKey(0)
    kq, kc, kt, kr, kp = jax.random.split(key, 5)
    q_enc = jax.random.normal(kq, (LQ, 1, HIDDEN), jnp.float32)
    c_enc = jax.random.normal(kc, (LC, 1, HIDDEN), jnp.float32)
    t_enc = jax.random.normal(kt, (LT, 1, HIDDEN), jnp.float32)
    relation = jax.random.randint(kr, (S, S), 0, NUM_RELATIONS, dtype=jnp.int32)
    params = init_params(kp)

    fwd = jax.jit(functools.partial(rat_forward, params=params))
    q_new, c_new, t_new = fwd(q_enc, c_enc, t_enc, relation)
    jax.block_until_ready((q_new, c_new, t_new))

    assert q_new.shape == (1, LQ, HIDDEN)
    assert c_new.shape == (1, LC, HIDDEN)
    assert t_new.shape == (1, LT, HIDDEN)

    # correctness vs pure-JAX reference (loose tol for MXU matmul precision)
    qr_, cr_, tr_ = rat_forward_ref(q_enc, c_enc, t_enc, relation, params)
    for a, b in ((q_new, qr_), (c_new, cr_), (t_new, tr_)):
        assert jnp.allclose(a, b, atol=5e-2, rtol=5e-2), float(jnp.abs(a - b).max())

    print("KERNEL_OK")
</pallas_src>

<mosaic_0001>
module attributes {stable_mosaic.version = 11 : i64} {
  func.func @rat_kernel(%arg0: memref<8x32xf32, #tpu.memory_space<vmem>>, %arg1: memref<8x8xi32, #tpu.memory_space<vmem>>, %arg2: memref<2x2x16x8xf32, #tpu.memory_space<vmem>>, %arg3: memref<2x16x32x8xf32, #tpu.memory_space<vmem>>, %arg4: memref<2x12x1x8xf32, #tpu.memory_space<vmem>>, %arg5: memref<2x32x128xf32, #tpu.memory_space<vmem>>, %arg6: memref<2x128x32xf32, #tpu.memory_space<vmem>>, %arg7: memref<3x8x128xf32, #tpu.memory_space<vmem>>, %arg8: memref<8x32xf32, #tpu.memory_space<vmem>>) attributes {dimension_semantics = [], scalar_prefetch = 0 : i64, scratch_operands = 0 : i64, tpu.core_type = #tpu.core_type<tc>} {
    %c0 = arith.constant 0 : index
    %c0_0 = arith.constant 0 : index
    %0 = vector.load %arg0[%c0, %c0_0] : memref<8x32xf32, #tpu.memory_space<vmem>>, vector<8x32xf32>
    %c0_1 = arith.constant 0 : index
    %c0_2 = arith.constant 0 : index
    %1 = vector.load %arg1[%c0_1, %c0_2] : memref<8x8xi32, #tpu.memory_space<vmem>>, vector<8x8xi32>
    %2 = tpu.iota {dimensions = array<i32: 2>} : vector<8x8x16xi32>
    %3 = vector.shape_cast %1 : vector<8x8xi32> to vector<8x8x1xi32>
    %4 = vector.broadcast %3 : vector<8x8x1xi32> to vector<8x8x16xi32>
    %5 = arith.cmpi eq, %4, %2 : vector<8x8x16xi32>
    %6 = arith.extui %5 : vector<8x8x16xi1> to vector<8x8x16xi32>
    %7 = arith.sitofp %6 : vector<8x8x16xi32> to vector<8x8x16xf32>
    %8 = vector.shape_cast %7 : vector<8x8x16xf32> to vector<64x16xf32>
    %c0_3 = arith.constant 0 : index
    %c0_4 = arith.constant 0 : index
    %c0_5 = arith.constant 0 : index
    %9 = vector.load %arg7[%c0_3, %c0_4, %c0_5] : memref<3x8x128xf32, #tpu.memory_space<vmem>>, vector<1x8x128xf32>
    %10 = vector.shape_cast %9 : vector<1x8x128xf32> to vector<8x128xf32>
    %11 = vector.extract_strided_slice %10 {offsets = [0, 0], sizes = [1, 32], strides = [1, 1]} : vector<8x128xf32> to vector<1x32xf32>
    %12 = vector.extract_strided_slice %10 {offsets = [1, 0], sizes = [1, 32], strides = [1, 1]} : vector<8x128xf32> to vector<1x32xf32>
    %13 = vector.extract_strided_slice %10 {offsets = [2, 0], sizes = [1, 32], strides = [1, 1]} : vector<8x128xf32> to vector<1x32xf32>
    %14 = vector.extract_strided_slice %10 {offsets = [3, 0], sizes = [1, 32], strides = [1, 1]} : vector<8x128xf32> to vector<1x32xf32>
    %15 = vector.extract_strided_slice %10 {offsets = [4, 0], sizes = [1, 32], strides = [1, 1]} : vector<8x128xf32> to vector<1x32xf32>
    %16 = vector.extract_strided_slice %10 {offsets = [5, 0], sizes = [1, 32], strides = [1, 1]} : vector<8x128xf32> to vector<1x32xf32>
    %17 = vector.extract_strided_slice %10 {offsets = [6, 0], sizes = [1, 128], strides = [1, 1]} : vector<8x128xf32> to vector<1x128xf32>
    %c0_6 = arith.constant 0 : index
    %c0_7 = arith.constant 0 : index
    %c0_8 = arith.constant 0 : index
    %c0_9 = arith.constant 0 : index
    %18 = vector.load %arg2[%c0_6, %c0_7, %c0_8, %c0_9] : memref<2x2x16x8xf32, #tpu.memory_space<vmem>>, vector<1x2x16x8xf32>
    %19 = vector.shape_cast %18 : vector<1x2x16x8xf32> to vector<2x16x8xf32>
    %20 = vector.extract_strided_slice %19 {offsets = [0, 0, 0], sizes = [1, 16, 8], strides = [1, 1, 1]} : vector<2x16x8xf32> to vector<1x16x8xf32>
    %21 = vector.shape_cast %20 : vector<1x16x8xf32> to vector<16x8xf32>
    %cst = arith.constant dense<0.000000e+00> : vector<64x8xf32>
    %22 = tpu.matmul %8, %21, %cst {dimension_numbers = #tpu.dot_dimension_numbers<[1], [0], [0], [1], [0, 0, 1, 1], [], []>} : vector<64x16xf32>, vector<16x8xf32>, vector<64x8xf32> -> vector<64x8xf32>
    %23 = vector.shape_cast %22 : vector<64x8xf32> to vector<8x8x8xf32>
    %24 = vector.extract_strided_slice %19 {offsets = [1, 0, 0], sizes = [1, 16, 8], strides = [1, 1, 1]} : vector<2x16x8xf32> to vector<1x16x8xf32>
    %25 = vector.shape_cast %24 : vector<1x16x8xf32> to vector<16x8xf32>
    %cst_10 = arith.constant dense<0.000000e+00> : vector<64x8xf32>
    %26 = tpu.matmul %8, %25, %cst_10 {dimension_numbers = #tpu.dot_dimension_numbers<[1], [0], [0], [1], [0, 0, 1, 1], [], []>} : vector<64x16xf32>, vector<16x8xf32>, vector<64x8xf32> -> vector<64x8xf32>
    %27 = vector.shape_cast %26 : vector<64x8xf32> to vector<8x8x8xf32>
    %cst_11 = arith.constant dense<0.000000e+00> : vector<8xf32>
    %28 = vector.multi_reduction <add>, %0, %cst_11 [1] : vector<8x32xf32> to vector<8xf32>
    %29 = vector.shape_cast %28 : vector<8xf32> to vector<8x1xf32>
    %cst_12 = arith.constant 3.200000e+01 : f32
    %30 = vector.broadcast %cst_12 : f32 to vector<8x1xf32>
    %31 = arith.divf %29, %30 : vector<8x1xf32>
    %32 = vector.broadcast %31 : vector<8x1xf32> to vector<8x32xf32>
    %33 = arith.subf %0, %32 : vector<8x32xf32>
    %34 = arith.mulf %33, %33 : vector<8x32xf32>
    %cst_13 = arith.constant dense<0.000000e+00> : vector<8xf32>
    %35 = vector.multi_reduction <add>, %34, %cst_13 [1] : vector<8x32xf32> to vector<8xf32>
    %36 = vector.shape_cast %35 : vector<8xf32> to vector<8x1xf32>
    %cst_14 = arith.constant 3.200000e+01 : f32
    %37 = vector.broadcast %cst_14 : f32 to vector<8x1xf32>
    %38 = arith.divf %36, %37 : vector<8x1xf32>
    %39 = vector.broadcast %31 : vector<8x1xf32> to vector<8x32xf32>
    %40 = arith.subf %0, %39 : vector<8x32xf32>
    %41 = vector.broadcast %11 : vector<1x32xf32> to vector<8x32xf32>
    %42 = arith.mulf %41, %40 : vector<8x32xf32>
    %cst_15 = arith.constant 9.99999974E-6 : f32
    %43 = vector.broadcast %cst_15 : f32 to vector<8x1xf32>
    %44 = arith.addf %38, %43 : vector<8x1xf32>
    %45 = math.rsqrt %44 : vector<8x1xf32>
    %46 = vector.broadcast %45 : vector<8x1xf32> to vector<8x32xf32>
    %47 = arith.mulf %42, %46 : vector<8x32xf32>
    %48 = vector.broadcast %12 : vector<1x32xf32> to vector<8x32xf32>
    %49 = arith.addf %47, %48 : vector<8x32xf32>
    %c0_16 = arith.constant 0 : index
    %c0_17 = arith.constant 0 : index
    %c0_18 = arith.constant 0 : index
    %c0_19 = arith.constant 0 : index
    %50 = vector.load %arg3[%c0_16, %c0_17, %c0_18, %c0_19] : memref<2x16x32x8xf32, #tpu.memory_space<vmem>>, vector<1x16x32x8xf32>
    %51 = vector.shape_cast %50 : vector<1x16x32x8xf32> to vector<16x32x8xf32>
    %52 = vector.shape_cast %49 : vector<8x32xf32> to vector<1x8x32xf32>
    %53 = vector.shape_cast %52 : vector<1x8x32xf32> to vector<1x8x32xf32>
    %54 = vector.broadcast %53 : vector<1x8x32xf32> to vector<12x8x32xf32>
    %55 = vector.extract_strided_slice %51 {offsets = [0, 0, 0], sizes = [12, 32, 8], strides = [1, 1, 1]} : vector<16x32x8xf32> to vector<12x32x8xf32>
    %cst_20 = arith.constant dense<0.000000e+00> : vector<12x8x8xf32>
    %56 = tpu.matmul %54, %55, %cst_20 {dimension_numbers = #tpu.dot_dimension_numbers<[2], [1], [1], [2], [0, 0, 0, 1, 1, 2], [0], [0]>} : vector<12x8x32xf32>, vector<12x32x8xf32>, vector<12x8x8xf32> -> vector<12x8x8xf32>
    %c0_21 = arith.constant 0 : index
    %c0_22 = arith.constant 0 : index
    %c0_23 = arith.constant 0 : index
    %c0_24 = arith.constant 0 : index
    %57 = vector.load %arg4[%c0_21, %c0_22, %c0_23, %c0_24] : memref<2x12x1x8xf32, #tpu.memory_space<vmem>>, vector<1x12x1x8xf32>
    %58 = vector.shape_cast %57 : vector<1x12x1x8xf32> to vector<12x1x8xf32>
    %59 = vector.broadcast %58 : vector<12x1x8xf32> to vector<12x8x8xf32>
    %60 = arith.addf %56, %59 : vector<12x8x8xf32>
    %61 = vector.extract_strided_slice %60 {offsets = [0, 0, 0], sizes = [4, 8, 8], strides = [1, 1, 1]} : vector<12x8x8xf32> to vector<4x8x8xf32>
    %62 = vector.extract_strided_slice %60 {offsets = [4, 0, 0], sizes = [4, 8, 8], strides = [1, 1, 1]} : vector<12x8x8xf32> to vector<4x8x8xf32>
    %63 = vector.extract_strided_slice %60 {offsets = [8, 0, 0], sizes = [4, 8, 8], strides = [1, 1, 1]} : vector<12x8x8xf32> to vector<4x8x8xf32>
    %cst_25 = arith.constant dense<0.000000e+00> : vector<4x8x8xf32>
    %64 = tpu.matmul %61, %62, %cst_25 {dimension_numbers = #tpu.dot_dimension_numbers<[2], [2], [1], [1], [0, 0, 0, 1, 1, 1], [0], [0]>} : vector<4x8x8xf32>, vector<4x8x8xf32>, vector<4x8x8xf32> -> vector<4x8x8xf32>
    %65 = vector.shape_cast %61 : vector<4x8x8xf32> to vector<4x8x1x8xf32>
    %66 = vector.shape_cast %23 : vector<8x8x8xf32> to vector<1x8x8x8xf32>
    %67 = vector.broadcast %65 : vector<4x8x1x8xf32> to vector<4x8x8x8xf32>
    %68 = vector.broadcast %66 : vector<1x8x8x8xf32> to vector<4x8x8x8xf32>
    %69 = arith.mulf %67, %68 : vector<4x8x8x8xf32>
    %cst_26 = arith.constant dense<0.000000e+00> : vector<4x8x8xf32>
    %70 = vector.multi_reduction <add>, %69, %cst_26 [3] : vector<4x8x8x8xf32> to vector<4x8x8xf32>
    %71 = arith.addf %64, %70 : vector<4x8x8xf32>
    %cst_27 = arith.constant 0.353553385 : f32
    %72 = vector.broadcast %cst_27 : f32 to vector<4x8x8xf32>
    %73 = arith.mulf %71, %72 : vector<4x8x8xf32>
    %cst_28 = arith.constant dense<0xFF800000> : vector<4x8xf32>
    %74 = vector.multi_reduction <maximumf>, %73, %cst_28 [2] : vector<4x8x8xf32> to vector<4x8xf32>
    %75 = vector.shape_cast %74 : vector<4x8xf32> to vector<4x8x1xf32>
    %76 = vector.broadcast %75 : vector<4x8x1xf32> to vector<4x8x8xf32>
    %77 = arith.subf %73, %76 : vector<4x8x8xf32>
    %78 = math.exp %77 : vector<4x8x8xf32>
    %cst_29 = arith.constant dense<0.000000e+00> : vector<4x8xf32>
    %79 = vector.multi_reduction <add>, %78, %cst_29 [2] : vector<4x8x8xf32> to vector<4x8xf32>
    %80 = vector.shape_cast %79 : vector<4x8xf32> to vector<4x8x1xf32>
    %81 = tpu.reciprocal %80 {approx = true} : vector<4x8x1xf32> -> vector<4x8x1xf32>
    %82 = vector.broadcast %81 : vector<4x8x1xf32> to vector<4x8x8xf32>
    %83 = arith.mulf %78, %82 : vector<4x8x8xf32>
    %cst_30 = arith.constant dense<0.000000e+00> : vector<4x8x8xf32>
    %84 = tpu.matmul %83, %63, %cst_30 {dimension_numbers = #tpu.dot_dimension_numbers<[2], [1], [1], [2], [0, 0, 0, 1, 1, 2], [0], [0]>} : vector<4x8x8xf32>, vector<4x8x8xf32>, vector<4x8x8xf32> -> vector<4x8x8xf32>
    %85 = vector.shape_cast %83 : vector<4x8x8xf32> to vector<4x8x8x1xf32>
    %86 = vector.shape_cast %27 : vector<8x8x8xf32> to vector<1x8x8x8xf32>
    %87 = vector.broadcast %85 : vector<4x8x8x1xf32> to vector<4x8x8x8xf32>
    %88 = vector.broadcast %86 : vector<1x8x8x8xf32> to vector<4x8x8x8xf32>
    %89 = arith.mulf %87, %88 : vector<4x8x8x8xf32>
    %cst_31 = arith.constant dense<0.000000e+00> : vector<4x8x8xf32>
    %90 = vector.multi_reduction <add>, %89, %cst_31 [2] : vector<4x8x8x8xf32> to vector<4x8x8xf32>
    %91 = arith.addf %84, %90 : vector<4x8x8xf32>
    %92 = vector.extract_strided_slice %51 {offsets = [12, 0, 0], sizes = [4, 32, 8], strides = [1, 1, 1]} : vector<16x32x8xf32> to vector<4x32x8xf32>
    %cst_32 = arith.constant dense<0.000000e+00> : vector<4x8x32xf32>
    %93 = tpu.matmul %91, %92, %cst_32 {dimension_numbers = #tpu.dot_dimension_numbers<[2], [2], [1], [1], [0, 0, 0, 1, 1, 1], [0], [0]>} : vector<4x8x8xf32>, vector<4x32x8xf32>, vector<4x8x32xf32> -> vector<4x8x32xf32>
    %cst_33 = arith.constant dense<0.000000e+00> : vector<8x32xf32>
    %94 = vector.multi_reduction <add>, %93, %cst_33 [0] : vector<4x8x32xf32> to vector<8x32xf32>
    %95 = arith.addf %0, %94 : vector<8x32xf32>
    %96 = vector.broadcast %13 : vector<1x32xf32> to vector<8x32xf32>
    %97 = arith.addf %95, %96 : vector<8x32xf32>
    %cst_34 = arith.constant dense<0.000000e+00> : vector<8xf32>
    %98 = vector.multi_reduction <add>, %97, %cst_34 [1] : vector<8x32xf32> to vector<8xf32>
    %99 = vector.shape_cast %98 : vector<8xf32> to vector<8x1xf32>
    %cst_35 = arith.constant 3.200000e+01 : f32
    %100 = vector.broadcast %cst_35 : f32 to vector<8x1xf32>
    %101 = arith.divf %99, %100 : vector<8x1xf32>
    %102 = vector.broadcast %101 : vector<8x1xf32> to vector<8x32xf32>
    %103 = arith.subf %97, %102 : vector<8x32xf32>
    %104 = arith.mulf %103, %103 : vector<8x32xf32>
    %cst_36 = arith.constant dense<0.000000e+00> : vector<8xf32>
    %105 = vector.multi_reduction <add>, %104, %cst_36 [1] : vector<8x32xf32> to vector<8xf32>
    %106 = vector.shape_cast %105 : vector<8xf32> to vector<8x1xf32>
    %cst_37 = arith.constant 3.200000e+01 : f32
    %107 = vector.broadcast %cst_37 : f32 to vector<8x1xf32>
    %108 = arith.divf %106, %107 : vector<8x1xf32>
    %109 = vector.broadcast %101 : vector<8x1xf32> to vector<8x32xf32>
    %110 = arith.subf %97, %109 : vector<8x32xf32>
    %111 = vector.broadcast %14 : vector<1x32xf32> to vector<8x32xf32>
    %112 = arith.mulf %111, %110 : vector<8x32xf32>
    %cst_38 = arith.constant 9.99999974E-6 : f32
    %113 = vector.broadcast %cst_38 : f32 to vector<8x1xf32>
    %114 = arith.addf %108, %113 : vector<8x1xf32>
    %115 = math.rsqrt %114 : vector<8x1xf32>
    %116 = vector.broadcast %115 : vector<8x1xf32> to vector<8x32xf32>
    %117 = arith.mulf %112, %116 : vector<8x32xf32>
    %118 = vector.broadcast %15 : vector<1x32xf32> to vector<8x32xf32>
    %119 = arith.addf %117, %118 : vector<8x32xf32>
    %c0_39 = arith.constant 0 : index
    %c0_40 = arith.constant 0 : index
    %c0_41 = arith.constant 0 : index
    %120 = vector.load %arg5[%c0_39, %c0_40, %c0_41] : memref<2x32x128xf32, #tpu.memory_space<vmem>>, vector<1x32x128xf32>
    %121 = vector.shape_cast %120 : vector<1x32x128xf32> to vector<32x128xf32>
    %cst_42 = arith.constant dense<0.000000e+00> : vector<8x128xf32>
    %122 = tpu.matmul %119, %121, %cst_42 {dimension_numbers = #tpu.dot_dimension_numbers<[1], [0], [0], [1], [0, 0, 1, 1], [], []>} : vector<8x32xf32>, vector<32x128xf32>, vector<8x128xf32> -> vector<8x128xf32>
    %123 = vector.broadcast %17 : vector<1x128xf32> to vector<8x128xf32>
    %124 = arith.addf %122, %123 : vector<8x128xf32>
    %cst_43 = arith.constant 0.000000e+00 : f32
    %125 = vector.broadcast %cst_43 : f32 to vector<8x128xf32>
    %126 = arith.maximumf %124, %125 : vector<8x128xf32>
    %c0_44 = arith.constant 0 : index
    %c0_45 = arith.constant 0 : index
    %c0_46 = arith.constant 0 : index
    %127 = vector.load %arg6[%c0_44, %c0_45, %c0_46] : memref<2x128x32xf32, #tpu.memory_space<vmem>>, vector<1x128x32xf32>
    %128 = vector.shape_cast %127 : vector<1x128x32xf32> to vector<128x32xf32>
    %cst_47 = arith.constant dense<0.000000e+00> : vector<8x32xf32>
    %129 = tpu.matmul %126, %128, %cst_47 {dimension_numbers = #tpu.dot_dimension_numbers<[1], [0], [0], [1], [0, 0, 1, 1], [], []>} : vector<8x128xf32>, vector<128x32xf32>, vector<8x32xf32> -> vector<8x32xf32>
    %130 = arith.addf %97, %129 : vector<8x32xf32>
    %131 = vector.broadcast %16 : vector<1x32xf32> to vector<8x32xf32>
    %132 = arith.addf %130, %131 : vector<8x32xf32>
    %c1 = arith.constant 1 : index
    %c0_48 = arith.constant 0 : index
    %c0_49 = arith.constant 0 : index
    %133 = vector.load %arg7[%c1, %c0_48, %c0_49] : memref<3x8x128xf32, #tpu.memory_space<vmem>>, vector<1x8x128xf32>
    %134 = vector.shape_cast %133 : vector<1x8x128xf32> to vector<8x128xf32>
    %135 = vector.extract_strided_slice %134 {offsets = [0, 0], sizes = [1, 32], strides = [1, 1]} : vector<8x128xf32> to vector<1x32xf32>
    %136 = vector.extract_strided_slice %134 {offsets = [1, 0], sizes = [1, 32], strides = [1, 1]} : vector<8x128xf32> to vector<1x32xf32>
    %137 = vector.extract_strided_slice %134 {offsets = [2, 0], sizes = [1, 32], strides = [1, 1]} : vector<8x128xf32> to vector<1x32xf32>
    %138 = vector.extract_strided_slice %134 {offsets = [3, 0], sizes = [1, 32], strides = [1, 1]} : vector<8x128xf32> to vector<1x32xf32>
    %139 = vector.extract_strided_slice %134 {offsets = [4, 0], sizes = [1, 32], strides = [1, 1]} : vector<8x128xf32> to vector<1x32xf32>
    %140 = vector.extract_strided_slice %134 {offsets = [5, 0], sizes = [1, 32], strides = [1, 1]} : vector<8x128xf32> to vector<1x32xf32>
    %141 = vector.extract_strided_slice %134 {offsets = [6, 0], sizes = [1, 128], strides = [1, 1]} : vector<8x128xf32> to vector<1x128xf32>
    %c1_50 = arith.constant 1 : index
    %c0_51 = arith.constant 0 : index
    %c0_52 = arith.constant 0 : index
    %c0_53 = arith.constant 0 : index
    %142 = vector.load %arg2[%c1_50, %c0_51, %c0_52, %c0_53] : memref<2x2x16x8xf32, #tpu.memory_space<vmem>>, vector<1x2x16x8xf32>
    %143 = vector.shape_cast %142 : vector<1x2x16x8xf32> to vector<2x16x8xf32>
    %144 = vector.extract_strided_slice %143 {offsets = [0, 0, 0], sizes = [1, 16, 8], strides = [1, 1, 1]} : vector<2x16x8xf32> to vector<1x16x8xf32>
    %145 = vector.shape_cast %144 : vector<1x16x8xf32> to vector<16x8xf32>
    %cst_54 = arith.constant dense<0.000000e+00> : vector<64x8xf32>
    %146 = tpu.matmul %8, %145, %cst_54 {dimension_numbers = #tpu.dot_dimension_numbers<[1], [0], [0], [1], [0, 0, 1, 1], [], []>} : vector<64x16xf32>, vector<16x8xf32>, vector<64x8xf32> -> vector<64x8xf32>
    %147 = vector.shape_cast %146 : vector<64x8xf32> to vector<8x8x8xf32>
    %148 = vector.extract_strided_slice %143 {offsets = [1, 0, 0], sizes = [1, 16, 8], strides = [1, 1, 1]} : vector<2x16x8xf32> to vector<1x16x8xf32>
    %149 = vector.shape_cast %148 : vector<1x16x8xf32> to vector<16x8xf32>
    %cst_55 = arith.constant dense<0.000000e+00> : vector<64x8xf32>
    %150 = tpu.matmul %8, %149, %cst_55 {dimension_numbers = #tpu.dot_dimension_numbers<[1], [0], [0], [1], [0, 0, 1, 1], [], []>} : vector<64x16xf32>, vector<16x8xf32>, vector<64x8xf32> -> vector<64x8xf32>
    %151 = vector.shape_cast %150 : vector<64x8xf32> to vector<8x8x8xf32>
    %cst_56 = arith.constant dense<0.000000e+00> : vector<8xf32>
    %152 = vector.multi_reduction <add>, %132, %cst_56 [1] : vector<8x32xf32> to vector<8xf32>
    %153 = vector.shape_cast %152 : vector<8xf32> to vector<8x1xf32>
    %cst_57 = arith.constant 3.200000e+01 : f32
    %154 = vector.broadcast %cst_57 : f32 to vector<8x1xf32>
    %155 = arith.divf %153, %154 : vector<8x1xf32>
    %156 = vector.broadcast %155 : vector<8x1xf32> to vector<8x32xf32>
    %157 = arith.subf %132, %156 : vector<8x32xf32>
    %158 = arith.mulf %157, %157 : vector<8x32xf32>
    %cst_58 = arith.constant dense<0.000000e+00> : vector<8xf32>
    %159 = vector.multi_reduction <add>, %158, %cst_58 [1] : vector<8x32xf32> to vector<8xf32>
    %160 = vector.shape_cast %159 : vector<8xf32> to vector<8x1xf32>
    %cst_59 = arith.constant 3.200000e+01 : f32
    %161 = vector.broadcast %cst_59 : f32 to vector<8x1xf32>
    %162 = arith.divf %160, %161 : vector<8x1xf32>
    %163 = vector.broadcast %155 : vector<8x1xf32> to vector<8x32xf32>
    %164 = arith.subf %132, %163 : vector<8x32xf32>
    %165 = vector.broadcast %135 : vector<1x32xf32> to vector<8x32xf32>
    %166 = arith.mulf %165, %164 : vector<8x32xf32>
    %cst_60 = arith.constant 9.99999974E-6 : f32
    %167 = vector.broadcast %cst_60 : f32 to vector<8x1xf32>
    %168 = arith.addf %162, %167 : vector<8x1xf32>
    %169 = math.rsqrt %168 : vector<8x1xf32>
    %170 = vector.broadcast %169 : vector<8x1xf32> to vector<8x32xf32>
    %171 = arith.mulf %166, %170 : vector<8x32xf32>
    %172 = vector.broadcast %136 : vector<1x32xf32> to vector<8x32xf32>
    %173 = arith.addf %171, %172 : vector<8x32xf32>
    %c1_61 = arith.constant 1 : index
    %c0_62 = arith.constant 0 : index
    %c0_63 = arith.constant 0 : index
    %c0_64 = arith.constant 0 : index
    %174 = vector.load %arg3[%c1_61, %c0_62, %c0_63, %c0_64] : memref<2x16x32x8xf32, #tpu.memory_space<vmem>>, vector<1x16x32x8xf32>
    %175 = vector.shape_cast %174 : vector<1x16x32x8xf32> to vector<16x32x8xf32>
    %176 = vector.shape_cast %173 : vector<8x32xf32> to vector<1x8x32xf32>
    %177 = vector.shape_cast %176 : vector<1x8x32xf32> to vector<1x8x32xf32>
    %178 = vector.broadcast %177 : vector<1x8x32xf32> to vector<12x8x32xf32>
    %179 = vector.extract_strided_slice %175 {offsets = [0, 0, 0], sizes = [12, 32, 8], strides = [1, 1, 1]} : vector<16x32x8xf32> to vector<12x32x8xf32>
    %cst_65 = arith.constant dense<0.000000e+00> : vector<12x8x8xf32>
    %180 = tpu.matmul %178, %179, %cst_65 {dimension_numbers = #tpu.dot_dimension_numbers<[2], [1], [1], [2], [0, 0, 0, 1, 1, 2], [0], [0]>} : vector<12x8x32xf32>, vector<12x32x8xf32>, vector<12x8x8xf32> -> vector<12x8x8xf32>
    %c1_66 = arith.constant 1 : index
    %c0_67 = arith.constant 0 : index
    %c0_68 = arith.constant 0 : index
    %c0_69 = arith.constant 0 : index
    %181 = vector.load %arg4[%c1_66, %c0_67, %c0_68, %c0_69] : memref<2x12x1x8xf32, #tpu.memory_space<vmem>>, vector<1x12x1x8xf32>
    %182 = vector.shape_cast %181 : vector<1x12x1x8xf32> to vector<12x1x8xf32>
    %183 = vector.broadcast %182 : vector<12x1x8xf32> to vector<12x8x8xf32>
    %184 = arith.addf %180, %183 : vector<12x8x8xf32>
    %185 = vector.extract_strided_slice %184 {offsets = [0, 0, 0], sizes = [4, 8, 8], strides = [1, 1, 1]} : vector<12x8x8xf32> to vector<4x8x8xf32>
    %186 = vector.extract_strided_slice %184 {offsets = [4, 0, 0], sizes = [4, 8, 8], strides = [1, 1, 1]} : vector<12x8x8xf32> to vector<4x8x8xf32>
    %187 = vector.extract_strided_slice %184 {offsets = [8, 0, 0], sizes = [4, 8, 8], strides = [1, 1, 1]} : vector<12x8x8xf32> to vector<4x8x8xf32>
    %cst_70 = arith.constant dense<0.000000e+00> : vector<4x8x8xf32>
    %188 = tpu.matmul %185, %186, %cst_70 {dimension_numbers = #tpu.dot_dimension_numbers<[2], [2], [1], [1], [0, 0, 0, 1, 1, 1], [0], [0]>} : vector<4x8x8xf32>, vector<4x8x8xf32>, vector<4x8x8xf32> -> vector<4x8x8xf32>
    %189 = vector.shape_cast %185 : vector<4x8x8xf32> to vector<4x8x1x8xf32>
    %190 = vector.shape_cast %147 : vector<8x8x8xf32> to vector<1x8x8x8xf32>
    %191 = vector.broadcast %189 : vector<4x8x1x8xf32> to vector<4x8x8x8xf32>
    %192 = vector.broadcast %190 : vector<1x8x8x8xf32> to vector<4x8x8x8xf32>
    %193 = arith.mulf %191, %192 : vector<4x8x8x8xf32>
    %cst_71 = arith.constant dense<0.000000e+00> : vector<4x8x8xf32>
    %194 = vector.multi_reduction <add>, %193, %cst_71 [3] : vector<4x8x8x8xf32> to vector<4x8x8xf32>
    %195 = arith.addf %188, %194 : vector<4x8x8xf32>
    %cst_72 = arith.constant 0.353553385 : f32
    %196 = vector.broadcast %cst_72 : f32 to vector<4x8x8xf32>
    %197 = arith.mulf %195, %196 : vector<4x8x8xf32>
    %cst_73 = arith.constant dense<0xFF800000> : vector<4x8xf32>
    %198 = vector.multi_reduction <maximumf>, %197, %cst_73 [2] : vector<4x8x8xf32> to vector<4x8xf32>
    %199 = vector.shape_cast %198 : vector<4x8xf32> to vector<4x8x1xf32>
    %200 = vector.broadcast %199 : vector<4x8x1xf32> to vector<4x8x8xf32>
    %201 = arith.subf %197, %200 : vector<4x8x8xf32>
    %202 = math.exp %201 : vector<4x8x8xf32>
    %cst_74 = arith.constant dense<0.000000e+00> : vector<4x8xf32>
    %203 = vector.multi_reduction <add>, %202, %cst_74 [2] : vector<4x8x8xf32> to vector<4x8xf32>
    %204 = vector.shape_cast %203 : vector<4x8xf32> to vector<4x8x1xf32>
    %205 = tpu.reciprocal %204 {approx = true} : vector<4x8x1xf32> -> vector<4x8x1xf32>
    %206 = vector.broadcast %205 : vector<4x8x1xf32> to vector<4x8x8xf32>
    %207 = arith.mulf %202, %206 : vector<4x8x8xf32>
    %cst_75 = arith.constant dense<0.000000e+00> : vector<4x8x8xf32>
    %208 = tpu.matmul %207, %187, %cst_75 {dimension_numbers = #tpu.dot_dimension_numbers<[2], [1], [1], [2], [0, 0, 0, 1, 1, 2], [0], [0]>} : vector<4x8x8xf32>, vector<4x8x8xf32>, vector<4x8x8xf32> -> vector<4x8x8xf32>
    %209 = vector.shape_cast %207 : vector<4x8x8xf32> to vector<4x8x8x1xf32>
    %210 = vector.shape_cast %151 : vector<8x8x8xf32> to vector<1x8x8x8xf32>
    %211 = vector.broadcast %209 : vector<4x8x8x1xf32> to vector<4x8x8x8xf32>
    %212 = vector.broadcast %210 : vector<1x8x8x8xf32> to vector<4x8x8x8xf32>
    %213 = arith.mulf %211, %212 : vector<4x8x8x8xf32>
    %cst_76 = arith.constant dense<0.000000e+00> : vector<4x8x8xf32>
    %214 = vector.multi_reduction <add>, %213, %cst_76 [2] : vector<4x8x8x8xf32> to vector<4x8x8xf32>
    %215 = arith.addf %208, %214 : vector<4x8x8xf32>
    %216 = vector.extract_strided_slice %175 {offsets = [12, 0, 0], sizes = [4, 32, 8], strides = [1, 1, 1]} : vector<16x32x8xf32> to vector<4x32x8xf32>
    %cst_77 = arith.constant dense<0.000000e+00> : vector<4x8x32xf32>
    %217 = tpu.matmul %215, %216, %cst_77 {dimension_numbers = #tpu.dot_dimension_numbers<[2], [2], [1], [1], [0, 0, 0, 1, 1, 1], [0], [0]>} : vector<4x8x8xf32>, vector<4x32x8xf32>, vector<4x8x32xf32> -> vector<4x8x32xf32>
    %cst_78 = arith.constant dense<0.000000e+00> : vector<8x32xf32>
    %218 = vector.multi_reduction <add>, %217, %cst_78 [0] : vector<4x8x32xf32> to vector<8x32xf32>
    %219 = arith.addf %132, %218 : vector<8x32xf32>
    %220 = vector.broadcast %137 : vector<1x32xf32> to vector<8x32xf32>
    %221 = arith.addf %219, %220 : vector<8x32xf32>
    %cst_79 = arith.constant dense<0.000000e+00> : vector<8xf32>
    %222 = vector.multi_reduction <add>, %221, %cst_79 [1] : vector<8x32xf32> to vector<8xf32>
    %223 = vector.shape_cast %222 : vector<8xf32> to vector<8x1xf32>
    %cst_80 = arith.constant 3.200000e+01 : f32
    %224 = vector.broadcast %cst_80 : f32 to vector<8x1xf32>
    %225 = arith.divf %223, %224 : vector<8x1xf32>
    %226 = vector.broadcast %225 : vector<8x1xf32> to vector<8x32xf32>
    %227 = arith.subf %221, %226 : vector<8x32xf32>
    %228 = arith.mulf %227, %227 : vector<8x32xf32>
    %cst_81 = arith.constant dense<0.000000e+00> : vector<8xf32>
    %229 = vector.multi_reduction <add>, %228, %cst_81 [1] : vector<8x32xf32> to vector<8xf32>
    %230 = vector.shape_cast %229 : vector<8xf32> to vector<8x1xf32>
    %cst_82 = arith.constant 3.200000e+01 : f32
    %231 = vector.broadcast %cst_82 : f32 to vector<8x1xf32>
    %232 = arith.divf %230, %231 : vector<8x1xf32>
    %233 = vector.broadcast %225 : vector<8x1xf32> to vector<8x32xf32>
    %234 = arith.subf %221, %233 : vector<8x32xf32>
    %235 = vector.broadcast %138 : vector<1x32xf32> to vector<8x32xf32>
    %236 = arith.mulf %235, %234 : vector<8x32xf32>
    %cst_83 = arith.constant 9.99999974E-6 : f32
    %237 = vector.broadcast %cst_83 : f32 to vector<8x1xf32>
    %238 = arith.addf %232, %237 : vector<8x1xf32>
    %239 = math.rsqrt %238 : vector<8x1xf32>
    %240 = vector.broadcast %239 : vector<8x1xf32> to vector<8x32xf32>
    %241 = arith.mulf %236, %240 : vector<8x32xf32>
    %242 = vector.broadcast %139 : vector<1x32xf32> to vector<8x32xf32>
    %243 = arith.addf %241, %242 : vector<8x32xf32>
    %c1_84 = arith.constant 1 : index
    %c0_85 = arith.constant 0 : index
    %c0_86 = arith.constant 0 : index
    %244 = vector.load %arg5[%c1_84, %c0_85, %c0_86] : memref<2x32x128xf32, #tpu.memory_space<vmem>>, vector<1x32x128xf32>
    %245 = vector.shape_cast %244 : vector<1x32x128xf32> to vector<32x128xf32>
    %cst_87 = arith.constant dense<0.000000e+00> : vector<8x128xf32>
    %246 = tpu.matmul %243, %245, %cst_87 {dimension_numbers = #tpu.dot_dimension_numbers<[1], [0], [0], [1], [0, 0, 1, 1], [], []>} : vector<8x32xf32>, vector<32x128xf32>, vector<8x128xf32> -> vector<8x128xf32>
    %247 = vector.broadcast %141 : vector<1x128xf32> to vector<8x128xf32>
    %248 = arith.addf %246, %247 : vector<8x128xf32>
    %cst_88 = arith.constant 0.000000e+00 : f32
    %249 = vector.broadcast %cst_88 : f32 to vector<8x128xf32>
    %250 = arith.maximumf %248, %249 : vector<8x128xf32>
    %c1_89 = arith.constant 1 : index
    %c0_90 = arith.constant 0 : index
    %c0_91 = arith.constant 0 : index
    %251 = vector.load %arg6[%c1_89, %c0_90, %c0_91] : memref<2x128x32xf32, #tpu.memory_space<vmem>>, vector<1x128x32xf32>
    %252 = vector.shape_cast %251 : vector<1x128x32xf32> to vector<128x32xf32>
    %cst_92 = arith.constant dense<0.000000e+00> : vector<8x32xf32>
    %253 = tpu.matmul %250, %252, %cst_92 {dimension_numbers = #tpu.dot_dimension_numbers<[1], [0], [0], [1], [0, 0, 1, 1], [], []>} : vector<8x128xf32>, vector<128x32xf32>, vector<8x32xf32> -> vector<8x32xf32>
    %254 = arith.addf %221, %253 : vector<8x32xf32>
    %255 = vector.broadcast %140 : vector<1x32xf32> to vector<8x32xf32>
    %256 = arith.addf %254, %255 : vector<8x32xf32>
    %c2 = arith.constant 2 : index
    %c0_93 = arith.constant 0 : index
    %c0_94 = arith.constant 0 : index
    %257 = vector.load %arg7[%c2, %c0_93, %c0_94] : memref<3x8x128xf32, #tpu.memory_space<vmem>>, vector<1x8x128xf32>
    %258 = vector.shape_cast %257 : vector<1x8x128xf32> to vector<8x128xf32>
    %259 = vector.extract_strided_slice %258 {offsets = [0, 0], sizes = [1, 32], strides = [1, 1]} : vector<8x128xf32> to vector<1x32xf32>
    %260 = vector.extract_strided_slice %258 {offsets = [1, 0], sizes = [1, 32], strides = [1, 1]} : vector<8x128xf32> to vector<1x32xf32>
    %cst_95 = arith.constant dense<0.000000e+00> : vector<8xf32>
    %261 = vector.multi_reduction <add>, %256, %cst_95 [1] : vector<8x32xf32> to vector<8xf32>
    %262 = vector.shape_cast %261 : vector<8xf32> to vector<8x1xf32>
    %cst_96 = arith.constant 3.200000e+01 : f32
    %263 = vector.broadcast %cst_96 : f32 to vector<8x1xf32>
    %264 = arith.divf %262, %263 : vector<8x1xf32>
    %265 = vector.broadcast %264 : vector<8x1xf32> to vector<8x32xf32>
    %266 = arith.subf %256, %265 : vector<8x32xf32>
    %267 = arith.mulf %266, %266 : vector<8x32xf32>
    %cst_97 = arith.constant dense<0.000000e+00> : vector<8xf32>
    %268 = vector.multi_reduction <add>, %267, %cst_97 [1] : vector<8x32xf32> to vector<8xf32>
    %269 = vector.shape_cast %268 : vector<8xf32> to vector<8x1xf32>
    %cst_98 = arith.constant 3.200000e+01 : f32
    %270 = vector.broadcast %cst_98 : f32 to vector<8x1xf32>
    %271 = arith.divf %269, %270 : vector<8x1xf32>
    %272 = vector.broadcast %264 : vector<8x1xf32> to vector<8x32xf32>
    %273 = arith.subf %256, %272 : vector<8x32xf32>
    %274 = vector.broadcast %259 : vector<1x32xf32> to vector<8x32xf32>
    %275 = arith.mulf %274, %273 : vector<8x32xf32>
    %cst_99 = arith.constant 9.99999974E-6 : f32
    %276 = vector.broadcast %cst_99 : f32 to vector<8x1xf32>
    %277 = arith.addf %271, %276 : vector<8x1xf32>
    %278 = math.rsqrt %277 : vector<8x1xf32>
    %279 = vector.broadcast %278 : vector<8x1xf32> to vector<8x32xf32>
    %280 = arith.mulf %275, %279 : vector<8x32xf32>
    %281 = vector.broadcast %260 : vector<1x32xf32> to vector<8x32xf32>
    %282 = arith.addf %280, %281 : vector<8x32xf32>
    %c0_100 = arith.constant 0 : index
    %c0_101 = arith.constant 0 : index
    %283 = vector.load %arg8[%c0_100, %c0_101] : memref<8x32xf32, #tpu.memory_space<vmem>>, vector<8x32xf32>
    tpu.vector_store %arg8[%c0_100, %c0_101], %282 {strides = array<i32>} : memref<8x32xf32, #tpu.memory_space<vmem>>, vector<8x32xf32>,
    return
  }
}

</mosaic_0001>

<llo_original>
// kernel: rat_forward.1
$region0: #{rat_forward.1}
  #allocation0 [shape = 'u32[]', space=smem, size = 0x4, offset = 0x4, fixed_abs, tag = 'smem constant byte address 0x4 - core index']
  #allocation1 [shape = 'u32[144,128]{1,0:T(1,128)}', space=vmem, size = 0x12000, scoped, tag = 'internal scratch']
  %s0 = inlined_call_operand.vmem [shape: f32[8,32], index: 0, kind: input, shape index: {}]
  %s1 = inlined_call_operand.vmem [shape: s32[8,8], index: 1, kind: input, shape index: {}]
  %s2 = inlined_call_operand.vmem [shape: f32[2,2,16,8], index: 2, kind: input, shape index: {}]
  %s3 = inlined_call_operand.hbm [shape: f32[2,16,32,8], index: 3, kind: input, shape index: {}]
  %s4 = inlined_call_operand.vmem [shape: f32[2,12,1,8], index: 4, kind: input, shape index: {}]
  %s5 = inlined_call_operand.vmem [shape: f32[2,32,128], index: 5, kind: input, shape index: {}]
  %s6 = inlined_call_operand.hbm [shape: f32[2,128,32], index: 6, kind: input, shape index: {}]
  %s7 = inlined_call_operand.vmem [shape: f32[3,8,128], index: 7, kind: input, shape index: {}]
  %s8 = inlined_call_operand.vmem [shape: f32[8,32], index: 8, kind: output, shape index: {}]
  %s9 = sld [smem:[#allocation0]]
  $region50: #{rat_forward.1} parent=0
    _
  %s11 = ssub.s32 1, %s9
  %s12 = scalar_select 0, %s11, %s9
  $region1: #{rat_forward.1} parent=0
    #allocation2 [shape = 'u8[524288]{0}', space=vmem, size = 0x80000, scoped, tag = 'input window, operand 3, single buffered']
    #allocation3 [shape = 's32[1]{0}', space=sflag, size = 0x4, scoped, tag = 'scoped memory for rat_forward.1']
    #allocation4 [shape = 'u8[131072]{0}', space=vmem, size = 0x20000, scoped, tag = 'input window, operand 6, single buffered']
    #allocation5 [shape = 's32[1]{0}', space=sflag, size = 0x4, scoped, tag = 'scoped memory for rat_forward.1']
    %13 = vsyncpa [#allocation3], 0
    %14 = vsyncpa [#allocation5], 0
    // Predicated region
    $region2: #{rat_forward.1} parent=1 // pred_check
      _
    $region3: #{rat_forward.1} parent=1 // pred_check_branch
      %16 = sbr.rel (0) target = $region5
    $region4: #{rat_forward.1} parent=1 // pred_region
      _
    $region5: #{rat_forward.1} parent=1 // pred_fallthru
      _
    // Predicated region
    $region6: #{rat_forward.1} parent=1 // pred_check
      _
    $region7: #{rat_forward.1} parent=1 // pred_check_branch
      %18 = sbr.rel (0) target = $region9
    $region8: #{rat_forward.1} parent=1 // pred_region
      _
    $region9: #{rat_forward.1} parent=1 // pred_fallthru
      _
    // Predicated region
    $region10: #{rat_forward.1} parent=1 // pred_check
      _
    $region11: #{rat_forward.1} parent=1 // pred_check_branch
      %20 = sbr.rel (0) target = $region13
    $region12: #{rat_forward.1} parent=1 // pred_region
      _
    $region13: #{rat_forward.1} parent=1 // pred_fallthru
      _
    // Predicated region
    $region14: #{rat_forward.1} parent=1 // pred_check
      _
    $region15: #{rat_forward.1} parent=1 // pred_check_branch
      %22 = sbr.rel (0) target = $region17
    $region16: #{rat_forward.1} parent=1 // pred_region
      %s24 = ssub.s32 16384, 16384
      %25 = vsyncadd [#allocation3], %s24
      %s26 = sshll.u32 [#allocation2], 4
      %s27 = int_to_ptr.vmem [resolvable:$true] %s26
      %32 = dma.hbm_to_vmem [thread:$0]  %s3, 16384, %s27, [#allocation3], 128, 128, 8
    $region17: #{rat_forward.1} parent=1 // pred_fallthru
      _
    // Predicated region
    $region18: #{rat_forward.1} parent=1 // pred_check
      _
    $region19: #{rat_forward.1} parent=1 // pred_check_branch
      %34 = sbr.rel (0) target = $region21
    $region20: #{rat_forward.1} parent=1 // pred_region
      _
    $region21: #{rat_forward.1} parent=1 // pred_fallthru
      _
    // Predicated region
    $region22: #{rat_forward.1} parent=1 // pred_check
      _
    $region23: #{rat_forward.1} parent=1 // pred_check_branch
      %36 = sbr.rel (0) target = $region25
    $region24: #{rat_forward.1} parent=1 // pred_region
      _
    $region25: #{rat_forward.1} parent=1 // pred_fallthru
      _
    // Predicated region
    $region26: #{rat_forward.1} parent=1 // pred_check
      _
    $region27: #{rat_forward.1} parent=1 // pred_check_branch
      %38 = sbr.rel (0) target = $region29
    $region28: #{rat_forward.1} parent=1 // pred_region
      %s40 = ssub.s32 4096, 4096
      %41 = vsyncadd [#allocation5], %s40
      %s42 = sshll.u32 [#allocation4], 4
      %s43 = int_to_ptr.vmem [resolvable:$true] %s42
      %48 = dma.hbm_to_vmem [thread:$0]  %s6, 4096, %s43, [#allocation5], 128, 128, 8
    $region29: #{rat_forward.1} parent=1 // pred_fallthru
      _
    // Predicated region
    $region30: #{rat_forward.1} parent=1 // pred_check
      _
    $region31: #{rat_forward.1} parent=1 // pred_check_branch
      %50 = sbr.rel (0) target = $region33
    $region32: #{rat_forward.1} parent=1 // pred_region
      _
    $region33: #{rat_forward.1} parent=1 // pred_fallthru
      _
    // Predicated region
    $region34: #{rat_forward.1} parent=1 // pred_check
      _
    $region35: #{rat_forward.1} parent=1 // pred_check_branch
      %52 = sbr.rel (0) target = $region37
    $region36: #{rat_forward.1} parent=1 // pred_region
      %53 = dma.done [#allocation3], 16384
    $region37: #{rat_forward.1} parent=1 // pred_fallthru
      _
    // Predicated region
    $region38: #{rat_forward.1} parent=1 // pred_check
      _
    $region39: #{rat_forward.1} parent=1 // pred_check_branch
      %55 = sbr.rel (0) target = $region41
    $region40: #{rat_forward.1} parent=1 // pred_region
      %56 = dma.done [#allocation5], 4096
    $region41: #{rat_forward.1} parent=1 // pred_fallthru
      _
    %v57 = vld [vmem:[%s0] sm:$0xff]
    %v58 = vld [vmem:[%s1] sm:$0xff]
    %v59 = vlaneseq
    %v60 = vand.u32 %v59, 127
    %v61 = vlaneseq
    %v62 = vshrl.u32 %v61, 7
    %v63 = vsub.s32 0, %v62
    %v64 = vrot.slane %v58, %v63
    %66 = vbcast.lane.b32.xlu0 %v64, 256
    %v67 = vpop.permute.xlu0 %66
    %v68 = vlaneseq
    %v69 = vshrl.u32 %v68, 7
    %v70 = vsub.s32 1, %v69
    %v71 = vrot.slane %v58, %v70
    %73 = vbcast.lane.b32.xlu0 %v71, 256
    %v74 = vpop.permute.xlu0 %73
    %v75 = vlaneseq
    %v76 = vshrl.u32 %v75, 7
    %v77 = vsub.s32 2, %v76
    %v78 = vrot.slane %v58, %v77
    %80 = vbcast.lane.b32.xlu0 %v78, 256
    %v81 = vpop.permute.xlu0 %80
    %v82 = vlaneseq
    %v83 = vshrl.u32 %v82, 7
    %v84 = vsub.s32 3, %v83
    %v85 = vrot.slane %v58, %v84
    %87 = vbcast.lane.b32.xlu0 %v85, 256
    %v88 = vpop.permute.xlu0 %87
    %v89 = vlaneseq
    %v90 = vshrl.u32 %v89, 7
    %v91 = vsub.s32 4, %v90
    %v92 = vrot.slane %v58, %v91
    %94 = vbcast.lane.b32.xlu0 %v92, 256
    %v95 = vpop.permute.xlu0 %94
    %v96 = vlaneseq
    %v97 = vshrl.u32 %v96, 7
    %v98 = vsub.s32 5, %v97
    %v99 = vrot.slane %v58, %v98
    %101 = vbcast.lane.b32.xlu0 %v99, 256
    %v102 = vpop.permute.xlu0 %101
    %v103 = vlaneseq
    %v104 = vshrl.u32 %v103, 7
    %v105 = vsub.s32 6, %v104
    %v106 = vrot.slane %v58, %v105
    %108 = vbcast.lane.b32.xlu0 %v106, 256
    %v109 = vpop.permute.xlu0 %108
    %v110 = vlaneseq
    %v111 = vshrl.u32 %v110, 7
    %v112 = vsub.s32 7, %v111
    %v113 = vrot.slane %v58, %v112
    %115 = vbcast.lane.b32.xlu0 %v113, 256
    %v116 = vpop.permute.xlu0 %115
    %vm117 = vcmp.eq.s32.totalorder %v67, %v60
    %vm118 = vcmp.eq.s32.totalorder %v74, %v60
    %vm119 = vcmp.eq.s32.totalorder %v81, %v60
    %vm120 = vcmp.eq.s32.totalorder %v88, %v60
    %vm121 = vcmp.eq.s32.totalorder %v95, %v60
    %vm122 = vcmp.eq.s32.totalorder %v102, %v60
    %vm123 = vcmp.eq.s32.totalorder %v109, %v60
    %vm124 = vcmp.eq.s32.totalorder %v116, %v60
    %v125 = vsel %vm117, 1, 0
    %v126 = vsel %vm118, 1, 0
    %v127 = vsel %vm119, 1, 0
    %v128 = vsel %vm120, 1, 0
    %v129 = vsel %vm121, 1, 0
    %v130 = vsel %vm122, 1, 0
    %v131 = vsel %vm123, 1, 0
    %v132 = vsel %vm124, 1, 0
    %v133 = vcvt.s32.f32 %v125
    %v134 = vcvt.s32.f32 %v126
    %v135 = vcvt.s32.f32 %v127
    %v136 = vcvt.s32.f32 %v128
    %v137 = vcvt.s32.f32 %v129
    %v138 = vcvt.s32.f32 %v130
    %v139 = vcvt.s32.f32 %v131
    %v140 = vcvt.s32.f32 %v132
    %v141 = vld [vmem:[%s7] sm:$0xff]
    %v142 = vld [vmem:[%s2] sm:$0xff]
    %v143 = vld [vmem:[%s2 + $0x8] sm:$0xff]
    %v144 = vld [vmem:[%s2 + $0x10] sm:$0xff]
    %v145 = vld [vmem:[%s2 + $0x18] sm:$0xff]
    %vm146 = vcmask 130048
    %v148 = vsel %vm146, %v133, 0
    %v151 = vsel %vm146, %v134, 0
    %v154 = vsel %vm146, %v135, 0
    %v157 = vsel %vm146, %v136, 0
    %v160 = vsel %vm146, %v137, 0
    %v163 = vsel %vm146, %v138, 0
    %v166 = vsel %vm146, %v139, 0
    %v169 = vsel %vm146, %v140, 0
    %171 = vmatprep.subr.mxu0 0.0
    %172 = vmatpush1.msra.mxu0 %v142
    %173 = vmatprep.subr.mxu0 0.0
    %174 = vmatpush1.msra.mxu0 %v143
    %175 = vmatprep.subr.mxu0 0.0
    %176 = vmatpush1.msra.mxu0 0.0
    %177 = vmatprep.subr.mxu0 0.0
    %178 = vmatpush1.msra.mxu0 0.0
    %179 = vmatprep.subr.mxu0 0.0
    %180 = vmatpush1.msra.mxu0 0.0
    %181 = vmatprep.subr.mxu0 0.0
    %182 = vmatpush1.msra.mxu0 0.0
    %183 = vmatprep.subr.mxu0 0.0
    %184 = vmatpush1.msra.mxu0 0.0
    %185 = vmatprep.subr.mxu0 0.0
    %186 = vmatpush1.msra.mxu0 0.0
    %187 = vmatprep.subr.mxu0 0.0
    %188 = vmatpush1.msra.mxu0 0.0
    %189 = vmatprep.subr.mxu0 0.0
    %190 = vmatpush1.msra.mxu0 0.0
    %191 = vmatprep.subr.mxu0 0.0
    %192 = vmatpush1.msra.mxu0 0.0
    %193 = vmatprep.subr.mxu0 0.0
    %194 = vmatpush1.msra.mxu0 0.0
    %195 = vmatprep.subr.mxu0 0.0
    %196 = vmatpush1.msra.mxu0 0.0
    %197 = vmatprep.subr.mxu0 0.0
    %198 = vmatpush1.msra.mxu0 0.0
    %199 = vmatprep.subr.mxu0 0.0
    %200 = vmatpush1.msra.mxu0 0.0
    %201 = vmatprep.subr.mxu0 0.0
    %202 = vmatpush1.msra.mxu0 0.0
    %203 = vmatprep.subr.mxu0 0.0
    %204 = vmatpush1.msra.mxu0 0.0
    %205 = vmatprep.subr.mxu0 0.0
    %206 = vmatpush1.msra.mxu0 0.0
    %207 = vmatprep.subr.mxu0 0.0
    %208 = vmatpush1.msra.mxu0 0.0
    %209 = vmatprep.subr.mxu0 0.0
    %210 = vmatpush1.msra.mxu0 0.0
    %211 = vmatprep.subr.mxu0 0.0
    %212 = vmatpush1.msra.mxu0 0.0
    %213 = vmatprep.subr.mxu0 0.0
    %214 = vmatpush1.msra.mxu0 0.0
    %215 = vmatprep.subr.mxu0 0.0
    %216 = vmatpush1.msra.mxu0 0.0
    %217 = vmatprep.subr.mxu0 0.0
    %218 = vmatpush1.msra.mxu0 0.0
    %219 = vmatprep.subr.mxu0 0.0
    %220 = vmatpush1.msra.mxu0 0.0
    %221 = vmatprep.subr.mxu0 0.0
    %222 = vmatpush1.msra.mxu0 0.0
    %223 = vmatprep.subr.mxu0 0.0
    %224 = vmatpush1.msra.mxu0 0.0
    %225 = vmatprep.subr.mxu0 0.0
    %226 = vmatpush1.msra.mxu0 0.0
    %227 = vmatprep.subr.mxu0 0.0
    %228 = vmatpush1.msra.mxu0 0.0
    %229 = vmatprep.subr.mxu0 0.0
    %230 = vmatpush1.msra.mxu0 0.0
    %231 = vmatprep.subr.mxu0 0.0
    %232 = vmatpush1.msra.mxu0 0.0
    %233 = vmatprep.subr.mxu0 0.0
    %234 = vmatpush1.msra.mxu0 0.0
    %235 = vmatprep.mubr.f32.mxu0 0.0
    %236 = vmatmul.mubr.f32.gmra.mrb[0].mxu0 %v148
    %v237 = vpop.f32.mrb[0].mxu0
    %v238 = vadd.f32 0.0, %v237
    %v239 = vpop.f32.mrb[0].mxu0
    %240 = vmatprep.mubr.f32.mxu0 0.0
    %241 = vmatmul.mubr.f32.gmra.mrb[0].mxu0 %v151
    %v242 = vpop.f32.mrb[0].mxu0
    %v243 = vadd.f32 0.0, %v242
    %v244 = vpop.f32.mrb[0].mxu0
    %245 = vmatprep.mubr.f32.mxu0 0.0
    %246 = vmatmul.mubr.f32.gmra.mrb[0].mxu0 %v154
    %v247 = vpop.f32.mrb[0].mxu0
    %v248 = vadd.f32 0.0, %v247
    %v249 = vpop.f32.mrb[0].mxu0
    %250 = vmatprep.mubr.f32.mxu0 0.0
    %251 = vmatmul.mubr.f32.gmra.mrb[0].mxu0 %v157
    %v252 = vpop.f32.mrb[0].mxu0
    %v253 = vadd.f32 0.0, %v252
    %v254 = vpop.f32.mrb[0].mxu0
    %255 = vmatprep.mubr.f32.mxu0 0.0
    %256 = vmatmul.mubr.f32.gmra.mrb[0].mxu0 %v160
    %v257 = vpop.f32.mrb[0].mxu0
    %v258 = vadd.f32 0.0, %v257
    %v259 = vpop.f32.mrb[0].mxu0
    %260 = vmatprep.mubr.f32.mxu0 0.0
    %261 = vmatmul.mubr.f32.gmra.mrb[0].mxu0 %v163
    %v262 = vpop.f32.mrb[0].mxu0
    %v263 = vadd.f32 0.0, %v262
    %v264 = vpop.f32.mrb[0].mxu0
    %265 = vmatprep.mubr.f32.mxu0 0.0
    %266 = vmatmul.mubr.f32.gmra.mrb[0].mxu0 %v166
    %v267 = vpop.f32.mrb[0].mxu0
    %v268 = vadd.f32 0.0, %v267
    %v269 = vpop.f32.mrb[0].mxu0
    %270 = vmatprep.mubr.f32.mxu0 0.0
    %271 = vmatmul.mubr.f32.gmra.mrb[0].mxu0 %v169
    %v272 = vpop.f32.mrb[0].mxu0
    %v273 = vadd.f32 0.0, %v272
    %v274 = vpop.f32.mrb[0].mxu0
    %275 = vdwg.mxu0
    %276 = vmatprep.subr.mxu0 0.0
    %277 = vmatpush1.msra.mxu0 %v144
    %278 = vmatprep.subr.mxu0 0.0
    %279 = vmatpush1.msra.mxu0 %v145
    %280 = vmatprep.subr.mxu0 0.0
    %281 = vmatpush1.msra.mxu0 0.0
    %282 = vmatprep.subr.mxu0 0.0
    %283 = vmatpush1.msra.mxu0 0.0
    %284 = vmatprep.subr.mxu0 0.0
    %285 = vmatpush1.msra.mxu0 0.0
    %286 = vmatprep.subr.mxu0 0.0
    %287 = vmatpush1.msra.mxu0 0.0
    %288 = vmatprep.subr.mxu0 0.0
    %289 = vmatpush1.msra.mxu0 0.0
    %290 = vmatprep.subr.mxu0 0.0
    %291 = vmatpush1.msra.mxu0 0.0
    %292 = vmatprep.subr.mxu0 0.0
    %293 = vmatpush1.msra.mxu0 0.0
    %294 = vmatprep.subr.mxu0 0.0
    %295 = vmatpush1.msra.mxu0 0.0
    %296 = vmatprep.subr.mxu0 0.0
    %297 = vmatpush1.msra.mxu0 0.0
    %298 = vmatprep.subr.mxu0 0.0
    %299 = vmatpush1.msra.mxu0 0.0
    %300 = vmatprep.subr.mxu0 0.0
    %301 = vmatpush1.msra.mxu0 0.0
    %302 = vmatprep.subr.mxu0 0.0
    %303 = vmatpush1.msra.mxu0 0.0
    %304 = vmatprep.subr.mxu0 0.0
    %305 = vmatpush1.msra.mxu0 0.0
    %306 = vmatprep.subr.mxu0 0.0
    %307 = vmatpush1.msra.mxu0 0.0
    %308 = vmatprep.subr.mxu0 0.0
    %309 = vmatpush1.msra.mxu0 0.0
    %310 = vmatprep.subr.mxu0 0.0
    %311 = vmatpush1.msra.mxu0 0.0
    %312 = vmatprep.subr.mxu0 0.0
    %313 = vmatpush1.msra.mxu0 0.0
    %314 = vmatprep.subr.mxu0 0.0
    %315 = vmatpush1.msra.mxu0 0.0
    %316 = vmatprep.subr.mxu0 0.0
    %317 = vmatpush1.msra.mxu0 0.0
    %318 = vmatprep.subr.mxu0 0.0
    %319 = vmatpush1.msra.mxu0 0.0
    %320 = vmatprep.subr.mxu0 0.0
    %321 = vmatpush1.msra.mxu0 0.0
    %322 = vmatprep.subr.mxu0 0.0
    %323 = vmatpush1.msra.mxu0 0.0
    %324 = vmatprep.subr.mxu0 0.0
    %325 = vmatpush1.msra.mxu0 0.0
    %326 = vmatprep.subr.mxu0 0.0
    %327 = vmatpush1.msra.mxu0 0.0
    %328 = vmatprep.subr.mxu0 0.0
    %329 = vmatpush1.msra.mxu0 0.0
    %330 = vmatprep.subr.mxu0 0.0
    %331 = vmatpush1.msra.mxu0 0.0
    %332 = vmatprep.subr.mxu0 0.0
    %333 = vmatpush1.msra.mxu0 0.0
    %334 = vmatprep.subr.mxu0 0.0
    %335 = vmatpush1.msra.mxu0 0.0
    %336 = vmatprep.subr.mxu0 0.0
    %337 = vmatpush1.msra.mxu0 0.0
    %338 = vmatprep.subr.mxu0 0.0
    %339 = vmatpush1.msra.mxu0 0.0
    %340 = vmatprep.mubr.f32.mxu0 0.0
    %341 = vmatmul.mubr.f32.gmra.mrb[0].mxu0 %v148
    %v342 = vpop.f32.mrb[0].mxu0
    %v343 = vadd.f32 0.0, %v342
    %v344 = vpop.f32.mrb[0].mxu0
    %345 = vmatprep.mubr.f32.mxu0 0.0
    %346 = vmatmul.mubr.f32.gmra.mrb[0].mxu0 %v151
    %v347 = vpop.f32.mrb[0].mxu0
    %v348 = vadd.f32 0.0, %v347
    %v349 = vpop.f32.mrb[0].mxu0
    %350 = vmatprep.mubr.f32.mxu0 0.0
    %351 = vmatmul.mubr.f32.gmra.mrb[0].mxu0 %v154
    %v352 = vpop.f32.mrb[0].mxu0
    %v353 = vadd.f32 0.0, %v352
    %v354 = vpop.f32.mrb[0].mxu0
    %355 = vmatprep.mubr.f32.mxu0 0.0
    %356 = vmatmul.mubr.f32.gmra.mrb[0].mxu0 %v157
    %v357 = vpop.f32.mrb[0].mxu0
    %v358 = vadd.f32 0.0, %v357
    %v359 = vpop.f32.mrb[0].mxu0
    %360 = vmatprep.mubr.f32.mxu0 0.0
    %361 = vmatmul.mubr.f32.gmra.mrb[0].mxu0 %v160
    %v362 = vpop.f32.mrb[0].mxu0
    %v363 = vadd.f32 0.0, %v362
    %v364 = vpop.f32.mrb[0].mxu0
    %365 = vmatprep.mubr.f32.mxu0 0.0
    %366 = vmatmul.mubr.f32.gmra.mrb[0].mxu0 %v163
    %v367 = vpop.f32.mrb[0].mxu0
    %v368 = vadd.f32 0.0, %v367
    %v369 = vpop.f32.mrb[0].mxu0
    %370 = vmatprep.mubr.f32.mxu0 0.0
    %371 = vmatmul.mubr.f32.gmra.mrb[0].mxu0 %v166
    %v372 = vpop.f32.mrb[0].mxu0
    %v373 = vadd.f32 0.0, %v372
    %v374 = vpop.f32.mrb[0].mxu0
    %375 = vmatprep.mubr.f32.mxu0 0.0
    %376 = vmatmul.mubr.f32.gmra.mrb[0].mxu0 %v169
    %v377 = vpop.f32.mrb[0].mxu0
    %v378 = vadd.f32 0.0, %v377
    %v379 = vpop.f32.mrb[0].mxu0
    %380 = vdwg.mxu0
    %vm381 = vcmask 261120
    %v382 = vsel %vm381, %v57, 0.0
    %383 = vadd.xlane.f32.xlu0 %v382
    %v384 = vpop.xlane.xlu0 %383
    %v385 = vrcp.pop 32.0
    %v386 = vmul.f32 %v384, %v385
    %v387 = vsub.f32 %v57, %v386
    %v388 = vmul.f32 %v387, %v387
    %v389 = vsel %vm381, %v388, 0.0
    %390 = vadd.xlane.f32.xlu0 %v389
    %v391 = vpop.xlane.xlu0 %390
    %v392 = vmul.f32 %v391, %v385
    %v393 = vlaneseq
    %v394 = vshrl.u32 %v393, 7
    %v395 = vsub.s32 0, %v394
    %v396 = vrot.slane %v141, %v395
    %v397 = vmul.f32 %v396, %v387
    %v398 = vadd.f32 %v392, 1e-05
    %v399 = vrsqrt.pop %v398
    %v400 = vmul.f32 %v397, %v399
    %v401 = vlaneseq
    %v402 = vshrl.u32 %v401, 7
    %v403 = vsub.s32 1, %v402
    %v404 = vrot.slane %v141, %v403
    %v405 = vadd.f32 %v400, %v404
    %v406 = vld [vmem:[#allocation2] sm:$0xff]
    %v407 = vld [vmem:[#allocation2 + $0x8] sm:$0xff]
    %v408 = vld [vmem:[#allocation2 + $0x10] sm:$0xff]
    %v409 = vld [vmem:[#allocation2 + $0x18] sm:$0xff]
    %v410 = vld [vmem:[#allocation2 + $0x20] sm:$0xff]
    %v411 = vld [vmem:[#allocation2 + $0x28] sm:$0xff]
    %v412 = vld [vmem:[#allocation2 + $0x30] sm:$0xff]
    %v413 = vld [vmem:[#allocation2 + $0x38] sm:$0xff]
    %v414 = vld [vmem:[#allocation2 + $0x40] sm:$0xff]
    %v415 = vld [vmem:[#allocation2 + $0x48] sm:$0xff]
    %v416 = vld [vmem:[#allocation2 + $0x50] sm:$0xff]
    %v417 = vld [vmem:[#allocation2 + $0x58] sm:$0xff]
    %v418 = vld [vmem:[#allocation2 + $0x60] sm:$0xff]
    %v419 = vld [vmem:[#allocation2 + $0x68] sm:$0xff]
    %v420 = vld [vmem:[#allocation2 + $0x70] sm:$0xff]
    %v421 = vld [vmem:[#allocation2 + $0x78] sm:$0xff]
    %v422 = vld [vmem:[#allocation2 + $0x80] sm:$0xff]
    %v423 = vld [vmem:[#allocation2 + $0x88] sm:$0xff]
    %v424 = vld [vmem:[#allocation2 + $0x90] sm:$0xff]
    %v425 = vld [vmem:[#allocation2 + $0x98] sm:$0xff]
    %v426 = vld [vmem:[#allocation2 + $0xa0] sm:$0xff]
    %v427 = vld [vmem:[#allocation2 + $0xa8] sm:$0xff]
    %v428 = vld [vmem:[#allocation2 + $0xb0] sm:$0xff]
    %v429 = vld [vmem:[#allocation2 + $0xb8] sm:$0xff]
    %v430 = vld [vmem:[#allocation2 + $0xc0] sm:$0xff]
    %v431 = vld [vmem:[#allocation2 + $0xc8] sm:$0xff]
    %v432 = vld [vmem:[#allocation2 + $0xd0] sm:$0xff]
    %v433 = vld [vmem:[#allocation2 + $0xd8] sm:$0xff]
    %v434 = vld [vmem:[#allocation2 + $0xe0] sm:$0xff]
    %v435 = vld [vmem:[#allocation2 + $0xe8] sm:$0xff]
    %v436 = vld [vmem:[#allocation2 + $0xf0] sm:$0xff]
    %v437 = vld [vmem:[#allocation2 + $0xf8] sm:$0xff]
    %v438 = vld [vmem:[#allocation2 + $0x100] sm:$0xff]
    %v439 = vld [vmem:[#allocation2 + $0x108] sm:$0xff]
    %v440 = vld [vmem:[#allocation2 + $0x110] sm:$0xff]
    %v441 = vld [vmem:[#allocation2 + $0x118] sm:$0xff]
    %v442 = vld [vmem:[#allocation2 + $0x120] sm:$0xff]
    %v443 = vld [vmem:[#allocation2 + $0x128] sm:$0xff]
    %v444 = vld [vmem:[#allocation2 + $0x130] sm:$0xff]
    %v445 = vld [vmem:[#allocation2 + $0x138] sm:$0xff]
    %v446 = vld [vmem:[#allocation2 + $0x140] sm:$0xff]
    %v447 = vld [vmem:[#allocation2 + $0x148] sm:$0xff]
    %v448 = vld [vmem:[#allocation2 + $0x150] sm:$0xff]
    %v449 = vld [vmem:[#allocation2 + $0x158] sm:$0xff]
    %v450 = vld [vmem:[#allocation2 + $0x160] sm:$0xff]
    %v451 = vld [vmem:[#allocation2 + $0x168] sm:$0xff]
    %v452 = vld [vmem:[#allocation2 + $0x170] sm:$0xff]
    %v453 = vld [vmem:[#allocation2 + $0x178] sm:$0xff]
    %v454 = vld [vmem:[#allocation2 + $0x180] sm:$0xff]
    %v455 = vld [vmem:[#allocation2 + $0x188] sm:$0xff]
    %v456 = vld [vmem:[#allocation2 + $0x190] sm:$0xff]
    %v457 = vld [vmem:[#allocation2 + $0x198] sm:$0xff]
    %v458 = vld [vmem:[#allocation2 + $0x1a0] sm:$0xff]
    %v459 = vld [vmem:[#allocation2 + $0x1a8] sm:$0xff]
    %v460 = vld [vmem:[#allocation2 + $0x1b0] sm:$0xff]
    %v461 = vld [vmem:[#allocation2 + $0x1b8] sm:$0xff]
    %v462 = vld [vmem:[#allocation2 + $0x1c0] sm:$0xff]
    %v463 = vld [vmem:[#allocation2 + $0x1c8] sm:$0xff]
    %v464 = vld [vmem:[#allocation2 + $0x1d0] sm:$0xff]
    %v465 = vld [vmem:[#allocation2 + $0x1d8] sm:$0xff]
    %v466 = vld [vmem:[#allocation2 + $0x1e0] sm:$0xff]
    %v467 = vld [vmem:[#allocation2 + $0x1e8] sm:$0xff]
    %v468 = vld [vmem:[#allocation2 + $0x1f0] sm:$0xff]
    %v469 = vld [vmem:[#allocation2 + $0x1f8] sm:$0xff]
    %v470 = vld [vmem:[%s4] sm:$0x1]
    %v471 = vld [vmem:[%s4 + $0x1] sm:$0x1]
    %v472 = vld [vmem:[%s4 + $0x2] sm:$0x1]
    %v473 = vld [vmem:[%s4 + $0x3] sm:$0x1]
    %v474 = vld [vmem:[%s4 + $0x4] sm:$0x1]
    %v475 = vld [vmem:[%s4 + $0x5] sm:$0x1]
    %v476 = vld [vmem:[%s4 + $0x6] sm:$0x1]
    %v477 = vld [vmem:[%s4 + $0x7] sm:$0x1]
    %v478 = vld [vmem:[%s4 + $0x8] sm:$0x1]
    %v479 = vld [vmem:[%s4 + $0x9] sm:$0x1]
    %v480 = vld [vmem:[%s4 + $0xa] sm:$0x1]
    %v481 = vld [vmem:[%s4 + $0xb] sm:$0x1]
    %v494 = vlaneseq
    %v495 = vshrl.u32 %v494, 7
    %v496 = vsub.s32 0, %v495
    %v497 = vrot.slane %v470, %v496
    %v498 = vlaneseq
    %v499 = vshrl.u32 %v498, 7
    %v500 = vsub.s32 0, %v499
    %v501 = vrot.slane %v471, %v500
    %v502 = vlaneseq
    %v503 = vshrl.u32 %v502, 7
    %v504 = vsub.s32 0, %v503
    %v505 = vrot.slane %v472, %v504
    %v506 = vlaneseq
    %v507 = vshrl.u32 %v506, 7
    %v508 = vsub.s32 0, %v507
    %v509 = vrot.slane %v473, %v508
    %v510 = vlaneseq
    %v511 = vshrl.u32 %v510, 7
    %v512 = vsub.s32 0, %v511
    %v513 = vrot.slane %v474, %v512
    %v514 = vlaneseq
    %v515 = vshrl.u32 %v514, 7
    %v516 = vsub.s32 0, %v515
    %v517 = vrot.slane %v475, %v516
    %v518 = vlaneseq
    %v519 = vshrl.u32 %v518, 7
    %v520 = vsub.s32 0, %v519
    %v521 = vrot.slane %v476, %v520
    %v522 = vlaneseq
    %v523 = vshrl.u32 %v522, 7
    %v524 = vsub.s32 0, %v523
    %v525 = vrot.slane %v477, %v524
    %v526 = vlaneseq
    %v527 = vshrl.u32 %v526, 7
    %v528 = vsub.s32 0, %v527
    %v529 = vrot.slane %v478, %v528
    %v530 = vlaneseq
    %v531 = vshrl.u32 %v530, 7
    %v532 = vsub.s32 0, %v531
    %v533 = vrot.slane %v479, %v532
    %v534 = vlaneseq
    %v535 = vshrl.u32 %v534, 7
    %v536 = vsub.s32 0, %v535
    %v537 = vrot.slane %v480, %v536
    %v538 = vlaneseq
    %v539 = vshrl.u32 %v538, 7
    %v540 = vsub.s32 0, %v539
    %v541 = vrot.slane %v481, %v540
    %v555 = vsel %vm381, %v405, 0
    %557 = vmatprep.subr.mxu0 0.0
    %558 = vmatpush1.msra.mxu0 %v406
    %559 = vmatprep.subr.mxu0 0.0
    %560 = vmatpush1.msra.mxu0 %v407
    %561 = vmatprep.subr.mxu0 0.0
    %562 = vmatpush1.msra.mxu0 %v408
    %563 = vmatprep.subr.mxu0 0.0
    %564 = vmatpush1.msra.mxu0 %v409
    %565 = vmatprep.subr.mxu0 0.0
    %566 = vmatpush1.msra.mxu0 0.0
    %567 = vmatprep.subr.mxu0 0.0
    %568 = vmatpush1.msra.mxu0 0.0
    %569 = vmatprep.subr.mxu0 0.0
    %570 = vmatpush1.msra.mxu0 0.0
    %571 = vmatprep.subr.mxu0 0.0
    %572 = vmatpush1.msra.mxu0 0.0
    %573 = vmatprep.subr.mxu0 0.0
    %574 = vmatpush1.msra.mxu0 0.0
    %575 = vmatprep.subr.mxu0 0.0
    %576 = vmatpush1.msra.mxu0 0.0
    %577 = vmatprep.subr.mxu0 0.0
    %578 = vmatpush1.msra.mxu0 0.0
    %579 = vmatprep.subr.mxu0 0.0
    %580 = vmatpush1.msra.mxu0 0.0
    %581 = vmatprep.subr.mxu0 0.0
    %582 = vmatpush1.msra.mxu0 0.0
    %583 = vmatprep.subr.mxu0 0.0
    %584 = vmatpush1.msra.mxu0 0.0
    %585 = vmatprep.subr.mxu0 0.0
    %586 = vmatpush1.msra.mxu0 0.0
    %587 = vmatprep.subr.mxu0 0.0
    %588 = vmatpush1.msra.mxu0 0.0
    %589 = vmatprep.subr.mxu0 0.0
    %590 = vmatpush1.msra.mxu0 0.0
    %591 = vmatprep.subr.mxu0 0.0
    %592 = vmatpush1.msra.mxu0 0.0
    %593 = vmatprep.subr.mxu0 0.0
    %594 = vmatpush1.msra.mxu0 0.0
    %595 = vmatprep.subr.mxu0 0.0
    %596 = vmatpush1.msra.mxu0 0.0
    %597 = vmatprep.subr.mxu0 0.0
    %598 = vmatpush1.msra.mxu0 0.0
    %599 = vmatprep.subr.mxu0 0.0
    %600 = vmatpush1.msra.mxu0 0.0
    %601 = vmatprep.subr.mxu0 0.0
    %602 = vmatpush1.msra.mxu0 0.0
    %603 = vmatprep.subr.mxu0 0.0
    %604 = vmatpush1.msra.mxu0 0.0
    %605 = vmatprep.subr.mxu0 0.0
    %606 = vmatpush1.msra.mxu0 0.0
    %607 = vmatprep.subr.mxu0 0.0
    %608 = vmatpush1.msra.mxu0 0.0
    %609 = vmatprep.subr.mxu0 0.0
    %610 = vmatpush1.msra.mxu0 0.0
    %611 = vmatprep.subr.mxu0 0.0
    %612 = vmatpush1.msra.mxu0 0.0
    %613 = vmatprep.subr.mxu0 0.0
    %614 = vmatpush1.msra.mxu0 0.0
    %615 = vmatprep.subr.mxu0 0.0
    %616 = vmatpush1.msra.mxu0 0.0
    %617 = vmatprep.subr.mxu0 0.0
    %618 = vmatpush1.msra.mxu0 0.0
    %619 = vmatprep.subr.mxu0 0.0
    %620 = vmatpush1.msra.mxu0 0.0
    %621 = vmatprep.mubr.f32.mxu0 0.0
    %622 = vmatmul.mubr.f32.gmra.mrb[0].mxu0 %v555
    %v623 = vpop.f32.mrb[0].mxu0
    %v624 = vadd.f32 %v497, %v623
    %v625 = vpop.f32.mrb[0].mxu0
    %626 = vdwg.mxu0
    %627 = vmatprep.subr.mxu0 0.0
    %628 = vmatpush1.msra.mxu0 %v410
    %629 = vmatprep.subr.mxu0 0.0
    %630 = vmatpush1.msra.mxu0 %v411
    %631 = vmatprep.subr.mxu0 0.0
    %632 = vmatpush1.msra.mxu0 %v412
    %633 = vmatprep.subr.mxu0 0.0
    %634 = vmatpush1.msra.mxu0 %v413
    %635 = vmatprep.subr.mxu0 0.0
    %636 = vmatpush1.msra.mxu0 0.0
    %637 = vmatprep.subr.mxu0 0.0
    %638 = vmatpush1.msra.mxu0 0.0
    %639 = vmatprep.subr.mxu0 0.0
    %640 = vmatpush1.msra.mxu0 0.0
    %641 = vmatprep.subr.mxu0 0.0
    %642 = vmatpush1.msra.mxu0 0.0
    %643 = vmatprep.subr.mxu0 0.0
    %644 = vmatpush1.msra.mxu0 0.0
    %645 = vmatprep.subr.mxu0 0.0
    %646 = vmatpush1.msra.mxu0 0.0
    %647 = vmatprep.subr.mxu0 0.0
    %648 = vmatpush1.msra.mxu0 0.0
    %649 = vmatprep.subr.mxu0 0.0
    %650 = vmatpush1.msra.mxu0 0.0
    %651 = vmatprep.subr.mxu0 0.0
    %652 = vmatpush1.msra.mxu0 0.0
    %653 = vmatprep.subr.mxu0 0.0
    %654 = vmatpush1.msra.mxu0 0.0
    %655 = vmatprep.subr.mxu0 0.0
    %656 = vmatpush1.msra.mxu0 0.0
    %657 = vmatprep.subr.mxu0 0.0
    %658 = vmatpush1.msra.mxu0 0.0
    %659 = vmatprep.subr.mxu0 0.0
    %660 = vmatpush1.msra.mxu0 0.0
    %661 = vmatprep.subr.mxu0 0.0
    %662 = vmatpush1.msra.mxu0 0.0
    %663 = vmatprep.subr.mxu0 0.0
    %664 = vmatpush1.msra.mxu0 0.0
    %665 = vmatprep.subr.mxu0 0.0
    %666 = vmatpush1.msra.mxu0 0.0
    %667 = vmatprep.subr.mxu0 0.0
    %668 = vmatpush1.msra.mxu0 0.0
    %669 = vmatprep.subr.mxu0 0.0
    %670 = vmatpush1.msra.mxu0 0.0
    %671 = vmatprep.subr.mxu0 0.0
    %672 = vmatpush1.msra.mxu0 0.0
    %673 = vmatprep.subr.mxu0 0.0
    %674 = vmatpush1.msra.mxu0 0.0
    %675 = vmatprep.subr.mxu0 0.0
    %676 = vmatpush1.msra.mxu0 0.0
    %677 = vmatprep.subr.mxu0 0.0
    %678 = vmatpush1.msra.mxu0 0.0
    %679 = vmatprep.subr.mxu0 0.0
    %680 = vmatpush1.msra.mxu0 0.0
    %681 = vmatprep.subr.mxu0 0.0
    %682 = vmatpush1.msra.mxu0 0.0
    %683 = vmatprep.subr.mxu0 0.0
    %684 = vmatpush1.msra.mxu0 0.0
    %685 = vmatprep.subr.mxu0 0.0
    %686 = vmatpush1.msra.mxu0 0.0
    %687 = vmatprep.subr.mxu0 0.0
    %688 = vmatpush1.msra.mxu0 0.0
    %689 = vmatprep.subr.mxu0 0.0
    %690 = vmatpush1.msra.mxu0 0.0
    %691 = vmatprep.mubr.f32.mxu0 0.0
    %692 = vmatmul.mubr.f32.gmra.mrb[0].mxu0 %v555
    %v693 = vpop.f32.mrb[0].mxu0
    %v694 = vadd.f32 %v501, %v693
    %v695 = vpop.f32.mrb[0].mxu0
    %696 = vdwg.mxu0
    %697 = vmatprep.subr.mxu0 0.0
    %698 = vmatpush1.msra.mxu0 %v414
    %699 = vmatprep.subr.mxu0 0.0
    %700 = vmatpush1.msra.mxu0 %v415
    %701 = vmatprep.subr.mxu0 0.0
    %702 = vmatpush1.msra.mxu0 %v416
    %703 = vmatprep.subr.mxu0 0.0
    %704 = vmatpush1.msra.mxu0 %v417
    %705 = vmatprep.subr.mxu0 0.0
    %706 = vmatpush1.msra.mxu0 0.0
    %707 = vmatprep.subr.mxu0 0.0
    %708 = vmatpush1.msra.mxu0 0.0
    %709 = vmatprep.subr.mxu0 0.0
    %710 = vmatpush1.msra.mxu0 0.0
    %711 = vmatprep.subr.mxu0 0.0
    %712 = vmatpush1.msra.mxu0 0.0
    %713 = vmatprep.subr.mxu0 0.0
    %714 = vmatpush1.msra.mxu0 0.0
    %715 = vmatprep.subr.mxu0 0.0
    %716 = vmatpush1.msra.mxu0 0.0
    %717 = vmatprep.subr.mxu0 0.0
    %718 = vmatpush1.msra.mxu0 0.0
    %719 = vmatprep.subr.mxu0 0.0
    %720 = vmatpush1.msra.mxu0 0.0
    %721 = vmatprep.subr.mxu0 0.0
    %722 = vmatpush1.msra.mxu0 0.0
    %723 = vmatprep.subr.mxu0 0.0
    %724 = vmatpush1.msra.mxu0 0.0
    %725 = vmatprep.subr.mxu0 0.0
    %726 = vmatpush1.msra.mxu0 0.0
    %727 = vmatprep.subr.mxu0 0.0
    %728 = vmatpush1.msra.mxu0 0.0
    %729 = vmatprep.subr.mxu0 0.0
    %730 = vmatpush1.msra.mxu0 0.0
    %731 = vmatprep.subr.mxu0 0.0
    %732 = vmatpush1.msra.mxu0 0.0
    %733 = vmatprep.subr.mxu0 0.0
    %734 = vmatpush1.msra.mxu0 0.0
    %735 = vmatprep.subr.mxu0 0.0
    %736 = vmatpush1.msra.mxu0 0.0
    %737 = vmatprep.subr.mxu0 0.0
    %738 = vmatpush1.msra.mxu0 0.0
    %739 = vmatprep.subr.mxu0 0.0
    %740 = vmatpush1.msra.mxu0 0.0
    %741 = vmatprep.subr.mxu0 0.0
    %742 = vmatpush1.msra.mxu0 0.0
    %743 = vmatprep.subr.mxu0 0.0
    %744 = vmatpush1.msra.mxu0 0.0
    %745 = vmatprep.subr.mxu0 0.0
    %746 = vmatpush1.msra.mxu0 0.0
    %747 = vmatprep.subr.mxu0 0.0
    %748 = vmatpush1.msra.mxu0 0.0
    %749 = vmatprep.subr.mxu0 0.0
    %750 = vmatpush1.msra.mxu0 0.0
    %751 = vmatprep.subr.mxu0 0.0
    %752 = vmatpush1.msra.mxu0 0.0
    %753 = vmatprep.subr.mxu0 0.0
    %754 = vmatpush1.msra.mxu0 0.0
    %755 = vmatprep.subr.mxu0 0.0
    %756 = vmatpush1.msra.mxu0 0.0
    %757 = vmatprep.subr.mxu0 0.0
    %758 = vmatpush1.msra.mxu0 0.0
    %759 = vmatprep.subr.mxu0 0.0
    %760 = vmatpush1.msra.mxu0 0.0
    %761 = vmatprep.mubr.f32.mxu0 0.0
    %762 = vmatmul.mubr.f32.gmra.mrb[0].mxu0 %v555
    %v763 = vpop.f32.mrb[0].mxu0
    %v764 = vadd.f32 %v505, %v763
    %v765 = vpop.f32.mrb[0].mxu0
    %766 = vdwg.mxu0
    %767 = vmatprep.subr.mxu0 0.0
    %768 = vmatpush1.msra.mxu0 %v418
    %769 = vmatprep.subr.mxu0 0.0
    %770 = vmatpush1.msra.mxu0 %v419
    %771 = vmatprep.subr.mxu0 0.0
    %772 = vmatpush1.msra.mxu0 %v420
    %773 = vmatprep.subr.mxu0 0.0
    %774 = vmatpush1.msra.mxu0 %v421
    %775 = vmatprep.subr.mxu0 0.0
    %776 = vmatpush1.msra.mxu0 0.0
    %777 = vmatprep.subr.mxu0 0.0
    %778 = vmatpush1.msra.mxu0 0.0
    %779 = vmatprep.subr.mxu0 0.0
    %780 = vmatpush1.msra.mxu0 0.0
    %781 = vmatprep.subr.mxu0 0.0
    %782 = vmatpush1.msra.mxu0 0.0
    %783 = vmatprep.subr.mxu0 0.0
    %784 = vmatpush1.msra.mxu0 0.0
    %785 = vmatprep.subr.mxu0 0.0
    %786 = vmatpush1.msra.mxu0 0.0
    %787 = vmatprep.subr.mxu0 0.0
    %788 = vmatpush1.msra.mxu0 0.0
    %789 = vmatprep.subr.mxu0 0.0
    %790 = vmatpush1.msra.mxu0 0.0
    %791 = vmatprep.subr.mxu0 0.0
    %792 = vmatpush1.msra.mxu0 0.0
    %793 = vmatprep.subr.mxu0 0.0
    %794 = vmatpush1.msra.mxu0 0.0
    %795 = vmatprep.subr.mxu0 0.0
    %796 = vmatpush1.msra.mxu0 0.0
    %797 = vmatprep.subr.mxu0 0.0
    %798 = vmatpush1.msra.mxu0 0.0
    %799 = vmatprep.subr.mxu0 0.0
    %800 = vmatpush1.msra.mxu0 0.0
    %801 = vmatprep.subr.mxu0 0.0
    %802 = vmatpush1.msra.mxu0 0.0
    %803 = vmatprep.subr.mxu0 0.0
    %804 = vmatpush1.msra.mxu0 0.0
    %805 = vmatprep.subr.mxu0 0.0
    %806 = vmatpush1.msra.mxu0 0.0
    %807 = vmatprep.subr.mxu0 0.0
    %808 = vmatpush1.msra.mxu0 0.0
    %809 = vmatprep.subr.mxu0 0.0
    %810 = vmatpush1.msra.mxu0 0.0
    %811 = vmatprep.subr.mxu0 0.0
    %812 = vmatpush1.msra.mxu0 0.0
    %813 = vmatprep.subr.mxu0 0.0
    %814 = vmatpush1.msra.mxu0 0.0
    %815 = vmatprep.subr.mxu0 0.0
    %816 = vmatpush1.msra.mxu0 0.0
    %817 = vmatprep.subr.mxu0 0.0
    %818 = vmatpush1.msra.mxu0 0.0
    %819 = vmatprep.subr.mxu0 0.0
    %820 = vmatpush1.msra.mxu0 0.0
    %821 = vmatprep.subr.mxu0 0.0
    %822 = vmatpush1.msra.mxu0 0.0
    %823 = vmatprep.subr.mxu0 0.0
    %824 = vmatpush1.msra.mxu0 0.0
    %825 = vmatprep.subr.mxu0 0.0
    %826 = vmatpush1.msra.mxu0 0.0
    %827 = vmatprep.subr.mxu0 0.0
    %828 = vmatpush1.msra.mxu0 0.0
    %829 = vmatprep.subr.mxu0 0.0
    %830 = vmatpush1.msra.mxu0 0.0
    %831 = vmatprep.mubr.f32.mxu0 0.0
    %832 = vmatmul.mubr.f32.gmra.mrb[0].mxu0 %v555
    %v833 = vpop.f32.mrb[0].mxu0
    %v834 = vadd.f32 %v509, %v833
    %v835 = vpop.f32.mrb[0].mxu0
    %836 = vdwg.mxu0
    %837 = vmatprep.subr.mxu0 0.0
    %838 = vmatpush1.msra.mxu0 %v422
    %839 = vmatprep.subr.mxu0 0.0
    %840 = vmatpush1.msra.mxu0 %v423
    %841 = vmatprep.subr.mxu0 0.0
    %842 = vmatpush1.msra.mxu0 %v424
    %843 = vmatprep.subr.mxu0 0.0
    %844 = vmatpush1.msra.mxu0 %v425
    %845 = vmatprep.subr.mxu0 0.0
    %846 = vmatpush1.msra.mxu0 0.0
    %847 = vmatprep.subr.mxu0 0.0
    %848 = vmatpush1.msra.mxu0 0.0
    %849 = vmatprep.subr.mxu0 0.0
    %850 = vmatpush1.msra.mxu0 0.0
    %851 = vmatprep.subr.mxu0 0.0
    %852 = vmatpush1.msra.mxu0 0.0
    %853 = vmatprep.subr.mxu0 0.0
    %854 = vmatpush1.msra.mxu0 0.0
    %855 = vmatprep.subr.mxu0 0.0
    %856 = vmatpush1.msra.mxu0 0.0
    %857 = vmatprep.subr.mxu0 0.0
    %858 = vmatpush1.msra.mxu0 0.0
    %859 = vmatprep.subr.mxu0 0.0
    %860 = vmatpush1.msra.mxu0 0.0
    %861 = vmatprep.subr.mxu0 0.0
    %862 = vmatpush1.msra.mxu0 0.0
    %863 = vmatprep.subr.mxu0 0.0
    %864 = vmatpush1.msra.mxu0 0.0
    %865 = vmatprep.subr.mxu0 0.0
    %866 = vmatpush1.msra.mxu0 0.0
    %867 = vmatprep.subr.mxu0 0.0
    %868 = vmatpush1.msra.mxu0 0.0
    %869 = vmatprep.subr.mxu0 0.0
    %870 = vmatpush1.msra.mxu0 0.0
    %871 = vmatprep.subr.mxu0 0.0
    %872 = vmatpush1.msra.mxu0 0.0
    %873 = vmatprep.subr.mxu0 0.0
    %874 = vmatpush1.msra.mxu0 0.0
    %875 = vmatprep.subr.mxu0 0.0
    %876 = vmatpush1.msra.mxu0 0.0
    %877 = vmatprep.subr.mxu0 0.0
    %878 = vmatpush1.msra.mxu0 0.0
    %879 = vmatprep.subr.mxu0 0.0
    %880 = vmatpush1.msra.mxu0 0.0
    %881 = vmatprep.subr.mxu0 0.0
    %882 = vmatpush1.msra.mxu0 0.0
    %883 = vmatprep.subr.mxu0 0.0
    %884 = vmatpush1.msra.mxu0 0.0
    %885 = vmatprep.subr.mxu0 0.0
    %886 = vmatpush1.msra.mxu0 0.0
    %887 = vmatprep.subr.mxu0 0.0
    %888 = vmatpush1.msra.mxu0 0.0
    %889 = vmatprep.subr.mxu0 0.0
    %890 = vmatpush1.msra.mxu0 0.0
    %891 = vmatprep.subr.mxu0 0.0
    %892 = vmatpush1.msra.mxu0 0.0
    %893 = vmatprep.subr.mxu0 0.0
    %894 = vmatpush1.msra.mxu0 0.0
    %895 = vmatprep.subr.mxu0 0.0
    %896 = vmatpush1.msra.mxu0 0.0
    %897 = vmatprep.subr.mxu0 0.0
    %898 = vmatpush1.msra.mxu0 0.0
    %899 = vmatprep.subr.mxu0 0.0
    %900 = vmatpush1.msra.mxu0 0.0
    %901 = vmatprep.mubr.f32.mxu0 0.0
    %902 = vmatmul.mubr.f32.gmra.mrb[0].mxu0 %v555
    %v903 = vpop.f32.mrb[0].mxu0
    %v904 = vadd.f32 %v513, %v903
    %v905 = vpop.f32.mrb[0].mxu0
    %906 = vdwg.mxu0
    %907 = vmatprep.subr.mxu0 0.0
    %908 = vmatpush1.msra.mxu0 %v426
    %909 = vmatprep.subr.mxu0 0.0
    %910 = vmatpush1.msra.mxu0 %v427
    %911 = vmatprep.subr.mxu0 0.0
    %912 = vmatpush1.msra.mxu0 %v428
    %913 = vmatprep.subr.mxu0 0.0
    %914 = vmatpush1.msra.mxu0 %v429
    %915 = vmatprep.subr.mxu0 0.0
    %916 = vmatpush1.msra.mxu0 0.0
    %917 = vmatprep.subr.mxu0 0.0
    %918 = vmatpush1.msra.mxu0 0.0
    %919 = vmatprep.subr.mxu0 0.0
    %920 = vmatpush1.msra.mxu0 0.0
    %921 = vmatprep.subr.mxu0 0.0
    %922 = vmatpush1.msra.mxu0 0.0
    %923 = vmatprep.subr.mxu0 0.0
    %924 = vmatpush1.msra.mxu0 0.0
    %925 = vmatprep.subr.mxu0 0.0
    %926 = vmatpush1.msra.mxu0 0.0
    %927 = vmatprep.subr.mxu0 0.0
    %928 = vmatpush1.msra.mxu0 0.0
    %929 = vmatprep.subr.mxu0 0.0
    %930 = vmatpush1.msra.mxu0 0.0
    %931 = vmatprep.subr.mxu0 0.0
    %932 = vmatpush1.msra.mxu0 0.0
    %933 = vmatprep.subr.mxu0 0.0
    %934 = vmatpush1.msra.mxu0 0.0
    %935 = vmatprep.subr.mxu0 0.0
    %936 = vmatpush1.msra.mxu0 0.0
    %937 = vmatprep.subr.mxu0 0.0
    %938 = vmatpush1.msra.mxu0 0.0
    %939 = vmatprep.subr.mxu0 0.0
    %940 = vmatpush1.msra.mxu0 0.0
    %941 = vmatprep.subr.mxu0 0.0
    %942 = vmatpush1.msra.mxu0 0.0
    %943 = vmatprep.subr.mxu0 0.0
    %944 = vmatpush1.msra.mxu0 0.0
    %945 = vmatprep.subr.mxu0 0.0
    %946 = vmatpush1.msra.mxu0 0.0
    %947 = vmatprep.subr.mxu0 0.0
    %948 = vmatpush1.msra.mxu0 0.0
    %949 = vmatprep.subr.mxu0 0.0
    %950 = vmatpush1.msra.mxu0 0.0
    %951 = vmatprep.subr.mxu0 0.0
    %952 = vmatpush1.msra.mxu0 0.0
    %953 = vmatprep.subr.mxu0 0.0
    %954 = vmatpush1.msra.mxu0 0.0
    %955 = vmatprep.subr.mxu0 0.0
    %956 = vmatpush1.msra.mxu0 0.0
    %957 = vmatprep.subr.mxu0 0.0
    %958 = vmatpush1.msra.mxu0 0.0
    %959 = vmatprep.subr.mxu0 0.0
    %960 = vmatpush1.msra.mxu0 0.0
    %961 = vmatprep.subr.mxu0 0.0
    %962 = vmatpush1.msra.mxu0 0.0
    %963 = vmatprep.subr.mxu0 0.0
    %964 = vmatpush1.msra.mxu0 0.0
    %965 = vmatprep.subr.mxu0 0.0
    %966 = vmatpush1.msra.mxu0 0.0
    %967 = vmatprep.subr.mxu0 0.0
    %968 = vmatpush1.msra.mxu0 0.0
    %969 = vmatprep.subr.mxu0 0.0
    %970 = vmatpush1.msra.mxu0 0.0
    %971 = vmatprep.mubr.f32.mxu0 0.0
    %972 = vmatmul.mubr.f32.gmra.mrb[0].mxu0 %v555
    %v973 = vpop.f32.mrb[0].mxu0
    %v974 = vadd.f32 %v517, %v973
    %v975 = vpop.f32.mrb[0].mxu0
    %976 = vdwg.mxu0
    %977 = vmatprep.subr.mxu0 0.0
    %978 = vmatpush1.msra.mxu0 %v430
    %979 = vmatprep.subr.mxu0 0.0
    %980 = vmatpush1.msra.mxu0 %v431
    %981 = vmatprep.subr.mxu0 0.0
    %982 = vmatpush1.msra.mxu0 %v432
    %983 = vmatprep.subr.mxu0 0.0
    %984 = vmatpush1.msra.mxu0 %v433
    %985 = vmatprep.subr.mxu0 0.0
    %986 = vmatpush1.msra.mxu0 0.0
    %987 = vmatprep.subr.mxu0 0.0
    %988 = vmatpush1.msra.mxu0 0.0
    %989 = vmatprep.subr.mxu0 0.0
    %990 = vmatpush1.msra.mxu0 0.0
    %991 = vmatprep.subr.mxu0 0.0
    %992 = vmatpush1.msra.mxu0 0.0
    %993 = vmatprep.subr.mxu0 0.0
    %994 = vmatpush1.msra.mxu0 0.0
    %995 = vmatprep.subr.mxu0 0.0
    %996 = vmatpush1.msra.mxu0 0.0
    %997 = vmatprep.subr.mxu0 0.0
    %998 = vmatpush1.msra.mxu0 0.0
    %999 = vmatprep.subr.mxu0 0.0
    %1000 = vmatpush1.msra.mxu0 0.0
    %1001 = vmatprep.subr.mxu0 0.0
    %1002 = vmatpush1.msra.mxu0 0.0
    %1003 = vmatprep.subr.mxu0 0.0
    %1004 = vmatpush1.msra.mxu0 0.0
    %1005 = vmatprep.subr.mxu0 0.0
    %1006 = vmatpush1.msra.mxu0 0.0
    %1007 = vmatprep.subr.mxu0 0.0
    %1008 = vmatpush1.msra.mxu0 0.0
    %1009 = vmatprep.subr.mxu0 0.0
    %1010 = vmatpush1.msra.mxu0 0.0
    %1011 = vmatprep.subr.mxu0 0.0
    %1012 = vmatpush1.msra.mxu0 0.0
    %1013 = vmatprep.subr.mxu0 0.0
    %1014 = vmatpush1.msra.mxu0 0.0
    %1015 = vmatprep.subr.mxu0 0.0
    %1016 = vmatpush1.msra.mxu0 0.0
    %1017 = vmatprep.subr.mxu0 0.0
    %1018 = vmatpush1.msra.mxu0 0.0
    %1019 = vmatprep.subr.mxu0 0.0
    %1020 = vmatpush1.msra.mxu0 0.0
    %1021 = vmatprep.subr.mxu0 0.0
    %1022 = vmatpush1.msra.mxu0 0.0
    %1023 = vmatprep.subr.mxu0 0.0
    %1024 = vmatpush1.msra.mxu0 0.0
    %1025 = vmatprep.subr.mxu0 0.0
    %1026 = vmatpush1.msra.mxu0 0.0
    %1027 = vmatprep.subr.mxu0 0.0
    %1028 = vmatpush1.msra.mxu0 0.0
    %1029 = vmatprep.subr.mxu0 0.0
    %1030 = vmatpush1.msra.mxu0 0.0
    %1031 = vmatprep.subr.mxu0 0.0
    %1032 = vmatpush1.msra.mxu0 0.0
    %1033 = vmatprep.subr.mxu0 0.0
    %1034 = vmatpush1.msra.mxu0 0.0
    %1035 = vmatprep.subr.mxu0 0.0
    %1036 = vmatpush1.msra.mxu0 0.0
    %1037 = vmatprep.subr.mxu0 0.0
    %1038 = vmatpush1.msra.mxu0 0.0
    %1039 = vmatprep.subr.mxu0 0.0
    %1040 = vmatpush1.msra.mxu0 0.0
    %1041 = vmatprep.mubr.f32.mxu0 0.0
    %1042 = vmatmul.mubr.f32.gmra.mrb[0].mxu0 %v555
    %v1043 = vpop.f32.mrb[0].mxu0
    %v1044 = vadd.f32 %v521, %v1043
    %v1045 = vpop.f32.mrb[0].mxu0
    %1046 = vdwg.mxu0
    %1047 = vmatprep.subr.mxu0 0.0
    %1048 = vmatpush1.msra.mxu0 %v434
    %1049 = vmatprep.subr.mxu0 0.0
    %1050 = vmatpush1.msra.mxu0 %v435
    %1051 = vmatprep.subr.mxu0 0.0
    %1052 = vmatpush1.msra.mxu0 %v436
    %1053 = vmatprep.subr.mxu0 0.0
    %1054 = vmatpush1.msra.mxu0 %v437
    %1055 = vmatprep.subr.mxu0 0.0
    %1056 = vmatpush1.msra.mxu0 0.0
    %1057 = vmatprep.subr.mxu0 0.0
    %1058 = vmatpush1.msra.mxu0 0.0
    %1059 = vmatprep.subr.mxu0 0.0
    %1060 = vmatpush1.msra.mxu0 0.0
    %1061 = vmatprep.subr.mxu0 0.0
    %1062 = vmatpush1.msra.mxu0 0.0
    %1063 = vmatprep.subr.mxu0 0.0
    %1064 = vmatpush1.msra.mxu0 0.0
    %1065 = vmatprep.subr.mxu0 0.0
    %1066 = vmatpush1.msra.mxu0 0.0
    %1067 = vmatprep.subr.mxu0 0.0
    %1068 = vmatpush1.msra.mxu0 0.0
    %1069 = vmatprep.subr.mxu0 0.0
    %1070 = vmatpush1.msra.mxu0 0.0
    %1071 = vmatprep.subr.mxu0 0.0
    %1072 = vmatpush1.msra.mxu0 0.0
    %1073 = vmatprep.subr.mxu0 0.0
    %1074 = vmatpush1.msra.mxu0 0.0
    %1075 = vmatprep.subr.mxu0 0.0
    %1076 = vmatpush1.msra.mxu0 0.0
    %1077 = vmatprep.subr.mxu0 0.0
    %1078 = vmatpush1.msra.mxu0 0.0
    %1079 = vmatprep.subr.mxu0 0.0
    %1080 = vmatpush1.msra.mxu0 0.0
    %1081 = vmatprep.subr.mxu0 0.0
    %1082 = vmatpush1.msra.mxu0 0.0
    %1083 = vmatprep.subr.mxu0 0.0
    %1084 = vmatpush1.msra.mxu0 0.0
    %1085 = vmatprep.subr.mxu0 0.0
    %1086 = vmatpush1.msra.mxu0 0.0
    %1087 = vmatprep.subr.mxu0 0.0
    %1088 = vmatpush1.msra.mxu0 0.0
    %1089 = vmatprep.subr.mxu0 0.0
    %1090 = vmatpush1.msra.mxu0 0.0
    %1091 = vmatprep.subr.mxu0 0.0
    %1092 = vmatpush1.msra.mxu0 0.0
    %1093 = vmatprep.subr.mxu0 0.0
    %1094 = vmatpush1.msra.mxu0 0.0
    %1095 = vmatprep.subr.mxu0 0.0
    %1096 = vmatpush1.msra.mxu0 0.0
    %1097 = vmatprep.subr.mxu0 0.0
    %1098 = vmatpush1.msra.mxu0 0.0
    %1099 = vmatprep.subr.mxu0 0.0
    %1100 = vmatpush1.msra.mxu0 0.0
    %1101 = vmatprep.subr.mxu0 0.0
    %1102 = vmatpush1.msra.mxu0 0.0
    %1103 = vmatprep.subr.mxu0 0.0
    %1104 = vmatpush1.msra.mxu0 0.0
    %1105 = vmatprep.subr.mxu0 0.0
    %1106 = vmatpush1.msra.mxu0 0.0
    %1107 = vmatprep.subr.mxu0 0.0
    %1108 = vmatpush1.msra.mxu0 0.0
    %1109 = vmatprep.subr.mxu0 0.0
    %1110 = vmatpush1.msra.mxu0 0.0
    %1111 = vmatprep.mubr.f32.mxu0 0.0
    %1112 = vmatmul.mubr.f32.gmra.mrb[0].mxu0 %v555
    %v1113 = vpop.f32.mrb[0].mxu0
    %v1114 = vadd.f32 %v525, %v1113
    %v1115 = vpop.f32.mrb[0].mxu0
    %1116 = vdwg.mxu0
    %1117 = vmatprep.subr.mxu0 0.0
    %1118 = vmatpush1.msra.mxu0 %v438
    %1119 = vmatprep.subr.mxu0 0.0
    %1120 = vmatpush1.msra.mxu0 %v439
    %1121 = vmatprep.subr.mxu0 0.0
    %1122 = vmatpush1.msra.mxu0 %v440
    %1123 = vmatprep.subr.mxu0 0.0
    %1124 = vmatpush1.msra.mxu0 %v441
    %1125 = vmatprep.subr.mxu0 0.0
    %1126 = vmatpush1.msra.mxu0 0.0
    %1127 = vmatprep.subr.mxu0 0.0
    %1128 = vmatpush1.msra.mxu0 0.0
    %1129 = vmatprep.subr.mxu0 0.0
    %1130 = vmatpush1.msra.mxu0 0.0
    %1131 = vmatprep.subr.mxu0 0.0
    %1132 = vmatpush1.msra.mxu0 0.0
    %1133 = vmatprep.subr.mxu0 0.0
    %1134 = vmatpush1.msra.mxu0 0.0
    %1135 = vmatprep.subr.mxu0 0.0
    %1136 = vmatpush1.msra.mxu0 0.0
    %1137 = vmatprep.subr.mxu0 0.0
    %1138 = vmatpush1.msra.mxu0 0.0
    %1139 = vmatprep.subr.mxu0 0.0
    %1140 = vmatpush1.msra.mxu0 0.0
    %1141 = vmatprep.subr.mxu0 0.0
    %1142 = vmatpush1.msra.mxu0 0.0
    %1143 = vmatprep.subr.mxu0 0.0
    %1144 = vmatpush1.msra.mxu0 0.0
    %1145 = vmatprep.subr.mxu0 0.0
    %1146 = vmatpush1.msra.mxu0 0.0
    %1147 = vmatprep.subr.mxu0 0.0
    %1148 = vmatpush1.msra.mxu0 0.0
    %1149 = vmatprep.subr.mxu0 0.0
    %1150 = vmatpush1.msra.mxu0 0.0
    %1151 = vmatprep.subr.mxu0 0.0
    %1152 = vmatpush1.msra.mxu0 0.0
    %1153 = vmatprep.subr.mxu0 0.0
    %1154 = vmatpush1.msra.mxu0 0.0
    %1155 = vmatprep.subr.mxu0 0.0
    %1156 = vmatpush1.msra.mxu0 0.0
    %1157 = vmatprep.subr.mxu0 0.0
    %1158 = vmatpush1.msra.mxu0 0.0
    %1159 = vmatprep.subr.mxu0 0.0
    %1160 = vmatpush1.msra.mxu0 0.0
    %1161 = vmatprep.subr.mxu0 0.0
    %1162 = vmatpush1.msra.mxu0 0.0
    %1163 = vmatprep.subr.mxu0 0.0
    %1164 = vmatpush1.msra.mxu0 0.0
    %1165 = vmatprep.subr.mxu0 0.0
    %1166 = vmatpush1.msra.mxu0 0.0
    %1167 = vmatprep.subr.mxu0 0.0
    %1168 = vmatpush1.msra.mxu0 0.0
    %1169 = vmatprep.subr.mxu0 0.0
    %1170 = vmatpush1.msra.mxu0 0.0
    %1171 = vmatprep.subr.mxu0 0.0
    %1172 = vmatpush1.msra.mxu0 0.0
    %1173 = vmatprep.subr.mxu0 0.0
    %1174 = vmatpush1.msra.mxu0 0.0
    %1175 = vmatprep.subr.mxu0 0.0
    %1176 = vmatpush1.msra.mxu0 0.0
    %1177 = vmatprep.subr.mxu0 0.0
    %1178 = vmatpush1.msra.mxu0 0.0
    %1179 = vmatprep.subr.mxu0 0.0
    %1180 = vmatpush1.msra.mxu0 0.0
    %1181 = vmatprep.mubr.f32.mxu0 0.0
    %1182 = vmatmul.mubr.f32.gmra.mrb[0].mxu0 %v555
    %v1183 = vpop.f32.mrb[0].mxu0
    %v1184 = vadd.f32 %v529, %v1183
    %v1185 = vpop.f32.mrb[0].mxu0
    %1186 = vdwg.mxu0
    %1187 = vmatprep.subr.mxu0 0.0
    %1188 = vmatpush1.msra.mxu0 %v442
    %1189 = vmatprep.subr.mxu0 0.0
    %1190 = vmatpush1.msra.mxu0 %v443
    %1191 = vmatprep.subr.mxu0 0.0
    %1192 = vmatpush1.msra.mxu0 %v444
    %1193 = vmatprep.subr.mxu0 0.0
    %1194 = vmatpush1.msra.mxu0 %v445
    %1195 = vmatprep.subr.mxu0 0.0
    %1196 = vmatpush1.msra.mxu0 0.0
    %1197 = vmatprep.subr.mxu0 0.0
    %1198 = vmatpush1.msra.mxu0 0.0
    %1199 = vmatprep.subr.mxu0 0.0
    %1200 = vmatpush1.msra.mxu0 0.0
    %1201 = vmatprep.subr.mxu0 0.0
    %1202 = vmatpush1.msra.mxu0 0.0
    %1203 = vmatprep.subr.mxu0 0.0
    %1204 = vmatpush1.msra.mxu0 0.0
    %1205 = vmatprep.subr.mxu0 0.0
    %1206 = vmatpush1.msra.mxu0 0.0
    %1207 = vmatprep.subr.mxu0 0.0
    %1208 = vmatpush1.msra.mxu0 0.0
    %1209 = vmatprep.subr.mxu0 0.0
    %1210 = vmatpush1.msra.mxu0 0.0
    %1211 = vmatprep.subr.mxu0 0.0
    %1212 = vmatpush1.msra.mxu0 0.0
    %1213 = vmatprep.subr.mxu0 0.0
    %1214 = vmatpush1.msra.mxu0 0.0
    %1215 = vmatprep.subr.mxu0 0.0
    %1216 = vmatpush1.msra.mxu0 0.0
    %1217 = vmatprep.subr.mxu0 0.0
    %1218 = vmatpush1.msra.mxu0 0.0
    %1219 = vmatprep.subr.mxu0 0.0
    %1220 = vmatpush1.msra.mxu0 0.0
    %1221 = vmatprep.subr.mxu0 0.0
    %1222 = vmatpush1.msra.mxu0 0.0
    %1223 = vmatprep.subr.mxu0 0.0
    %1224 = vmatpush1.msra.mxu0 0.0
    %1225 = vmatprep.subr.mxu0 0.0
    %1226 = vmatpush1.msra.mxu0 0.0
    %1227 = vmatprep.subr.mxu0 0.0
    %1228 = vmatpush1.msra.mxu0 0.0
    %1229 = vmatprep.subr.mxu0 0.0
    %1230 = vmatpush1.msra.mxu0 0.0
    %1231 = vmatprep.subr.mxu0 0.0
    %1232 = vmatpush1.msra.mxu0 0.0
    %1233 = vmatprep.subr.mxu0 0.0
    %1234 = vmatpush1.msra.mxu0 0.0
    %1235 = vmatprep.subr.mxu0 0.0
    %1236 = vmatpush1.msra.mxu0 0.0
    %1237 = vmatprep.subr.mxu0 0.0
    %1238 = vmatpush1.msra.mxu0 0.0
    %1239 = vmatprep.subr.mxu0 0.0
    %1240 = vmatpush1.msra.mxu0 0.0
    %1241 = vmatprep.subr.mxu0 0.0
    %1242 = vmatpush1.msra.mxu0 0.0
    %1243 = vmatprep.subr.mxu0 0.0
    %1244 = vmatpush1.msra.mxu0 0.0
    %1245 = vmatprep.subr.mxu0 0.0
    %1246 = vmatpush1.msra.mxu0 0.0
    %1247 = vmatprep.subr.mxu0 0.0
    %1248 = vmatpush1.msra.mxu0 0.0
    %1249 = vmatprep.subr.mxu0 0.0
    %1250 = vmatpush1.msra.mxu0 0.0
    %1251 = vmatprep.mubr.f32.mxu0 0.0
    %1252 = vmatmul.mubr.f32.gmra.mrb[0].mxu0 %v555
    %v1253 = vpop.f32.mrb[0].mxu0
    %v1254 = vadd.f32 %v533, %v1253
    %v1255 = vpop.f32.mrb[0].mxu0
    %1256 = vdwg.mxu0
    %1257 = vmatprep.subr.mxu0 0.0
    %1258 = vmatpush1.msra.mxu0 %v446
    %1259 = vmatprep.subr.mxu0 0.0
    %1260 = vmatpush1.msra.mxu0 %v447
    %1261 = vmatprep.subr.mxu0 0.0
    %1262 = vmatpush1.msra.mxu0 %v448
    %1263 = vmatprep.subr.mxu0 0.0
    %1264 = vmatpush1.msra.mxu0 %v449
    %1265 = vmatprep.subr.mxu0 0.0
    %1266 = vmatpush1.msra.mxu0 0.0
    %1267 = vmatprep.subr.mxu0 0.0
    %1268 = vmatpush1.msra.mxu0 0.0
    %1269 = vmatprep.subr.mxu0 0.0
    %1270 = vmatpush1.msra.mxu0 0.0
    %1271 = vmatprep.subr.mxu0 0.0
    %1272 = vmatpush1.msra.mxu0 0.0
    %1273 = vmatprep.subr.mxu0 0.0
    %1274 = vmatpush1.msra.mxu0 0.0
    %1275 = vmatprep.subr.mxu0 0.0
    %1276 = vmatpush1.msra.mxu0 0.0
    %1277 = vmatprep.subr.mxu0 0.0
    %1278 = vmatpush1.msra.mxu0 0.0
    %1279 = vmatprep.subr.mxu0 0.0
    %1280 = vmatpush1.msra.mxu0 0.0
    %1281 = vmatprep.subr.mxu0 0.0
    %1282 = vmatpush1.msra.mxu0 0.0
    %1283 = vmatprep.subr.mxu0 0.0
    %1284 = vmatpush1.msra.mxu0 0.0
    %1285 = vmatprep.subr.mxu0 0.0
    %1286 = vmatpush1.msra.mxu0 0.0
    %1287 = vmatprep.subr.mxu0 0.0
    %1288 = vmatpush1.msra.mxu0 0.0
    %1289 = vmatprep.subr.mxu0 0.0
    %1290 = vmatpush1.msra.mxu0 0.0
    %1291 = vmatprep.subr.mxu0 0.0
    %1292 = vmatpush1.msra.mxu0 0.0
    %1293 = vmatprep.subr.mxu0 0.0
    %1294 = vmatpush1.msra.mxu0 0.0
    %1295 = vmatprep.subr.mxu0 0.0
    %1296 = vmatpush1.msra.mxu0 0.0
    %1297 = vmatprep.subr.mxu0 0.0
    %1298 = vmatpush1.msra.mxu0 0.0
    %1299 = vmatprep.subr.mxu0 0.0
    %1300 = vmatpush1.msra.mxu0 0.0
    %1301 = vmatprep.subr.mxu0 0.0
    %1302 = vmatpush1.msra.mxu0 0.0
    %1303 = vmatprep.subr.mxu0 0.0
    %1304 = vmatpush1.msra.mxu0 0.0
    %1305 = vmatprep.subr.mxu0 0.0
    %1306 = vmatpush1.msra.mxu0 0.0
    %1307 = vmatprep.subr.mxu0 0.0
    %1308 = vmatpush1.msra.mxu0 0.0
    %1309 = vmatprep.subr.mxu0 0.0
    %1310 = vmatpush1.msra.mxu0 0.0
    %1311 = vmatprep.subr.mxu0 0.0
    %1312 = vmatpush1.msra.mxu0 0.0
    %1313 = vmatprep.subr.mxu0 0.0
    %1314 = vmatpush1.msra.mxu0 0.0
    %1315 = vmatprep.subr.mxu0 0.0
    %1316 = vmatpush1.msra.mxu0 0.0
    %1317 = vmatprep.subr.mxu0 0.0
    %1318 = vmatpush1.msra.mxu0 0.0
    %1319 = vmatprep.subr.mxu0 0.0
    %1320 = vmatpush1.msra.mxu0 0.0
    %1321 = vmatprep.mubr.f32.mxu0 0.0
    %1322 = vmatmul.mubr.f32.gmra.mrb[0].mxu0 %v555
    %v1323 = vpop.f32.mrb[0].mxu0
    %v1324 = vadd.f32 %v537, %v1323
    %v1325 = vpop.f32.mrb[0].mxu0
    %1326 = vdwg.mxu0
    %1327 = vmatprep.subr.mxu0 0.0
    %1328 = vmatpush1.msra.mxu0 %v450
    %1329 = vmatprep.subr.mxu0 0.0
    %1330 = vmatpush1.msra.mxu0 %v451
    %1331 = vmatprep.subr.mxu0 0.0
    %1332 = vmatpush1.msra.mxu0 %v452
    %1333 = vmatprep.subr.mxu0 0.0
    %1334 = vmatpush1.msra.mxu0 %v453
    %1335 = vmatprep.subr.mxu0 0.0
    %1336 = vmatpush1.msra.mxu0 0.0
    %1337 = vmatprep.subr.mxu0 0.0
    %1338 = vmatpush1.msra.mxu0 0.0
    %1339 = vmatprep.subr.mxu0 0.0
    %1340 = vmatpush1.msra.mxu0 0.0
    %1341 = vmatprep.subr.mxu0 0.0
    %1342 = vmatpush1.msra.mxu0 0.0
    %1343 = vmatprep.subr.mxu0 0.0
    %1344 = vmatpush1.msra.mxu0 0.0
    %1345 = vmatprep.subr.mxu0 0.0
    %1346 = vmatpush1.msra.mxu0 0.0
    %1347 = vmatprep.subr.mxu0 0.0
    %1348 = vmatpush1.msra.mxu0 0.0
    %1349 = vmatprep.subr.mxu0 0.0
    %1350 = vmatpush1.msra.mxu0 0.0
    %1351 = vmatprep.subr.mxu0 0.0
    %1352 = vmatpush1.msra.mxu0 0.0
    %1353 = vmatprep.subr.mxu0 0.0
    %1354 = vmatpush1.msra.mxu0 0.0
    %1355 = vmatprep.subr.mxu0 0.0
    %1356 = vmatpush1.msra.mxu0 0.0
    %1357 = vmatprep.subr.mxu0 0.0
    %1358 = vmatpush1.msra.mxu0 0.0
    %1359 = vmatprep.subr.mxu0 0.0
    %1360 = vmatpush1.msra.mxu0 0.0
    %1361 = vmatprep.subr.mxu0 0.0
    %1362 = vmatpush1.msra.mxu0 0.0
    %1363 = vmatprep.subr.mxu0 0.0
    %1364 = vmatpush1.msra.mxu0 0.0
    %1365 = vmatprep.subr.mxu0 0.0
    %1366 = vmatpush1.msra.mxu0 0.0
    %1367 = vmatprep.subr.mxu0 0.0
    %1368 = vmatpush1.msra.mxu0 0.0
    %1369 = vmatprep.subr.mxu0 0.0
    %1370 = vmatpush1.msra.mxu0 0.0
    %1371 = vmatprep.subr.mxu0 0.0
    %1372 = vmatpush1.msra.mxu0 0.0
    %1373 = vmatprep.subr.mxu0 0.0
    %1374 = vmatpush1.msra.mxu0 0.0
    %1375 = vmatprep.subr.mxu0 0.0
    %1376 = vmatpush1.msra.mxu0 0.0
    %1377 = vmatprep.subr.mxu0 0.0
    %1378 = vmatpush1.msra.mxu0 0.0
    %1379 = vmatprep.subr.mxu0 0.0
    %1380 = vmatpush1.msra.mxu0 0.0
    %1381 = vmatprep.subr.mxu0 0.0
    %1382 = vmatpush1.msra.mxu0 0.0
    %1383 = vmatprep.subr.mxu0 0.0
    %1384 = vmatpush1.msra.mxu0 0.0
    %1385 = vmatprep.subr.mxu0 0.0
    %1386 = vmatpush1.msra.mxu0 0.0
    %1387 = vmatprep.subr.mxu0 0.0
    %1388 = vmatpush1.msra.mxu0 0.0
    %1389 = vmatprep.subr.mxu0 0.0
    %1390 = vmatpush1.msra.mxu0 0.0
    %1391 = vmatprep.mubr.f32.mxu0 0.0
    %1392 = vmatmul.mubr.f32.gmra.mrb[0].mxu0 %v555
    %v1393 = vpop.f32.mrb[0].mxu0
    %v1394 = vadd.f32 %v541, %v1393
    %v1395 = vpop.f32.mrb[0].mxu0
    %1396 = vdwg.mxu0
    %v1401 = vcombine.high %v624, %v624
    %v1403 = vunpack.c.l.s4 1966171168
    %v1404 = vunpack.c.0.s8 %v1403
    %v1405 = vlaneseq
    %v1406 = vshrl.u32 %v1405, 7
    %v1407 = vsub.s32 %v1404, %v1406
    %v1408 = vrot.slane %v624, %v1407
    %v1410 = vunpack.c.l.s4 1966171168
    %v1411 = vunpack.c.0.s8 %v1410
    %v1412 = vlaneseq
    %v1413 = vshrl.u32 %v1412, 7
    %v1414 = vsub.s32 %v1411, %v1413
    %v1415 = vrot.slane %v1401, %v1414
    %v1416 = vcombine.high %v1408, %v1408
    %v1417 = vcombine.high %v1415, %v1415
    %v1419 = vunpack.c.l.s4 1966171168
    %v1420 = vunpack.c.0.s8 %v1419
    %v1421 = vlaneseq
    %v1422 = vshrl.u32 %v1421, 7
    %v1423 = vsub.s32 %v1420, %v1422
    %v1424 = vrot.slane %v1408, %v1423
    %v1426 = vunpack.c.l.s4 1966171168
    %v1427 = vunpack.c.0.s8 %v1426
    %v1428 = vlaneseq
    %v1429 = vshrl.u32 %v1428, 7
    %v1430 = vsub.s32 %v1427, %v1429
    %v1431 = vrot.slane %v1415, %v1430
    %v1433 = vunpack.c.l.s4 1966171168
    %v1434 = vunpack.c.0.s8 %v1433
    %v1435 = vlaneseq
    %v1436 = vshrl.u32 %v1435, 7
    %v1437 = vsub.s32 %v1434, %v1436
    %v1438 = vrot.slane %v1416, %v1437
    %v1440 = vunpack.c.l.s4 1966171168
    %v1441 = vunpack.c.0.s8 %v1440
    %v1442 = vlaneseq
    %v1443 = vshrl.u32 %v1442, 7
    %v1444 = vsub.s32 %v1441, %v1443
    %v1445 = vrot.slane %v1417, %v1444
    %v1446 = vcombine.high %v1424, %v1424
    %v1447 = vcombine.high %v1431, %v1431
    %v1448 = vcombine.high %v1438, %v1438
    %v1449 = vcombine.high %v1445, %v1445
    %v1450 = vcombine.high %v694, %v694
    %v1452 = vunpack.c.l.s4 1966171168
    %v1453 = vunpack.c.0.s8 %v1452
    %v1454 = vlaneseq
    %v1455 = vshrl.u32 %v1454, 7
    %v1456 = vsub.s32 %v1453, %v1455
    %v1457 = vrot.slane %v694, %v1456
    %v1459 = vunpack.c.l.s4 1966171168
    %v1460 = vunpack.c.0.s8 %v1459
    %v1461 = vlaneseq
    %v1462 = vshrl.u32 %v1461, 7
    %v1463 = vsub.s32 %v1460, %v1462
    %v1464 = vrot.slane %v1450, %v1463
    %v1465 = vcombine.high %v1457, %v1457
    %v1466 = vcombine.high %v1464, %v1464
    %v1468 = vunpack.c.l.s4 1966171168
    %v1469 = vunpack.c.0.s8 %v1468
    %v1470 = vlaneseq
    %v1471 = vshrl.u32 %v1470, 7
    %v1472 = vsub.s32 %v1469, %v1471
    %v1473 = vrot.slane %v1457, %v1472
    %v1475 = vunpack.c.l.s4 1966171168
    %v1476 = vunpack.c.0.s8 %v1475
    %v1477 = vlaneseq
    %v1478 = vshrl.u32 %v1477, 7
    %v1479 = vsub.s32 %v1476, %v1478
    %v1480 = vrot.slane %v1464, %v1479
    %v1482 = vunpack.c.l.s4 1966171168
    %v1483 = vunpack.c.0.s8 %v1482
    %v1484 = vlaneseq
    %v1485 = vshrl.u32 %v1484, 7
    %v1486 = vsub.s32 %v1483, %v1485
    %v1487 = vrot.slane %v1465, %v1486
    %v1489 = vunpack.c.l.s4 1966171168
    %v1490 = vunpack.c.0.s8 %v1489
    %v1491 = vlaneseq
    %v1492 = vshrl.u32 %v1491, 7
    %v1493 = vsub.s32 %v1490, %v1492
    %v1494 = vrot.slane %v1466, %v1493
    %v1495 = vcombine.high %v1473, %v1473
    %v1496 = vcombine.high %v1480, %v1480
    %v1497 = vcombine.high %v1487, %v1487
    %v1498 = vcombine.high %v1494, %v1494
    %v1499 = vcombine.high %v764, %v764
    %v1501 = vunpack.c.l.s4 1966171168
    %v1502 = vunpack.c.0.s8 %v1501
    %v1503 = vlaneseq
    %v1504 = vshrl.u32 %v1503, 7
    %v1505 = vsub.s32 %v1502, %v1504
    %v1506 = vrot.slane %v764, %v1505
    %v1508 = vunpack.c.l.s4 1966171168
    %v1509 = vunpack.c.0.s8 %v1508
    %v1510 = vlaneseq
    %v1511 = vshrl.u32 %v1510, 7
    %v1512 = vsub.s32 %v1509, %v1511
    %v1513 = vrot.slane %v1499, %v1512
    %v1514 = vcombine.high %v1506, %v1506
    %v1515 = vcombine.high %v1513, %v1513
    %v1517 = vunpack.c.l.s4 1966171168
    %v1518 = vunpack.c.0.s8 %v1517
    %v1519 = vlaneseq
    %v1520 = vshrl.u32 %v1519, 7
    %v1521 = vsub.s32 %v1518, %v1520
    %v1522 = vrot.slane %v1506, %v1521
    %v1524 = vunpack.c.l.s4 1966171168
    %v1525 = vunpack.c.0.s8 %v1524
    %v1526 = vlaneseq
    %v1527 = vshrl.u32 %v1526, 7
    %v1528 = vsub.s32 %v1525, %v1527
    %v1529 = vrot.slane %v1513, %v1528
    %v1531 = vunpack.c.l.s4 1966171168
    %v1532 = vunpack.c.0.s8 %v1531
    %v1533 = vlaneseq
    %v1534 = vshrl.u32 %v1533, 7
    %v1535 = vsub.s32 %v1532, %v1534
    %v1536 = vrot.slane %v1514, %v1535
    %v1538 = vunpack.c.l.s4 1966171168
    %v1539 = vunpack.c.0.s8 %v1538
    %v1540 = vlaneseq
    %v1541 = vshrl.u32 %v1540, 7
    %v1542 = vsub.s32 %v1539, %v1541
    %v1543 = vrot.slane %v1515, %v1542
    %v1544 = vcombine.high %v1522, %v1522
    %v1545 = vcombine.high %v1529, %v1529
    %v1546 = vcombine.high %v1536, %v1536
    %v1547 = vcombine.high %v1543, %v1543
    %v1548 = vcombine.high %v834, %v834
    %v1550 = vunpack.c.l.s4 1966171168
    %v1551 = vunpack.c.0.s8 %v1550
    %v1552 = vlaneseq
    %v1553 = vshrl.u32 %v1552, 7
    %v1554 = vsub.s32 %v1551, %v1553
    %v1555 = vrot.slane %v834, %v1554
    %v1557 = vunpack.c.l.s4 1966171168
    %v1558 = vunpack.c.0.s8 %v1557
    %v1559 = vlaneseq
    %v1560 = vshrl.u32 %v1559, 7
    %v1561 = vsub.s32 %v1558, %v1560
    %v1562 = vrot.slane %v1548, %v1561
    %v1563 = vcombine.high %v1555, %v1555
    %v1564 = vcombine.high %v1562, %v1562
    %v1566 = vunpack.c.l.s4 1966171168
    %v1567 = vunpack.c.0.s8 %v1566
    %v1568 = vlaneseq
    %v1569 = vshrl.u32 %v1568, 7
    %v1570 = vsub.s32 %v1567, %v1569
    %v1571 = vrot.slane %v1555, %v1570
    %v1573 = vunpack.c.l.s4 1966171168
    %v1574 = vunpack.c.0.s8 %v1573
    %v1575 = vlaneseq
    %v1576 = vshrl.u32 %v1575, 7
    %v1577 = vsub.s32 %v1574, %v1576
    %v1578 = vrot.slane %v1562, %v1577
    %v1580 = vunpack.c.l.s4 1966171168
    %v1581 = vunpack.c.0.s8 %v1580
    %v1582 = vlaneseq
    %v1583 = vshrl.u32 %v1582, 7
    %v1584 = vsub.s32 %v1581, %v1583
    %v1585 = vrot.slane %v1563, %v1584
    %v1587 = vunpack.c.l.s4 1966171168
    %v1588 = vunpack.c.0.s8 %v1587
    %v1589 = vlaneseq
    %v1590 = vshrl.u32 %v1589, 7
    %v1591 = vsub.s32 %v1588, %v1590
    %v1592 = vrot.slane %v1564, %v1591
    %v1593 = vcombine.high %v1571, %v1571
    %v1594 = vcombine.high %v1578, %v1578
    %v1595 = vcombine.high %v1585, %v1585
    %v1596 = vcombine.high %v1592, %v1592
    %v1597 = vlaneseq
    %v1598 = vshrl.u32 %v1597, 7
    %v1599 = vsub.s32 0, %v1598
    %v1600 = vrot.slane %v1424, %v1599
    %v1601 = vlaneseq
    %v1602 = vshrl.u32 %v1601, 7
    %v1603 = vsub.s32 0, %v1602
    %v1604 = vrot.slane %v1438, %v1603
    %v1605 = vlaneseq
    %v1606 = vshrl.u32 %v1605, 7
    %v1607 = vsub.s32 0, %v1606
    %v1608 = vrot.slane %v1446, %v1607
    %v1609 = vlaneseq
    %v1610 = vshrl.u32 %v1609, 7
    %v1611 = vsub.s32 0, %v1610
    %v1612 = vrot.slane %v1448, %v1611
    %v1613 = vlaneseq
    %v1614 = vshrl.u32 %v1613, 7
    %v1615 = vsub.s32 0, %v1614
    %v1616 = vrot.slane %v1431, %v1615
    %v1617 = vlaneseq
    %v1618 = vshrl.u32 %v1617, 7
    %v1619 = vsub.s32 0, %v1618
    %v1620 = vrot.slane %v1445, %v1619
    %v1621 = vlaneseq
    %v1622 = vshrl.u32 %v1621, 7
    %v1623 = vsub.s32 0, %v1622
    %v1624 = vrot.slane %v1447, %v1623
    %v1625 = vlaneseq
    %v1626 = vshrl.u32 %v1625, 7
    %v1627 = vsub.s32 0, %v1626
    %v1628 = vrot.slane %v1449, %v1627
    %v1629 = vlaneseq
    %v1630 = vshrl.u32 %v1629, 7
    %v1631 = vsub.s32 0, %v1630
    %v1632 = vrot.slane %v1473, %v1631
    %v1633 = vlaneseq
    %v1634 = vshrl.u32 %v1633, 7
    %v1635 = vsub.s32 0, %v1634
    %v1636 = vrot.slane %v1487, %v1635
    %v1637 = vlaneseq
    %v1638 = vshrl.u32 %v1637, 7
    %v1639 = vsub.s32 0, %v1638
    %v1640 = vrot.slane %v1495, %v1639
    %v1641 = vlaneseq
    %v1642 = vshrl.u32 %v1641, 7
    %v1643 = vsub.s32 0, %v1642
    %v1644 = vrot.slane %v1497, %v1643
    %v1645 = vlaneseq
    %v1646 = vshrl.u32 %v1645, 7
    %v1647 = vsub.s32 0, %v1646
    %v1648 = vrot.slane %v1480, %v1647
    %v1649 = vlaneseq
    %v1650 = vshrl.u32 %v1649, 7
    %v1651 = vsub.s32 0, %v1650
    %v1652 = vrot.slane %v1494, %v1651
    %v1653 = vlaneseq
    %v1654 = vshrl.u32 %v1653, 7
    %v1655 = vsub.s32 0, %v1654
    %v1656 = vrot.slane %v1496, %v1655
    %v1657 = vlaneseq
    %v1658 = vshrl.u32 %v1657, 7
    %v1659 = vsub.s32 0, %v1658
    %v1660 = vrot.slane %v1498, %v1659
    %v1661 = vlaneseq
    %v1662 = vshrl.u32 %v1661, 7
    %v1663 = vsub.s32 0, %v1662
    %v1664 = vrot.slane %v1522, %v1663
    %v1665 = vlaneseq
    %v1666 = vshrl.u32 %v1665, 7
    %v1667 = vsub.s32 0, %v1666
    %v1668 = vrot.slane %v1536, %v1667
    %v1669 = vlaneseq
    %v1670 = vshrl.u32 %v1669, 7
    %v1671 = vsub.s32 0, %v1670
    %v1672 = vrot.slane %v1544, %v1671
    %v1673 = vlaneseq
    %v1674 = vshrl.u32 %v1673, 7
    %v1675 = vsub.s32 0, %v1674
    %v1676 = vrot.slane %v1546, %v1675
    %v1677 = vlaneseq
    %v1678 = vshrl.u32 %v1677, 7
    %v1679 = vsub.s32 0, %v1678
    %v1680 = vrot.slane %v1529, %v1679
    %v1681 = vlaneseq
    %v1682 = vshrl.u32 %v1681, 7
    %v1683 = vsub.s32 0, %v1682
    %v1684 = vrot.slane %v1543, %v1683
    %v1685 = vlaneseq
    %v1686 = vshrl.u32 %v1685, 7
    %v1687 = vsub.s32 0, %v1686
    %v1688 = vrot.slane %v1545, %v1687
    %v1689 = vlaneseq
    %v1690 = vshrl.u32 %v1689, 7
    %v1691 = vsub.s32 0, %v1690
    %v1692 = vrot.slane %v1547, %v1691
    %v1693 = vlaneseq
    %v1694 = vshrl.u32 %v1693, 7
    %v1695 = vsub.s32 0, %v1694
    %v1696 = vrot.slane %v1571, %v1695
    %v1697 = vlaneseq
    %v1698 = vshrl.u32 %v1697, 7
    %v1699 = vsub.s32 0, %v1698
    %v1700 = vrot.slane %v1585, %v1699
    %v1701 = vlaneseq
    %v1702 = vshrl.u32 %v1701, 7
    %v1703 = vsub.s32 0, %v1702
    %v1704 = vrot.slane %v1593, %v1703
    %v1705 = vlaneseq
    %v1706 = vshrl.u32 %v1705, 7
    %v1707 = vsub.s32 0, %v1706
    %v1708 = vrot.slane %v1595, %v1707
    %v1709 = vlaneseq
    %v1710 = vshrl.u32 %v1709, 7
    %v1711 = vsub.s32 0, %v1710
    %v1712 = vrot.slane %v1578, %v1711
    %v1713 = vlaneseq
    %v1714 = vshrl.u32 %v1713, 7
    %v1715 = vsub.s32 0, %v1714
    %v1716 = vrot.slane %v1592, %v1715
    %v1717 = vlaneseq
    %v1718 = vshrl.u32 %v1717, 7
    %v1719 = vsub.s32 0, %v1718
    %v1720 = vrot.slane %v1594, %v1719
    %v1721 = vlaneseq
    %v1722 = vshrl.u32 %v1721, 7
    %v1723 = vsub.s32 0, %v1722
    %v1724 = vrot.slane %v1596, %v1723
    %v1757 = vmul.f32 %v1600, %v238
    %v1758 = vmul.f32 %v1604, %v243
    %v1759 = vmul.f32 %v1608, %v248
    %v1760 = vmul.f32 %v1612, %v253
    %v1761 = vmul.f32 %v1616, %v258
    %v1762 = vmul.f32 %v1620, %v263
    %v1763 = vmul.f32 %v1624, %v268
    %v1764 = vmul.f32 %v1628, %v273
    %v1765 = vmul.f32 %v1632, %v238
    %v1766 = vmul.f32 %v1636, %v243
    %v1767 = vmul.f32 %v1640, %v248
    %v1768 = vmul.f32 %v1644, %v253
    %v1769 = vmul.f32 %v1648, %v258
    %v1770 = vmul.f32 %v1652, %v263
    %v1771 = vmul.f32 %v1656, %v268
    %v1772 = vmul.f32 %v1660, %v273
    %v1773 = vmul.f32 %v1664, %v238
    %v1774 = vmul.f32 %v1668, %v243
    %v1775 = vmul.f32 %v1672, %v248
    %v1776 = vmul.f32 %v1676, %v253
    %v1777 = vmul.f32 %v1680, %v258
    %v1778 = vmul.f32 %v1684, %v263
    %v1779 = vmul.f32 %v1688, %v268
    %v1780 = vmul.f32 %v1692, %v273
    %v1781 = vmul.f32 %v1696, %v238
    %v1782 = vmul.f32 %v1700, %v243
    %v1783 = vmul.f32 %v1704, %v248
    %v1784 = vmul.f32 %v1708, %v253
    %v1785 = vmul.f32 %v1712, %v258
    %v1786 = vmul.f32 %v1716, %v263
    %v1787 = vmul.f32 %v1720, %v268
    %v1788 = vmul.f32 %v1724, %v273
    %vm1789 = vcmask 64512
    %v1790 = vsel %vm1789, %v1757, 0.0
    %1791 = vadd.xlane.f32.xlu0 %v1790
    %v1792 = vpop.xlane.xlu0 %1791
    %v1793 = vsel %vm1789, %v1758, 0.0
    %1794 = vadd.xlane.f32.xlu0 %v1793
    %v1795 = vpop.xlane.xlu0 %1794
    %v1796 = vsel %vm1789, %v1759, 0.0
    %1797 = vadd.xlane.f32.xlu0 %v1796
    %v1798 = vpop.xlane.xlu0 %1797
    %v1799 = vsel %vm1789, %v1760, 0.0
    %1800 = vadd.xlane.f32.xlu0 %v1799
    %v1801 = vpop.xlane.xlu0 %1800
    %v1802 = vsel %vm1789, %v1761, 0.0
    %1803 = vadd.xlane.f32.xlu0 %v1802
    %v1804 = vpop.xlane.xlu0 %1803
    %v1805 = vsel %vm1789, %v1762, 0.0
    %1806 = vadd.xlane.f32.xlu0 %v1805
    %v1807 = vpop.xlane.xlu0 %1806
    %v1808 = vsel %vm1789, %v1763, 0.0
    %1809 = vadd.xlane.f32.xlu0 %v1808
    %v1810 = vpop.xlane.xlu0 %1809
    %v1811 = vsel %vm1789, %v1764, 0.0
    %1812 = vadd.xlane.f32.xlu0 %v1811
    %v1813 = vpop.xlane.xlu0 %1812
    %v1814 = vsel %vm1789, %v1765, 0.0
    %1815 = vadd.xlane.f32.xlu0 %v1814
    %v1816 = vpop.xlane.xlu0 %1815
    %v1817 = vsel %vm1789, %v1766, 0.0
    %1818 = vadd.xlane.f32.xlu0 %v1817
    %v1819 = vpop.xlane.xlu0 %1818
    %v1820 = vsel %vm1789, %v1767, 0.0
    %1821 = vadd.xlane.f32.xlu0 %v1820
    %v1822 = vpop.xlane.xlu0 %1821
    %v1823 = vsel %vm1789, %v1768, 0.0
    %1824 = vadd.xlane.f32.xlu0 %v1823
    %v1825 = vpop.xlane.xlu0 %1824
    %v1826 = vsel %vm1789, %v1769, 0.0
    %1827 = vadd.xlane.f32.xlu0 %v1826
    %v1828 = vpop.xlane.xlu0 %1827
    %v1829 = vsel %vm1789, %v1770, 0.0
    %1830 = vadd.xlane.f32.xlu0 %v1829
    %v1831 = vpop.xlane.xlu0 %1830
    %v1832 = vsel %vm1789, %v1771, 0.0
    %1833 = vadd.xlane.f32.xlu0 %v1832
    %v1834 = vpop.xlane.xlu0 %1833
    %v1835 = vsel %vm1789, %v1772, 0.0
    %1836 = vadd.xlane.f32.xlu0 %v1835
    %v1837 = vpop.xlane.xlu0 %1836
    %v1838 = vsel %vm1789, %v1773, 0.0
    %1839 = vadd.xlane.f32.xlu0 %v1838
    %v1840 = vpop.xlane.xlu0 %1839
    %v1841 = vsel %vm1789, %v1774, 0.0
    %1842 = vadd.xlane.f32.xlu0 %v1841
    %v1843 = vpop.xlane.xlu0 %1842
    %v1844 = vsel %vm1789, %v1775, 0.0
    %1845 = vadd.xlane.f32.xlu0 %v1844
    %v1846 = vpop.xlane.xlu0 %1845
    %v1847 = vsel %vm1789, %v1776, 0.0
    %1848 = vadd.xlane.f32.xlu0 %v1847
    %v1849 = vpop.xlane.xlu0 %1848
    %v1850 = vsel %vm1789, %v1777, 0.0
    %1851 = vadd.xlane.f32.xlu0 %v1850
    %v1852 = vpop.xlane.xlu0 %1851
    %v1853 = vsel %vm1789, %v1778, 0.0
    %1854 = vadd.xlane.f32.xlu0 %v1853
    %v1855 = vpop.xlane.xlu0 %1854
    %v1856 = vsel %vm1789, %v1779, 0.0
    %1857 = vadd.xlane.f32.xlu0 %v1856
    %v1858 = vpop.xlane.xlu0 %1857
    %v1859 = vsel %vm1789, %v1780, 0.0
    %1860 = vadd.xlane.f32.xlu0 %v1859
    %v1861 = vpop.xlane.xlu0 %1860
    %v1862 = vsel %vm1789, %v1781, 0.0
    %1863 = vadd.xlane.f32.xlu0 %v1862
    %v1864 = vpop.xlane.xlu0 %1863
    %v1865 = vsel %vm1789, %v1782, 0.0
    %1866 = vadd.xlane.f32.xlu0 %v1865
    %v1867 = vpop.xlane.xlu0 %1866
    %v1868 = vsel %vm1789, %v1783, 0.0
    %1869 = vadd.xlane.f32.xlu0 %v1868
    %v1870 = vpop.xlane.xlu0 %1869
    %v1871 = vsel %vm1789, %v1784, 0.0
    %1872 = vadd.xlane.f32.xlu0 %v1871
    %v1873 = vpop.xlane.xlu0 %1872
    %v1874 = vsel %vm1789, %v1785, 0.0
    %1875 = vadd.xlane.f32.xlu0 %v1874
    %v1876 = vpop.xlane.xlu0 %1875
    %v1877 = vsel %vm1789, %v1786, 0.0
    %1878 = vadd.xlane.f32.xlu0 %v1877
    %v1879 = vpop.xlane.xlu0 %1878
    %v1880 = vsel %vm1789, %v1787, 0.0
    %1881 = vadd.xlane.f32.xlu0 %v1880
    %v1882 = vpop.xlane.xlu0 %1881
    %v1883 = vsel %vm1789, %v1788, 0.0
    %1884 = vadd.xlane.f32.xlu0 %v1883
    %v1885 = vpop.xlane.xlu0 %1884
    %v1894 = vlaneseq
    %v1895 = vshrl.u32 %v1894, 7
    %v1896 = vsub.s32 %v60, %v1895
    %v1897 = vrot.slane %v1792, %v1896
    %v1898 = vlaneseq
    %v1899 = vshrl.u32 %v1898, 7
    %v1900 = vsub.s32 %v60, %v1899
    %v1901 = vrot.slane %v1795, %v1900
    %v1902 = vlaneseq
    %v1903 = vshrl.u32 %v1902, 7
    %v1904 = vsub.s32 %v60, %v1903
    %v1905 = vrot.slane %v1798, %v1904
    %v1906 = vlaneseq
    %v1907 = vshrl.u32 %v1906, 7
    %v1908 = vsub.s32 %v60, %v1907
    %v1909 = vrot.slane %v1801, %v1908
    %v1910 = vlaneseq
    %v1911 = vshrl.u32 %v1910, 7
    %v1912 = vsub.s32 %v60, %v1911
    %v1913 = vrot.slane %v1804, %v1912
    %v1914 = vlaneseq
    %v1915 = vshrl.u32 %v1914, 7
    %v1916 = vsub.s32 %v60, %v1915
    %v1917 = vrot.slane %v1807, %v1916
    %v1918 = vlaneseq
    %v1919 = vshrl.u32 %v1918, 7
    %v1920 = vsub.s32 %v60, %v1919
    %v1921 = vrot.slane %v1810, %v1920
    %v1922 = vlaneseq
    %v1923 = vshrl.u32 %v1922, 7
    %v1924 = vsub.s32 %v60, %v1923
    %v1925 = vrot.slane %v1813, %v1924
    %vm1926 = vcmask 1041409
    %v1927 = vsel %vm1926, %v1901, %v1897
    %vm1928 = vcmask 1042434
    %v1929 = vsel %vm1928, %v1905, %v1927
    %vm1930 = vcmask 1043459
    %v1931 = vsel %vm1930, %v1909, %v1929
    %vm1932 = vcmask 1044484
    %v1933 = vsel %vm1932, %v1913, %v1931
    %vm1934 = vcmask 1045509
    %v1935 = vsel %vm1934, %v1917, %v1933
    %vm1936 = vcmask 1046534
    %v1937 = vsel %vm1936, %v1921, %v1935
    %vm1938 = vcmask 1047559
    %v1939 = vsel %vm1938, %v1925, %v1937
    %v1941 = vsel %vm1789, %v624, 0
    %v1944 = vsel %vm1789, %v904, 0
    %1946 = vmatprep.subr.mxu0 0.0
    %1947 = vmatpush1.xpose.msra.mxu0 %v1944
    %1948 = vmatprep.subr.mxu0 0.0
    %1949 = vmatpush1.xpose.msra.mxu0 0.0
    %1950 = vmatprep.subr.mxu0 0.0
    %1951 = vmatpush1.xpose.msra.mxu0 0.0
    %1952 = vmatprep.subr.mxu0 0.0
    %1953 = vmatpush1.xpose.msra.mxu0 0.0
    %1954 = vmatprep.subr.mxu0 0.0
    %1955 = vmatpush1.xpose.msra.mxu0 0.0
    %1956 = vmatprep.subr.mxu0 0.0
    %1957 = vmatpush1.xpose.msra.mxu0 0.0
    %1958 = vmatprep.subr.mxu0 0.0
    %1959 = vmatpush1.xpose.msra.mxu0 0.0
    %1960 = vmatprep.subr.mxu0 0.0
    %1961 = vmatpush1.xpose.msra.mxu0 0.0
    %1962 = vmatprep.subr.mxu0 0.0
    %1963 = vmatpush1.xpose.msra.mxu0 0.0
    %1964 = vmatprep.subr.mxu0 0.0
    %1965 = vmatpush1.xpose.msra.mxu0 0.0
    %1966 = vmatprep.subr.mxu0 0.0
    %1967 = vmatpush1.xpose.msra.mxu0 0.0
    %1968 = vmatprep.subr.mxu0 0.0
    %1969 = vmatpush1.xpose.msra.mxu0 0.0
    %1970 = vmatprep.subr.mxu0 0.0
    %1971 = vmatpush1.xpose.msra.mxu0 0.0
    %1972 = vmatprep.subr.mxu0 0.0
    %1973 = vmatpush1.xpose.msra.mxu0 0.0
    %1974 = vmatprep.subr.mxu0 0.0
    %1975 = vmatpush1.xpose.msra.mxu0 0.0
    %1976 = vmatprep.subr.mxu0 0.0
    %1977 = vmatpush1.xpose.msra.mxu0 0.0
    %1978 = vmatprep.subr.mxu0 0.0
    %1979 = vmatpush1.xpose.msra.mxu0 0.0
    %1980 = vmatprep.subr.mxu0 0.0
    %1981 = vmatpush1.xpose.msra.mxu0 0.0
    %1982 = vmatprep.subr.mxu0 0.0
    %1983 = vmatpush1.xpose.msra.mxu0 0.0
    %1984 = vmatprep.subr.mxu0 0.0
    %1985 = vmatpush1.xpose.msra.mxu0 0.0
    %1986 = vmatprep.subr.mxu0 0.0
    %1987 = vmatpush1.xpose.msra.mxu0 0.0
    %1988 = vmatprep.subr.mxu0 0.0
    %1989 = vmatpush1.xpose.msra.mxu0 0.0
    %1990 = vmatprep.subr.mxu0 0.0
    %1991 = vmatpush1.xpose.msra.mxu0 0.0
    %1992 = vmatprep.subr.mxu0 0.0
    %1993 = vmatpush1.xpose.msra.mxu0 0.0
    %1994 = vmatprep.subr.mxu0 0.0
    %1995 = vmatpush1.xpose.msra.mxu0 0.0
    %1996 = vmatprep.subr.mxu0 0.0
    %1997 = vmatpush1.xpose.msra.mxu0 0.0
    %1998 = vmatprep.subr.mxu0 0.0
    %1999 = vmatpush1.xpose.msra.mxu0 0.0
    %2000 = vmatprep.subr.mxu0 0.0
    %2001 = vmatpush1.xpose.msra.mxu0 0.0
    %2002 = vmatprep.subr.mxu0 0.0
    %2003 = vmatpush1.xpose.msra.mxu0 0.0
    %2004 = vmatprep.subr.mxu0 0.0
    %2005 = vmatpush1.xpose.msra.mxu0 0.0
    %2006 = vmatprep.subr.mxu0 0.0
    %2007 = vmatpush1.xpose.msra.mxu0 0.0
    %2008 = vmatprep.subr.mxu0 0.0
    %2009 = vmatpush1.xpose.msra.mxu0 0.0
    %2010 = vmatprep.mubr.f32.mxu0 0.0
    %2011 = vmatmul.mubr.f32.gmra.mrb[0].mxu0 %v1941
    %v2012 = vpop.f32.mrb[0].mxu0
    %v2013 = vadd.f32 %v1939, %v2012
    %v2014 = vpop.f32.mrb[0].mxu0
    %2015 = vdwg.mxu0
    %v2024 = vlaneseq
    %v2025 = vshrl.u32 %v2024, 7
    %v2026 = vsub.s32 %v60, %v2025
    %v2027 = vrot.slane %v1816, %v2026
    %v2028 = vlaneseq
    %v2029 = vshrl.u32 %v2028, 7
    %v2030 = vsub.s32 %v60, %v2029
    %v2031 = vrot.slane %v1819, %v2030
    %v2032 = vlaneseq
    %v2033 = vshrl.u32 %v2032, 7
    %v2034 = vsub.s32 %v60, %v2033
    %v2035 = vrot.slane %v1822, %v2034
    %v2036 = vlaneseq
    %v2037 = vshrl.u32 %v2036, 7
    %v2038 = vsub.s32 %v60, %v2037
    %v2039 = vrot.slane %v1825, %v2038
    %v2040 = vlaneseq
    %v2041 = vshrl.u32 %v2040, 7
    %v2042 = vsub.s32 %v60, %v2041
    %v2043 = vrot.slane %v1828, %v2042
    %v2044 = vlaneseq
    %v2045 = vshrl.u32 %v2044, 7
    %v2046 = vsub.s32 %v60, %v2045
    %v2047 = vrot.slane %v1831, %v2046
    %v2048 = vlaneseq
    %v2049 = vshrl.u32 %v2048, 7
    %v2050 = vsub.s32 %v60, %v2049
    %v2051 = vrot.slane %v1834, %v2050
    %v2052 = vlaneseq
    %v2053 = vshrl.u32 %v2052, 7
    %v2054 = vsub.s32 %v60, %v2053
    %v2055 = vrot.slane %v1837, %v2054
    %v2056 = vsel %vm1926, %v2031, %v2027
    %v2057 = vsel %vm1928, %v2035, %v2056
    %v2058 = vsel %vm1930, %v2039, %v2057
    %v2059 = vsel %vm1932, %v2043, %v2058
    %v2060 = vsel %vm1934, %v2047, %v2059
    %v2061 = vsel %vm1936, %v2051, %v2060
    %v2062 = vsel %vm1938, %v2055, %v2061
    %v2064 = vsel %vm1789, %v694, 0
    %v2067 = vsel %vm1789, %v974, 0
    %2069 = vmatprep.subr.mxu0 0.0
    %2070 = vmatpush1.xpose.msra.mxu0 %v2067
    %2071 = vmatprep.subr.mxu0 0.0
    %2072 = vmatpush1.xpose.msra.mxu0 0.0
    %2073 = vmatprep.subr.mxu0 0.0
    %2074 = vmatpush1.xpose.msra.mxu0 0.0
    %2075 = vmatprep.subr.mxu0 0.0
    %2076 = vmatpush1.xpose.msra.mxu0 0.0
    %2077 = vmatprep.subr.mxu0 0.0
    %2078 = vmatpush1.xpose.msra.mxu0 0.0
    %2079 = vmatprep.subr.mxu0 0.0
    %2080 = vmatpush1.xpose.msra.mxu0 0.0
    %2081 = vmatprep.subr.mxu0 0.0
    %2082 = vmatpush1.xpose.msra.mxu0 0.0
    %2083 = vmatprep.subr.mxu0 0.0
    %2084 = vmatpush1.xpose.msra.mxu0 0.0
    %2085 = vmatprep.subr.mxu0 0.0
    %2086 = vmatpush1.xpose.msra.mxu0 0.0
    %2087 = vmatprep.subr.mxu0 0.0
    %2088 = vmatpush1.xpose.msra.mxu0 0.0
    %2089 = vmatprep.subr.mxu0 0.0
    %2090 = vmatpush1.xpose.msra.mxu0 0.0
    %2091 = vmatprep.subr.mxu0 0.0
    %2092 = vmatpush1.xpose.msra.mxu0 0.0
    %2093 = vmatprep.subr.mxu0 0.0
    %2094 = vmatpush1.xpose.msra.mxu0 0.0
    %2095 = vmatprep.subr.mxu0 0.0
    %2096 = vmatpush1.xpose.msra.mxu0 0.0
    %2097 = vmatprep.subr.mxu0 0.0
    %2098 = vmatpush1.xpose.msra.mxu0 0.0
    %2099 = vmatprep.subr.mxu0 0.0
    %2100 = vmatpush1.xpose.msra.mxu0 0.0
    %2101 = vmatprep.subr.mxu0 0.0
    %2102 = vmatpush1.xpose.msra.mxu0 0.0
    %2103 = vmatprep.subr.mxu0 0.0
    %2104 = vmatpush1.xpose.msra.mxu0 0.0
    %2105 = vmatprep.subr.mxu0 0.0
    %2106 = vmatpush1.xpose.msra.mxu0 0.0
    %2107 = vmatprep.subr.mxu0 0.0
    %2108 = vmatpush1.xpose.msra.mxu0 0.0
    %2109 = vmatprep.subr.mxu0 0.0
    %2110 = vmatpush1.xpose.msra.mxu0 0.0
    %2111 = vmatprep.subr.mxu0 0.0
    %2112 = vmatpush1.xpose.msra.mxu0 0.0
    %2113 = vmatprep.subr.mxu0 0.0
    %2114 = vmatpush1.xpose.msra.mxu0 0.0
    %2115 = vmatprep.subr.mxu0 0.0
    %2116 = vmatpush1.xpose.msra.mxu0 0.0
    %2117 = vmatprep.subr.mxu0 0.0
    %2118 = vmatpush1.xpose.msra.mxu0 0.0
    %2119 = vmatprep.subr.mxu0 0.0
    %2120 = vmatpush1.xpose.msra.mxu0 0.0
    %2121 = vmatprep.subr.mxu0 0.0
    %2122 = vmatpush1.xpose.msra.mxu0 0.0
    %2123 = vmatprep.subr.mxu0 0.0
    %2124 = vmatpush1.xpose.msra.mxu0 0.0
    %2125 = vmatprep.subr.mxu0 0.0
    %2126 = vmatpush1.xpose.msra.mxu0 0.0
    %2127 = vmatprep.subr.mxu0 0.0
    %2128 = vmatpush1.xpose.msra.mxu0 0.0
    %2129 = vmatprep.subr.mxu0 0.0
    %2130 = vmatpush1.xpose.msra.mxu0 0.0
    %2131 = vmatprep.subr.mxu0 0.0
    %2132 = vmatpush1.xpose.msra.mxu0 0.0
    %2133 = vmatprep.mubr.f32.mxu0 0.0
    %2134 = vmatmul.mubr.f32.gmra.mrb[0].mxu0 %v2064
    %v2135 = vpop.f32.mrb[0].mxu0
    %v2136 = vadd.f32 %v2062, %v2135
    %v2137 = vpop.f32.mrb[0].mxu0
    %2138 = vdwg.mxu0
    %v2147 = vlaneseq
    %v2148 = vshrl.u32 %v2147, 7
    %v2149 = vsub.s32 %v60, %v2148
    %v2150 = vrot.slane %v1840, %v2149
    %v2151 = vlaneseq
    %v2152 = vshrl.u32 %v2151, 7
    %v2153 = vsub.s32 %v60, %v2152
    %v2154 = vrot.slane %v1843, %v2153
    %v2155 = vlaneseq
    %v2156 = vshrl.u32 %v2155, 7
    %v2157 = vsub.s32 %v60, %v2156
    %v2158 = vrot.slane %v1846, %v2157
    %v2159 = vlaneseq
    %v2160 = vshrl.u32 %v2159, 7
    %v2161 = vsub.s32 %v60, %v2160
    %v2162 = vrot.slane %v1849, %v2161
    %v2163 = vlaneseq
    %v2164 = vshrl.u32 %v2163, 7
    %v2165 = vsub.s32 %v60, %v2164
    %v2166 = vrot.slane %v1852, %v2165
    %v2167 = vlaneseq
    %v2168 = vshrl.u32 %v2167, 7
    %v2169 = vsub.s32 %v60, %v2168
    %v2170 = vrot.slane %v1855, %v2169
    %v2171 = vlaneseq
    %v2172 = vshrl.u32 %v2171, 7
    %v2173 = vsub.s32 %v60, %v2172
    %v2174 = vrot.slane %v1858, %v2173
    %v2175 = vlaneseq
    %v2176 = vshrl.u32 %v2175, 7
    %v2177 = vsub.s32 %v60, %v2176
    %v2178 = vrot.slane %v1861, %v2177
    %v2179 = vsel %vm1926, %v2154, %v2150
    %v2180 = vsel %vm1928, %v2158, %v2179
    %v2181 = vsel %vm1930, %v2162, %v2180
    %v2182 = vsel %vm1932, %v2166, %v2181
    %v2183 = vsel %vm1934, %v2170, %v2182
    %v2184 = vsel %vm1936, %v2174, %v2183
    %v2185 = vsel %vm1938, %v2178, %v2184
    %v2187 = vsel %vm1789, %v764, 0
    %v2190 = vsel %vm1789, %v1044, 0
    %2192 = vmatprep.subr.mxu0 0.0
    %2193 = vmatpush1.xpose.msra.mxu0 %v2190
    %2194 = vmatprep.subr.mxu0 0.0
    %2195 = vmatpush1.xpose.msra.mxu0 0.0
    %2196 = vmatprep.subr.mxu0 0.0
    %2197 = vmatpush1.xpose.msra.mxu0 0.0
    %2198 = vmatprep.subr.mxu0 0.0
    %2199 = vmatpush1.xpose.msra.mxu0 0.0
    %2200 = vmatprep.subr.mxu0 0.0
    %2201 = vmatpush1.xpose.msra.mxu0 0.0
    %2202 = vmatprep.subr.mxu0 0.0
    %2203 = vmatpush1.xpose.msra.mxu0 0.0
    %2204 = vmatprep.subr.mxu0 0.0
    %2205 = vmatpush1.xpose.msra.mxu0 0.0
    %2206 = vmatprep.subr.mxu0 0.0
    %2207 = vmatpush1.xpose.msra.mxu0 0.0
    %2208 = vmatprep.subr.mxu0 0.0
    %2209 = vmatpush1.xpose.msra.mxu0 0.0
    %2210 = vmatprep.subr.mxu0 0.0
    %2211 = vmatpush1.xpose.msra.mxu0 0.0
    %2212 = vmatprep.subr.mxu0 0.0
    %2213 = vmatpush1.xpose.msra.mxu0 0.0
    %2214 = vmatprep.subr.mxu0 0.0
    %2215 = vmatpush1.xpose.msra.mxu0 0.0
    %2216 = vmatprep.subr.mxu0 0.0
    %2217 = vmatpush1.xpose.msra.mxu0 0.0
    %2218 = vmatprep.subr.mxu0 0.0
    %2219 = vmatpush1.xpose.msra.mxu0 0.0
    %2220 = vmatprep.subr.mxu0 0.0
    %2221 = vmatpush1.xpose.msra.mxu0 0.0
    %2222 = vmatprep.subr.mxu0 0.0
    %2223 = vmatpush1.xpose.msra.mxu0 0.0
    %2224 = vmatprep.subr.mxu0 0.0
    %2225 = vmatpush1.xpose.msra.mxu0 0.0
    %2226 = vmatprep.subr.mxu0 0.0
    %2227 = vmatpush1.xpose.msra.mxu0 0.0
    %2228 = vmatprep.subr.mxu0 0.0
    %2229 = vmatpush1.xpose.msra.mxu0 0.0
    %2230 = vmatprep.subr.mxu0 0.0
    %2231 = vmatpush1.xpose.msra.mxu0 0.0
    %2232 = vmatprep.subr.mxu0 0.0
    %2233 = vmatpush1.xpose.msra.mxu0 0.0
    %2234 = vmatprep.subr.mxu0 0.0
    %2235 = vmatpush1.xpose.msra.mxu0 0.0
    %2236 = vmatprep.subr.mxu0 0.0
    %2237 = vmatpush1.xpose.msra.mxu0 0.0
    %2238 = vmatprep.subr.mxu0 0.0
    %2239 = vmatpush1.xpose.msra.mxu0 0.0
    %2240 = vmatprep.subr.mxu0 0.0
    %2241 = vmatpush1.xpose.msra.mxu0 0.0
    %2242 = vmatprep.subr.mxu0 0.0
    %2243 = vmatpush1.xpose.msra.mxu0 0.0
    %2244 = vmatprep.subr.mxu0 0.0
    %2245 = vmatpush1.xpose.msra.mxu0 0.0
    %2246 = vmatprep.subr.mxu0 0.0
    %2247 = vmatpush1.xpose.msra.mxu0 0.0
    %2248 = vmatprep.subr.mxu0 0.0
    %2249 = vmatpush1.xpose.msra.mxu0 0.0
    %2250 = vmatprep.subr.mxu0 0.0
    %2251 = vmatpush1.xpose.msra.mxu0 0.0
    %2252 = vmatprep.subr.mxu0 0.0
    %2253 = vmatpush1.xpose.msra.mxu0 0.0
    %2254 = vmatprep.subr.mxu0 0.0
    %2255 = vmatpush1.xpose.msra.mxu0 0.0
    %2256 = vmatprep.mubr.f32.mxu0 0.0
    %2257 = vmatmul.mubr.f32.gmra.mrb[0].mxu0 %v2187
    %v2258 = vpop.f32.mrb[0].mxu0
    %v2259 = vadd.f32 %v2185, %v2258
    %v2260 = vpop.f32.mrb[0].mxu0
    %2261 = vdwg.mxu0
    %v2270 = vlaneseq
    %v2271 = vshrl.u32 %v2270, 7
    %v2272 = vsub.s32 %v60, %v2271
    %v2273 = vrot.slane %v1864, %v2272
    %v2274 = vlaneseq
    %v2275 = vshrl.u32 %v2274, 7
    %v2276 = vsub.s32 %v60, %v2275
    %v2277 = vrot.slane %v1867, %v2276
    %v2278 = vlaneseq
    %v2279 = vshrl.u32 %v2278, 7
    %v2280 = vsub.s32 %v60, %v2279
    %v2281 = vrot.slane %v1870, %v2280
    %v2282 = vlaneseq
    %v2283 = vshrl.u32 %v2282, 7
    %v2284 = vsub.s32 %v60, %v2283
    %v2285 = vrot.slane %v1873, %v2284
    %v2286 = vlaneseq
    %v2287 = vshrl.u32 %v2286, 7
    %v2288 = vsub.s32 %v60, %v2287
    %v2289 = vrot.slane %v1876, %v2288
    %v2290 = vlaneseq
    %v2291 = vshrl.u32 %v2290, 7
    %v2292 = vsub.s32 %v60, %v2291
    %v2293 = vrot.slane %v1879, %v2292
    %v2294 = vlaneseq
    %v2295 = vshrl.u32 %v2294, 7
    %v2296 = vsub.s32 %v60, %v2295
    %v2297 = vrot.slane %v1882, %v2296
    %v2298 = vlaneseq
    %v2299 = vshrl.u32 %v2298, 7
    %v2300 = vsub.s32 %v60, %v2299
    %v2301 = vrot.slane %v1885, %v2300
    %v2302 = vsel %vm1926, %v2277, %v2273
    %v2303 = vsel %vm1928, %v2281, %v2302
    %v2304 = vsel %vm1930, %v2285, %v2303
    %v2305 = vsel %vm1932, %v2289, %v2304
    %v2306 = vsel %vm1934, %v2293, %v2305
    %v2307 = vsel %vm1936, %v2297, %v2306
    %v2308 = vsel %vm1938, %v2301, %v2307
    %v2310 = vsel %vm1789, %v834, 0
    %v2313 = vsel %vm1789, %v1114, 0
    %2315 = vmatprep.subr.mxu0 0.0
    %2316 = vmatpush1.xpose.msra.mxu0 %v2313
    %2317 = vmatprep.subr.mxu0 0.0
    %2318 = vmatpush1.xpose.msra.mxu0 0.0
    %2319 = vmatprep.subr.mxu0 0.0
    %2320 = vmatpush1.xpose.msra.mxu0 0.0
    %2321 = vmatprep.subr.mxu0 0.0
    %2322 = vmatpush1.xpose.msra.mxu0 0.0
    %2323 = vmatprep.subr.mxu0 0.0
    %2324 = vmatpush1.xpose.msra.mxu0 0.0
    %2325 = vmatprep.subr.mxu0 0.0
    %2326 = vmatpush1.xpose.msra.mxu0 0.0
    %2327 = vmatprep.subr.mxu0 0.0
    %2328 = vmatpush1.xpose.msra.mxu0 0.0
    %2329 = vmatprep.subr.mxu0 0.0
    %2330 = vmatpush1.xpose.msra.mxu0 0.0
    %2331 = vmatprep.subr.mxu0 0.0
    %2332 = vmatpush1.xpose.msra.mxu0 0.0
    %2333 = vmatprep.subr.mxu0 0.0
    %2334 = vmatpush1.xpose.msra.mxu0 0.0
    %2335 = vmatprep.subr.mxu0 0.0
    %2336 = vmatpush1.xpose.msra.mxu0 0.0
    %2337 = vmatprep.subr.mxu0 0.0
    %2338 = vmatpush1.xpose.msra.mxu0 0.0
    %2339 = vmatprep.subr.mxu0 0.0
    %2340 = vmatpush1.xpose.msra.mxu0 0.0
    %2341 = vmatprep.subr.mxu0 0.0
    %2342 = vmatpush1.xpose.msra.mxu0 0.0
    %2343 = vmatprep.subr.mxu0 0.0
    %2344 = vmatpush1.xpose.msra.mxu0 0.0
    %2345 = vmatprep.subr.mxu0 0.0
    %2346 = vmatpush1.xpose.msra.mxu0 0.0
    %2347 = vmatprep.subr.mxu0 0.0
    %2348 = vmatpush1.xpose.msra.mxu0 0.0
    %2349 = vmatprep.subr.mxu0 0.0
    %2350 = vmatpush1.xpose.msra.mxu0 0.0
    %2351 = vmatprep.subr.mxu0 0.0
    %2352 = vmatpush1.xpose.msra.mxu0 0.0
    %2353 = vmatprep.subr.mxu0 0.0
    %2354 = vmatpush1.xpose.msra.mxu0 0.0
    %2355 = vmatprep.subr.mxu0 0.0
    %2356 = vmatpush1.xpose.msra.mxu0 0.0
    %2357 = vmatprep.subr.mxu0 0.0
    %2358 = vmatpush1.xpose.msra.mxu0 0.0
    %2359 = vmatprep.subr.mxu0 0.0
    %2360 = vmatpush1.xpose.msra.mxu0 0.0
    %2361 = vmatprep.subr.mxu0 0.0
    %2362 = vmatpush1.xpose.msra.mxu0 0.0
    %2363 = vmatprep.subr.mxu0 0.0
    %2364 = vmatpush1.xpose.msra.mxu0 0.0
    %2365 = vmatprep.subr.mxu0 0.0
    %2366 = vmatpush1.xpose.msra.mxu0 0.0
    %2367 = vmatprep.subr.mxu0 0.0
    %2368 = vmatpush1.xpose.msra.mxu0 0.0
    %2369 = vmatprep.subr.mxu0 0.0
    %2370 = vmatpush1.xpose.msra.mxu0 0.0
    %2371 = vmatprep.subr.mxu0 0.0
    %2372 = vmatpush1.xpose.msra.mxu0 0.0
    %2373 = vmatprep.subr.mxu0 0.0
    %2374 = vmatpush1.xpose.msra.mxu0 0.0
    %2375 = vmatprep.subr.mxu0 0.0
    %2376 = vmatpush1.xpose.msra.mxu0 0.0
    %2377 = vmatprep.subr.mxu0 0.0
    %2378 = vmatpush1.xpose.msra.mxu0 0.0
    %2379 = vmatprep.mubr.f32.mxu0 0.0
    %2380 = vmatmul.mubr.f32.gmra.mrb[0].mxu0 %v2310
    %v2381 = vpop.f32.mrb[0].mxu0
    %v2382 = vadd.f32 %v2308, %v2381
    %v2383 = vpop.f32.mrb[0].mxu0
    %2384 = vdwg.mxu0
    %v2385 = vmul.f32 %v2013, 0.35355338
    %v2386 = vmul.f32 %v2136, 0.35355338
    %v2387 = vmul.f32 %v2259, 0.35355338
    %v2388 = vmul.f32 %v2382, 0.35355338
    %v2389 = vsel %vm1789, %v2385, -inf
    %2390 = vmax.xlane.f32.xlu0 %v2389
    %v2391 = vpop.xlane.xlu0 %2390
    %v2392 = vsel %vm1789, %v2386, -inf
    %2393 = vmax.xlane.f32.xlu0 %v2392
    %v2394 = vpop.xlane.xlu0 %2393
    %v2395 = vsel %vm1789, %v2387, -inf
    %2396 = vmax.xlane.f32.xlu0 %v2395
    %v2397 = vpop.xlane.xlu0 %2396
    %v2398 = vsel %vm1789, %v2388, -inf
    %2399 = vmax.xlane.f32.xlu0 %v2398
    %v2400 = vpop.xlane.xlu0 %2399
    %v2401 = vsub.f32 %v2385, %v2391
    %v2402 = vsub.f32 %v2386, %v2394
    %v2403 = vsub.f32 %v2387, %v2397
    %v2404 = vsub.f32 %v2388, %v2400
    %v2405 = vmul.f32 %v2401, 1.442695
    %v2406 = vpow.pop %v2405
    %v2407 = vmul.f32 %v2402, 1.442695
    %v2408 = vpow.pop %v2407
    %v2409 = vmul.f32 %v2403, 1.442695
    %v2410 = vpow.pop %v2409
    %v2411 = vmul.f32 %v2404, 1.442695
    %v2412 = vpow.pop %v2411
    %v2413 = vsel %vm1789, %v2406, 0.0
    %2414 = vadd.xlane.f32.xlu0 %v2413
    %v2415 = vpop.xlane.xlu0 %2414
    %v2416 = vsel %vm1789, %v2408, 0.0
    %2417 = vadd.xlane.f32.xlu0 %v2416
    %v2418 = vpop.xlane.xlu0 %2417
    %v2419 = vsel %vm1789, %v2410, 0.0
    %2420 = vadd.xlane.f32.xlu0 %v2419
    %v2421 = vpop.xlane.xlu0 %2420
    %v2422 = vsel %vm1789, %v2412, 0.0
    %2423 = vadd.xlane.f32.xlu0 %v2422
    %v2424 = vpop.xlane.xlu0 %2423
    %v2425 = vrcp.pop %v2415
    %v2426 = vrcp.pop %v2418
    %v2427 = vrcp.pop %v2421
    %v2428 = vrcp.pop %v2424
    %v2429 = vmul.f32 %v2406, %v2425
    %v2430 = vmul.f32 %v2408, %v2426
    %v2431 = vmul.f32 %v2410, %v2427
    %v2432 = vmul.f32 %v2412, %v2428
    %v2433 = vlaneseq
    %v2434 = vshrl.u32 %v2433, 7
    %v2435 = vsub.s32 0, %v2434
    %v2436 = vrot.slane %v2429, %v2435
    %2438 = vbcast.lane.b32.xlu0 %v2436, 256
    %v2439 = vpop.permute.xlu0 %2438
    %v2440 = vlaneseq
    %v2441 = vshrl.u32 %v2440, 7
    %v2442 = vsub.s32 1, %v2441
    %v2443 = vrot.slane %v2429, %v2442
    %2445 = vbcast.lane.b32.xlu0 %v2443, 256
    %v2446 = vpop.permute.xlu0 %2445
    %v2447 = vlaneseq
    %v2448 = vshrl.u32 %v2447, 7
    %v2449 = vsub.s32 2, %v2448
    %v2450 = vrot.slane %v2429, %v2449
    %2452 = vbcast.lane.b32.xlu0 %v2450, 256
    %v2453 = vpop.permute.xlu0 %2452
    %v2454 = vlaneseq
    %v2455 = vshrl.u32 %v2454, 7
    %v2456 = vsub.s32 3, %v2455
    %v2457 = vrot.slane %v2429, %v2456
    %2459 = vbcast.lane.b32.xlu0 %v2457, 256
    %v2460 = vpop.permute.xlu0 %2459
    %v2461 = vlaneseq
    %v2462 = vshrl.u32 %v2461, 7
    %v2463 = vsub.s32 4, %v2462
    %v2464 = vrot.slane %v2429, %v2463
    %2466 = vbcast.lane.b32.xlu0 %v2464, 256
    %v2467 = vpop.permute.xlu0 %2466
    %v2468 = vlaneseq
    %v2469 = vshrl.u32 %v2468, 7
    %v2470 = vsub.s32 5, %v2469
    %v2471 = vrot.slane %v2429, %v2470
    %2473 = vbcast.lane.b32.xlu0 %v2471, 256
    %v2474 = vpop.permute.xlu0 %2473
    %v2475 = vlaneseq
    %v2476 = vshrl.u32 %v2475, 7
    %v2477 = vsub.s32 6, %v2476
    %v2478 = vrot.slane %v2429, %v2477
    %2480 = vbcast.lane.b32.xlu0 %v2478, 256
    %v2481 = vpop.permute.xlu0 %2480
    %v2482 = vlaneseq
    %v2483 = vshrl.u32 %v2482, 7
    %v2484 = vsub.s32 7, %v2483
    %v2485 = vrot.slane %v2429, %v2484
    %2487 = vbcast.lane.b32.xlu0 %v2485, 256
    %v2488 = vpop.permute.xlu0 %2487
    %v2489 = vlaneseq
    %v2490 = vshrl.u32 %v2489, 7
    %v2491 = vsub.s32 0, %v2490
    %v2492 = vrot.slane %v2430, %v2491
    %2494 = vbcast.lane.b32.xlu0 %v2492, 256
    %v2495 = vpop.permute.xlu0 %2494
    %v2496 = vlaneseq
    %v2497 = vshrl.u32 %v2496, 7
    %v2498 = vsub.s32 1, %v2497
    %v2499 = vrot.slane %v2430, %v2498
    %2501 = vbcast.lane.b32.xlu0 %v2499, 256
    %v2502 = vpop.permute.xlu0 %2501
    %v2503 = vlaneseq
    %v2504 = vshrl.u32 %v2503, 7
    %v2505 = vsub.s32 2, %v2504
    %v2506 = vrot.slane %v2430, %v2505
    %2508 = vbcast.lane.b32.xlu0 %v2506, 256
    %v2509 = vpop.permute.xlu0 %2508
    %v2510 = vlaneseq
    %v2511 = vshrl.u32 %v2510, 7
    %v2512 = vsub.s32 3, %v2511
    %v2513 = vrot.slane %v2430, %v2512
    %2515 = vbcast.lane.b32.xlu0 %v2513, 256
    %v2516 = vpop.permute.xlu0 %2515
    %v2517 = vlaneseq
    %v2518 = vshrl.u32 %v2517, 7
    %v2519 = vsub.s32 4, %v2518
    %v2520 = vrot.slane %v2430, %v2519
    %2522 = vbcast.lane.b32.xlu0 %v2520, 256
    %v2523 = vpop.permute.xlu0 %2522
    %v2524 = vlaneseq
    %v2525 = vshrl.u32 %v2524, 7
    %v2526 = vsub.s32 5, %v2525
    %v2527 = vrot.slane %v2430, %v2526
    %2529 = vbcast.lane.b32.xlu0 %v2527, 256
    %v2530 = vpop.permute.xlu0 %2529
    %v2531 = vlaneseq
    %v2532 = vshrl.u32 %v2531, 7
    %v2533 = vsub.s32 6, %v2532
    %v2534 = vrot.slane %v2430, %v2533
    %2536 = vbcast.lane.b32.xlu0 %v2534, 256
    %v2537 = vpop.permute.xlu0 %2536
    %v2538 = vlaneseq
    %v2539 = vshrl.u32 %v2538, 7
    %v2540 = vsub.s32 7, %v2539
    %v2541 = vrot.slane %v2430, %v2540
    %2543 = vbcast.lane.b32.xlu0 %v2541, 256
    %v2544 = vpop.permute.xlu0 %2543
    %v2545 = vlaneseq
    %v2546 = vshrl.u32 %v2545, 7
    %v2547 = vsub.s32 0, %v2546
    %v2548 = vrot.slane %v2431, %v2547
    %2550 = vbcast.lane.b32.xlu0 %v2548, 256
    %v2551 = vpop.permute.xlu0 %2550
    %v2552 = vlaneseq
    %v2553 = vshrl.u32 %v2552, 7
    %v2554 = vsub.s32 1, %v2553
    %v2555 = vrot.slane %v2431, %v2554
    %2557 = vbcast.lane.b32.xlu0 %v2555, 256
    %v2558 = vpop.permute.xlu0 %2557
    %v2559 = vlaneseq
    %v2560 = vshrl.u32 %v2559, 7
    %v2561 = vsub.s32 2, %v2560
    %v2562 = vrot.slane %v2431, %v2561
    %2564 = vbcast.lane.b32.xlu0 %v2562, 256
    %v2565 = vpop.permute.xlu0 %2564
    %v2566 = vlaneseq
    %v2567 = vshrl.u32 %v2566, 7
    %v2568 = vsub.s32 3, %v2567
    %v2569 = vrot.slane %v2431, %v2568
    %2571 = vbcast.lane.b32.xlu0 %v2569, 256
    %v2572 = vpop.permute.xlu0 %2571
    %v2573 = vlaneseq
    %v2574 = vshrl.u32 %v2573, 7
    %v2575 = vsub.s32 4, %v2574
    %v2576 = vrot.slane %v2431, %v2575
    %2578 = vbcast.lane.b32.xlu0 %v2576, 256
    %v2579 = vpop.permute.xlu0 %2578
    %v2580 = vlaneseq
    %v2581 = vshrl.u32 %v2580, 7
    %v2582 = vsub.s32 5, %v2581
    %v2583 = vrot.slane %v2431, %v2582
    %2585 = vbcast.lane.b32.xlu0 %v2583, 256
    %v2586 = vpop.permute.xlu0 %2585
    %v2587 = vlaneseq
    %v2588 = vshrl.u32 %v2587, 7
    %v2589 = vsub.s32 6, %v2588
    %v2590 = vrot.slane %v2431, %v2589
    %2592 = vbcast.lane.b32.xlu0 %v2590, 256
    %v2593 = vpop.permute.xlu0 %2592
    %v2594 = vlaneseq
    %v2595 = vshrl.u32 %v2594, 7
    %v2596 = vsub.s32 7, %v2595
    %v2597 = vrot.slane %v2431, %v2596
    %2599 = vbcast.lane.b32.xlu0 %v2597, 256
    %v2600 = vpop.permute.xlu0 %2599
    %v2601 = vlaneseq
    %v2602 = vshrl.u32 %v2601, 7
    %v2603 = vsub.s32 0, %v2602
    %v2604 = vrot.slane %v2432, %v2603
    %2606 = vbcast.lane.b32.xlu0 %v2604, 256
    %v2607 = vpop.permute.xlu0 %2606
    %v2608 = vlaneseq
    %v2609 = vshrl.u32 %v2608, 7
    %v2610 = vsub.s32 1, %v2609
    %v2611 = vrot.slane %v2432, %v2610
    %2613 = vbcast.lane.b32.xlu0 %v2611, 256
    %v2614 = vpop.permute.xlu0 %2613
    %v2615 = vlaneseq
    %v2616 = vshrl.u32 %v2615, 7
    %v2617 = vsub.s32 2, %v2616
    %v2618 = vrot.slane %v2432, %v2617
    %2620 = vbcast.lane.b32.xlu0 %v2618, 256
    %v2621 = vpop.permute.xlu0 %2620
    %v2622 = vlaneseq
    %v2623 = vshrl.u32 %v2622, 7
    %v2624 = vsub.s32 3, %v2623
    %v2625 = vrot.slane %v2432, %v2624
    %2627 = vbcast.lane.b32.xlu0 %v2625, 256
    %v2628 = vpop.permute.xlu0 %2627
    %v2629 = vlaneseq
    %v2630 = vshrl.u32 %v2629, 7
    %v2631 = vsub.s32 4, %v2630
    %v2632 = vrot.slane %v2432, %v2631
    %2634 = vbcast.lane.b32.xlu0 %v2632, 256
    %v2635 = vpop.permute.xlu0 %2634
    %v2636 = vlaneseq
    %v2637 = vshrl.u32 %v2636, 7
    %v2638 = vsub.s32 5, %v2637
    %v2639 = vrot.slane %v2432, %v2638
    %2641 = vbcast.lane.b32.xlu0 %v2639, 256
    %v2642 = vpop.permute.xlu0 %2641
    %v2643 = vlaneseq
    %v2644 = vshrl.u32 %v2643, 7
    %v2645 = vsub.s32 6, %v2644
    %v2646 = vrot.slane %v2432, %v2645
    %2648 = vbcast.lane.b32.xlu0 %v2646, 256
    %v2649 = vpop.permute.xlu0 %2648
    %v2650 = vlaneseq
    %v2651 = vshrl.u32 %v2650, 7
    %v2652 = vsub.s32 7, %v2651
    %v2653 = vrot.slane %v2432, %v2652
    %2655 = vbcast.lane.b32.xlu0 %v2653, 256
    %v2656 = vpop.permute.xlu0 %2655
    %v2657 = vmul.f32 %v2439, %v343
    %v2658 = vmul.f32 %v2446, %v348
    %v2659 = vmul.f32 %v2453, %v353
    %v2660 = vmul.f32 %v2460, %v358
    %v2661 = vmul.f32 %v2467, %v363
    %v2662 = vmul.f32 %v2474, %v368
    %v2663 = vmul.f32 %v2481, %v373
    %v2664 = vmul.f32 %v2488, %v378
    %v2665 = vmul.f32 %v2495, %v343
    %v2666 = vmul.f32 %v2502, %v348
    %v2667 = vmul.f32 %v2509, %v353
    %v2668 = vmul.f32 %v2516, %v358
    %v2669 = vmul.f32 %v2523, %v363
    %v2670 = vmul.f32 %v2530, %v368
    %v2671 = vmul.f32 %v2537, %v373
    %v2672 = vmul.f32 %v2544, %v378
    %v2673 = vmul.f32 %v2551, %v343
    %v2674 = vmul.f32 %v2558, %v348
    %v2675 = vmul.f32 %v2565, %v353
    %v2676 = vmul.f32 %v2572, %v358
    %v2677 = vmul.f32 %v2579, %v363
    %v2678 = vmul.f32 %v2586, %v368
    %v2679 = vmul.f32 %v2593, %v373
    %v2680 = vmul.f32 %v2600, %v378
    %v2681 = vmul.f32 %v2607, %v343
    %v2682 = vmul.f32 %v2614, %v348
    %v2683 = vmul.f32 %v2621, %v353
    %v2684 = vmul.f32 %v2628, %v358
    %v2685 = vmul.f32 %v2635, %v363
    %v2686 = vmul.f32 %v2642, %v368
    %v2687 = vmul.f32 %v2649, %v373
    %v2688 = vmul.f32 %v2656, %v378
    %v2689 = vsel %vm1789, %v2657, 0.0
    %v2690 = vrot.slane %v2689, 4
    %v2691 = vadd.f32 %v2689, %v2690
    %v2692 = vrot.slane %v2691, 2
    %v2693 = vadd.f32 %v2691, %v2692
    %v2694 = vrot.slane %v2693, 1
    %v2695 = vadd.f32 %v2693, %v2694
    %v2696 = vsel %vm1789, %v2658, 0.0
    %v2697 = vrot.slane %v2696, 4
    %v2698 = vadd.f32 %v2696, %v2697
    %v2699 = vrot.slane %v2698, 2
    %v2700 = vadd.f32 %v2698, %v2699
    %v2701 = vrot.slane %v2700, 1
    %v2702 = vadd.f32 %v2700, %v2701
    %v2703 = vsel %vm1789, %v2659, 0.0
    %v2704 = vrot.slane %v2703, 4
    %v2705 = vadd.f32 %v2703, %v2704
    %v2706 = vrot.slane %v2705, 2
    %v2707 = vadd.f32 %v2705, %v2706
    %v2708 = vrot.slane %v2707, 1
    %v2709 = vadd.f32 %v2707, %v2708
    %v2710 = vsel %vm1789, %v2660, 0.0
    %v2711 = vrot.slane %v2710, 4
    %v2712 = vadd.f32 %v2710, %v2711
    %v2713 = vrot.slane %v2712, 2
    %v2714 = vadd.f32 %v2712, %v2713
    %v2715 = vrot.slane %v2714, 1
    %v2716 = vadd.f32 %v2714, %v2715
    %v2717 = vsel %vm1789, %v2661, 0.0
    %v2718 = vrot.slane %v2717, 4
    %v2719 = vadd.f32 %v2717, %v2718
    %v2720 = vrot.slane %v2719, 2
    %v2721 = vadd.f32 %v2719, %v2720
    %v2722 = vrot.slane %v2721, 1
    %v2723 = vadd.f32 %v2721, %v2722
    %v2724 = vsel %vm1789, %v2662, 0.0
    %v2725 = vrot.slane %v2724, 4
    %v2726 = vadd.f32 %v2724, %v2725
    %v2727 = vrot.slane %v2726, 2
    %v2728 = vadd.f32 %v2726, %v2727
    %v2729 = vrot.slane %v2728, 1
    %v2730 = vadd.f32 %v2728, %v2729
    %v2731 = vsel %vm1789, %v2663, 0.0
    %v2732 = vrot.slane %v2731, 4
    %v2733 = vadd.f32 %v2731, %v2732
    %v2734 = vrot.slane %v2733, 2
    %v2735 = vadd.f32 %v2733, %v2734
    %v2736 = vrot.slane %v2735, 1
    %v2737 = vadd.f32 %v2735, %v2736
    %v2738 = vsel %vm1789, %v2664, 0.0
    %v2739 = vrot.slane %v2738, 4
    %v2740 = vadd.f32 %v2738, %v2739
    %v2741 = vrot.slane %v2740, 2
    %v2742 = vadd.f32 %v2740, %v2741
    %v2743 = vrot.slane %v2742, 1
    %v2744 = vadd.f32 %v2742, %v2743
    %v2745 = vsel %vm1789, %v2665, 0.0
    %v2746 = vrot.slane %v2745, 4
    %v2747 = vadd.f32 %v2745, %v2746
    %v2748 = vrot.slane %v2747, 2
    %v2749 = vadd.f32 %v2747, %v2748
    %v2750 = vrot.slane %v2749, 1
    %v2751 = vadd.f32 %v2749, %v2750
    %v2752 = vsel %vm1789, %v2666, 0.0
    %v2753 = vrot.slane %v2752, 4
    %v2754 = vadd.f32 %v2752, %v2753
    %v2755 = vrot.slane %v2754, 2
    %v2756 = vadd.f32 %v2754, %v2755
    %v2757 = vrot.slane %v2756, 1
    %v2758 = vadd.f32 %v2756, %v2757
    %v2759 = vsel %vm1789, %v2667, 0.0
    %v2760 = vrot.slane %v2759, 4
    %v2761 = vadd.f32 %v2759, %v2760
    %v2762 = vrot.slane %v2761, 2
    %v2763 = vadd.f32 %v2761, %v2762
    %v2764 = vrot.slane %v2763, 1
    %v2765 = vadd.f32 %v2763, %v2764
    %v2766 = vsel %vm1789, %v2668, 0.0
    %v2767 = vrot.slane %v2766, 4
    %v2768 = vadd.f32 %v2766, %v2767
    %v2769 = vrot.slane %v2768, 2
    %v2770 = vadd.f32 %v2768, %v2769
    %v2771 = vrot.slane %v2770, 1
    %v2772 = vadd.f32 %v2770, %v2771
    %v2773 = vsel %vm1789, %v2669, 0.0
    %v2774 = vrot.slane %v2773, 4
    %v2775 = vadd.f32 %v2773, %v2774
    %v2776 = vrot.slane %v2775, 2
    %v2777 = vadd.f32 %v2775, %v2776
    %v2778 = vrot.slane %v2777, 1
    %v2779 = vadd.f32 %v2777, %v2778
    %v2780 = vsel %vm1789, %v2670, 0.0
    %v2781 = vrot.slane %v2780, 4
    %v2782 = vadd.f32 %v2780, %v2781
    %v2783 = vrot.slane %v2782, 2
    %v2784 = vadd.f32 %v2782, %v2783
    %v2785 = vrot.slane %v2784, 1
    %v2786 = vadd.f32 %v2784, %v2785
    %v2787 = vsel %vm1789, %v2671, 0.0
    %v2788 = vrot.slane %v2787, 4
    %v2789 = vadd.f32 %v2787, %v2788
    %v2790 = vrot.slane %v2789, 2
    %v2791 = vadd.f32 %v2789, %v2790
    %v2792 = vrot.slane %v2791, 1
    %v2793 = vadd.f32 %v2791, %v2792
    %v2794 = vsel %vm1789, %v2672, 0.0
    %v2795 = vrot.slane %v2794, 4
    %v2796 = vadd.f32 %v2794, %v2795
    %v2797 = vrot.slane %v2796, 2
    %v2798 = vadd.f32 %v2796, %v2797
    %v2799 = vrot.slane %v2798, 1
    %v2800 = vadd.f32 %v2798, %v2799
    %v2801 = vsel %vm1789, %v2673, 0.0
    %v2802 = vrot.slane %v2801, 4
    %v2803 = vadd.f32 %v2801, %v2802
    %v2804 = vrot.slane %v2803, 2
    %v2805 = vadd.f32 %v2803, %v2804
    %v2806 = vrot.slane %v2805, 1
    %v2807 = vadd.f32 %v2805, %v2806
    %v2808 = vsel %vm1789, %v2674, 0.0
    %v2809 = vrot.slane %v2808, 4
    %v2810 = vadd.f32 %v2808, %v2809
    %v2811 = vrot.slane %v2810, 2
    %v2812 = vadd.f32 %v2810, %v2811
    %v2813 = vrot.slane %v2812, 1
    %v2814 = vadd.f32 %v2812, %v2813
    %v2815 = vsel %vm1789, %v2675, 0.0
    %v2816 = vrot.slane %v2815, 4
    %v2817 = vadd.f32 %v2815, %v2816
    %v2818 = vrot.slane %v2817, 2
    %v2819 = vadd.f32 %v2817, %v2818
    %v2820 = vrot.slane %v2819, 1
    %v2821 = vadd.f32 %v2819, %v2820
    %v2822 = vsel %vm1789, %v2676, 0.0
    %v2823 = vrot.slane %v2822, 4
    %v2824 = vadd.f32 %v2822, %v2823
    %v2825 = vrot.slane %v2824, 2
    %v2826 = vadd.f32 %v2824, %v2825
    %v2827 = vrot.slane %v2826, 1
    %v2828 = vadd.f32 %v2826, %v2827
    %v2829 = vsel %vm1789, %v2677, 0.0
    %v2830 = vrot.slane %v2829, 4
    %v2831 = vadd.f32 %v2829, %v2830
    %v2832 = vrot.slane %v2831, 2
    %v2833 = vadd.f32 %v2831, %v2832
    %v2834 = vrot.slane %v2833, 1
    %v2835 = vadd.f32 %v2833, %v2834
    %v2836 = vsel %vm1789, %v2678, 0.0
    %v2837 = vrot.slane %v2836, 4
    %v2838 = vadd.f32 %v2836, %v2837
    %v2839 = vrot.slane %v2838, 2
    %v2840 = vadd.f32 %v2838, %v2839
    %v2841 = vrot.slane %v2840, 1
    %v2842 = vadd.f32 %v2840, %v2841
    %v2843 = vsel %vm1789, %v2679, 0.0
    %v2844 = vrot.slane %v2843, 4
    %v2845 = vadd.f32 %v2843, %v2844
    %v2846 = vrot.slane %v2845, 2
    %v2847 = vadd.f32 %v2845, %v2846
    %v2848 = vrot.slane %v2847, 1
    %v2849 = vadd.f32 %v2847, %v2848
    %v2850 = vsel %vm1789, %v2680, 0.0
    %v2851 = vrot.slane %v2850, 4
    %v2852 = vadd.f32 %v2850, %v2851
    %v2853 = vrot.slane %v2852, 2
    %v2854 = vadd.f32 %v2852, %v2853
    %v2855 = vrot.slane %v2854, 1
    %v2856 = vadd.f32 %v2854, %v2855
    %v2857 = vsel %vm1789, %v2681, 0.0
    %v2858 = vrot.slane %v2857, 4
    %v2859 = vadd.f32 %v2857, %v2858
    %v2860 = vrot.slane %v2859, 2
    %v2861 = vadd.f32 %v2859, %v2860
    %v2862 = vrot.slane %v2861, 1
    %v2863 = vadd.f32 %v2861, %v2862
    %v2864 = vsel %vm1789, %v2682, 0.0
    %v2865 = vrot.slane %v2864, 4
    %v2866 = vadd.f32 %v2864, %v2865
    %v2867 = vrot.slane %v2866, 2
    %v2868 = vadd.f32 %v2866, %v2867
    %v2869 = vrot.slane %v2868, 1
    %v2870 = vadd.f32 %v2868, %v2869
    %v2871 = vsel %vm1789, %v2683, 0.0
    %v2872 = vrot.slane %v2871, 4
    %v2873 = vadd.f32 %v2871, %v2872
    %v2874 = vrot.slane %v2873, 2
    %v2875 = vadd.f32 %v2873, %v2874
    %v2876 = vrot.slane %v2875, 1
    %v2877 = vadd.f32 %v2875, %v2876
    %v2878 = vsel %vm1789, %v2684, 0.0
    %v2879 = vrot.slane %v2878, 4
    %v2880 = vadd.f32 %v2878, %v2879
    %v2881 = vrot.slane %v2880, 2
    %v2882 = vadd.f32 %v2880, %v2881
    %v2883 = vrot.slane %v2882, 1
    %v2884 = vadd.f32 %v2882, %v2883
    %v2885 = vsel %vm1789, %v2685, 0.0
    %v2886 = vrot.slane %v2885, 4
    %v2887 = vadd.f32 %v2885, %v2886
    %v2888 = vrot.slane %v2887, 2
    %v2889 = vadd.f32 %v2887, %v2888
    %v2890 = vrot.slane %v2889, 1
    %v2891 = vadd.f32 %v2889, %v2890
    %v2892 = vsel %vm1789, %v2686, 0.0
    %v2893 = vrot.slane %v2892, 4
    %v2894 = vadd.f32 %v2892, %v2893
    %v2895 = vrot.slane %v2894, 2
    %v2896 = vadd.f32 %v2894, %v2895
    %v2897 = vrot.slane %v2896, 1
    %v2898 = vadd.f32 %v2896, %v2897
    %v2899 = vsel %vm1789, %v2687, 0.0
    %v2900 = vrot.slane %v2899, 4
    %v2901 = vadd.f32 %v2899, %v2900
    %v2902 = vrot.slane %v2901, 2
    %v2903 = vadd.f32 %v2901, %v2902
    %v2904 = vrot.slane %v2903, 1
    %v2905 = vadd.f32 %v2903, %v2904
    %v2906 = vsel %vm1789, %v2688, 0.0
    %v2907 = vrot.slane %v2906, 4
    %v2908 = vadd.f32 %v2906, %v2907
    %v2909 = vrot.slane %v2908, 2
    %v2910 = vadd.f32 %v2908, %v2909
    %v2911 = vrot.slane %v2910, 1
    %v2912 = vadd.f32 %v2910, %v2911
    %v2921 = vsel %vm1926, %v2702, %v2695
    %v2922 = vsel %vm1928, %v2709, %v2921
    %v2923 = vsel %vm1930, %v2716, %v2922
    %v2924 = vsel %vm1932, %v2723, %v2923
    %v2925 = vsel %vm1934, %v2730, %v2924
    %v2926 = vsel %vm1936, %v2737, %v2925
    %v2927 = vsel %vm1938, %v2744, %v2926
    %v2930 = vsel %vm1789, %v2429, 0
    %2932 = vmatprep.subr.mxu0 0.0
    %2933 = vmatpush1.msra.mxu0 %v1184
    %2934 = vmatprep.subr.mxu0 0.0
    %2935 = vmatpush1.msra.mxu0 0.0
    %2936 = vmatprep.subr.mxu0 0.0
    %2937 = vmatpush1.msra.mxu0 0.0
    %2938 = vmatprep.subr.mxu0 0.0
    %2939 = vmatpush1.msra.mxu0 0.0
    %2940 = vmatprep.subr.mxu0 0.0
    %2941 = vmatpush1.msra.mxu0 0.0
    %2942 = vmatprep.subr.mxu0 0.0
    %2943 = vmatpush1.msra.mxu0 0.0
    %2944 = vmatprep.subr.mxu0 0.0
    %2945 = vmatpush1.msra.mxu0 0.0
    %2946 = vmatprep.subr.mxu0 0.0
    %2947 = vmatpush1.msra.mxu0 0.0
    %2948 = vmatprep.subr.mxu0 0.0
    %2949 = vmatpush1.msra.mxu0 0.0
    %2950 = vmatprep.subr.mxu0 0.0
    %2951 = vmatpush1.msra.mxu0 0.0
    %2952 = vmatprep.subr.mxu0 0.0
    %2953 = vmatpush1.msra.mxu0 0.0
    %2954 = vmatprep.subr.mxu0 0.0
    %2955 = vmatpush1.msra.mxu0 0.0
    %2956 = vmatprep.subr.mxu0 0.0
    %2957 = vmatpush1.msra.mxu0 0.0
    %2958 = vmatprep.subr.mxu0 0.0
    %2959 = vmatpush1.msra.mxu0 0.0
    %2960 = vmatprep.subr.mxu0 0.0
    %2961 = vmatpush1.msra.mxu0 0.0
    %2962 = vmatprep.subr.mxu0 0.0
    %2963 = vmatpush1.msra.mxu0 0.0
    %2964 = vmatprep.subr.mxu0 0.0
    %2965 = vmatpush1.msra.mxu0 0.0
    %2966 = vmatprep.subr.mxu0 0.0
    %2967 = vmatpush1.msra.mxu0 0.0
    %2968 = vmatprep.subr.mxu0 0.0
    %2969 = vmatpush1.msra.mxu0 0.0
    %2970 = vmatprep.subr.mxu0 0.0
    %2971 = vmatpush1.msra.mxu0 0.0
    %2972 = vmatprep.subr.mxu0 0.0
    %2973 = vmatpush1.msra.mxu0 0.0
    %2974 = vmatprep.subr.mxu0 0.0
    %2975 = vmatpush1.msra.mxu0 0.0
    %2976 = vmatprep.subr.mxu0 0.0
    %2977 = vmatpush1.msra.mxu0 0.0
    %2978 = vmatprep.subr.mxu0 0.0
    %2979 = vmatpush1.msra.mxu0 0.0
    %2980 = vmatprep.subr.mxu0 0.0
    %2981 = vmatpush1.msra.mxu0 0.0
    %2982 = vmatprep.subr.mxu0 0.0
    %2983 = vmatpush1.msra.mxu0 0.0
    %2984 = vmatprep.subr.mxu0 0.0
    %2985 = vmatpush1.msra.mxu0 0.0
    %2986 = vmatprep.subr.mxu0 0.0
    %2987 = vmatpush1.msra.mxu0 0.0
    %2988 = vmatprep.subr.mxu0 0.0
    %2989 = vmatpush1.msra.mxu0 0.0
    %2990 = vmatprep.subr.mxu0 0.0
    %2991 = vmatpush1.msra.mxu0 0.0
    %2992 = vmatprep.subr.mxu0 0.0
    %2993 = vmatpush1.msra.mxu0 0.0
    %2994 = vmatprep.subr.mxu0 0.0
    %2995 = vmatpush1.msra.mxu0 0.0
    %2996 = vmatprep.mubr.f32.mxu0 0.0
    %2997 = vmatmul.mubr.f32.gmra.mrb[0].mxu0 %v2930
    %v2998 = vpop.f32.mrb[0].mxu0
    %v2999 = vadd.f32 %v2927, %v2998
    %v3000 = vpop.f32.mrb[0].mxu0
    %3001 = vdwg.mxu0
    %v3010 = vsel %vm1926, %v2758, %v2751
    %v3011 = vsel %vm1928, %v2765, %v3010
    %v3012 = vsel %vm1930, %v2772, %v3011
    %v3013 = vsel %vm1932, %v2779, %v3012
    %v3014 = vsel %vm1934, %v2786, %v3013
    %v3015 = vsel %vm1936, %v2793, %v3014
    %v3016 = vsel %vm1938, %v2800, %v3015
    %v3019 = vsel %vm1789, %v2430, 0
    %3021 = vmatprep.subr.mxu0 0.0
    %3022 = vmatpush1.msra.mxu0 %v1254
    %3023 = vmatprep.subr.mxu0 0.0
    %3024 = vmatpush1.msra.mxu0 0.0
    %3025 = vmatprep.subr.mxu0 0.0
    %3026 = vmatpush1.msra.mxu0 0.0
    %3027 = vmatprep.subr.mxu0 0.0
    %3028 = vmatpush1.msra.mxu0 0.0
    %3029 = vmatprep.subr.mxu0 0.0
    %3030 = vmatpush1.msra.mxu0 0.0
    %3031 = vmatprep.subr.mxu0 0.0
    %3032 = vmatpush1.msra.mxu0 0.0
    %3033 = vmatprep.subr.mxu0 0.0
    %3034 = vmatpush1.msra.mxu0 0.0
    %3035 = vmatprep.subr.mxu0 0.0
    %3036 = vmatpush1.msra.mxu0 0.0
    %3037 = vmatprep.subr.mxu0 0.0
    %3038 = vmatpush1.msra.mxu0 0.0
    %3039 = vmatprep.subr.mxu0 0.0
    %3040 = vmatpush1.msra.mxu0 0.0
    %3041 = vmatprep.subr.mxu0 0.0
    %3042 = vmatpush1.msra.mxu0 0.0
    %3043 = vmatprep.subr.mxu0 0.0
    %3044 = vmatpush1.msra.mxu0 0.0
    %3045 = vmatprep.subr.mxu0 0.0
    %3046 = vmatpush1.msra.mxu0 0.0
    %3047 = vmatprep.subr.mxu0 0.0
    %3048 = vmatpush1.msra.mxu0 0.0
    %3049 = vmatprep.subr.mxu0 0.0
    %3050 = vmatpush1.msra.mxu0 0.0
    %3051 = vmatprep.subr.mxu0 0.0
    %3052 = vmatpush1.msra.mxu0 0.0
    %3053 = vmatprep.subr.mxu0 0.0
    %3054 = vmatpush1.msra.mxu0 0.0
    %3055 = vmatprep.subr.mxu0 0.0
    %3056 = vmatpush1.msra.mxu0 0.0
    %3057 = vmatprep.subr.mxu0 0.0
    %3058 = vmatpush1.msra.mxu0 0.0
    %3059 = vmatprep.subr.mxu0 0.0
    %3060 = vmatpush1.msra.mxu0 0.0
    %3061 = vmatprep.subr.mxu0 0.0
    %3062 = vmatpush1.msra.mxu0 0.0
    %3063 = vmatprep.subr.mxu0 0.0
    %3064 = vmatpush1.msra.mxu0 0.0
    %3065 = vmatprep.subr.mxu0 0.0
    %3066 = vmatpush1.msra.mxu0 0.0
    %3067 = vmatprep.subr.mxu0 0.0
    %3068 = vmatpush1.msra.mxu0 0.0
    %3069 = vmatprep.subr.mxu0 0.0
    %3070 = vmatpush1.msra.mxu0 0.0
    %3071 = vmatprep.subr.mxu0 0.0
    %3072 = vmatpush1.msra.mxu0 0.0
    %3073 = vmatprep.subr.mxu0 0.0
    %3074 = vmatpush1.msra.mxu0 0.0
    %3075 = vmatprep.subr.mxu0 0.0
    %3076 = vmatpush1.msra.mxu0 0.0
    %3077 = vmatprep.subr.mxu0 0.0
    %3078 = vmatpush1.msra.mxu0 0.0
    %3079 = vmatprep.subr.mxu0 0.0
    %3080 = vmatpush1.msra.mxu0 0.0
    %3081 = vmatprep.subr.mxu0 0.0
    %3082 = vmatpush1.msra.mxu0 0.0
    %3083 = vmatprep.subr.mxu0 0.0
    %3084 = vmatpush1.msra.mxu0 0.0
    %3085 = vmatprep.mubr.f32.mxu0 0.0
    %3086 = vmatmul.mubr.f32.gmra.mrb[0].mxu0 %v3019
    %v3087 = vpop.f32.mrb[0].mxu0
    %v3088 = vadd.f32 %v3016, %v3087
    %v3089 = vpop.f32.mrb[0].mxu0
    %3090 = vdwg.mxu0
    %v3099 = vsel %vm1926, %v2814, %v2807
    %v3100 = vsel %vm1928, %v2821, %v3099
    %v3101 = vsel %vm1930, %v2828, %v3100
    %v3102 = vsel %vm1932, %v2835, %v3101
    %v3103 = vsel %vm1934, %v2842, %v3102
    %v3104 = vsel %vm1936, %v2849, %v3103
    %v3105 = vsel %vm1938, %v2856, %v3104
    %v3108 = vsel %vm1789, %v2431, 0
    %3110 = vmatprep.subr.mxu0 0.0
    %3111 = vmatpush1.msra.mxu0 %v1324
    %3112 = vmatprep.subr.mxu0 0.0
    %3113 = vmatpush1.msra.mxu0 0.0
    %3114 = vmatprep.subr.mxu0 0.0
    %3115 = vmatpush1.msra.mxu0 0.0
    %3116 = vmatprep.subr.mxu0 0.0
    %3117 = vmatpush1.msra.mxu0 0.0
    %3118 = vmatprep.subr.mxu0 0.0
    %3119 = vmatpush1.msra.mxu0 0.0
    %3120 = vmatprep.subr.mxu0 0.0
    %3121 = vmatpush1.msra.mxu0 0.0
    %3122 = vmatprep.subr.mxu0 0.0
    %3123 = vmatpush1.msra.mxu0 0.0
    %3124 = vmatprep.subr.mxu0 0.0
    %3125 = vmatpush1.msra.mxu0 0.0
    %3126 = vmatprep.subr.mxu0 0.0
    %3127 = vmatpush1.msra.mxu0 0.0
    %3128 = vmatprep.subr.mxu0 0.0
    %3129 = vmatpush1.msra.mxu0 0.0
    %3130 = vmatprep.subr.mxu0 0.0
    %3131 = vmatpush1.msra.mxu0 0.0
    %3132 = vmatprep.subr.mxu0 0.0
    %3133 = vmatpush1.msra.mxu0 0.0
    %3134 = vmatprep.subr.mxu0 0.0
    %3135 = vmatpush1.msra.mxu0 0.0
    %3136 = vmatprep.subr.mxu0 0.0
    %3137 = vmatpush1.msra.mxu0 0.0
    %3138 = vmatprep.subr.mxu0 0.0
    %3139 = vmatpush1.msra.mxu0 0.0
    %3140 = vmatprep.subr.mxu0 0.0
    %3141 = vmatpush1.msra.mxu0 0.0
    %3142 = vmatprep.subr.mxu0 0.0
    %3143 = vmatpush1.msra.mxu0 0.0
    %3144 = vmatprep.subr.mxu0 0.0
    %3145 = vmatpush1.msra.mxu0 0.0
    %3146 = vmatprep.subr.mxu0 0.0
    %3147 = vmatpush1.msra.mxu0 0.0
    %3148 = vmatprep.subr.mxu0 0.0
    %3149 = vmatpush1.msra.mxu0 0.0
    %3150 = vmatprep.subr.mxu0 0.0
    %3151 = vmatpush1.msra.mxu0 0.0
    %3152 = vmatprep.subr.mxu0 0.0
    %3153 = vmatpush1.msra.mxu0 0.0
    %3154 = vmatprep.subr.mxu0 0.0
    %3155 = vmatpush1.msra.mxu0 0.0
    %3156 = vmatprep.subr.mxu0 0.0
    %3157 = vmatpush1.msra.mxu0 0.0
    %3158 = vmatprep.subr.mxu0 0.0
    %3159 = vmatpush1.msra.mxu0 0.0
    %3160 = vmatprep.subr.mxu0 0.0
    %3161 = vmatpush1.msra.mxu0 0.0
    %3162 = vmatprep.subr.mxu0 0.0
    %3163 = vmatpush1.msra.mxu0 0.0
    %3164 = vmatprep.subr.mxu0 0.0
    %3165 = vmatpush1.msra.mxu0 0.0
    %3166 = vmatprep.subr.mxu0 0.0
    %3167 = vmatpush1.msra.mxu0 0.0
    %3168 = vmatprep.subr.mxu0 0.0
    %3169 = vmatpush1.msra.mxu0 0.0
    %3170 = vmatprep.subr.mxu0 0.0
    %3171 = vmatpush1.msra.mxu0 0.0
    %3172 = vmatprep.subr.mxu0 0.0
    %3173 = vmatpush1.msra.mxu0 0.0
    %3174 = vmatprep.mubr.f32.mxu0 0.0
    %3175 = vmatmul.mubr.f32.gmra.mrb[0].mxu0 %v3108
    %v3176 = vpop.f32.mrb[0].mxu0
    %v3177 = vadd.f32 %v3105, %v3176
    %v3178 = vpop.f32.mrb[0].mxu0
    %3179 = vdwg.mxu0
    %v3188 = vsel %vm1926, %v2870, %v2863
    %v3189 = vsel %vm1928, %v2877, %v3188
    %v3190 = vsel %vm1930, %v2884, %v3189
    %v3191 = vsel %vm1932, %v2891, %v3190
    %v3192 = vsel %vm1934, %v2898, %v3191
    %v3193 = vsel %vm1936, %v2905, %v3192
    %v3194 = vsel %vm1938, %v2912, %v3193
    %v3197 = vsel %vm1789, %v2432, 0
    %3199 = vmatprep.subr.mxu0 0.0
    %3200 = vmatpush1.msra.mxu0 %v1394
    %3201 = vmatprep.subr.mxu0 0.0
    %3202 = vmatpush1.msra.mxu0 0.0
    %3203 = vmatprep.subr.mxu0 0.0
    %3204 = vmatpush1.msra.mxu0 0.0
    %3205 = vmatprep.subr.mxu0 0.0
    %3206 = vmatpush1.msra.mxu0 0.0
    %3207 = vmatprep.subr.mxu0 0.0
    %3208 = vmatpush1.msra.mxu0 0.0
    %3209 = vmatprep.subr.mxu0 0.0
    %3210 = vmatpush1.msra.mxu0 0.0
    %3211 = vmatprep.subr.mxu0 0.0
    %3212 = vmatpush1.msra.mxu0 0.0
    %3213 = vmatprep.subr.mxu0 0.0
    %3214 = vmatpush1.msra.mxu0 0.0
    %3215 = vmatprep.subr.mxu0 0.0
    %3216 = vmatpush1.msra.mxu0 0.0
    %3217 = vmatprep.subr.mxu0 0.0
    %3218 = vmatpush1.msra.mxu0 0.0
    %3219 = vmatprep.subr.mxu0 0.0
    %3220 = vmatpush1.msra.mxu0 0.0
    %3221 = vmatprep.subr.mxu0 0.0
    %3222 = vmatpush1.msra.mxu0 0.0
    %3223 = vmatprep.subr.mxu0 0.0
    %3224 = vmatpush1.msra.mxu0 0.0
    %3225 = vmatprep.subr.mxu0 0.0
    %3226 = vmatpush1.msra.mxu0 0.0
    %3227 = vmatprep.subr.mxu0 0.0
    %3228 = vmatpush1.msra.mxu0 0.0
    %3229 = vmatprep.subr.mxu0 0.0
    %3230 = vmatpush1.msra.mxu0 0.0
    %3231 = vmatprep.subr.mxu0 0.0
    %3232 = vmatpush1.msra.mxu0 0.0
    %3233 = vmatprep.subr.mxu0 0.0
    %3234 = vmatpush1.msra.mxu0 0.0
    %3235 = vmatprep.subr.mxu0 0.0
    %3236 = vmatpush1.msra.mxu0 0.0
    %3237 = vmatprep.subr.mxu0 0.0
    %3238 = vmatpush1.msra.mxu0 0.0
    %3239 = vmatprep.subr.mxu0 0.0
    %3240 = vmatpush1.msra.mxu0 0.0
    %3241 = vmatprep.subr.mxu0 0.0
    %3242 = vmatpush1.msra.mxu0 0.0
    %3243 = vmatprep.subr.mxu0 0.0
    %3244 = vmatpush1.msra.mxu0 0.0
    %3245 = vmatprep.subr.mxu0 0.0
    %3246 = vmatpush1.msra.mxu0 0.0
    %3247 = vmatprep.subr.mxu0 0.0
    %3248 = vmatpush1.msra.mxu0 0.0
    %3249 = vmatprep.subr.mxu0 0.0
    %3250 = vmatpush1.msra.mxu0 0.0
    %3251 = vmatprep.subr.mxu0 0.0
    %3252 = vmatpush1.msra.mxu0 0.0
    %3253 = vmatprep.subr.mxu0 0.0
    %3254 = vmatpush1.msra.mxu0 0.0
    %3255 = vmatprep.subr.mxu0 0.0
    %3256 = vmatpush1.msra.mxu0 0.0
    %3257 = vmatprep.subr.mxu0 0.0
    %3258 = vmatpush1.msra.mxu0 0.0
    %3259 = vmatprep.subr.mxu0 0.0
    %3260 = vmatpush1.msra.mxu0 0.0
    %3261 = vmatprep.subr.mxu0 0.0
    %3262 = vmatpush1.msra.mxu0 0.0
    %3263 = vmatprep.mubr.f32.mxu0 0.0
    %3264 = vmatmul.mubr.f32.gmra.mrb[0].mxu0 %v3197
    %v3265 = vpop.f32.mrb[0].mxu0
    %v3266 = vadd.f32 %v3194, %v3265
    %v3267 = vpop.f32.mrb[0].mxu0
    %3268 = vdwg.mxu0
    %v3270 = vsel %vm1789, %v2999, 0
    %v3273 = vsel %vm1789, %v454, 0
    %v3276 = vsel %vm1789, %v455, 0
    %v3279 = vsel %vm1789, %v456, 0
    %v3282 = vsel %vm1789, %v457, 0
    %3284 = vmatprep.subr.mxu0 0.0
    %3285 = vmatpush1.xpose.msra.mxu0 %v3273
    %3286 = vmatprep.subr.mxu0 0.0
    %3287 = vmatpush1.xpose.msra.mxu0 %v3276
    %3288 = vmatprep.subr.mxu0 0.0
    %3289 = vmatpush1.xpose.msra.mxu0 %v3279
    %3290 = vmatprep.subr.mxu0 0.0
    %3291 = vmatpush1.xpose.msra.mxu0 %v3282
    %3292 = vmatprep.subr.mxu0 0.0
    %3293 = vmatpush1.xpose.msra.mxu0 0.0
    %3294 = vmatprep.subr.mxu0 0.0
    %3295 = vmatpush1.xpose.msra.mxu0 0.0
    %3296 = vmatprep.subr.mxu0 0.0
    %3297 = vmatpush1.xpose.msra.mxu0 0.0
    %3298 = vmatprep.subr.mxu0 0.0
    %3299 = vmatpush1.xpose.msra.mxu0 0.0
    %3300 = vmatprep.subr.mxu0 0.0
    %3301 = vmatpush1.xpose.msra.mxu0 0.0
    %3302 = vmatprep.subr.mxu0 0.0
    %3303 = vmatpush1.xpose.msra.mxu0 0.0
    %3304 = vmatprep.subr.mxu0 0.0
    %3305 = vmatpush1.xpose.msra.mxu0 0.0
    %3306 = vmatprep.subr.mxu0 0.0
    %3307 = vmatpush1.xpose.msra.mxu0 0.0
    %3308 = vmatprep.subr.mxu0 0.0
    %3309 = vmatpush1.xpose.msra.mxu0 0.0
    %3310 = vmatprep.subr.mxu0 0.0
    %3311 = vmatpush1.xpose.msra.mxu0 0.0
    %3312 = vmatprep.subr.mxu0 0.0
    %3313 = vmatpush1.xpose.msra.mxu0 0.0
    %3314 = vmatprep.subr.mxu0 0.0
    %3315 = vmatpush1.xpose.msra.mxu0 0.0
    %3316 = vmatprep.subr.mxu0 0.0
    %3317 = vmatpush1.xpose.msra.mxu0 0.0
    %3318 = vmatprep.subr.mxu0 0.0
    %3319 = vmatpush1.xpose.msra.mxu0 0.0
    %3320 = vmatprep.subr.mxu0 0.0
    %3321 = vmatpush1.xpose.msra.mxu0 0.0
    %3322 = vmatprep.subr.mxu0 0.0
    %3323 = vmatpush1.xpose.msra.mxu0 0.0
    %3324 = vmatprep.subr.mxu0 0.0
    %3325 = vmatpush1.xpose.msra.mxu0 0.0
    %3326 = vmatprep.subr.mxu0 0.0
    %3327 = vmatpush1.xpose.msra.mxu0 0.0
    %3328 = vmatprep.subr.mxu0 0.0
    %3329 = vmatpush1.xpose.msra.mxu0 0.0
    %3330 = vmatprep.subr.mxu0 0.0
    %3331 = vmatpush1.xpose.msra.mxu0 0.0
    %3332 = vmatprep.subr.mxu0 0.0
    %3333 = vmatpush1.xpose.msra.mxu0 0.0
    %3334 = vmatprep.subr.mxu0 0.0
    %3335 = vmatpush1.xpose.msra.mxu0 0.0
    %3336 = vmatprep.subr.mxu0 0.0
    %3337 = vmatpush1.xpose.msra.mxu0 0.0
    %3338 = vmatprep.subr.mxu0 0.0
    %3339 = vmatpush1.xpose.msra.mxu0 0.0
    %3340 = vmatprep.subr.mxu0 0.0
    %3341 = vmatpush1.xpose.msra.mxu0 0.0
    %3342 = vmatprep.subr.mxu0 0.0
    %3343 = vmatpush1.xpose.msra.mxu0 0.0
    %3344 = vmatprep.subr.mxu0 0.0
    %3345 = vmatpush1.xpose.msra.mxu0 0.0
    %3346 = vmatprep.subr.mxu0 0.0
    %3347 = vmatpush1.xpose.msra.mxu0 0.0
    %3348 = vmatprep.mubr.f32.mxu0 0.0
    %3349 = vmatmul.mubr.f32.gmra.mrb[0].mxu0 %v3270
    %v3350 = vpop.f32.mrb[0].mxu0
    %v3351 = vadd.f32 0.0, %v3350
    %v3352 = vpop.f32.mrb[0].mxu0
    %3353 = vdwg.mxu0
    %v3355 = vsel %vm1789, %v3088, 0
    %v3358 = vsel %vm1789, %v458, 0
    %v3361 = vsel %vm1789, %v459, 0
    %v3364 = vsel %vm1789, %v460, 0
    %v3367 = vsel %vm1789, %v461, 0
    %3369 = vmatprep.subr.mxu0 0.0
    %3370 = vmatpush1.xpose.msra.mxu0 %v3358
    %3371 = vmatprep.subr.mxu0 0.0
    %3372 = vmatpush1.xpose.msra.mxu0 %v3361
    %3373 = vmatprep.subr.mxu0 0.0
    %3374 = vmatpush1.xpose.msra.mxu0 %v3364
    %3375 = vmatprep.subr.mxu0 0.0
    %3376 = vmatpush1.xpose.msra.mxu0 %v3367
    %3377 = vmatprep.subr.mxu0 0.0
    %3378 = vmatpush1.xpose.msra.mxu0 0.0
    %3379 = vmatprep.subr.mxu0 0.0
    %3380 = vmatpush1.xpose.msra.mxu0 0.0
    %3381 = vmatprep.subr.mxu0 0.0
    %3382 = vmatpush1.xpose.msra.mxu0 0.0
    %3383 = vmatprep.subr.mxu0 0.0
    %3384 = vmatpush1.xpose.msra.mxu0 0.0
    %3385 = vmatprep.subr.mxu0 0.0
    %3386 = vmatpush1.xpose.msra.mxu0 0.0
    %3387 = vmatprep.subr.mxu0 0.0
    %3388 = vmatpush1.xpose.msra.mxu0 0.0
    %3389 = vmatprep.subr.mxu0 0.0
    %3390 = vmatpush1.xpose.msra.mxu0 0.0
    %3391 = vmatprep.subr.mxu0 0.0
    %3392 = vmatpush1.xpose.msra.mxu0 0.0
    %3393 = vmatprep.subr.mxu0 0.0
    %3394 = vmatpush1.xpose.msra.mxu0 0.0
    %3395 = vmatprep.subr.mxu0 0.0
    %3396 = vmatpush1.xpose.msra.mxu0 0.0
    %3397 = vmatprep.subr.mxu0 0.0
    %3398 = vmatpush1.xpose.msra.mxu0 0.0
    %3399 = vmatprep.subr.mxu0 0.0
    %3400 = vmatpush1.xpose.msra.mxu0 0.0
    %3401 = vmatprep.subr.mxu0 0.0
    %3402 = vmatpush1.xpose.msra.mxu0 0.0
    %3403 = vmatprep.subr.mxu0 0.0
    %3404 = vmatpush1.xpose.msra.mxu0 0.0
    %3405 = vmatprep.subr.mxu0 0.0
    %3406 = vmatpush1.xpose.msra.mxu0 0.0
    %3407 = vmatprep.subr.mxu0 0.0
    %3408 = vmatpush1.xpose.msra.mxu0 0.0
    %3409 = vmatprep.subr.mxu0 0.0
    %3410 = vmatpush1.xpose.msra.mxu0 0.0
    %3411 = vmatprep.subr.mxu0 0.0
    %3412 = vmatpush1.xpose.msra.mxu0 0.0
    %3413 = vmatprep.subr.mxu0 0.0
    %3414 = vmatpush1.xpose.msra.mxu0 0.0
    %3415 = vmatprep.subr.mxu0 0.0
    %3416 = vmatpush1.xpose.msra.mxu0 0.0
    %3417 = vmatprep.subr.mxu0 0.0
    %3418 = vmatpush1.xpose.msra.mxu0 0.0
    %3419 = vmatprep.subr.mxu0 0.0
    %3420 = vmatpush1.xpose.msra.mxu0 0.0
    %3421 = vmatprep.subr.mxu0 0.0
    %3422 = vmatpush1.xpose.msra.mxu0 0.0
    %3423 = vmatprep.subr.mxu0 0.0
    %3424 = vmatpush1.xpose.msra.mxu0 0.0
    %3425 = vmatprep.subr.mxu0 0.0
    %3426 = vmatpush1.xpose.msra.mxu0 0.0
    %3427 = vmatprep.subr.mxu0 0.0
    %3428 = vmatpush1.xpose.msra.mxu0 0.0
    %3429 = vmatprep.subr.mxu0 0.0
    %3430 = vmatpush1.xpose.msra.mxu0 0.0
    %3431 = vmatprep.subr.mxu0 0.0
    %3432 = vmatpush1.xpose.msra.mxu0 0.0
    %3433 = vmatprep.mubr.f32.mxu0 0.0
    %3434 = vmatmul.mubr.f32.gmra.mrb[0].mxu0 %v3355
    %v3435 = vpop.f32.mrb[0].mxu0
    %v3436 = vadd.f32 0.0, %v3435
    %v3437 = vpop.f32.mrb[0].mxu0
    %3438 = vdwg.mxu0
    %v3440 = vsel %vm1789, %v3177, 0
    %v3443 = vsel %vm1789, %v462, 0
    %v3446 = vsel %vm1789, %v463, 0
    %v3449 = vsel %vm1789, %v464, 0
    %v3452 = vsel %vm1789, %v465, 0
    %3454 = vmatprep.subr.mxu0 0.0
    %3455 = vmatpush1.xpose.msra.mxu0 %v3443
    %3456 = vmatprep.subr.mxu0 0.0
    %3457 = vmatpush1.xpose.msra.mxu0 %v3446
    %3458 = vmatprep.subr.mxu0 0.0
    %3459 = vmatpush1.xpose.msra.mxu0 %v3449
    %3460 = vmatprep.subr.mxu0 0.0
    %3461 = vmatpush1.xpose.msra.mxu0 %v3452
    %3462 = vmatprep.subr.mxu0 0.0
    %3463 = vmatpush1.xpose.msra.mxu0 0.0
    %3464 = vmatprep.subr.mxu0 0.0
    %3465 = vmatpush1.xpose.msra.mxu0 0.0
    %3466 = vmatprep.subr.mxu0 0.0
    %3467 = vmatpush1.xpose.msra.mxu0 0.0
    %3468 = vmatprep.subr.mxu0 0.0
    %3469 = vmatpush1.xpose.msra.mxu0 0.0
    %3470 = vmatprep.subr.mxu0 0.0
    %3471 = vmatpush1.xpose.msra.mxu0 0.0
    %3472 = vmatprep.subr.mxu0 0.0
    %3473 = vmatpush1.xpose.msra.mxu0 0.0
    %3474 = vmatprep.subr.mxu0 0.0
    %3475 = vmatpush1.xpose.msra.mxu0 0.0
    %3476 = vmatprep.subr.mxu0 0.0
    %3477 = vmatpush1.xpose.msra.mxu0 0.0
    %3478 = vmatprep.subr.mxu0 0.0
    %3479 = vmatpush1.xpose.msra.mxu0 0.0
    %3480 = vmatprep.subr.mxu0 0.0
    %3481 = vmatpush1.xpose.msra.mxu0 0.0
    %3482 = vmatprep.subr.mxu0 0.0
    %3483 = vmatpush1.xpose.msra.mxu0 0.0
    %3484 = vmatprep.subr.mxu0 0.0
    %3485 = vmatpush1.xpose.msra.mxu0 0.0
    %3486 = vmatprep.subr.mxu0 0.0
    %3487 = vmatpush1.xpose.msra.mxu0 0.0
    %3488 = vmatprep.subr.mxu0 0.0
    %3489 = vmatpush1.xpose.msra.mxu0 0.0
    %3490 = vmatprep.subr.mxu0 0.0
    %3491 = vmatpush1.xpose.msra.mxu0 0.0
    %3492 = vmatprep.subr.mxu0 0.0
    %3493 = vmatpush1.xpose.msra.mxu0 0.0
    %3494 = vmatprep.subr.mxu0 0.0
    %3495 = vmatpush1.xpose.msra.mxu0 0.0
    %3496 = vmatprep.subr.mxu0 0.0
    %3497 = vmatpush1.xpose.msra.mxu0 0.0
    %3498 = vmatprep.subr.mxu0 0.0
    %3499 = vmatpush1.xpose.msra.mxu0 0.0
    %3500 = vmatprep.subr.mxu0 0.0
    %3501 = vmatpush1.xpose.msra.mxu0 0.0
    %3502 = vmatprep.subr.mxu0 0.0
    %3503 = vmatpush1.xpose.msra.mxu0 0.0
    %3504 = vmatprep.subr.mxu0 0.0
    %3505 = vmatpush1.xpose.msra.mxu0 0.0
    %3506 = vmatprep.subr.mxu0 0.0
    %3507 = vmatpush1.xpose.msra.mxu0 0.0
    %3508 = vmatprep.subr.mxu0 0.0
    %3509 = vmatpush1.xpose.msra.mxu0 0.0
    %3510 = vmatprep.subr.mxu0 0.0
    %3511 = vmatpush1.xpose.msra.mxu0 0.0
    %3512 = vmatprep.subr.mxu0 0.0
    %3513 = vmatpush1.xpose.msra.mxu0 0.0
    %3514 = vmatprep.subr.mxu0 0.0
    %3515 = vmatpush1.xpose.msra.mxu0 0.0
    %3516 = vmatprep.subr.mxu0 0.0
    %3517 = vmatpush1.xpose.msra.mxu0 0.0
    %3518 = vmatprep.mubr.f32.mxu0 0.0
    %3519 = vmatmul.mubr.f32.gmra.mrb[0].mxu0 %v3440
    %v3520 = vpop.f32.mrb[0].mxu0
    %v3521 = vadd.f32 0.0, %v3520
    %v3522 = vpop.f32.mrb[0].mxu0
    %3523 = vdwg.mxu0
    %v3525 = vsel %vm1789, %v3266, 0
    %v3528 = vsel %vm1789, %v466, 0
    %v3531 = vsel %vm1789, %v467, 0
    %v3534 = vsel %vm1789, %v468, 0
    %v3537 = vsel %vm1789, %v469, 0
    %3539 = vmatprep.subr.mxu0 0.0
    %3540 = vmatpush1.xpose.msra.mxu0 %v3528
    %3541 = vmatprep.subr.mxu0 0.0
    %3542 = vmatpush1.xpose.msra.mxu0 %v3531
    %3543 = vmatprep.subr.mxu0 0.0
    %3544 = vmatpush1.xpose.msra.mxu0 %v3534
    %3545 = vmatprep.subr.mxu0 0.0
    %3546 = vmatpush1.xpose.msra.mxu0 %v3537
    %3547 = vmatprep.subr.mxu0 0.0
    %3548 = vmatpush1.xpose.msra.mxu0 0.0
    %3549 = vmatprep.subr.mxu0 0.0
    %3550 = vmatpush1.xpose.msra.mxu0 0.0
    %3551 = vmatprep.subr.mxu0 0.0
    %3552 = vmatpush1.xpose.msra.mxu0 0.0
    %3553 = vmatprep.subr.mxu0 0.0
    %3554 = vmatpush1.xpose.msra.mxu0 0.0
    %3555 = vmatprep.subr.mxu0 0.0
    %3556 = vmatpush1.xpose.msra.mxu0 0.0
    %3557 = vmatprep.subr.mxu0 0.0
    %3558 = vmatpush1.xpose.msra.mxu0 0.0
    %3559 = vmatprep.subr.mxu0 0.0
    %3560 = vmatpush1.xpose.msra.mxu0 0.0
    %3561 = vmatprep.subr.mxu0 0.0
    %3562 = vmatpush1.xpose.msra.mxu0 0.0
    %3563 = vmatprep.subr.mxu0 0.0
    %3564 = vmatpush1.xpose.msra.mxu0 0.0
    %3565 = vmatprep.subr.mxu0 0.0
    %3566 = vmatpush1.xpose.msra.mxu0 0.0
    %3567 = vmatprep.subr.mxu0 0.0
    %3568 = vmatpush1.xpose.msra.mxu0 0.0
    %3569 = vmatprep.subr.mxu0 0.0
    %3570 = vmatpush1.xpose.msra.mxu0 0.0
    %3571 = vmatprep.subr.mxu0 0.0
    %3572 = vmatpush1.xpose.msra.mxu0 0.0
    %3573 = vmatprep.subr.mxu0 0.0
    %3574 = vmatpush1.xpose.msra.mxu0 0.0
    %3575 = vmatprep.subr.mxu0 0.0
    %3576 = vmatpush1.xpose.msra.mxu0 0.0
    %3577 = vmatprep.subr.mxu0 0.0
    %3578 = vmatpush1.xpose.msra.mxu0 0.0
    %3579 = vmatprep.subr.mxu0 0.0
    %3580 = vmatpush1.xpose.msra.mxu0 0.0
    %3581 = vmatprep.subr.mxu0 0.0
    %3582 = vmatpush1.xpose.msra.mxu0 0.0
    %3583 = vmatprep.subr.mxu0 0.0
    %3584 = vmatpush1.xpose.msra.mxu0 0.0
    %3585 = vmatprep.subr.mxu0 0.0
    %3586 = vmatpush1.xpose.msra.mxu0 0.0
    %3587 = vmatprep.subr.mxu0 0.0
    %3588 = vmatpush1.xpose.msra.mxu0 0.0
    %3589 = vmatprep.subr.mxu0 0.0
    %3590 = vmatpush1.xpose.msra.mxu0 0.0
    %3591 = vmatprep.subr.mxu0 0.0
    %3592 = vmatpush1.xpose.msra.mxu0 0.0
    %3593 = vmatprep.subr.mxu0 0.0
    %3594 = vmatpush1.xpose.msra.mxu0 0.0
    %3595 = vmatprep.subr.mxu0 0.0
    %3596 = vmatpush1.xpose.msra.mxu0 0.0
    %3597 = vmatprep.subr.mxu0 0.0
    %3598 = vmatpush1.xpose.msra.mxu0 0.0
    %3599 = vmatprep.subr.mxu0 0.0
    %3600 = vmatpush1.xpose.msra.mxu0 0.0
    %3601 = vmatprep.subr.mxu0 0.0
    %3602 = vmatpush1.xpose.msra.mxu0 0.0
    %3603 = vmatprep.mubr.f32.mxu0 0.0
    %3604 = vmatmul.mubr.f32.gmra.mrb[0].mxu0 %v3525
    %v3605 = vpop.f32.mrb[0].mxu0
    %v3606 = vadd.f32 0.0, %v3605
    %v3607 = vpop.f32.mrb[0].mxu0
    %3608 = vdwg.mxu0
    %v3609 = vsel %vm381, %v3351, 0.0
    %v3610 = vsel %vm381, %v3436, 0.0
    %v3611 = vadd.f32 %v3609, %v3610
    %v3612 = vsel %vm381, %v3521, 0.0
    %v3613 = vadd.f32 %v3611, %v3612
    %v3614 = vsel %vm381, %v3606, 0.0
    %v3615 = vadd.f32 %v3613, %v3614
    %v3616 = vadd.f32 %v57, %v3615
    %v3617 = vlaneseq
    %v3618 = vshrl.u32 %v3617, 7
    %v3619 = vsub.s32 2, %v3618
    %v3620 = vrot.slane %v141, %v3619
    %v3621 = vadd.f32 %v3616, %v3620
    %v3622 = vsel %vm381, %v3621, 0.0
    %3623 = vadd.xlane.f32.xlu0 %v3622
    %v3624 = vpop.xlane.xlu0 %3623
    %v3625 = vmul.f32 %v3624, %v385
    %v3626 = vsub.f32 %v3621, %v3625
    %v3627 = vmul.f32 %v3626, %v3626
    %v3628 = vsel %vm381, %v3627, 0.0
    %3629 = vadd.xlane.f32.xlu0 %v3628
    %v3630 = vpop.xlane.xlu0 %3629
    %v3631 = vmul.f32 %v3630, %v385
    %v3632 = vlaneseq
    %v3633 = vshrl.u32 %v3632, 7
    %v3634 = vsub.s32 3, %v3633
    %v3635 = vrot.slane %v141, %v3634
    %v3636 = vmul.f32 %v3635, %v3626
    %v3637 = vadd.f32 %v3631, 1e-05
    %v3638 = vrsqrt.pop %v3637
    %v3639 = vmul.f32 %v3636, %v3638
    %v3640 = vlaneseq
    %v3641 = vshrl.u32 %v3640, 7
    %v3642 = vsub.s32 4, %v3641
    %v3643 = vrot.slane %v141, %v3642
    %v3644 = vadd.f32 %v3639, %v3643
    %v3645 = vld [vmem:[%s5] sm:$0xff]
    %v3646 = vld [vmem:[%s5 + $0x8] sm:$0xff]
    %v3647 = vld [vmem:[%s5 + $0x10] sm:$0xff]
    %v3648 = vld [vmem:[%s5 + $0x18] sm:$0xff]
    %v3649 = vlaneseq
    %v3650 = vshrl.u32 %v3649, 7
    %v3651 = vsub.s32 6, %v3650
    %v3652 = vrot.slane %v141, %v3651
    %v3654 = vsel %vm381, %v3644, 0
    %3656 = vmatprep.subr.mxu0 0.0
    %3657 = vmatpush1.msra.mxu0 %v3645
    %3658 = vmatprep.subr.mxu0 0.0
    %3659 = vmatpush1.msra.mxu0 %v3646
    %3660 = vmatprep.subr.mxu0 0.0
    %3661 = vmatpush1.msra.mxu0 %v3647
    %3662 = vmatprep.subr.mxu0 0.0
    %3663 = vmatpush1.msra.mxu0 %v3648
    %3664 = vmatprep.subr.mxu0 0.0
    %3665 = vmatpush1.msra.mxu0 0.0
    %3666 = vmatprep.subr.mxu0 0.0
    %3667 = vmatpush1.msra.mxu0 0.0
    %3668 = vmatprep.subr.mxu0 0.0
    %3669 = vmatpush1.msra.mxu0 0.0
    %3670 = vmatprep.subr.mxu0 0.0
    %3671 = vmatpush1.msra.mxu0 0.0
    %3672 = vmatprep.subr.mxu0 0.0
    %3673 = vmatpush1.msra.mxu0 0.0
    %3674 = vmatprep.subr.mxu0 0.0
    %3675 = vmatpush1.msra.mxu0 0.0
    %3676 = vmatprep.subr.mxu0 0.0
    %3677 = vmatpush1.msra.mxu0 0.0
    %3678 = vmatprep.subr.mxu0 0.0
    %3679 = vmatpush1.msra.mxu0 0.0
    %3680 = vmatprep.subr.mxu0 0.0
    %3681 = vmatpush1.msra.mxu0 0.0
    %3682 = vmatprep.subr.mxu0 0.0
    %3683 = vmatpush1.msra.mxu0 0.0
    %3684 = vmatprep.subr.mxu0 0.0
    %3685 = vmatpush1.msra.mxu0 0.0
    %3686 = vmatprep.subr.mxu0 0.0
    %3687 = vmatpush1.msra.mxu0 0.0
    %3688 = vmatprep.subr.mxu0 0.0
    %3689 = vmatpush1.msra.mxu0 0.0
    %3690 = vmatprep.subr.mxu0 0.0
    %3691 = vmatpush1.msra.mxu0 0.0
    %3692 = vmatprep.subr.mxu0 0.0
    %3693 = vmatpush1.msra.mxu0 0.0
    %3694 = vmatprep.subr.mxu0 0.0
    %3695 = vmatpush1.msra.mxu0 0.0
    %3696 = vmatprep.subr.mxu0 0.0
    %3697 = vmatpush1.msra.mxu0 0.0
    %3698 = vmatprep.subr.mxu0 0.0
    %3699 = vmatpush1.msra.mxu0 0.0
    %3700 = vmatprep.subr.mxu0 0.0
    %3701 = vmatpush1.msra.mxu0 0.0
    %3702 = vmatprep.subr.mxu0 0.0
    %3703 = vmatpush1.msra.mxu0 0.0
    %3704 = vmatprep.subr.mxu0 0.0
    %3705 = vmatpush1.msra.mxu0 0.0
    %3706 = vmatprep.subr.mxu0 0.0
    %3707 = vmatpush1.msra.mxu0 0.0
    %3708 = vmatprep.subr.mxu0 0.0
    %3709 = vmatpush1.msra.mxu0 0.0
    %3710 = vmatprep.subr.mxu0 0.0
    %3711 = vmatpush1.msra.mxu0 0.0
    %3712 = vmatprep.subr.mxu0 0.0
    %3713 = vmatpush1.msra.mxu0 0.0
    %3714 = vmatprep.subr.mxu0 0.0
    %3715 = vmatpush1.msra.mxu0 0.0
    %3716 = vmatprep.subr.mxu0 0.0
    %3717 = vmatpush1.msra.mxu0 0.0
    %3718 = vmatprep.subr.mxu0 0.0
    %3719 = vmatpush1.msra.mxu0 0.0
    %3720 = vmatprep.mubr.f32.mxu0 0.0
    %3721 = vmatmul.mubr.f32.gmra.mrb[0].mxu0 %v3654
    %v3722 = vpop.f32.mrb[0].mxu0
    %v3723 = vadd.f32 %v3652, %v3722
    %v3724 = vpop.f32.mrb[0].mxu0
    %3725 = vdwg.mxu0
    %v3726 = vmax.f32 %v3723, 0.0
    %v3727 = vld [vmem:[#allocation4] sm:$0xff]
    %v3728 = vld [vmem:[#allocation4 + $0x8] sm:$0xff]
    %v3729 = vld [vmem:[#allocation4 + $0x10] sm:$0xff]
    %v3730 = vld [vmem:[#allocation4 + $0x18] sm:$0xff]
    %v3731 = vld [vmem:[#allocation4 + $0x20] sm:$0xff]
    %v3732 = vld [vmem:[#allocation4 + $0x28] sm:$0xff]
    %v3733 = vld [vmem:[#allocation4 + $0x30] sm:$0xff]
    %v3734 = vld [vmem:[#allocation4 + $0x38] sm:$0xff]
    %v3735 = vld [vmem:[#allocation4 + $0x40] sm:$0xff]
    %v3736 = vld [vmem:[#allocation4 + $0x48] sm:$0xff]
    %v3737 = vld [vmem:[#allocation4 + $0x50] sm:$0xff]
    %v3738 = vld [vmem:[#allocation4 + $0x58] sm:$0xff]
    %v3739 = vld [vmem:[#allocation4 + $0x60] sm:$0xff]
    %v3740 = vld [vmem:[#allocation4 + $0x68] sm:$0xff]
    %v3741 = vld [vmem:[#allocation4 + $0x70] sm:$0xff]
    %v3742 = vld [vmem:[#allocation4 + $0x78] sm:$0xff]
    %3743 = vmatprep.subr.mxu0 0.0
    %3744 = vmatpush1.msra.mxu0 %v3727
    %3745 = vmatprep.subr.mxu0 0.0
    %3746 = vmatpush1.msra.mxu0 %v3728
    %3747 = vmatprep.subr.mxu0 0.0
    %3748 = vmatpush1.msra.mxu0 %v3729
    %3749 = vmatprep.subr.mxu0 0.0
    %3750 = vmatpush1.msra.mxu0 %v3730
    %3751 = vmatprep.subr.mxu0 0.0
    %3752 = vmatpush1.msra.mxu0 %v3731
    %3753 = vmatprep.subr.mxu0 0.0
    %3754 = vmatpush1.msra.mxu0 %v3732
    %3755 = vmatprep.subr.mxu0 0.0
    %3756 = vmatpush1.msra.mxu0 %v3733
    %3757 = vmatprep.subr.mxu0 0.0
    %3758 = vmatpush1.msra.mxu0 %v3734
    %3759 = vmatprep.subr.mxu0 0.0
    %3760 = vmatpush1.msra.mxu0 %v3735
    %3761 = vmatprep.subr.mxu0 0.0
    %3762 = vmatpush1.msra.mxu0 %v3736
    %3763 = vmatprep.subr.mxu0 0.0
    %3764 = vmatpush1.msra.mxu0 %v3737
    %3765 = vmatprep.subr.mxu0 0.0
    %3766 = vmatpush1.msra.mxu0 %v3738
    %3767 = vmatprep.subr.mxu0 0.0
    %3768 = vmatpush1.msra.mxu0 %v3739
    %3769 = vmatprep.subr.mxu0 0.0
    %3770 = vmatpush1.msra.mxu0 %v3740
    %3771 = vmatprep.subr.mxu0 0.0
    %3772 = vmatpush1.msra.mxu0 %v3741
    %3773 = vmatprep.subr.mxu0 0.0
    %3774 = vmatpush1.msra.mxu0 %v3742
    %3775 = vmatprep.subr.mxu0 0.0
    %3776 = vmatpush1.msra.mxu0 0.0
    %3777 = vmatprep.subr.mxu0 0.0
    %3778 = vmatpush1.msra.mxu0 0.0
    %3779 = vmatprep.subr.mxu0 0.0
    %3780 = vmatpush1.msra.mxu0 0.0
    %3781 = vmatprep.subr.mxu0 0.0
    %3782 = vmatpush1.msra.mxu0 0.0
    %3783 = vmatprep.subr.mxu0 0.0
    %3784 = vmatpush1.msra.mxu0 0.0
    %3785 = vmatprep.subr.mxu0 0.0
    %3786 = vmatpush1.msra.mxu0 0.0
    %3787 = vmatprep.subr.mxu0 0.0
    %3788 = vmatpush1.msra.mxu0 0.0
    %3789 = vmatprep.subr.mxu0 0.0
    %3790 = vmatpush1.msra.mxu0 0.0
    %3791 = vmatprep.subr.mxu0 0.0
    %3792 = vmatpush1.msra.mxu0 0.0
    %3793 = vmatprep.subr.mxu0 0.0
    %3794 = vmatpush1.msra.mxu0 0.0
    %3795 = vmatprep.subr.mxu0 0.0
    %3796 = vmatpush1.msra.mxu0 0.0
    %3797 = vmatprep.subr.mxu0 0.0
    %3798 = vmatpush1.msra.mxu0 0.0
    %3799 = vmatprep.subr.mxu0 0.0
    %3800 = vmatpush1.msra.mxu0 0.0
    %3801 = vmatprep.subr.mxu0 0.0
    %3802 = vmatpush1.msra.mxu0 0.0
    %3803 = vmatprep.subr.mxu0 0.0
    %3804 = vmatpush1.msra.mxu0 0.0
    %3805 = vmatprep.subr.mxu0 0.0
    %3806 = vmatpush1.msra.mxu0 0.0
    %3807 = vmatprep.mubr.f32.mxu0 0.0
    %3808 = vmatmul.mubr.f32.gmra.mrb[0].mxu0 %v3726
    %v3809 = vpop.f32.mrb[0].mxu0
    %v3810 = vadd.f32 0.0, %v3809
    %v3811 = vpop.f32.mrb[0].mxu0
    %3812 = vdwg.mxu0
    %v3813 = vadd.f32 %v3621, %v3810
    %v3814 = vlaneseq
    %v3815 = vshrl.u32 %v3814, 7
    %v3816 = vsub.s32 5, %v3815
    %v3817 = vrot.slane %v141, %v3816
    %v3818 = vadd.f32 %v3813, %v3817
    %s3819 = scalar_lea.vmem %s7, 8
    %v3820 = vld [vmem:[%s3819] sm:$0xff]
    %s3821 = scalar_lea.vmem %s2, 32
    %v3822 = vld [vmem:[%s3821] sm:$0xff]
    %v3823 = vld [vmem:[%s3821 + $0x8] sm:$0xff]
    %v3824 = vld [vmem:[%s3821 + $0x10] sm:$0xff]
    %v3825 = vld [vmem:[%s3821 + $0x18] sm:$0xff]
    %3826 = vmatprep.subr.mxu0 0.0
    %3827 = vmatpush1.msra.mxu0 %v3822
    %3828 = vmatprep.subr.mxu0 0.0
    %3829 = vmatpush1.msra.mxu0 %v3823
    %3830 = vmatprep.subr.mxu0 0.0
    %3831 = vmatpush1.msra.mxu0 0.0
    %3832 = vmatprep.subr.mxu0 0.0
    %3833 = vmatpush1.msra.mxu0 0.0
    %3834 = vmatprep.subr.mxu0 0.0
    %3835 = vmatpush1.msra.mxu0 0.0
    %3836 = vmatprep.subr.mxu0 0.0
    %3837 = vmatpush1.msra.mxu0 0.0
    %3838 = vmatprep.subr.mxu0 0.0
    %3839 = vmatpush1.msra.mxu0 0.0
    %3840 = vmatprep.subr.mxu0 0.0
    %3841 = vmatpush1.msra.mxu0 0.0
    %3842 = vmatprep.subr.mxu0 0.0
    %3843 = vmatpush1.msra.mxu0 0.0
    %3844 = vmatprep.subr.mxu0 0.0
    %3845 = vmatpush1.msra.mxu0 0.0
    %3846 = vmatprep.subr.mxu0 0.0
    %3847 = vmatpush1.msra.mxu0 0.0
    %3848 = vmatprep.subr.mxu0 0.0
    %3849 = vmatpush1.msra.mxu0 0.0
    %3850 = vmatprep.subr.mxu0 0.0
    %3851 = vmatpush1.msra.mxu0 0.0
    %3852 = vmatprep.subr.mxu0 0.0
    %3853 = vmatpush1.msra.mxu0 0.0
    %3854 = vmatprep.subr.mxu0 0.0
    %3855 = vmatpush1.msra.mxu0 0.0
    %3856 = vmatprep.subr.mxu0 0.0
    %3857 = vmatpush1.msra.mxu0 0.0
    %3858 = vmatprep.subr.mxu0 0.0
    %3859 = vmatpush1.msra.mxu0 0.0
    %3860 = vmatprep.subr.mxu0 0.0
    %3861 = vmatpush1.msra.mxu0 0.0
    %3862 = vmatprep.subr.mxu0 0.0
    %3863 = vmatpush1.msra.mxu0 0.0
    %3864 = vmatprep.subr.mxu0 0.0
    %3865 = vmatpush1.msra.mxu0 0.0
    %3866 = vmatprep.subr.mxu0 0.0
    %3867 = vmatpush1.msra.mxu0 0.0
    %3868 = vmatprep.subr.mxu0 0.0
    %3869 = vmatpush1.msra.mxu0 0.0
    %3870 = vmatprep.subr.mxu0 0.0
    %3871 = vmatpush1.msra.mxu0 0.0
    %3872 = vmatprep.subr.mxu0 0.0
    %3873 = vmatpush1.msra.mxu0 0.0
    %3874 = vmatprep.subr.mxu0 0.0
    %3875 = vmatpush1.msra.mxu0 0.0
    %3876 = vmatprep.subr.mxu0 0.0
    %3877 = vmatpush1.msra.mxu0 0.0
    %3878 = vmatprep.subr.mxu0 0.0
    %3879 = vmatpush1.msra.mxu0 0.0
    %3880 = vmatprep.subr.mxu0 0.0
    %3881 = vmatpush1.msra.mxu0 0.0
    %3882 = vmatprep.subr.mxu0 0.0
    %3883 = vmatpush1.msra.mxu0 0.0
    %3884 = vmatprep.subr.mxu0 0.0
    %3885 = vmatpush1.msra.mxu0 0.0
    %3886 = vmatprep.subr.mxu0 0.0
    %3887 = vmatpush1.msra.mxu0 0.0
    %3888 = vmatprep.subr.mxu0 0.0
    %3889 = vmatpush1.msra.mxu0 0.0
    %3890 = vmatprep.mubr.f32.mxu0 0.0
    %3891 = vmatmul.mubr.f32.gmra.mrb[0].mxu0 %v148
    %v3892 = vpop.f32.mrb[0].mxu0
    %v3893 = vadd.f32 0.0, %v3892
    %v3894 = vpop.f32.mrb[0].mxu0
    %3895 = vmatprep.mubr.f32.mxu0 0.0
    %3896 = vmatmul.mubr.f32.gmra.mrb[0].mxu0 %v151
    %v3897 = vpop.f32.mrb[0].mxu0
    %v3898 = vadd.f32 0.0, %v3897
    %v3899 = vpop.f32.mrb[0].mxu0
    %3900 = vmatprep.mubr.f32.mxu0 0.0
    %3901 = vmatmul.mubr.f32.gmra.mrb[0].mxu0 %v154
    %v3902 = vpop.f32.mrb[0].mxu0
    %v3903 = vadd.f32 0.0, %v3902
    %v3904 = vpop.f32.mrb[0].mxu0
    %3905 = vmatprep.mubr.f32.mxu0 0.0
    %3906 = vmatmul.mubr.f32.gmra.mrb[0].mxu0 %v157
    %v3907 = vpop.f32.mrb[0].mxu0
    %v3908 = vadd.f32 0.0, %v3907
    %v3909 = vpop.f32.mrb[0].mxu0
    %3910 = vmatprep.mubr.f32.mxu0 0.0
    %3911 = vmatmul.mubr.f32.gmra.mrb[0].mxu0 %v160
    %v3912 = vpop.f32.mrb[0].mxu0
    %v3913 = vadd.f32 0.0, %v3912
    %v3914 = vpop.f32.mrb[0].mxu0
    %3915 = vmatprep.mubr.f32.mxu0 0.0
    %3916 = vmatmul.mubr.f32.gmra.mrb[0].mxu0 %v163
    %v3917 = vpop.f32.mrb[0].mxu0
    %v3918 = vadd.f32 0.0, %v3917
    %v3919 = vpop.f32.mrb[0].mxu0
    %3920 = vmatprep.mubr.f32.mxu0 0.0
    %3921 = vmatmul.mubr.f32.gmra.mrb[0].mxu0 %v166
    %v3922 = vpop.f32.mrb[0].mxu0
    %v3923 = vadd.f32 0.0, %v3922
    %v3924 = vpop.f32.mrb[0].mxu0
    %3925 = vmatprep.mubr.f32.mxu0 0.0
    %3926 = vmatmul.mubr.f32.gmra.mrb[0].mxu0 %v169
    %v3927 = vpop.f32.mrb[0].mxu0
    %v3928 = vadd.f32 0.0, %v3927
    %v3929 = vpop.f32.mrb[0].mxu0
    %3930 = vdwg.mxu0
    %3931 = vmatprep.subr.mxu0 0.0
    %3932 = vmatpush1.msra.mxu0 %v3824
    %3933 = vmatprep.subr.mxu0 0.0
    %3934 = vmatpush1.msra.mxu0 %v3825
    %3935 = vmatprep.subr.mxu0 0.0
    %3936 = vmatpush1.msra.mxu0 0.0
    %3937 = vmatprep.subr.mxu0 0.0
    %3938 = vmatpush1.msra.mxu0 0.0
    %3939 = vmatprep.subr.mxu0 0.0
    %3940 = vmatpush1.msra.mxu0 0.0
    %3941 = vmatprep.subr.mxu0 0.0
    %3942 = vmatpush1.msra.mxu0 0.0
    %3943 = vmatprep.subr.mxu0 0.0
    %3944 = vmatpush1.msra.mxu0 0.0
    %3945 = vmatprep.subr.mxu0 0.0
    %3946 = vmatpush1.msra.mxu0 0.0
    %3947 = vmatprep.subr.mxu0 0.0
    %3948 = vmatpush1.msra.mxu0 0.0
    %3949 = vmatprep.subr.mxu0 0.0
    %3950 = vmatpush1.msra.mxu0 0.0
    %3951 = vmatprep.subr.mxu0 0.0
    %3952 = vmatpush1.msra.mxu0 0.0
    %3953 = vmatprep.subr.mxu0 0.0
    %3954 = vmatpush1.msra.mxu0 0.0
    %3955 = vmatprep.subr.mxu0 0.0
    %3956 = vmatpush1.msra.mxu0 0.0
    %3957 = vmatprep.subr.mxu0 0.0
    %3958 = vmatpush1.msra.mxu0 0.0
    %3959 = vmatprep.subr.mxu0 0.0
    %3960 = vmatpush1.msra.mxu0 0.0
    %3961 = vmatprep.subr.mxu0 0.0
    %3962 = vmatpush1.msra.mxu0 0.0
    %3963 = vmatprep.subr.mxu0 0.0
    %3964 = vmatpush1.msra.mxu0 0.0
    %3965 = vmatprep.subr.mxu0 0.0
    %3966 = vmatpush1.msra.mxu0 0.0
    %3967 = vmatprep.subr.mxu0 0.0
    %3968 = vmatpush1.msra.mxu0 0.0
    %3969 = vmatprep.subr.mxu0 0.0
    %3970 = vmatpush1.msra.mxu0 0.0
    %3971 = vmatprep.subr.mxu0 0.0
    %3972 = vmatpush1.msra.mxu0 0.0
    %3973 = vmatprep.subr.mxu0 0.0
    %3974 = vmatpush1.msra.mxu0 0.0
    %3975 = vmatprep.subr.mxu0 0.0
    %3976 = vmatpush1.msra.mxu0 0.0
    %3977 = vmatprep.subr.mxu0 0.0
    %3978 = vmatpush1.msra.mxu0 0.0
    %3979 = vmatprep.subr.mxu0 0.0
    %3980 = vmatpush1.msra.mxu0 0.0
    %3981 = vmatprep.subr.mxu0 0.0
    %3982 = vmatpush1.msra.mxu0 0.0
    %3983 = vmatprep.subr.mxu0 0.0
    %3984 = vmatpush1.msra.mxu0 0.0
    %3985 = vmatprep.subr.mxu0 0.0
    %3986 = vmatpush1.msra.mxu0 0.0
    %3987 = vmatprep.subr.mxu0 0.0
    %3988 = vmatpush1.msra.mxu0 0.0
    %3989 = vmatprep.subr.mxu0 0.0
    %3990 = vmatpush1.msra.mxu0 0.0
    %3991 = vmatprep.subr.mxu0 0.0
    %3992 = vmatpush1.msra.mxu0 0.0
    %3993 = vmatprep.subr.mxu0 0.0
    %3994 = vmatpush1.msra.mxu0 0.0
    %3995 = vmatprep.mubr.f32.mxu0 0.0
    %3996 = vmatmul.mubr.f32.gmra.mrb[0].mxu0 %v148
    %v3997 = vpop.f32.mrb[0].mxu0
    %v3998 = vadd.f32 0.0, %v3997
    %v3999 = vpop.f32.mrb[0].mxu0
    %4000 = vmatprep.mubr.f32.mxu0 0.0
    %4001 = vmatmul.mubr.f32.gmra.mrb[0].mxu0 %v151
    %v4002 = vpop.f32.mrb[0].mxu0
    %v4003 = vadd.f32 0.0, %v4002
    %v4004 = vpop.f32.mrb[0].mxu0
    %4005 = vmatprep.mubr.f32.mxu0 0.0
    %4006 = vmatmul.mubr.f32.gmra.mrb[0].mxu0 %v154
    %v4007 = vpop.f32.mrb[0].mxu0
    %v4008 = vadd.f32 0.0, %v4007
    %v4009 = vpop.f32.mrb[0].mxu0
    %4010 = vmatprep.mubr.f32.mxu0 0.0
    %4011 = vmatmul.mubr.f32.gmra.mrb[0].mxu0 %v157
    %v4012 = vpop.f32.mrb[0].mxu0
    %v4013 = vadd.f32 0.0, %v4012
    %v4014 = vpop.f32.mrb[0].mxu0
    %4015 = vmatprep.mubr.f32.mxu0 0.0
    %4016 = vmatmul.mubr.f32.gmra.mrb[0].mxu0 %v160
    %v4017 = vpop.f32.mrb[0].mxu0
    %v4018 = vadd.f32 0.0, %v4017
    %v4019 = vpop.f32.mrb[0].mxu0
    %4020 = vmatprep.mubr.f32.mxu0 0.0
    %4021 = vmatmul.mubr.f32.gmra.mrb[0].mxu0 %v163
    %v4022 = vpop.f32.mrb[0].mxu0
    %v4023 = vadd.f32 0.0, %v4022
    %v4024 = vpop.f32.mrb[0].mxu0
    %4025 = vmatprep.mubr.f32.mxu0 0.0
    %4026 = vmatmul.mubr.f32.gmra.mrb[0].mxu0 %v166
    %v4027 = vpop.f32.mrb[0].mxu0
    %v4028 = vadd.f32 0.0, %v4027
    %v4029 = vpop.f32.mrb[0].mxu0
    %4030 = vmatprep.mubr.f32.mxu0 0.0
    %4031 = vmatmul.mubr.f32.gmra.mrb[0].mxu0 %v169
    %v4032 = vpop.f32.mrb[0].mxu0
    %v4033 = vadd.f32 0.0, %v4032
    %v4034 = vpop.f32.mrb[0].mxu0
    %4035 = vdwg.mxu0
    %v4036 = vsel %vm381, %v3818, 0.0
    %4037 = vadd.xlane.f32.xlu0 %v4036
    %v4038 = vpop.xlane.xlu0 %4037
    %v4039 = vmul.f32 %v4038, %v385
    %v4040 = vsub.f32 %v3818, %v4039
    %v4041 = vmul.f32 %v4040, %v4040
    %v4042 = vsel %vm381, %v4041, 0.0
    %4043 = vadd.xlane.f32.xlu0 %v4042
    %v4044 = vpop.xlane.xlu0 %4043
    %v4045 = vmul.f32 %v4044, %v385
    %v4046 = vlaneseq
    %v4047 = vshrl.u32 %v4046, 7
    %v4048 = vsub.s32 0, %v4047
    %v4049 = vrot.slane %v3820, %v4048
    %v4050 = vmul.f32 %v4049, %v4040
    %v4051 = vadd.f32 %v4045, 1e-05
    %v4052 = vrsqrt.pop %v4051
    %v4053 = vmul.f32 %v4050, %v4052
    %v4054 = vlaneseq
    %v4055 = vshrl.u32 %v4054, 7
    %v4056 = vsub.s32 1, %v4055
    %v4057 = vrot.slane %v3820, %v4056
    %v4058 = vadd.f32 %v4053, %v4057
    %s4059 = scalar_lea.vmem [#allocation2], 512
    %v4060 = vld [vmem:[%s4059] sm:$0xff]
    %v4061 = vld [vmem:[%s4059 + $0x8] sm:$0xff]
    %v4062 = vld [vmem:[%s4059 + $0x10] sm:$0xff]
    %v4063 = vld [vmem:[%s4059 + $0x18] sm:$0xff]
    %v4064 = vld [vmem:[%s4059 + $0x20] sm:$0xff]
    %v4065 = vld [vmem:[%s4059 + $0x28] sm:$0xff]
    %v4066 = vld [vmem:[%s4059 + $0x30] sm:$0xff]
    %v4067 = vld [vmem:[%s4059 + $0x38] sm:$0xff]
    %v4068 = vld [vmem:[%s4059 + $0x40] sm:$0xff]
    %v4069 = vld [vmem:[%s4059 + $0x48] sm:$0xff]
    %v4070 = vld [vmem:[%s4059 + $0x50] sm:$0xff]
    %v4071 = vld [vmem:[%s4059 + $0x58] sm:$0xff]
    %v4072 = vld [vmem:[%s4059 + $0x60] sm:$0xff]
    %v4073 = vld [vmem:[%s4059 + $0x68] sm:$0xff]
    %v4074 = vld [vmem:[%s4059 + $0x70] sm:$0xff]
    %v4075 = vld [vmem:[%s4059 + $0x78] sm:$0xff]
    %v4076 = vld [vmem:[%s4059 + $0x80] sm:$0xff]
    %v4077 = vld [vmem:[%s4059 + $0x88] sm:$0xff]
    %v4078 = vld [vmem:[%s4059 + $0x90] sm:$0xff]
    %v4079 = vld [vmem:[%s4059 + $0x98] sm:$0xff]
    %v4080 = vld [vmem:[%s4059 + $0xa0] sm:$0xff]
    %v4081 = vld [vmem:[%s4059 + $0xa8] sm:$0xff]
    %v4082 = vld [vmem:[%s4059 + $0xb0] sm:$0xff]
    %v4083 = vld [vmem:[%s4059 + $0xb8] sm:$0xff]
    %v4084 = vld [vmem:[%s4059 + $0xc0] sm:$0xff]
    %v4085 = vld [vmem:[%s4059 + $0xc8] sm:$0xff]
    %v4086 = vld [vmem:[%s4059 + $0xd0] sm:$0xff]
    %v4087 = vld [vmem:[%s4059 + $0xd8] sm:$0xff]
    %v4088 = vld [vmem:[%s4059 + $0xe0] sm:$0xff]
    %v4089 = vld [vmem:[%s4059 + $0xe8] sm:$0xff]
    %v4090 = vld [vmem:[%s4059 + $0xf0] sm:$0xff]
    %v4091 = vld [vmem:[%s4059 + $0xf8] sm:$0xff]
    %v4092 = vld [vmem:[%s4059 + $0x100] sm:$0xff]
    %v4093 = vld [vmem:[%s4059 + $0x108] sm:$0xff]
    %v4094 = vld [vmem:[%s4059 + $0x110] sm:$0xff]
    %v4095 = vld [vmem:[%s4059 + $0x118] sm:$0xff]
    %v4096 = vld [vmem:[%s4059 + $0x120] sm:$0xff]
    %v4097 = vld [vmem:[%s4059 + $0x128] sm:$0xff]
    %v4098 = vld [vmem:[%s4059 + $0x130] sm:$0xff]
    %v4099 = vld [vmem:[%s4059 + $0x138] sm:$0xff]
    %v4100 = vld [vmem:[%s4059 + $0x140] sm:$0xff]
    %v4101 = vld [vmem:[%s4059 + $0x148] sm:$0xff]
    %v4102 = vld [vmem:[%s4059 + $0x150] sm:$0xff]
    %v4103 = vld [vmem:[%s4059 + $0x158] sm:$0xff]
    %v4104 = vld [vmem:[%s4059 + $0x160] sm:$0xff]
    %v4105 = vld [vmem:[%s4059 + $0x168] sm:$0xff]
    %v4106 = vld [vmem:[%s4059 + $0x170] sm:$0xff]
    %v4107 = vld [vmem:[%s4059 + $0x178] sm:$0xff]
    %v4108 = vld [vmem:[%s4059 + $0x180] sm:$0xff]
    %v4109 = vld [vmem:[%s4059 + $0x188] sm:$0xff]
    %v4110 = vld [vmem:[%s4059 + $0x190] sm:$0xff]
    %v4111 = vld [vmem:[%s4059 + $0x198] sm:$0xff]
    %v4112 = vld [vmem:[%s4059 + $0x1a0] sm:$0xff]
    %v4113 = vld [vmem:[%s4059 + $0x1a8] sm:$0xff]
    %v4114 = vld [vmem:[%s4059 + $0x1b0] sm:$0xff]
    %v4115 = vld [vmem:[%s4059 + $0x1b8] sm:$0xff]
    %v4116 = vld [vmem:[%s4059 + $0x1c0] sm:$0xff]
    %v4117 = vld [vmem:[%s4059 + $0x1c8] sm:$0xff]
    %v4118 = vld [vmem:[%s4059 + $0x1d0] sm:$0xff]
    %v4119 = vld [vmem:[%s4059 + $0x1d8] sm:$0xff]
    %v4120 = vld [vmem:[%s4059 + $0x1e0] sm:$0xff]
    %v4121 = vld [vmem:[%s4059 + $0x1e8] sm:$0xff]
    %v4122 = vld [vmem:[%s4059 + $0x1f0] sm:$0xff]
    %v4123 = vld [vmem:[%s4059 + $0x1f8] sm:$0xff]
    %s4124 = scalar_lea.vmem %s4, 12
    %v4125 = vld [vmem:[%s4124] sm:$0x1]
    %v4126 = vld [vmem:[%s4124 + $0x1] sm:$0x1]
    %v4127 = vld [vmem:[%s4124 + $0x2] sm:$0x1]
    %v4128 = vld [vmem:[%s4124 + $0x3] sm:$0x1]
    %v4129 = vld [vmem:[%s4124 + $0x4] sm:$0x1]
    %v4130 = vld [vmem:[%s4124 + $0x5] sm:$0x1]
    %v4131 = vld [vmem:[%s4124 + $0x6] sm:$0x1]
    %v4132 = vld [vmem:[%s4124 + $0x7] sm:$0x1]
    %v4133 = vld [vmem:[%s4124 + $0x8] sm:$0x1]
    %v4134 = vld [vmem:[%s4124 + $0x9] sm:$0x1]
    %v4135 = vld [vmem:[%s4124 + $0xa] sm:$0x1]
    %v4136 = vld [vmem:[%s4124 + $0xb] sm:$0x1]
    %v4149 = vlaneseq
    %v4150 = vshrl.u32 %v4149, 7
    %v4151 = vsub.s32 0, %v4150
    %v4152 = vrot.slane %v4125, %v4151
    %v4153 = vlaneseq
    %v4154 = vshrl.u32 %v4153, 7
    %v4155 = vsub.s32 0, %v4154
    %v4156 = vrot.slane %v4126, %v4155
    %v4157 = vlaneseq
    %v4158 = vshrl.u32 %v4157, 7
    %v4159 = vsub.s32 0, %v4158
    %v4160 = vrot.slane %v4127, %v4159
    %v4161 = vlaneseq
    %v4162 = vshrl.u32 %v4161, 7
    %v4163 = vsub.s32 0, %v4162
    %v4164 = vrot.slane %v4128, %v4163
    %v4165 = vlaneseq
    %v4166 = vshrl.u32 %v4165, 7
    %v4167 = vsub.s32 0, %v4166
    %v4168 = vrot.slane %v4129, %v4167
    %v4169 = vlaneseq
    %v4170 = vshrl.u32 %v4169, 7
    %v4171 = vsub.s32 0, %v4170
    %v4172 = vrot.slane %v4130, %v4171
    %v4173 = vlaneseq
    %v4174 = vshrl.u32 %v4173, 7
    %v4175 = vsub.s32 0, %v4174
    %v4176 = vrot.slane %v4131, %v4175
    %v4177 = vlaneseq
    %v4178 = vshrl.u32 %v4177, 7
    %v4179 = vsub.s32 0, %v4178
    %v4180 = vrot.slane %v4132, %v4179
    %v4181 = vlaneseq
    %v4182 = vshrl.u32 %v4181, 7
    %v4183 = vsub.s32 0, %v4182
    %v4184 = vrot.slane %v4133, %v4183
    %v4185 = vlaneseq
    %v4186 = vshrl.u32 %v4185, 7
    %v4187 = vsub.s32 0, %v4186
    %v4188 = vrot.slane %v4134, %v4187
    %v4189 = vlaneseq
    %v4190 = vshrl.u32 %v4189, 7
    %v4191 = vsub.s32 0, %v4190
    %v4192 = vrot.slane %v4135, %v4191
    %v4193 = vlaneseq
    %v4194 = vshrl.u32 %v4193, 7
    %v4195 = vsub.s32 0, %v4194
    %v4196 = vrot.slane %v4136, %v4195
    %v4210 = vsel %vm381, %v4058, 0
    %4212 = vmatprep.subr.mxu0 0.0
    %4213 = vmatpush1.msra.mxu0 %v4060
    %4214 = vmatprep.subr.mxu0 0.0
    %4215 = vmatpush1.msra.mxu0 %v4061
    %4216 = vmatprep.subr.mxu0 0.0
    %4217 = vmatpush1.msra.mxu0 %v4062
    %4218 = vmatprep.subr.mxu0 0.0
    %4219 = vmatpush1.msra.mxu0 %v4063
    %4220 = vmatprep.subr.mxu0 0.0
    %4221 = vmatpush1.msra.mxu0 0.0
    %4222 = vmatprep.subr.mxu0 0.0
    %4223 = vmatpush1.msra.mxu0 0.0
    %4224 = vmatprep.subr.mxu0 0.0
    %4225 = vmatpush1.msra.mxu0 0.0
    %4226 = vmatprep.subr.mxu0 0.0
    %4227 = vmatpush1.msra.mxu0 0.0
    %4228 = vmatprep.subr.mxu0 0.0
    %4229 = vmatpush1.msra.mxu0 0.0
    %4230 = vmatprep.subr.mxu0 0.0
    %4231 = vmatpush1.msra.mxu0 0.0
    %4232 = vmatprep.subr.mxu0 0.0
    %4233 = vmatpush1.msra.mxu0 0.0
    %4234 = vmatprep.subr.mxu0 0.0
    %4235 = vmatpush1.msra.mxu0 0.0
    %4236 = vmatprep.subr.mxu0 0.0
    %4237 = vmatpush1.msra.mxu0 0.0
    %4238 = vmatprep.subr.mxu0 0.0
    %4239 = vmatpush1.msra.mxu0 0.0
    %4240 = vmatprep.subr.mxu0 0.0
    %4241 = vmatpush1.msra.mxu0 0.0
    %4242 = vmatprep.subr.mxu0 0.0
    %4243 = vmatpush1.msra.mxu0 0.0
    %4244 = vmatprep.subr.mxu0 0.0
    %4245 = vmatpush1.msra.mxu0 0.0
    %4246 = vmatprep.subr.mxu0 0.0
    %4247 = vmatpush1.msra.mxu0 0.0
    %4248 = vmatprep.subr.mxu0 0.0
    %4249 = vmatpush1.msra.mxu0 0.0
    %4250 = vmatprep.subr.mxu0 0.0
    %4251 = vmatpush1.msra.mxu0 0.0
    %4252 = vmatprep.subr.mxu0 0.0
    %4253 = vmatpush1.msra.mxu0 0.0
    %4254 = vmatprep.subr.mxu0 0.0
    %4255 = vmatpush1.msra.mxu0 0.0
    %4256 = vmatprep.subr.mxu0 0.0
    %4257 = vmatpush1.msra.mxu0 0.0
    %4258 = vmatprep.subr.mxu0 0.0
    %4259 = vmatpush1.msra.mxu0 0.0
    %4260 = vmatprep.subr.mxu0 0.0
    %4261 = vmatpush1.msra.mxu0 0.0
    %4262 = vmatprep.subr.mxu0 0.0
    %4263 = vmatpush1.msra.mxu0 0.0
    %4264 = vmatprep.subr.mxu0 0.0
    %4265 = vmatpush1.msra.mxu0 0.0
    %4266 = vmatprep.subr.mxu0 0.0
    %4267 = vmatpush1.msra.mxu0 0.0
    %4268 = vmatprep.subr.mxu0 0.0
    %4269 = vmatpush1.msra.mxu0 0.0
    %4270 = vmatprep.subr.mxu0 0.0
    %4271 = vmatpush1.msra.mxu0 0.0
    %4272 = vmatprep.subr.mxu0 0.0
    %4273 = vmatpush1.msra.mxu0 0.0
    %4274 = vmatprep.subr.mxu0 0.0
    %4275 = vmatpush1.msra.mxu0 0.0
    %4276 = vmatprep.mubr.f32.mxu0 0.0
    %4277 = vmatmul.mubr.f32.gmra.mrb[0].mxu0 %v4210
    %v4278 = vpop.f32.mrb[0].mxu0
    %v4279 = vadd.f32 %v4152, %v4278
    %v4280 = vpop.f32.mrb[0].mxu0
    %4281 = vdwg.mxu0
    %4282 = vmatprep.subr.mxu0 0.0
    %4283 = vmatpush1.msra.mxu0 %v4064
    %4284 = vmatprep.subr.mxu0 0.0
    %4285 = vmatpush1.msra.mxu0 %v4065
    %4286 = vmatprep.subr.mxu0 0.0
    %4287 = vmatpush1.msra.mxu0 %v4066
    %4288 = vmatprep.subr.mxu0 0.0
    %4289 = vmatpush1.msra.mxu0 %v4067
    %4290 = vmatprep.subr.mxu0 0.0
    %4291 = vmatpush1.msra.mxu0 0.0
    %4292 = vmatprep.subr.mxu0 0.0
    %4293 = vmatpush1.msra.mxu0 0.0
    %4294 = vmatprep.subr.mxu0 0.0
    %4295 = vmatpush1.msra.mxu0 0.0
    %4296 = vmatprep.subr.mxu0 0.0
    %4297 = vmatpush1.msra.mxu0 0.0
    %4298 = vmatprep.subr.mxu0 0.0
    %4299 = vmatpush1.msra.mxu0 0.0
    %4300 = vmatprep.subr.mxu0 0.0
    %4301 = vmatpush1.msra.mxu0 0.0
    %4302 = vmatprep.subr.mxu0 0.0
    %4303 = vmatpush1.msra.mxu0 0.0
    %4304 = vmatprep.subr.mxu0 0.0
    %4305 = vmatpush1.msra.mxu0 0.0
    %4306 = vmatprep.subr.mxu0 0.0
    %4307 = vmatpush1.msra.mxu0 0.0
    %4308 = vmatprep.subr.mxu0 0.0
    %4309 = vmatpush1.msra.mxu0 0.0
    %4310 = vmatprep.subr.mxu0 0.0
    %4311 = vmatpush1.msra.mxu0 0.0
    %4312 = vmatprep.subr.mxu0 0.0
    %4313 = vmatpush1.msra.mxu0 0.0
    %4314 = vmatprep.subr.mxu0 0.0
    %4315 = vmatpush1.msra.mxu0 0.0
    %4316 = vmatprep.subr.mxu0 0.0
    %4317 = vmatpush1.msra.mxu0 0.0
    %4318 = vmatprep.subr.mxu0 0.0
    %4319 = vmatpush1.msra.mxu0 0.0
    %4320 = vmatprep.subr.mxu0 0.0
    %4321 = vmatpush1.msra.mxu0 0.0
    %4322 = vmatprep.subr.mxu0 0.0
    %4323 = vmatpush1.msra.mxu0 0.0
    %4324 = vmatprep.subr.mxu0 0.0
    %4325 = vmatpush1.msra.mxu0 0.0
    %4326 = vmatprep.subr.mxu0 0.0
    %4327 = vmatpush1.msra.mxu0 0.0
    %4328 = vmatprep.subr.mxu0 0.0
    %4329 = vmatpush1.msra.mxu0 0.0
    %4330 = vmatprep.subr.mxu0 0.0
    %4331 = vmatpush1.msra.mxu0 0.0
    %4332 = vmatprep.subr.mxu0 0.0
    %4333 = vmatpush1.msra.mxu0 0.0
    %4334 = vmatprep.subr.mxu0 0.0
    %4335 = vmatpush1.msra.mxu0 0.0
    %4336 = vmatprep.subr.mxu0 0.0
    %4337 = vmatpush1.msra.mxu0 0.0
    %4338 = vmatprep.subr.mxu0 0.0
    %4339 = vmatpush1.msra.mxu0 0.0
    %4340 = vmatprep.subr.mxu0 0.0
    %4341 = vmatpush1.msra.mxu0 0.0
    %4342 = vmatprep.subr.mxu0 0.0
    %4343 = vmatpush1.msra.mxu0 0.0
    %4344 = vmatprep.subr.mxu0 0.0
    %4345 = vmatpush1.msra.mxu0 0.0
    %4346 = vmatprep.mubr.f32.mxu0 0.0
    %4347 = vmatmul.mubr.f32.gmra.mrb[0].mxu0 %v4210
    %v4348 = vpop.f32.mrb[0].mxu0
    %v4349 = vadd.f32 %v4156, %v4348
    %v4350 = vpop.f32.mrb[0].mxu0
    %4351 = vdwg.mxu0
    %4352 = vmatprep.subr.mxu0 0.0
    %4353 = vmatpush1.msra.mxu0 %v4068
    %4354 = vmatprep.subr.mxu0 0.0
    %4355 = vmatpush1.msra.mxu0 %v4069
    %4356 = vmatprep.subr.mxu0 0.0
    %4357 = vmatpush1.msra.mxu0 %v4070
    %4358 = vmatprep.subr.mxu0 0.0
    %4359 = vmatpush1.msra.mxu0 %v4071
    %4360 = vmatprep.subr.mxu0 0.0
    %4361 = vmatpush1.msra.mxu0 0.0
    %4362 = vmatprep.subr.mxu0 0.0
    %4363 = vmatpush1.msra.mxu0 0.0
    %4364 = vmatprep.subr.mxu0 0.0
    %4365 = vmatpush1.msra.mxu0 0.0
    %4366 = vmatprep.subr.mxu0 0.0
    %4367 = vmatpush1.msra.mxu0 0.0
    %4368 = vmatprep.subr.mxu0 0.0
    %4369 = vmatpush1.msra.mxu0 0.0
    %4370 = vmatprep.subr.mxu0 0.0
    %4371 = vmatpush1.msra.mxu0 0.0
    %4372 = vmatprep.subr.mxu0 0.0
    %4373 = vmatpush1.msra.mxu0 0.0
    %4374 = vmatprep.subr.mxu0 0.0
    %4375 = vmatpush1.msra.mxu0 0.0
    %4376 = vmatprep.subr.mxu0 0.0
    %4377 = vmatpush1.msra.mxu0 0.0
    %4378 = vmatprep.subr.mxu0 0.0
    %4379 = vmatpush1.msra.mxu0 0.0
    %4380 = vmatprep.subr.mxu0 0.0
    %4381 = vmatpush1.msra.mxu0 0.0
    %4382 = vmatprep.subr.mxu0 0.0
    %4383 = vmatpush1.msra.mxu0 0.0
    %4384 = vmatprep.subr.mxu0 0.0
    %4385 = vmatpush1.msra.mxu0 0.0
    %4386 = vmatprep.subr.mxu0 0.0
    %4387 = vmatpush1.msra.mxu0 0.0
    %4388 = vmatprep.subr.mxu0 0.0
    %4389 = vmatpush1.msra.mxu0 0.0
    %4390 = vmatprep.subr.mxu0 0.0
    %4391 = vmatpush1.msra.mxu0 0.0
    %4392 = vmatprep.subr.mxu0 0.0
    %4393 = vmatpush1.msra.mxu0 0.0
    %4394 = vmatprep.subr.mxu0 0.0
    %4395 = vmatpush1.msra.mxu0 0.0
    %4396 = vmatprep.subr.mxu0 0.0
    %4397 = vmatpush1.msra.mxu0 0.0
    %4398 = vmatprep.subr.mxu0 0.0
    %4399 = vmatpush1.msra.mxu0 0.0
    %4400 = vmatprep.subr.mxu0 0.0
    %4401 = vmatpush1.msra.mxu0 0.0
    %4402 = vmatprep.subr.mxu0 0.0
    %4403 = vmatpush1.msra.mxu0 0.0
    %4404 = vmatprep.subr.mxu0 0.0
    %4405 = vmatpush1.msra.mxu0 0.0
    %4406 = vmatprep.subr.mxu0 0.0
    %4407 = vmatpush1.msra.mxu0 0.0
    %4408 = vmatprep.subr.mxu0 0.0
    %4409 = vmatpush1.msra.mxu0 0.0
    %4410 = vmatprep.subr.mxu0 0.0
    %4411 = vmatpush1.msra.mxu0 0.0
    %4412 = vmatprep.subr.mxu0 0.0
    %4413 = vmatpush1.msra.mxu0 0.0
    %4414 = vmatprep.subr.mxu0 0.0
    %4415 = vmatpush1.msra.mxu0 0.0
    %4416 = vmatprep.mubr.f32.mxu0 0.0
    %4417 = vmatmul.mubr.f32.gmra.mrb[0].mxu0 %v4210
    %v4418 = vpop.f32.mrb[0].mxu0
    %v4419 = vadd.f32 %v4160, %v4418
    %v4420 = vpop.f32.mrb[0].mxu0
    %4421 = vdwg.mxu0
    %4422 = vmatprep.subr.mxu0 0.0
    %4423 = vmatpush1.msra.mxu0 %v4072
    %4424 = vmatprep.subr.mxu0 0.0
    %4425 = vmatpush1.msra.mxu0 %v4073
    %4426 = vmatprep.subr.mxu0 0.0
    %4427 = vmatpush1.msra.mxu0 %v4074
    %4428 = vmatprep.subr.mxu0 0.0
    %4429 = vmatpush1.msra.mxu0 %v4075
    %4430 = vmatprep.subr.mxu0 0.0
    %4431 = vmatpush1.msra.mxu0 0.0
    %4432 = vmatprep.subr.mxu0 0.0
    %4433 = vmatpush1.msra.mxu0 0.0
    %4434 = vmatprep.subr.mxu0 0.0
    %4435 = vmatpush1.msra.mxu0 0.0
    %4436 = vmatprep.subr.mxu0 0.0
    %4437 = vmatpush1.msra.mxu0 0.0
    %4438 = vmatprep.subr.mxu0 0.0
    %4439 = vmatpush1.msra.mxu0 0.0
    %4440 = vmatprep.subr.mxu0 0.0
    %4441 = vmatpush1.msra.mxu0 0.0
    %4442 = vmatprep.subr.mxu0 0.0
    %4443 = vmatpush1.msra.mxu0 0.0
    %4444 = vmatprep.subr.mxu0 0.0
    %4445 = vmatpush1.msra.mxu0 0.0
    %4446 = vmatprep.subr.mxu0 0.0
    %4447 = vmatpush1.msra.mxu0 0.0
    %4448 = vmatprep.subr.mxu0 0.0
    %4449 = vmatpush1.msra.mxu0 0.0
    %4450 = vmatprep.subr.mxu0 0.0
    %4451 = vmatpush1.msra.mxu0 0.0
    %4452 = vmatprep.subr.mxu0 0.0
    %4453 = vmatpush1.msra.mxu0 0.0
    %4454 = vmatprep.subr.mxu0 0.0
    %4455 = vmatpush1.msra.mxu0 0.0
    %4456 = vmatprep.subr.mxu0 0.0
    %4457 = vmatpush1.msra.mxu0 0.0
    %4458 = vmatprep.subr.mxu0 0.0
    %4459 = vmatpush1.msra.mxu0 0.0
    %4460 = vmatprep.subr.mxu0 0.0
    %4461 = vmatpush1.msra.mxu0 0.0
    %4462 = vmatprep.subr.mxu0 0.0
    %4463 = vmatpush1.msra.mxu0 0.0
    %4464 = vmatprep.subr.mxu0 0.0
    %4465 = vmatpush1.msra.mxu0 0.0
    %4466 = vmatprep.subr.mxu0 0.0
    %4467 = vmatpush1.msra.mxu0 0.0
    %4468 = vmatprep.subr.mxu0 0.0
    %4469 = vmatpush1.msra.mxu0 0.0
    %4470 = vmatprep.subr.mxu0 0.0
    %4471 = vmatpush1.msra.mxu0 0.0
    %4472 = vmatprep.subr.mxu0 0.0
    %4473 = vmatpush1.msra.mxu0 0.0
    %4474 = vmatprep.subr.mxu0 0.0
    %4475 = vmatpush1.msra.mxu0 0.0
    %4476 = vmatprep.subr.mxu0 0.0
    %4477 = vmatpush1.msra.mxu0 0.0
    %4478 = vmatprep.subr.mxu0 0.0
    %4479 = vmatpush1.msra.mxu0 0.0
    %4480 = vmatprep.subr.mxu0 0.0
    %4481 = vmatpush1.msra.mxu0 0.0
    %4482 = vmatprep.subr.mxu0 0.0
    %4483 = vmatpush1.msra.mxu0 0.0
    %4484 = vmatprep.subr.mxu0 0.0
    %4485 = vmatpush1.msra.mxu0 0.0
    %4486 = vmatprep.mubr.f32.mxu0 0.0
    %4487 = vmatmul.mubr.f32.gmra.mrb[0].mxu0 %v4210
    %v4488 = vpop.f32.mrb[0].mxu0
    %v4489 = vadd.f32 %v4164, %v4488
    %v4490 = vpop.f32.mrb[0].mxu0
    %4491 = vdwg.mxu0
    %4492 = vmatprep.subr.mxu0 0.0
    %4493 = vmatpush1.msra.mxu0 %v4076
    %4494 = vmatprep.subr.mxu0 0.0
    %4495 = vmatpush1.msra.mxu0 %v4077
    %4496 = vmatprep.subr.mxu0 0.0
    %4497 = vmatpush1.msra.mxu0 %v4078
    %4498 = vmatprep.subr.mxu0 0.0
    %4499 = vmatpush1.msra.mxu0 %v4079
    %4500 = vmatprep.subr.mxu0 0.0
    %4501 = vmatpush1.msra.mxu0 0.0
    %4502 = vmatprep.subr.mxu0 0.0
    %4503 = vmatpush1.msra.mxu0 0.0
    %4504 = vmatprep.subr.mxu0 0.0
    %4505 = vmatpush1.msra.mxu0 0.0
    %4506 = vmatprep.subr.mxu0 0.0
    %4507 = vmatpush1.msra.mxu0 0.0
    %4508 = vmatprep.subr.mxu0 0.0
    %4509 = vmatpush1.msra.mxu0 0.0
    %4510 = vmatprep.subr.mxu0 0.0
    %4511 = vmatpush1.msra.mxu0 0.0
    %4512 = vmatprep.subr.mxu0 0.0
    %4513 = vmatpush1.msra.mxu0 0.0
    %4514 = vmatprep.subr.mxu0 0.0
    %4515 = vmatpush1.msra.mxu0 0.0
    %4516 = vmatprep.subr.mxu0 0.0
    %4517 = vmatpush1.msra.mxu0 0.0
    %4518 = vmatprep.subr.mxu0 0.0
    %4519 = vmatpush1.msra.mxu0 0.0
    %4520 = vmatprep.subr.mxu0 0.0
    %4521 = vmatpush1.msra.mxu0 0.0
    %4522 = vmatprep.subr.mxu0 0.0
    %4523 = vmatpush1.msra.mxu0 0.0
    %4524 = vmatprep.subr.mxu0 0.0
    %4525 = vmatpush1.msra.mxu0 0.0
    %4526 = vmatprep.subr.mxu0 0.0
    %4527 = vmatpush1.msra.mxu0 0.0
    %4528 = vmatprep.subr.mxu0 0.0
    %4529 = vmatpush1.msra.mxu0 0.0
    %4530 = vmatprep.subr.mxu0 0.0
    %4531 = vmatpush1.msra.mxu0 0.0
    %4532 = vmatprep.subr.mxu0 0.0
    %4533 = vmatpush1.msra.mxu0 0.0
    %4534 = vmatprep.subr.mxu0 0.0
    %4535 = vmatpush1.msra.mxu0 0.0
    %4536 = vmatprep.subr.mxu0 0.0
    %4537 = vmatpush1.msra.mxu0 0.0
    %4538 = vmatprep.subr.mxu0 0.0
    %4539 = vmatpush1.msra.mxu0 0.0
    %4540 = vmatprep.subr.mxu0 0.0
    %4541 = vmatpush1.msra.mxu0 0.0
    %4542 = vmatprep.subr.mxu0 0.0
    %4543 = vmatpush1.msra.mxu0 0.0
    %4544 = vmatprep.subr.mxu0 0.0
    %4545 = vmatpush1.msra.mxu0 0.0
    %4546 = vmatprep.subr.mxu0 0.0
    %4547 = vmatpush1.msra.mxu0 0.0
    %4548 = vmatprep.subr.mxu0 0.0
    %4549 = vmatpush1.msra.mxu0 0.0
    %4550 = vmatprep.subr.mxu0 0.0
    %4551 = vmatpush1.msra.mxu0 0.0
    %4552 = vmatprep.subr.mxu0 0.0
    %4553 = vmatpush1.msra.mxu0 0.0
    %4554 = vmatprep.subr.mxu0 0.0
    %4555 = vmatpush1.msra.mxu0 0.0
    %4556 = vmatprep.mubr.f32.mxu0 0.0
    %4557 = vmatmul.mubr.f32.gmra.mrb[0].mxu0 %v4210
    %v4558 = vpop.f32.mrb[0].mxu0
    %v4559 = vadd.f32 %v4168, %v4558
    %v4560 = vpop.f32.mrb[0].mxu0
    %4561 = vdwg.mxu0
    %4562 = vmatprep.subr.mxu0 0.0
    %4563 = vmatpush1.msra.mxu0 %v4080
    %4564 = vmatprep.subr.mxu0 0.0
    %4565 = vmatpush1.msra.mxu0 %v4081
    %4566 = vmatprep.subr.mxu0 0.0
    %4567 = vmatpush1.msra.mxu0 %v4082
    %4568 = vmatprep.subr.mxu0 0.0
    %4569 = vmatpush1.msra.mxu0 %v4083
    %4570 = vmatprep.subr.mxu0 0.0
    %4571 = vmatpush1.msra.mxu0 0.0
    %4572 = vmatprep.subr.mxu0 0.0
    %4573 = vmatpush1.msra.mxu0 0.0
    %4574 = vmatprep.subr.mxu0 0.0
    %4575 = vmatpush1.msra.mxu0 0.0
    %4576 = vmatprep.subr.mxu0 0.0
    %4577 = vmatpush1.msra.mxu0 0.0
    %4578 = vmatprep.subr.mxu0 0.0
    %4579 = vmatpush1.msra.mxu0 0.0
    %4580 = vmatprep.subr.mxu0 0.0
    %4581 = vmatpush1.msra.mxu0 0.0
    %4582 = vmatprep.subr.mxu0 0.0
    %4583 = vmatpush1.msra.mxu0 0.0
    %4584 = vmatprep.subr.mxu0 0.0
    %4585 = vmatpush1.msra.mxu0 0.0
    %4586 = vmatprep.subr.mxu0 0.0
    %4587 = vmatpush1.msra.mxu0 0.0
    %4588 = vmatprep.subr.mxu0 0.0
    %4589 = vmatpush1.msra.mxu0 0.0
    %4590 = vmatprep.subr.mxu0 0.0
    %4591 = vmatpush1.msra.mxu0 0.0
    %4592 = vmatprep.subr.mxu0 0.0
    %4593 = vmatpush1.msra.mxu0 0.0
    %4594 = vmatprep.subr.mxu0 0.0
    %4595 = vmatpush1.msra.mxu0 0.0
    %4596 = vmatprep.subr.mxu0 0.0
    %4597 = vmatpush1.msra.mxu0 0.0
    %4598 = vmatprep.subr.mxu0 0.0
    %4599 = vmatpush1.msra.mxu0 0.0
    %4600 = vmatprep.subr.mxu0 0.0
    %4601 = vmatpush1.msra.mxu0 0.0
    %4602 = vmatprep.subr.mxu0 0.0
    %4603 = vmatpush1.msra.mxu0 0.0
    %4604 = vmatprep.subr.mxu0 0.0
    %4605 = vmatpush1.msra.mxu0 0.0
    %4606 = vmatprep.subr.mxu0 0.0
    %4607 = vmatpush1.msra.mxu0 0.0
    %4608 = vmatprep.subr.mxu0 0.0
    %4609 = vmatpush1.msra.mxu0 0.0
    %4610 = vmatprep.subr.mxu0 0.0
    %4611 = vmatpush1.msra.mxu0 0.0
    %4612 = vmatprep.subr.mxu0 0.0
    %4613 = vmatpush1.msra.mxu0 0.0
    %4614 = vmatprep.subr.mxu0 0.0
    %4615 = vmatpush1.msra.mxu0 0.0
    %4616 = vmatprep.subr.mxu0 0.0
    %4617 = vmatpush1.msra.mxu0 0.0
    %4618 = vmatprep.subr.mxu0 0.0
    %4619 = vmatpush1.msra.mxu0 0.0
    %4620 = vmatprep.subr.mxu0 0.0
    %4621 = vmatpush1.msra.mxu0 0.0
    %4622 = vmatprep.subr.mxu0 0.0
    %4623 = vmatpush1.msra.mxu0 0.0
    %4624 = vmatprep.subr.mxu0 0.0
    %4625 = vmatpush1.msra.mxu0 0.0
    %4626 = vmatprep.mubr.f32.mxu0 0.0
    %4627 = vmatmul.mubr.f32.gmra.mrb[0].mxu0 %v4210
    %v4628 = vpop.f32.mrb[0].mxu0
    %v4629 = vadd.f32 %v4172, %v4628
    %v4630 = vpop.f32.mrb[0].mxu0
    %4631 = vdwg.mxu0
    %4632 = vmatprep.subr.mxu0 0.0
    %4633 = vmatpush1.msra.mxu0 %v4084
    %4634 = vmatprep.subr.mxu0 0.0
    %4635 = vmatpush1.msra.mxu0 %v4085
    %4636 = vmatprep.subr.mxu0 0.0
    %4637 = vmatpush1.msra.mxu0 %v4086
    %4638 = vmatprep.subr.mxu0 0.0
    %4639 = vmatpush1.msra.mxu0 %v4087
    %4640 = vmatprep.subr.mxu0 0.0
    %4641 = vmatpush1.msra.mxu0 0.0
    %4642 = vmatprep.subr.mxu0 0.0
    %4643 = vmatpush1.msra.mxu0 0.0
    %4644 = vmatprep.subr.mxu0 0.0
    %4645 = vmatpush1.msra.mxu0 0.0
    %4646 = vmatprep.subr.mxu0 0.0
    %4647 = vmatpush1.msra.mxu0 0.0
    %4648 = vmatprep.subr.mxu0 0.0
    %4649 = vmatpush1.msra.mxu0 0.0
    %4650 = vmatprep.subr.mxu0 0.0
    %4651 = vmatpush1.msra.mxu0 0.0
    %4652 = vmatprep.subr.mxu0 0.0
    %4653 = vmatpush1.msra.mxu0 0.0
    %4654 = vmatprep.subr.mxu0 0.0
    %4655 = vmatpush1.msra.mxu0 0.0
    %4656 = vmatprep.subr.mxu0 0.0
    %4657 = vmatpush1.msra.mxu0 0.0
    %4658 = vmatprep.subr.mxu0 0.0
    %4659 = vmatpush1.msra.mxu0 0.0
    %4660 = vmatprep.subr.mxu0 0.0
    %4661 = vmatpush1.msra.mxu0 0.0
    %4662 = vmatprep.subr.mxu0 0.0
    %4663 = vmatpush1.msra.mxu0 0.0
    %4664 = vmatprep.subr.mxu0 0.0
    %4665 = vmatpush1.msra.mxu0 0.0
    %4666 = vmatprep.subr.mxu0 0.0
    %4667 = vmatpush1.msra.mxu0 0.0
    %4668 = vmatprep.subr.mxu0 0.0
    %4669 = vmatpush1.msra.mxu0 0.0
    %4670 = vmatprep.subr.mxu0 0.0
    %4671 = vmatpush1.msra.mxu0 0.0
    %4672 = vmatprep.subr.mxu0 0.0
    %4673 = vmatpush1.msra.mxu0 0.0
    %4674 = vmatprep.subr.mxu0 0.0
    %4675 = vmatpush1.msra.mxu0 0.0
    %4676 = vmatprep.subr.mxu0 0.0
    %4677 = vmatpush1.msra.mxu0 0.0
    %4678 = vmatprep.subr.mxu0 0.0
    %4679 = vmatpush1.msra.mxu0 0.0
    %4680 = vmatprep.subr.mxu0 0.0
    %4681 = vmatpush1.msra.mxu0 0.0
    %4682 = vmatprep.subr.mxu0 0.0
    %4683 = vmatpush1.msra.mxu0 0.0
    %4684 = vmatprep.subr.mxu0 0.0
    %4685 = vmatpush1.msra.mxu0 0.0
    %4686 = vmatprep.subr.mxu0 0.0
    %4687 = vmatpush1.msra.mxu0 0.0
    %4688 = vmatprep.subr.mxu0 0.0
    %4689 = vmatpush1.msra.mxu0 0.0
    %4690 = vmatprep.subr.mxu0 0.0
    %4691 = vmatpush1.msra.mxu0 0.0
    %4692 = vmatprep.subr.mxu0 0.0
    %4693 = vmatpush1.msra.mxu0 0.0
    %4694 = vmatprep.subr.mxu0 0.0
    %4695 = vmatpush1.msra.mxu0 0.0
    %4696 = vmatprep.mubr.f32.mxu0 0.0
    %4697 = vmatmul.mubr.f32.gmra.mrb[0].mxu0 %v4210
    %v4698 = vpop.f32.mrb[0].mxu0
    %v4699 = vadd.f32 %v4176, %v4698
    %v4700 = vpop.f32.mrb[0].mxu0
    %4701 = vdwg.mxu0
    %4702 = vmatprep.subr.mxu0 0.0
    %4703 = vmatpush1.msra.mxu0 %v4088
    %4704 = vmatprep.subr.mxu0 0.0
    %4705 = vmatpush1.msra.mxu0 %v4089
    %4706 = vmatprep.subr.mxu0 0.0
    %4707 = vmatpush1.msra.mxu0 %v4090
    %4708 = vmatprep.subr.mxu0 0.0
    %4709 = vmatpush1.msra.mxu0 %v4091
    %4710 = vmatprep.subr.mxu0 0.0
    %4711 = vmatpush1.msra.mxu0 0.0
    %4712 = vmatprep.subr.mxu0 0.0
    %4713 = vmatpush1.msra.mxu0 0.0
    %4714 = vmatprep.subr.mxu0 0.0
    %4715 = vmatpush1.msra.mxu0 0.0
    %4716 = vmatprep.subr.mxu0 0.0
    %4717 = vmatpush1.msra.mxu0 0.0
    %4718 = vmatprep.subr.mxu0 0.0
    %4719 = vmatpush1.msra.mxu0 0.0
    %4720 = vmatprep.subr.mxu0 0.0
    %4721 = vmatpush1.msra.mxu0 0.0
    %4722 = vmatprep.subr.mxu0 0.0
    %4723 = vmatpush1.msra.mxu0 0.0
    %4724 = vmatprep.subr.mxu0 0.0
    %4725 = vmatpush1.msra.mxu0 0.0
    %4726 = vmatprep.subr.mxu0 0.0
    %4727 = vmatpush1.msra.mxu0 0.0
    %4728 = vmatprep.subr.mxu0 0.0
    %4729 = vmatpush1.msra.mxu0 0.0
    %4730 = vmatprep.subr.mxu0 0.0
    %4731 = vmatpush1.msra.mxu0 0.0
    %4732 = vmatprep.subr.mxu0 0.0
    %4733 = vmatpush1.msra.mxu0 0.0
    %4734 = vmatprep.subr.mxu0 0.0
    %4735 = vmatpush1.msra.mxu0 0.0
    %4736 = vmatprep.subr.mxu0 0.0
    %4737 = vmatpush1.msra.mxu0 0.0
    %4738 = vmatprep.subr.mxu0 0.0
    %4739 = vmatpush1.msra.mxu0 0.0
    %4740 = vmatprep.subr.mxu0 0.0
    %4741 = vmatpush1.msra.mxu0 0.0
    %4742 = vmatprep.subr.mxu0 0.0
    %4743 = vmatpush1.msra.mxu0 0.0
    %4744 = vmatprep.subr.mxu0 0.0
    %4745 = vmatpush1.msra.mxu0 0.0
    %4746 = vmatprep.subr.mxu0 0.0
    %4747 = vmatpush1.msra.mxu0 0.0
    %4748 = vmatprep.subr.mxu0 0.0
    %4749 = vmatpush1.msra.mxu0 0.0
    %4750 = vmatprep.subr.mxu0 0.0
    %4751 = vmatpush1.msra.mxu0 0.0
    %4752 = vmatprep.subr.mxu0 0.0
    %4753 = vmatpush1.msra.mxu0 0.0
    %4754 = vmatprep.subr.mxu0 0.0
    %4755 = vmatpush1.msra.mxu0 0.0
    %4756 = vmatprep.subr.mxu0 0.0
    %4757 = vmatpush1.msra.mxu0 0.0
    %4758 = vmatprep.subr.mxu0 0.0
    %4759 = vmatpush1.msra.mxu0 0.0
    %4760 = vmatprep.subr.mxu0 0.0
    %4761 = vmatpush1.msra.mxu0 0.0
    %4762 = vmatprep.subr.mxu0 0.0
    %4763 = vmatpush1.msra.mxu0 0.0
    %4764 = vmatprep.subr.mxu0 0.0
    %4765 = vmatpush1.msra.mxu0 0.0
    %4766 = vmatprep.mubr.f32.mxu0 0.0
    %4767 = vmatmul.mubr.f32.gmra.mrb[0].mxu0 %v4210
    %v4768 = vpop.f32.mrb[0].mxu0
    %v4769 = vadd.f32 %v4180, %v4768
    %v4770 = vpop.f32.mrb[0].mxu0
    %4771 = vdwg.mxu0
    %4772 = vmatprep.subr.mxu0 0.0
    %4773 = vmatpush1.msra.mxu0 %v4092
    %4774 = vmatprep.subr.mxu0 0.0
    %4775 = vmatpush1.msra.mxu0 %v4093
    %4776 = vmatprep.subr.mxu0 0.0
    %4777 = vmatpush1.msra.mxu0 %v4094
    %4778 = vmatprep.subr.mxu0 0.0
    %4779 = vmatpush1.msra.mxu0 %v4095
    %4780 = vmatprep.subr.mxu0 0.0
    %4781 = vmatpush1.msra.mxu0 0.0
    %4782 = vmatprep.subr.mxu0 0.0
    %4783 = vmatpush1.msra.mxu0 0.0
    %4784 = vmatprep.subr.mxu0 0.0
    %4785 = vmatpush1.msra.mxu0 0.0
    %4786 = vmatprep.subr.mxu0 0.0
    %4787 = vmatpush1.msra.mxu0 0.0
    %4788 = vmatprep.subr.mxu0 0.0
    %4789 = vmatpush1.msra.mxu0 0.0
    %4790 = vmatprep.subr.mxu0 0.0
    %4791 = vmatpush1.msra.mxu0 0.0
    %4792 = vmatprep.subr.mxu0 0.0
    %4793 = vmatpush1.msra.mxu0 0.0
    %4794 = vmatprep.subr.mxu0 0.0
    %4795 = vmatpush1.msra.mxu0 0.0
    %4796 = vmatprep.subr.mxu0 0.0
    %4797 = vmatpush1.msra.mxu0 0.0
    %4798 = vmatprep.subr.mxu0 0.0
    %4799 = vmatpush1.msra.mxu0 0.0
    %4800 = vmatprep.subr.mxu0 0.0
    %4801 = vmatpush1.msra.mxu0 0.0
    %4802 = vmatprep.subr.mxu0 0.0
    %4803 = vmatpush1.msra.mxu0 0.0
    %4804 = vmatprep.subr.mxu0 0.0
    %4805 = vmatpush1.msra.mxu0 0.0
    %4806 = vmatprep.subr.mxu0 0.0
    %4807 = vmatpush1.msra.mxu0 0.0
    %4808 = vmatprep.subr.mxu0 0.0
    %4809 = vmatpush1.msra.mxu0 0.0
    %4810 = vmatprep.subr.mxu0 0.0
    %4811 = vmatpush1.msra.mxu0 0.0
    %4812 = vmatprep.subr.mxu0 0.0
    %4813 = vmatpush1.msra.mxu0 0.0
    %4814 = vmatprep.subr.mxu0 0.0
    %4815 = vmatpush1.msra.mxu0 0.0
    %4816 = vmatprep.subr.mxu0 0.0
    %4817 = vmatpush1.msra.mxu0 0.0
    %4818 = vmatprep.subr.mxu0 0.0
    %4819 = vmatpush1.msra.mxu0 0.0
    %4820 = vmatprep.subr.mxu0 0.0
    %4821 = vmatpush1.msra.mxu0 0.0
    %4822 = vmatprep.subr.mxu0 0.0
    %4823 = vmatpush1.msra.mxu0 0.0
    %4824 = vmatprep.subr.mxu0 0.0
    %4825 = vmatpush1.msra.mxu0 0.0
    %4826 = vmatprep.subr.mxu0 0.0
    %4827 = vmatpush1.msra.mxu0 0.0
    %4828 = vmatprep.subr.mxu0 0.0
    %4829 = vmatpush1.msra.mxu0 0.0
    %4830 = vmatprep.subr.mxu0 0.0
    %4831 = vmatpush1.msra.mxu0 0.0
    %4832 = vmatprep.subr.mxu0 0.0
    %4833 = vmatpush1.msra.mxu0 0.0
    %4834 = vmatprep.subr.mxu0 0.0
    %4835 = vmatpush1.msra.mxu0 0.0
    %4836 = vmatprep.mubr.f32.mxu0 0.0
    %4837 = vmatmul.mubr.f32.gmra.mrb[0].mxu0 %v4210
    %v4838 = vpop.f32.mrb[0].mxu0
    %v4839 = vadd.f32 %v4184, %v4838
    %v4840 = vpop.f32.mrb[0].mxu0
    %4841 = vdwg.mxu0
    %4842 = vmatprep.subr.mxu0 0.0
    %4843 = vmatpush1.msra.mxu0 %v4096
    %4844 = vmatprep.subr.mxu0 0.0
    %4845 = vmatpush1.msra.mxu0 %v4097
    %4846 = vmatprep.subr.mxu0 0.0
    %4847 = vmatpush1.msra.mxu0 %v4098
    %4848 = vmatprep.subr.mxu0 0.0
    %4849 = vmatpush1.msra.mxu0 %v4099
    %4850 = vmatprep.subr.mxu0 0.0
    %4851 = vmatpush1.msra.mxu0 0.0
    %4852 = vmatprep.subr.mxu0 0.0
    %4853 = vmatpush1.msra.mxu0 0.0
    %4854 = vmatprep.subr.mxu0 0.0
    %4855 = vmatpush1.msra.mxu0 0.0
    %4856 = vmatprep.subr.mxu0 0.0
    %4857 = vmatpush1.msra.mxu0 0.0
    %4858 = vmatprep.subr.mxu0 0.0
    %4859 = vmatpush1.msra.mxu0 0.0
    %4860 = vmatprep.subr.mxu0 0.0
    %4861 = vmatpush1.msra.mxu0 0.0
    %4862 = vmatprep.subr.mxu0 0.0
    %4863 = vmatpush1.msra.mxu0 0.0
    %4864 = vmatprep.subr.mxu0 0.0
    %4865 = vmatpush1.msra.mxu0 0.0
    %4866 = vmatprep.subr.mxu0 0.0
    %4867 = vmatpush1.msra.mxu0 0.0
    %4868 = vmatprep.subr.mxu0 0.0
    %4869 = vmatpush1.msra.mxu0 0.0
    %4870 = vmatprep.subr.mxu0 0.0
    %4871 = vmatpush1.msra.mxu0 0.0
    %4872 = vmatprep.subr.mxu0 0.0
    %4873 = vmatpush1.msra.mxu0 0.0
    %4874 = vmatprep.subr.mxu0 0.0
    %4875 = vmatpush1.msra.mxu0 0.0
    %4876 = vmatprep.subr.mxu0 0.0
    %4877 = vmatpush1.msra.mxu0 0.0
    %4878 = vmatprep.subr.mxu0 0.0
    %4879 = vmatpush1.msra.mxu0 0.0
    %4880 = vmatprep.subr.mxu0 0.0
    %4881 = vmatpush1.msra.mxu0 0.0
    %4882 = vmatprep.subr.mxu0 0.0
    %4883 = vmatpush1.msra.mxu0 0.0
    %4884 = vmatprep.subr.mxu0 0.0
    %4885 = vmatpush1.msra.mxu0 0.0
    %4886 = vmatprep.subr.mxu0 0.0
    %4887 = vmatpush1.msra.mxu0 0.0
    %4888 = vmatprep.subr.mxu0 0.0
    %4889 = vmatpush1.msra.mxu0 0.0
    %4890 = vmatprep.subr.mxu0 0.0
    %4891 = vmatpush1.msra.mxu0 0.0
    %4892 = vmatprep.subr.mxu0 0.0
    %4893 = vmatpush1.msra.mxu0 0.0
    %4894 = vmatprep.subr.mxu0 0.0
    %4895 = vmatpush1.msra.mxu0 0.0
    %4896 = vmatprep.subr.mxu0 0.0
    %4897 = vmatpush1.msra.mxu0 0.0
    %4898 = vmatprep.subr.mxu0 0.0
    %4899 = vmatpush1.msra.mxu0 0.0
    %4900 = vmatprep.subr.mxu0 0.0
    %4901 = vmatpush1.msra.mxu0 0.0
    %4902 = vmatprep.subr.mxu0 0.0
    %4903 = vmatpush1.msra.mxu0 0.0
    %4904 = vmatprep.subr.mxu0 0.0
    %4905 = vmatpush1.msra.mxu0 0.0
    %4906 = vmatprep.mubr.f32.mxu0 0.0
    %4907 = vmatmul.mubr.f32.gmra.mrb[0].mxu0 %v4210
    %v4908 = vpop.f32.mrb[0].mxu0
    %v4909 = vadd.f32 %v4188, %v4908
    %v4910 = vpop.f32.mrb[0].mxu0
    %4911 = vdwg.mxu0
    %4912 = vmatprep.subr.mxu0 0.0
    %4913 = vmatpush1.msra.mxu0 %v4100
    %4914 = vmatprep.subr.mxu0 0.0
    %4915 = vmatpush1.msra.mxu0 %v4101
    %4916 = vmatprep.subr.mxu0 0.0
    %4917 = vmatpush1.msra.mxu0 %v4102
    %4918 = vmatprep.subr.mxu0 0.0
    %4919 = vmatpush1.msra.mxu0 %v4103
    %4920 = vmatprep.subr.mxu0 0.0
    %4921 = vmatpush1.msra.mxu0 0.0
    %4922 = vmatprep.subr.mxu0 0.0
    %4923 = vmatpush1.msra.mxu0 0.0
    %4924 = vmatprep.subr.mxu0 0.0
    %4925 = vmatpush1.msra.mxu0 0.0
    %4926 = vmatprep.subr.mxu0 0.0
    %4927 = vmatpush1.msra.mxu0 0.0
    %4928 = vmatprep.subr.mxu0 0.0
    %4929 = vmatpush1.msra.mxu0 0.0
    %4930 = vmatprep.subr.mxu0 0.0
    %4931 = vmatpush1.msra.mxu0 0.0
    %4932 = vmatprep.subr.mxu0 0.0
    %4933 = vmatpush1.msra.mxu0 0.0
    %4934 = vmatprep.subr.mxu0 0.0
    %4935 = vmatpush1.msra.mxu0 0.0
    %4936 = vmatprep.subr.mxu0 0.0
    %4937 = vmatpush1.msra.mxu0 0.0
    %4938 = vmatprep.subr.mxu0 0.0
    %4939 = vmatpush1.msra.mxu0 0.0
    %4940 = vmatprep.subr.mxu0 0.0
    %4941 = vmatpush1.msra.mxu0 0.0
    %4942 = vmatprep.subr.mxu0 0.0
    %4943 = vmatpush1.msra.mxu0 0.0
    %4944 = vmatprep.subr.mxu0 0.0
    %4945 = vmatpush1.msra.mxu0 0.0
    %4946 = vmatprep.subr.mxu0 0.0
    %4947 = vmatpush1.msra.mxu0 0.0
    %4948 = vmatprep.subr.mxu0 0.0
    %4949 = vmatpush1.msra.mxu0 0.0
    %4950 = vmatprep.subr.mxu0 0.0
    %4951 = vmatpush1.msra.mxu0 0.0
    %4952 = vmatprep.subr.mxu0 0.0
    %4953 = vmatpush1.msra.mxu0 0.0
    %4954 = vmatprep.subr.mxu0 0.0
    %4955 = vmatpush1.msra.mxu0 0.0
    %4956 = vmatprep.subr.mxu0 0.0
    %4957 = vmatpush1.msra.mxu0 0.0
    %4958 = vmatprep.subr.mxu0 0.0
    %4959 = vmatpush1.msra.mxu0 0.0
    %4960 = vmatprep.subr.mxu0 0.0
    %4961 = vmatpush1.msra.mxu0 0.0
    %4962 = vmatprep.subr.mxu0 0.0
    %4963 = vmatpush1.msra.mxu0 0.0
    %4964 = vmatprep.subr.mxu0 0.0
    %4965 = vmatpush1.msra.mxu0 0.0
    %4966 = vmatprep.subr.mxu0 0.0
    %4967 = vmatpush1.msra.mxu0 0.0
    %4968 = vmatprep.subr.mxu0 0.0
    %4969 = vmatpush1.msra.mxu0 0.0
    %4970 = vmatprep.subr.mxu0 0.0
    %4971 = vmatpush1.msra.mxu0 0.0
    %4972 = vmatprep.subr.mxu0 0.0
    %4973 = vmatpush1.msra.mxu0 0.0
    %4974 = vmatprep.subr.mxu0 0.0
    %4975 = vmatpush1.msra.mxu0 0.0
    %4976 = vmatprep.mubr.f32.mxu0 0.0
    %4977 = vmatmul.mubr.f32.gmra.mrb[0].mxu0 %v4210
    %v4978 = vpop.f32.mrb[0].mxu0
    %v4979 = vadd.f32 %v4192, %v4978
    %v4980 = vpop.f32.mrb[0].mxu0
    %4981 = vdwg.mxu0
    %4982 = vmatprep.subr.mxu0 0.0
    %4983 = vmatpush1.msra.mxu0 %v4104
    %4984 = vmatprep.subr.mxu0 0.0
    %4985 = vmatpush1.msra.mxu0 %v4105
    %4986 = vmatprep.subr.mxu0 0.0
    %4987 = vmatpush1.msra.mxu0 %v4106
    %4988 = vmatprep.subr.mxu0 0.0
    %4989 = vmatpush1.msra.mxu0 %v4107
    %4990 = vmatprep.subr.mxu0 0.0
    %4991 = vmatpush1.msra.mxu0 0.0
    %4992 = vmatprep.subr.mxu0 0.0
    %4993 = vmatpush1.msra.mxu0 0.0
    %4994 = vmatprep.subr.mxu0 0.0
    %4995 = vmatpush1.msra.mxu0 0.0
    %4996 = vmatprep.subr.mxu0 0.0
    %4997 = vmatpush1.msra.mxu0 0.0
    %4998 = vmatprep.subr.mxu0 0.0
    %4999 = vmatpush1.msra.mxu0 0.0
    %5000 = vmatprep.subr.mxu0 0.0
    %5001 = vmatpush1.msra.mxu0 0.0
    %5002 = vmatprep.subr.mxu0 0.0
    %5003 = vmatpush1.msra.mxu0 0.0
    %5004 = vmatprep.subr.mxu0 0.0
    %5005 = vmatpush1.msra.mxu0 0.0
    %5006 = vmatprep.subr.mxu0 0.0
    %5007 = vmatpush1.msra.mxu0 0.0
    %5008 = vmatprep.subr.mxu0 0.0
    %5009 = vmatpush1.msra.mxu0 0.0
    %5010 = vmatprep.subr.mxu0 0.0
    %5011 = vmatpush1.msra.mxu0 0.0
    %5012 = vmatprep.subr.mxu0 0.0
    %5013 = vmatpush1.msra.mxu0 0.0
    %5014 = vmatprep.subr.mxu0 0.0
    %5015 = vmatpush1.msra.mxu0 0.0
    %5016 = vmatprep.subr.mxu0 0.0
    %5017 = vmatpush1.msra.mxu0 0.0
    %5018 = vmatprep.subr.mxu0 0.0
    %5019 = vmatpush1.msra.mxu0 0.0
    %5020 = vmatprep.subr.mxu0 0.0
    %5021 = vmatpush1.msra.mxu0 0.0
    %5022 = vmatprep.subr.mxu0 0.0
    %5023 = vmatpush1.msra.mxu0 0.0
    %5024 = vmatprep.subr.mxu0 0.0
    %5025 = vmatpush1.msra.mxu0 0.0
    %5026 = vmatprep.subr.mxu0 0.0
    %5027 = vmatpush1.msra.mxu0 0.0
    %5028 = vmatprep.subr.mxu0 0.0
    %5029 = vmatpush1.msra.mxu0 0.0
    %5030 = vmatprep.subr.mxu0 0.0
    %5031 = vmatpush1.msra.mxu0 0.0
    %5032 = vmatprep.subr.mxu0 0.0
    %5033 = vmatpush1.msra.mxu0 0.0
    %5034 = vmatprep.subr.mxu0 0.0
    %5035 = vmatpush1.msra.mxu0 0.0
    %5036 = vmatprep.subr.mxu0 0.0
    %5037 = vmatpush1.msra.mxu0 0.0
    %5038 = vmatprep.subr.mxu0 0.0
    %5039 = vmatpush1.msra.mxu0 0.0
    %5040 = vmatprep.subr.mxu0 0.0
    %5041 = vmatpush1.msra.mxu0 0.0
    %5042 = vmatprep.subr.mxu0 0.0
    %5043 = vmatpush1.msra.mxu0 0.0
    %5044 = vmatprep.subr.mxu0 0.0
    %5045 = vmatpush1.msra.mxu0 0.0
    %5046 = vmatprep.mubr.f32.mxu0 0.0
    %5047 = vmatmul.mubr.f32.gmra.mrb[0].mxu0 %v4210
    %v5048 = vpop.f32.mrb[0].mxu0
    %v5049 = vadd.f32 %v4196, %v5048
    %v5050 = vpop.f32.mrb[0].mxu0
    %5051 = vdwg.mxu0
    %v5056 = vcombine.high %v4279, %v4279
    %v5058 = vunpack.c.l.s4 1966171168
    %v5059 = vunpack.c.0.s8 %v5058
    %v5060 = vlaneseq
    %v5061 = vshrl.u32 %v5060, 7
    %v5062 = vsub.s32 %v5059, %v5061
    %v5063 = vrot.slane %v4279, %v5062
    %v5065 = vunpack.c.l.s4 1966171168
    %v5066 = vunpack.c.0.s8 %v5065
    %v5067 = vlaneseq
    %v5068 = vshrl.u32 %v5067, 7
    %v5069 = vsub.s32 %v5066, %v5068
    %v5070 = vrot.slane %v5056, %v5069
    %v5071 = vcombine.high %v5063, %v5063
    %v5072 = vcombine.high %v5070, %v5070
    %v5074 = vunpack.c.l.s4 1966171168
    %v5075 = vunpack.c.0.s8 %v5074
    %v5076 = vlaneseq
    %v5077 = vshrl.u32 %v5076, 7
    %v5078 = vsub.s32 %v5075, %v5077
    %v5079 = vrot.slane %v5063, %v5078
    %v5081 = vunpack.c.l.s4 1966171168
    %v5082 = vunpack.c.0.s8 %v5081
    %v5083 = vlaneseq
    %v5084 = vshrl.u32 %v5083, 7
    %v5085 = vsub.s32 %v5082, %v5084
    %v5086 = vrot.slane %v5070, %v5085
    %v5088 = vunpack.c.l.s4 1966171168
    %v5089 = vunpack.c.0.s8 %v5088
    %v5090 = vlaneseq
    %v5091 = vshrl.u32 %v5090, 7
    %v5092 = vsub.s32 %v5089, %v5091
    %v5093 = vrot.slane %v5071, %v5092
    %v5095 = vunpack.c.l.s4 1966171168
    %v5096 = vunpack.c.0.s8 %v5095
    %v5097 = vlaneseq
    %v5098 = vshrl.u32 %v5097, 7
    %v5099 = vsub.s32 %v5096, %v5098
    %v5100 = vrot.slane %v5072, %v5099
    %v5101 = vcombine.high %v5079, %v5079
    %v5102 = vcombine.high %v5086, %v5086
    %v5103 = vcombine.high %v5093, %v5093
    %v5104 = vcombine.high %v5100, %v5100
    %v5105 = vcombine.high %v4349, %v4349
    %v5107 = vunpack.c.l.s4 1966171168
    %v5108 = vunpack.c.0.s8 %v5107
    %v5109 = vlaneseq
    %v5110 = vshrl.u32 %v5109, 7
    %v5111 = vsub.s32 %v5108, %v5110
    %v5112 = vrot.slane %v4349, %v5111
    %v5114 = vunpack.c.l.s4 1966171168
    %v5115 = vunpack.c.0.s8 %v5114
    %v5116 = vlaneseq
    %v5117 = vshrl.u32 %v5116, 7
    %v5118 = vsub.s32 %v5115, %v5117
    %v5119 = vrot.slane %v5105, %v5118
    %v5120 = vcombine.high %v5112, %v5112
    %v5121 = vcombine.high %v5119, %v5119
    %v5123 = vunpack.c.l.s4 1966171168
    %v5124 = vunpack.c.0.s8 %v5123
    %v5125 = vlaneseq
    %v5126 = vshrl.u32 %v5125, 7
    %v5127 = vsub.s32 %v5124, %v5126
    %v5128 = vrot.slane %v5112, %v5127
    %v5130 = vunpack.c.l.s4 1966171168
    %v5131 = vunpack.c.0.s8 %v5130
    %v5132 = vlaneseq
    %v5133 = vshrl.u32 %v5132, 7
    %v5134 = vsub.s32 %v5131, %v5133
    %v5135 = vrot.slane %v5119, %v5134
    %v5137 = vunpack.c.l.s4 1966171168
    %v5138 = vunpack.c.0.s8 %v5137
    %v5139 = vlaneseq
    %v5140 = vshrl.u32 %v5139, 7
    %v5141 = vsub.s32 %v5138, %v5140
    %v5142 = vrot.slane %v5120, %v5141
    %v5144 = vunpack.c.l.s4 1966171168
    %v5145 = vunpack.c.0.s8 %v5144
    %v5146 = vlaneseq
    %v5147 = vshrl.u32 %v5146, 7
    %v5148 = vsub.s32 %v5145, %v5147
    %v5149 = vrot.slane %v5121, %v5148
    %v5150 = vcombine.high %v5128, %v5128
    %v5151 = vcombine.high %v5135, %v5135
    %v5152 = vcombine.high %v5142, %v5142
    %v5153 = vcombine.high %v5149, %v5149
    %v5154 = vcombine.high %v4419, %v4419
    %v5156 = vunpack.c.l.s4 1966171168
    %v5157 = vunpack.c.0.s8 %v5156
    %v5158 = vlaneseq
    %v5159 = vshrl.u32 %v5158, 7
    %v5160 = vsub.s32 %v5157, %v5159
    %v5161 = vrot.slane %v4419, %v5160
    %v5163 = vunpack.c.l.s4 1966171168
    %v5164 = vunpack.c.0.s8 %v5163
    %v5165 = vlaneseq
    %v5166 = vshrl.u32 %v5165, 7
    %v5167 = vsub.s32 %v5164, %v5166
    %v5168 = vrot.slane %v5154, %v5167
    %v5169 = vcombine.high %v5161, %v5161
    %v5170 = vcombine.high %v5168, %v5168
    %v5172 = vunpack.c.l.s4 1966171168
    %v5173 = vunpack.c.0.s8 %v5172
    %v5174 = vlaneseq
    %v5175 = vshrl.u32 %v5174, 7
    %v5176 = vsub.s32 %v5173, %v5175
    %v5177 = vrot.slane %v5161, %v5176
    %v5179 = vunpack.c.l.s4 1966171168
    %v5180 = vunpack.c.0.s8 %v5179
    %v5181 = vlaneseq
    %v5182 = vshrl.u32 %v5181, 7
    %v5183 = vsub.s32 %v5180, %v5182
    %v5184 = vrot.slane %v5168, %v5183
    %v5186 = vunpack.c.l.s4 1966171168
    %v5187 = vunpack.c.0.s8 %v5186
    %v5188 = vlaneseq
    %v5189 = vshrl.u32 %v5188, 7
    %v5190 = vsub.s32 %v5187, %v5189
    %v5191 = vrot.slane %v5169, %v5190
    %v5193 = vunpack.c.l.s4 1966171168
    %v5194 = vunpack.c.0.s8 %v5193
    %v5195 = vlaneseq
    %v5196 = vshrl.u32 %v5195, 7
    %v5197 = vsub.s32 %v5194, %v5196
    %v5198 = vrot.slane %v5170, %v5197
    %v5199 = vcombine.high %v5177, %v5177
    %v5200 = vcombine.high %v5184, %v5184
    %v5201 = vcombine.high %v5191, %v5191
    %v5202 = vcombine.high %v5198, %v5198
    %v5203 = vcombine.high %v4489, %v4489
    %v5205 = vunpack.c.l.s4 1966171168
    %v5206 = vunpack.c.0.s8 %v5205
    %v5207 = vlaneseq
    %v5208 = vshrl.u32 %v5207, 7
    %v5209 = vsub.s32 %v5206, %v5208
    %v5210 = vrot.slane %v4489, %v5209
    %v5212 = vunpack.c.l.s4 1966171168
    %v5213 = vunpack.c.0.s8 %v5212
    %v5214 = vlaneseq
    %v5215 = vshrl.u32 %v5214, 7
    %v5216 = vsub.s32 %v5213, %v5215
    %v5217 = vrot.slane %v5203, %v5216
    %v5218 = vcombine.high %v5210, %v5210
    %v5219 = vcombine.high %v5217, %v5217
    %v5221 = vunpack.c.l.s4 1966171168
    %v5222 = vunpack.c.0.s8 %v5221
    %v5223 = vlaneseq
    %v5224 = vshrl.u32 %v5223, 7
    %v5225 = vsub.s32 %v5222, %v5224
    %v5226 = vrot.slane %v5210, %v5225
    %v5228 = vunpack.c.l.s4 1966171168
    %v5229 = vunpack.c.0.s8 %v5228
    %v5230 = vlaneseq
    %v5231 = vshrl.u32 %v5230, 7
    %v5232 = vsub.s32 %v5229, %v5231
    %v5233 = vrot.slane %v5217, %v5232
    %v5235 = vunpack.c.l.s4 1966171168
    %v5236 = vunpack.c.0.s8 %v5235
    %v5237 = vlaneseq
    %v5238 = vshrl.u32 %v5237, 7
    %v5239 = vsub.s32 %v5236, %v5238
    %v5240 = vrot.slane %v5218, %v5239
    %v5242 = vunpack.c.l.s4 1966171168
    %v5243 = vunpack.c.0.s8 %v5242
    %v5244 = vlaneseq
    %v5245 = vshrl.u32 %v5244, 7
    %v5246 = vsub.s32 %v5243, %v5245
    %v5247 = vrot.slane %v5219, %v5246
    %v5248 = vcombine.high %v5226, %v5226
    %v5249 = vcombine.high %v5233, %v5233
    %v5250 = vcombine.high %v5240, %v5240
    %v5251 = vcombine.high %v5247, %v5247
    %v5252 = vlaneseq
    %v5253 = vshrl.u32 %v5252, 7
    %v5254 = vsub.s32 0, %v5253
    %v5255 = vrot.slane %v5079, %v5254
    %v5256 = vlaneseq
    %v5257 = vshrl.u32 %v5256, 7
    %v5258 = vsub.s32 0, %v5257
    %v5259 = vrot.slane %v5093, %v5258
    %v5260 = vlaneseq
    %v5261 = vshrl.u32 %v5260, 7
    %v5262 = vsub.s32 0, %v5261
    %v5263 = vrot.slane %v5101, %v5262
    %v5264 = vlaneseq
    %v5265 = vshrl.u32 %v5264, 7
    %v5266 = vsub.s32 0, %v5265
    %v5267 = vrot.slane %v5103, %v5266
    %v5268 = vlaneseq
    %v5269 = vshrl.u32 %v5268, 7
    %v5270 = vsub.s32 0, %v5269
    %v5271 = vrot.slane %v5086, %v5270
    %v5272 = vlaneseq
    %v5273 = vshrl.u32 %v5272, 7
    %v5274 = vsub.s32 0, %v5273
    %v5275 = vrot.slane %v5100, %v5274
    %v5276 = vlaneseq
    %v5277 = vshrl.u32 %v5276, 7
    %v5278 = vsub.s32 0, %v5277
    %v5279 = vrot.slane %v5102, %v5278
    %v5280 = vlaneseq
    %v5281 = vshrl.u32 %v5280, 7
    %v5282 = vsub.s32 0, %v5281
    %v5283 = vrot.slane %v5104, %v5282
    %v5284 = vlaneseq
    %v5285 = vshrl.u32 %v5284, 7
    %v5286 = vsub.s32 0, %v5285
    %v5287 = vrot.slane %v5128, %v5286
    %v5288 = vlaneseq
    %v5289 = vshrl.u32 %v5288, 7
    %v5290 = vsub.s32 0, %v5289
    %v5291 = vrot.slane %v5142, %v5290
    %v5292 = vlaneseq
    %v5293 = vshrl.u32 %v5292, 7
    %v5294 = vsub.s32 0, %v5293
    %v5295 = vrot.slane %v5150, %v5294
    %v5296 = vlaneseq
    %v5297 = vshrl.u32 %v5296, 7
    %v5298 = vsub.s32 0, %v5297
    %v5299 = vrot.slane %v5152, %v5298
    %v5300 = vlaneseq
    %v5301 = vshrl.u32 %v5300, 7
    %v5302 = vsub.s32 0, %v5301
    %v5303 = vrot.slane %v5135, %v5302
    %v5304 = vlaneseq
    %v5305 = vshrl.u32 %v5304, 7
    %v5306 = vsub.s32 0, %v5305
    %v5307 = vrot.slane %v5149, %v5306
    %v5308 = vlaneseq
    %v5309 = vshrl.u32 %v5308, 7
    %v5310 = vsub.s32 0, %v5309
    %v5311 = vrot.slane %v5151, %v5310
    %v5312 = vlaneseq
    %v5313 = vshrl.u32 %v5312, 7
    %v5314 = vsub.s32 0, %v5313
    %v5315 = vrot.slane %v5153, %v5314
    %v5316 = vlaneseq
    %v5317 = vshrl.u32 %v5316, 7
    %v5318 = vsub.s32 0, %v5317
    %v5319 = vrot.slane %v5177, %v5318
    %v5320 = vlaneseq
    %v5321 = vshrl.u32 %v5320, 7
    %v5322 = vsub.s32 0, %v5321
    %v5323 = vrot.slane %v5191, %v5322
    %v5324 = vlaneseq
    %v5325 = vshrl.u32 %v5324, 7
    %v5326 = vsub.s32 0, %v5325
    %v5327 = vrot.slane %v5199, %v5326
    %v5328 = vlaneseq
    %v5329 = vshrl.u32 %v5328, 7
    %v5330 = vsub.s32 0, %v5329
    %v5331 = vrot.slane %v5201, %v5330
    %v5332 = vlaneseq
    %v5333 = vshrl.u32 %v5332, 7
    %v5334 = vsub.s32 0, %v5333
    %v5335 = vrot.slane %v5184, %v5334
    %v5336 = vlaneseq
    %v5337 = vshrl.u32 %v5336, 7
    %v5338 = vsub.s32 0, %v5337
    %v5339 = vrot.slane %v5198, %v5338
    %v5340 = vlaneseq
    %v5341 = vshrl.u32 %v5340, 7
    %v5342 = vsub.s32 0, %v5341
    %v5343 = vrot.slane %v5200, %v5342
    %v5344 = vlaneseq
    %v5345 = vshrl.u32 %v5344, 7
    %v5346 = vsub.s32 0, %v5345
    %v5347 = vrot.slane %v5202, %v5346
    %v5348 = vlaneseq
    %v5349 = vshrl.u32 %v5348, 7
    %v5350 = vsub.s32 0, %v5349
    %v5351 = vrot.slane %v5226, %v5350
    %v5352 = vlaneseq
    %v5353 = vshrl.u32 %v5352, 7
    %v5354 = vsub.s32 0, %v5353
    %v5355 = vrot.slane %v5240, %v5354
    %v5356 = vlaneseq
    %v5357 = vshrl.u32 %v5356, 7
    %v5358 = vsub.s32 0, %v5357
    %v5359 = vrot.slane %v5248, %v5358
    %v5360 = vlaneseq
    %v5361 = vshrl.u32 %v5360, 7
    %v5362 = vsub.s32 0, %v5361
    %v5363 = vrot.slane %v5250, %v5362
    %v5364 = vlaneseq
    %v5365 = vshrl.u32 %v5364, 7
    %v5366 = vsub.s32 0, %v5365
    %v5367 = vrot.slane %v5233, %v5366
    %v5368 = vlaneseq
    %v5369 = vshrl.u32 %v5368, 7
    %v5370 = vsub.s32 0, %v5369
    %v5371 = vrot.slane %v5247, %v5370
    %v5372 = vlaneseq
    %v5373 = vshrl.u32 %v5372, 7
    %v5374 = vsub.s32 0, %v5373
    %v5375 = vrot.slane %v5249, %v5374
    %v5376 = vlaneseq
    %v5377 = vshrl.u32 %v5376, 7
    %v5378 = vsub.s32 0, %v5377
    %v5379 = vrot.slane %v5251, %v5378
    %v5412 = vmul.f32 %v5255, %v3893
    %v5413 = vmul.f32 %v5259, %v3898
    %v5414 = vmul.f32 %v5263, %v3903
    %v5415 = vmul.f32 %v5267, %v3908
    %v5416 = vmul.f32 %v5271, %v3913
    %v5417 = vmul.f32 %v5275, %v3918
    %v5418 = vmul.f32 %v5279, %v3923
    %v5419 = vmul.f32 %v5283, %v3928
    %v5420 = vmul.f32 %v5287, %v3893
    %v5421 = vmul.f32 %v5291, %v3898
    %v5422 = vmul.f32 %v5295, %v3903
    %v5423 = vmul.f32 %v5299, %v3908
    %v5424 = vmul.f32 %v5303, %v3913
    %v5425 = vmul.f32 %v5307, %v3918
    %v5426 = vmul.f32 %v5311, %v3923
    %v5427 = vmul.f32 %v5315, %v3928
    %v5428 = vmul.f32 %v5319, %v3893
    %v5429 = vmul.f32 %v5323, %v3898
    %v5430 = vmul.f32 %v5327, %v3903
    %v5431 = vmul.f32 %v5331, %v3908
    %v5432 = vmul.f32 %v5335, %v3913
    %v5433 = vmul.f32 %v5339, %v3918
    %v5434 = vmul.f32 %v5343, %v3923
    %v5435 = vmul.f32 %v5347, %v3928
    %v5436 = vmul.f32 %v5351, %v3893
    %v5437 = vmul.f32 %v5355, %v3898
    %v5438 = vmul.f32 %v5359, %v3903
    %v5439 = vmul.f32 %v5363, %v3908
    %v5440 = vmul.f32 %v5367, %v3913
    %v5441 = vmul.f32 %v5371, %v3918
    %v5442 = vmul.f32 %v5375, %v3923
    %v5443 = vmul.f32 %v5379, %v3928
    %v5444 = vsel %vm1789, %v5412, 0.0
    %5445 = vadd.xlane.f32.xlu0 %v5444
    %v5446 = vpop.xlane.xlu0 %5445
    %v5447 = vsel %vm1789, %v5413, 0.0
    %5448 = vadd.xlane.f32.xlu0 %v5447
    %v5449 = vpop.xlane.xlu0 %5448
    %v5450 = vsel %vm1789, %v5414, 0.0
    %5451 = vadd.xlane.f32.xlu0 %v5450
    %v5452 = vpop.xlane.xlu0 %5451
    %v5453 = vsel %vm1789, %v5415, 0.0
    %5454 = vadd.xlane.f32.xlu0 %v5453
    %v5455 = vpop.xlane.xlu0 %5454
    %v5456 = vsel %vm1789, %v5416, 0.0
    %5457 = vadd.xlane.f32.xlu0 %v5456
    %v5458 = vpop.xlane.xlu0 %5457
    %v5459 = vsel %vm1789, %v5417, 0.0
    %5460 = vadd.xlane.f32.xlu0 %v5459
    %v5461 = vpop.xlane.xlu0 %5460
    %v5462 = vsel %vm1789, %v5418, 0.0
    %5463 = vadd.xlane.f32.xlu0 %v5462
    %v5464 = vpop.xlane.xlu0 %5463
    %v5465 = vsel %vm1789, %v5419, 0.0
    %5466 = vadd.xlane.f32.xlu0 %v5465
    %v5467 = vpop.xlane.xlu0 %5466
    %v5468 = vsel %vm1789, %v5420, 0.0
    %5469 = vadd.xlane.f32.xlu0 %v5468
    %v5470 = vpop.xlane.xlu0 %5469
    %v5471 = vsel %vm1789, %v5421, 0.0
    %5472 = vadd.xlane.f32.xlu0 %v5471
    %v5473 = vpop.xlane.xlu0 %5472
    %v5474 = vsel %vm1789, %v5422, 0.0
    %5475 = vadd.xlane.f32.xlu0 %v5474
    %v5476 = vpop.xlane.xlu0 %5475
    %v5477 = vsel %vm1789, %v5423, 0.0
    %5478 = vadd.xlane.f32.xlu0 %v5477
    %v5479 = vpop.xlane.xlu0 %5478
    %v5480 = vsel %vm1789, %v5424, 0.0
    %5481 = vadd.xlane.f32.xlu0 %v5480
    %v5482 = vpop.xlane.xlu0 %5481
    %v5483 = vsel %vm1789, %v5425, 0.0
    %5484 = vadd.xlane.f32.xlu0 %v5483
    %v5485 = vpop.xlane.xlu0 %5484
    %v5486 = vsel %vm1789, %v5426, 0.0
    %5487 = vadd.xlane.f32.xlu0 %v5486
    %v5488 = vpop.xlane.xlu0 %5487
    %v5489 = vsel %vm1789, %v5427, 0.0
    %5490 = vadd.xlane.f32.xlu0 %v5489
    %v5491 = vpop.xlane.xlu0 %5490
    %v5492 = vsel %vm1789, %v5428, 0.0
    %5493 = vadd.xlane.f32.xlu0 %v5492
    %v5494 = vpop.xlane.xlu0 %5493
    %v5495 = vsel %vm1789, %v5429, 0.0
    %5496 = vadd.xlane.f32.xlu0 %v5495
    %v5497 = vpop.xlane.xlu0 %5496
    %v5498 = vsel %vm1789, %v5430, 0.0
    %5499 = vadd.xlane.f32.xlu0 %v5498
    %v5500 = vpop.xlane.xlu0 %5499
    %v5501 = vsel %vm1789, %v5431, 0.0
    %5502 = vadd.xlane.f32.xlu0 %v5501
    %v5503 = vpop.xlane.xlu0 %5502
    %v5504 = vsel %vm1789, %v5432, 0.0
    %5505 = vadd.xlane.f32.xlu0 %v5504
    %v5506 = vpop.xlane.xlu0 %5505
    %v5507 = vsel %vm1789, %v5433, 0.0
    %5508 = vadd.xlane.f32.xlu0 %v5507
    %v5509 = vpop.xlane.xlu0 %5508
    %v5510 = vsel %vm1789, %v5434, 0.0
    %5511 = vadd.xlane.f32.xlu0 %v5510
    %v5512 = vpop.xlane.xlu0 %5511
    %v5513 = vsel %vm1789, %v5435, 0.0
    %5514 = vadd.xlane.f32.xlu0 %v5513
    %v5515 = vpop.xlane.xlu0 %5514
    %v5516 = vsel %vm1789, %v5436, 0.0
    %5517 = vadd.xlane.f32.xlu0 %v5516
    %v5518 = vpop.xlane.xlu0 %5517
    %v5519 = vsel %vm1789, %v5437, 0.0
    %5520 = vadd.xlane.f32.xlu0 %v5519
    %v5521 = vpop.xlane.xlu0 %5520
    %v5522 = vsel %vm1789, %v5438, 0.0
    %5523 = vadd.xlane.f32.xlu0 %v5522
    %v5524 = vpop.xlane.xlu0 %5523
    %v5525 = vsel %vm1789, %v5439, 0.0
    %5526 = vadd.xlane.f32.xlu0 %v5525
    %v5527 = vpop.xlane.xlu0 %5526
    %v5528 = vsel %vm1789, %v5440, 0.0
    %5529 = vadd.xlane.f32.xlu0 %v5528
    %v5530 = vpop.xlane.xlu0 %5529
    %v5531 = vsel %vm1789, %v5441, 0.0
    %5532 = vadd.xlane.f32.xlu0 %v5531
    %v5533 = vpop.xlane.xlu0 %5532
    %v5534 = vsel %vm1789, %v5442, 0.0
    %5535 = vadd.xlane.f32.xlu0 %v5534
    %v5536 = vpop.xlane.xlu0 %5535
    %v5537 = vsel %vm1789, %v5443, 0.0
    %5538 = vadd.xlane.f32.xlu0 %v5537
    %v5539 = vpop.xlane.xlu0 %5538
    %v5548 = vlaneseq
    %v5549 = vshrl.u32 %v5548, 7
    %v5550 = vsub.s32 %v60, %v5549
    %v5551 = vrot.slane %v5446, %v5550
    %v5552 = vlaneseq
    %v5553 = vshrl.u32 %v5552, 7
    %v5554 = vsub.s32 %v60, %v5553
    %v5555 = vrot.slane %v5449, %v5554
    %v5556 = vlaneseq
    %v5557 = vshrl.u32 %v5556, 7
    %v5558 = vsub.s32 %v60, %v5557
    %v5559 = vrot.slane %v5452, %v5558
    %v5560 = vlaneseq
    %v5561 = vshrl.u32 %v5560, 7
    %v5562 = vsub.s32 %v60, %v5561
    %v5563 = vrot.slane %v5455, %v5562
    %v5564 = vlaneseq
    %v5565 = vshrl.u32 %v5564, 7
    %v5566 = vsub.s32 %v60, %v5565
    %v5567 = vrot.slane %v5458, %v5566
    %v5568 = vlaneseq
    %v5569 = vshrl.u32 %v5568, 7
    %v5570 = vsub.s32 %v60, %v5569
    %v5571 = vrot.slane %v5461, %v5570
    %v5572 = vlaneseq
    %v5573 = vshrl.u32 %v5572, 7
    %v5574 = vsub.s32 %v60, %v5573
    %v5575 = vrot.slane %v5464, %v5574
    %v5576 = vlaneseq
    %v5577 = vshrl.u32 %v5576, 7
    %v5578 = vsub.s32 %v60, %v5577
    %v5579 = vrot.slane %v5467, %v5578
    %v5580 = vsel %vm1926, %v5555, %v5551
    %v5581 = vsel %vm1928, %v5559, %v5580
    %v5582 = vsel %vm1930, %v5563, %v5581
    %v5583 = vsel %vm1932, %v5567, %v5582
    %v5584 = vsel %vm1934, %v5571, %v5583
    %v5585 = vsel %vm1936, %v5575, %v5584
    %v5586 = vsel %vm1938, %v5579, %v5585
    %v5588 = vsel %vm1789, %v4279, 0
    %v5591 = vsel %vm1789, %v4559, 0
    %5593 = vmatprep.subr.mxu0 0.0
    %5594 = vmatpush1.xpose.msra.mxu0 %v5591
    %5595 = vmatprep.subr.mxu0 0.0
    %5596 = vmatpush1.xpose.msra.mxu0 0.0
    %5597 = vmatprep.subr.mxu0 0.0
    %5598 = vmatpush1.xpose.msra.mxu0 0.0
    %5599 = vmatprep.subr.mxu0 0.0
    %5600 = vmatpush1.xpose.msra.mxu0 0.0
    %5601 = vmatprep.subr.mxu0 0.0
    %5602 = vmatpush1.xpose.msra.mxu0 0.0
    %5603 = vmatprep.subr.mxu0 0.0
    %5604 = vmatpush1.xpose.msra.mxu0 0.0
    %5605 = vmatprep.subr.mxu0 0.0
    %5606 = vmatpush1.xpose.msra.mxu0 0.0
    %5607 = vmatprep.subr.mxu0 0.0
    %5608 = vmatpush1.xpose.msra.mxu0 0.0
    %5609 = vmatprep.subr.mxu0 0.0
    %5610 = vmatpush1.xpose.msra.mxu0 0.0
    %5611 = vmatprep.subr.mxu0 0.0
    %5612 = vmatpush1.xpose.msra.mxu0 0.0
    %5613 = vmatprep.subr.mxu0 0.0
    %5614 = vmatpush1.xpose.msra.mxu0 0.0
    %5615 = vmatprep.subr.mxu0 0.0
    %5616 = vmatpush1.xpose.msra.mxu0 0.0
    %5617 = vmatprep.subr.mxu0 0.0
    %5618 = vmatpush1.xpose.msra.mxu0 0.0
    %5619 = vmatprep.subr.mxu0 0.0
    %5620 = vmatpush1.xpose.msra.mxu0 0.0
    %5621 = vmatprep.subr.mxu0 0.0
    %5622 = vmatpush1.xpose.msra.mxu0 0.0
    %5623 = vmatprep.subr.mxu0 0.0
    %5624 = vmatpush1.xpose.msra.mxu0 0.0
    %5625 = vmatprep.subr.mxu0 0.0
    %5626 = vmatpush1.xpose.msra.mxu0 0.0
    %5627 = vmatprep.subr.mxu0 0.0
    %5628 = vmatpush1.xpose.msra.mxu0 0.0
    %5629 = vmatprep.subr.mxu0 0.0
    %5630 = vmatpush1.xpose.msra.mxu0 0.0
    %5631 = vmatprep.subr.mxu0 0.0
    %5632 = vmatpush1.xpose.msra.mxu0 0.0
    %5633 = vmatprep.subr.mxu0 0.0
    %5634 = vmatpush1.xpose.msra.mxu0 0.0
    %5635 = vmatprep.subr.mxu0 0.0
    %5636 = vmatpush1.xpose.msra.mxu0 0.0
    %5637 = vmatprep.subr.mxu0 0.0
    %5638 = vmatpush1.xpose.msra.mxu0 0.0
    %5639 = vmatprep.subr.mxu0 0.0
    %5640 = vmatpush1.xpose.msra.mxu0 0.0
    %5641 = vmatprep.subr.mxu0 0.0
    %5642 = vmatpush1.xpose.msra.mxu0 0.0
    %5643 = vmatprep.subr.mxu0 0.0
    %5644 = vmatpush1.xpose.msra.mxu0 0.0
    %5645 = vmatprep.subr.mxu0 0.0
    %5646 = vmatpush1.xpose.msra.mxu0 0.0
    %5647 = vmatprep.subr.mxu0 0.0
    %5648 = vmatpush1.xpose.msra.mxu0 0.0
    %5649 = vmatprep.subr.mxu0 0.0
    %5650 = vmatpush1.xpose.msra.mxu0 0.0
    %5651 = vmatprep.subr.mxu0 0.0
    %5652 = vmatpush1.xpose.msra.mxu0 0.0
    %5653 = vmatprep.subr.mxu0 0.0
    %5654 = vmatpush1.xpose.msra.mxu0 0.0
    %5655 = vmatprep.subr.mxu0 0.0
    %5656 = vmatpush1.xpose.msra.mxu0 0.0
    %5657 = vmatprep.mubr.f32.mxu0 0.0
    %5658 = vmatmul.mubr.f32.gmra.mrb[0].mxu0 %v5588
    %v5659 = vpop.f32.mrb[0].mxu0
    %v5660 = vadd.f32 %v5586, %v5659
    %v5661 = vpop.f32.mrb[0].mxu0
    %5662 = vdwg.mxu0
    %v5671 = vlaneseq
    %v5672 = vshrl.u32 %v5671, 7
    %v5673 = vsub.s32 %v60, %v5672
    %v5674 = vrot.slane %v5470, %v5673
    %v5675 = vlaneseq
    %v5676 = vshrl.u32 %v5675, 7
    %v5677 = vsub.s32 %v60, %v5676
    %v5678 = vrot.slane %v5473, %v5677
    %v5679 = vlaneseq
    %v5680 = vshrl.u32 %v5679, 7
    %v5681 = vsub.s32 %v60, %v5680
    %v5682 = vrot.slane %v5476, %v5681
    %v5683 = vlaneseq
    %v5684 = vshrl.u32 %v5683, 7
    %v5685 = vsub.s32 %v60, %v5684
    %v5686 = vrot.slane %v5479, %v5685
    %v5687 = vlaneseq
    %v5688 = vshrl.u32 %v5687, 7
    %v5689 = vsub.s32 %v60, %v5688
    %v5690 = vrot.slane %v5482, %v5689
    %v5691 = vlaneseq
    %v5692 = vshrl.u32 %v5691, 7
    %v5693 = vsub.s32 %v60, %v5692
    %v5694 = vrot.slane %v5485, %v5693
    %v5695 = vlaneseq
    %v5696 = vshrl.u32 %v5695, 7
    %v5697 = vsub.s32 %v60, %v5696
    %v5698 = vrot.slane %v5488, %v5697
    %v5699 = vlaneseq
    %v5700 = vshrl.u32 %v5699, 7
    %v5701 = vsub.s32 %v60, %v5700
    %v5702 = vrot.slane %v5491, %v5701
    %v5703 = vsel %vm1926, %v5678, %v5674
    %v5704 = vsel %vm1928, %v5682, %v5703
    %v5705 = vsel %vm1930, %v5686, %v5704
    %v5706 = vsel %vm1932, %v5690, %v5705
    %v5707 = vsel %vm1934, %v5694, %v5706
    %v5708 = vsel %vm1936, %v5698, %v5707
    %v5709 = vsel %vm1938, %v5702, %v5708
    %v5711 = vsel %vm1789, %v4349, 0
    %v5714 = vsel %vm1789, %v4629, 0
    %5716 = vmatprep.subr.mxu0 0.0
    %5717 = vmatpush1.xpose.msra.mxu0 %v5714
    %5718 = vmatprep.subr.mxu0 0.0
    %5719 = vmatpush1.xpose.msra.mxu0 0.0
    %5720 = vmatprep.subr.mxu0 0.0
    %5721 = vmatpush1.xpose.msra.mxu0 0.0
    %5722 = vmatprep.subr.mxu0 0.0
    %5723 = vmatpush1.xpose.msra.mxu0 0.0
    %5724 = vmatprep.subr.mxu0 0.0
    %5725 = vmatpush1.xpose.msra.mxu0 0.0
    %5726 = vmatprep.subr.mxu0 0.0
    %5727 = vmatpush1.xpose.msra.mxu0 0.0
    %5728 = vmatprep.subr.mxu0 0.0
    %5729 = vmatpush1.xpose.msra.mxu0 0.0
    %5730 = vmatprep.subr.mxu0 0.0
    %5731 = vmatpush1.xpose.msra.mxu0 0.0
    %5732 = vmatprep.subr.mxu0 0.0
    %5733 = vmatpush1.xpose.msra.mxu0 0.0
    %5734 = vmatprep.subr.mxu0 0.0
    %5735 = vmatpush1.xpose.msra.mxu0 0.0
    %5736 = vmatprep.subr.mxu0 0.0
    %5737 = vmatpush1.xpose.msra.mxu0 0.0
    %5738 = vmatprep.subr.mxu0 0.0
    %5739 = vmatpush1.xpose.msra.mxu0 0.0
    %5740 = vmatprep.subr.mxu0 0.0
    %5741 = vmatpush1.xpose.msra.mxu0 0.0
    %5742 = vmatprep.subr.mxu0 0.0
    %5743 = vmatpush1.xpose.msra.mxu0 0.0
    %5744 = vmatprep.subr.mxu0 0.0
    %5745 = vmatpush1.xpose.msra.mxu0 0.0
    %5746 = vmatprep.subr.mxu0 0.0
    %5747 = vmatpush1.xpose.msra.mxu0 0.0
    %5748 = vmatprep.subr.mxu0 0.0
    %5749 = vmatpush1.xpose.msra.mxu0 0.0
    %5750 = vmatprep.subr.mxu0 0.0
    %5751 = vmatpush1.xpose.msra.mxu0 0.0
    %5752 = vmatprep.subr.mxu0 0.0
    %5753 = vmatpush1.xpose.msra.mxu0 0.0
    %5754 = vmatprep.subr.mxu0 0.0
    %5755 = vmatpush1.xpose.msra.mxu0 0.0
    %5756 = vmatprep.subr.mxu0 0.0
    %5757 = vmatpush1.xpose.msra.mxu0 0.0
    %5758 = vmatprep.subr.mxu0 0.0
    %5759 = vmatpush1.xpose.msra.mxu0 0.0
    %5760 = vmatprep.subr.mxu0 0.0
    %5761 = vmatpush1.xpose.msra.mxu0 0.0
    %5762 = vmatprep.subr.mxu0 0.0
    %5763 = vmatpush1.xpose.msra.mxu0 0.0
    %5764 = vmatprep.subr.mxu0 0.0
    %5765 = vmatpush1.xpose.msra.mxu0 0.0
    %5766 = vmatprep.subr.mxu0 0.0
    %5767 = vmatpush1.xpose.msra.mxu0 0.0
    %5768 = vmatprep.subr.mxu0 0.0
    %5769 = vmatpush1.xpose.msra.mxu0 0.0
    %5770 = vmatprep.subr.mxu0 0.0
    %5771 = vmatpush1.xpose.msra.mxu0 0.0
    %5772 = vmatprep.subr.mxu0 0.0
    %5773 = vmatpush1.xpose.msra.mxu0 0.0
    %5774 = vmatprep.subr.mxu0 0.0
    %5775 = vmatpush1.xpose.msra.mxu0 0.0
    %5776 = vmatprep.subr.mxu0 0.0
    %5777 = vmatpush1.xpose.msra.mxu0 0.0
    %5778 = vmatprep.subr.mxu0 0.0
    %5779 = vmatpush1.xpose.msra.mxu0 0.0
    %5780 = vmatprep.mubr.f32.mxu0 0.0
    %5781 = vmatmul.mubr.f32.gmra.mrb[0].mxu0 %v5711
    %v5782 = vpop.f32.mrb[0].mxu0
    %v5783 = vadd.f32 %v5709, %v5782
    %v5784 = vpop.f32.mrb[0].mxu0
    %5785 = vdwg.mxu0
    %v5794 = vlaneseq
    %v5795 = vshrl.u32 %v5794, 7
    %v5796 = vsub.s32 %v60, %v5795
    %v5797 = vrot.slane %v5494, %v5796
    %v5798 = vlaneseq
    %v5799 = vshrl.u32 %v5798, 7
    %v5800 = vsub.s32 %v60, %v5799
    %v5801 = vrot.slane %v5497, %v5800
    %v5802 = vlaneseq
    %v5803 = vshrl.u32 %v5802, 7
    %v5804 = vsub.s32 %v60, %v5803
    %v5805 = vrot.slane %v5500, %v5804
    %v5806 = vlaneseq
    %v5807 = vshrl.u32 %v5806, 7
    %v5808 = vsub.s32 %v60, %v5807
    %v5809 = vrot.slane %v5503, %v5808
    %v5810 = vlaneseq
    %v5811 = vshrl.u32 %v5810, 7
    %v5812 = vsub.s32 %v60, %v5811
    %v5813 = vrot.slane %v5506, %v5812
    %v5814 = vlaneseq
    %v5815 = vshrl.u32 %v5814, 7
    %v5816 = vsub.s32 %v60, %v5815
    %v5817 = vrot.slane %v5509, %v5816
    %v5818 = vlaneseq
    %v5819 = vshrl.u32 %v5818, 7
    %v5820 = vsub.s32 %v60, %v5819
    %v5821 = vrot.slane %v5512, %v5820
    %v5822 = vlaneseq
    %v5823 = vshrl.u32 %v5822, 7
    %v5824 = vsub.s32 %v60, %v5823
    %v5825 = vrot.slane %v5515, %v5824
    %v5826 = vsel %vm1926, %v5801, %v5797
    %v5827 = vsel %vm1928, %v5805, %v5826
    %v5828 = vsel %vm1930, %v5809, %v5827
    %v5829 = vsel %vm1932, %v5813, %v5828
    %v5830 = vsel %vm1934, %v5817, %v5829
    %v5831 = vsel %vm1936, %v5821, %v5830
    %v5832 = vsel %vm1938, %v5825, %v5831
    %v5834 = vsel %vm1789, %v4419, 0
    %v5837 = vsel %vm1789, %v4699, 0
    %5839 = vmatprep.subr.mxu0 0.0
    %5840 = vmatpush1.xpose.msra.mxu0 %v5837
    %5841 = vmatprep.subr.mxu0 0.0
    %5842 = vmatpush1.xpose.msra.mxu0 0.0
    %5843 = vmatprep.subr.mxu0 0.0
    %5844 = vmatpush1.xpose.msra.mxu0 0.0
    %5845 = vmatprep.subr.mxu0 0.0
    %5846 = vmatpush1.xpose.msra.mxu0 0.0
    %5847 = vmatprep.subr.mxu0 0.0
    %5848 = vmatpush1.xpose.msra.mxu0 0.0
    %5849 = vmatprep.subr.mxu0 0.0
    %5850 = vmatpush1.xpose.msra.mxu0 0.0
    %5851 = vmatprep.subr.mxu0 0.0
    %5852 = vmatpush1.xpose.msra.mxu0 0.0
    %5853 = vmatprep.subr.mxu0 0.0
    %5854 = vmatpush1.xpose.msra.mxu0 0.0
    %5855 = vmatprep.subr.mxu0 0.0
    %5856 = vmatpush1.xpose.msra.mxu0 0.0
    %5857 = vmatprep.subr.mxu0 0.0
    %5858 = vmatpush1.xpose.msra.mxu0 0.0
    %5859 = vmatprep.subr.mxu0 0.0
    %5860 = vmatpush1.xpose.msra.mxu0 0.0
    %5861 = vmatprep.subr.mxu0 0.0
    %5862 = vmatpush1.xpose.msra.mxu0 0.0
    %5863 = vmatprep.subr.mxu0 0.0
    %5864 = vmatpush1.xpose.msra.mxu0 0.0
    %5865 = vmatprep.subr.mxu0 0.0
    %5866 = vmatpush1.xpose.msra.mxu0 0.0
    %5867 = vmatprep.subr.mxu0 0.0
    %5868 = vmatpush1.xpose.msra.mxu0 0.0
    %5869 = vmatprep.subr.mxu0 0.0
    %5870 = vmatpush1.xpose.msra.mxu0 0.0
    %5871 = vmatprep.subr.mxu0 0.0
    %5872 = vmatpush1.xpose.msra.mxu0 0.0
    %5873 = vmatprep.subr.mxu0 0.0
    %5874 = vmatpush1.xpose.msra.mxu0 0.0
    %5875 = vmatprep.subr.mxu0 0.0
    %5876 = vmatpush1.xpose.msra.mxu0 0.0
    %5877 = vmatprep.subr.mxu0 0.0
    %5878 = vmatpush1.xpose.msra.mxu0 0.0
    %5879 = vmatprep.subr.mxu0 0.0
    %5880 = vmatpush1.xpose.msra.mxu0 0.0
    %5881 = vmatprep.subr.mxu0 0.0
    %5882 = vmatpush1.xpose.msra.mxu0 0.0
    %5883 = vmatprep.subr.mxu0 0.0
    %5884 = vmatpush1.xpose.msra.mxu0 0.0
    %5885 = vmatprep.subr.mxu0 0.0
    %5886 = vmatpush1.xpose.msra.mxu0 0.0
    %5887 = vmatprep.subr.mxu0 0.0
    %5888 = vmatpush1.xpose.msra.mxu0 0.0
    %5889 = vmatprep.subr.mxu0 0.0
    %5890 = vmatpush1.xpose.msra.mxu0 0.0
    %5891 = vmatprep.subr.mxu0 0.0
    %5892 = vmatpush1.xpose.msra.mxu0 0.0
    %5893 = vmatprep.subr.mxu0 0.0
    %5894 = vmatpush1.xpose.msra.mxu0 0.0
    %5895 = vmatprep.subr.mxu0 0.0
    %5896 = vmatpush1.xpose.msra.mxu0 0.0
    %5897 = vmatprep.subr.mxu0 0.0
    %5898 = vmatpush1.xpose.msra.mxu0 0.0
    %5899 = vmatprep.subr.mxu0 0.0
    %5900 = vmatpush1.xpose.msra.mxu0 0.0
    %5901 = vmatprep.subr.mxu0 0.0
    %5902 = vmatpush1.xpose.msra.mxu0 0.0
    %5903 = vmatprep.mubr.f32.mxu0 0.0
    %5904 = vmatmul.mubr.f32.gmra.mrb[0].mxu0 %v5834
    %v5905 = vpop.f32.mrb[0].mxu0
    %v5906 = vadd.f32 %v5832, %v5905
    %v5907 = vpop.f32.mrb[0].mxu0
    %5908 = vdwg.mxu0
    %v5917 = vlaneseq
    %v5918 = vshrl.u32 %v5917, 7
    %v5919 = vsub.s32 %v60, %v5918
    %v5920 = vrot.slane %v5518, %v5919
    %v5921 = vlaneseq
    %v5922 = vshrl.u32 %v5921, 7
    %v5923 = vsub.s32 %v60, %v5922
    %v5924 = vrot.slane %v5521, %v5923
    %v5925 = vlaneseq
    %v5926 = vshrl.u32 %v5925, 7
    %v5927 = vsub.s32 %v60, %v5926
    %v5928 = vrot.slane %v5524, %v5927
    %v5929 = vlaneseq
    %v5930 = vshrl.u32 %v5929, 7
    %v5931 = vsub.s32 %v60, %v5930
    %v5932 = vrot.slane %v5527, %v5931
    %v5933 = vlaneseq
    %v5934 = vshrl.u32 %v5933, 7
    %v5935 = vsub.s32 %v60, %v5934
    %v5936 = vrot.slane %v5530, %v5935
    %v5937 = vlaneseq
    %v5938 = vshrl.u32 %v5937, 7
    %v5939 = vsub.s32 %v60, %v5938
    %v5940 = vrot.slane %v5533, %v5939
    %v5941 = vlaneseq
    %v5942 = vshrl.u32 %v5941, 7
    %v5943 = vsub.s32 %v60, %v5942
    %v5944 = vrot.slane %v5536, %v5943
    %v5945 = vlaneseq
    %v5946 = vshrl.u32 %v5945, 7
    %v5947 = vsub.s32 %v60, %v5946
    %v5948 = vrot.slane %v5539, %v5947
    %v5949 = vsel %vm1926, %v5924, %v5920
    %v5950 = vsel %vm1928, %v5928, %v5949
    %v5951 = vsel %vm1930, %v5932, %v5950
    %v5952 = vsel %vm1932, %v5936, %v5951
    %v5953 = vsel %vm1934, %v5940, %v5952
    %v5954 = vsel %vm1936, %v5944, %v5953
    %v5955 = vsel %vm1938, %v5948, %v5954
    %v5957 = vsel %vm1789, %v4489, 0
    %v5960 = vsel %vm1789, %v4769, 0
    %5962 = vmatprep.subr.mxu0 0.0
    %5963 = vmatpush1.xpose.msra.mxu0 %v5960
    %5964 = vmatprep.subr.mxu0 0.0
    %5965 = vmatpush1.xpose.msra.mxu0 0.0
    %5966 = vmatprep.subr.mxu0 0.0
    %5967 = vmatpush1.xpose.msra.mxu0 0.0
    %5968 = vmatprep.subr.mxu0 0.0
    %5969 = vmatpush1.xpose.msra.mxu0 0.0
    %5970 = vmatprep.subr.mxu0 0.0
    %5971 = vmatpush1.xpose.msra.mxu0 0.0
    %5972 = vmatprep.subr.mxu0 0.0
    %5973 = vmatpush1.xpose.msra.mxu0 0.0
    %5974 = vmatprep.subr.mxu0 0.0
    %5975 = vmatpush1.xpose.msra.mxu0 0.0
    %5976 = vmatprep.subr.mxu0 0.0
    %5977 = vmatpush1.xpose.msra.mxu0 0.0
    %5978 = vmatprep.subr.mxu0 0.0
    %5979 = vmatpush1.xpose.msra.mxu0 0.0
    %5980 = vmatprep.subr.mxu0 0.0
    %5981 = vmatpush1.xpose.msra.mxu0 0.0
    %5982 = vmatprep.subr.mxu0 0.0
    %5983 = vmatpush1.xpose.msra.mxu0 0.0
    %5984 = vmatprep.subr.mxu0 0.0
    %5985 = vmatpush1.xpose.msra.mxu0 0.0
    %5986 = vmatprep.subr.mxu0 0.0
    %5987 = vmatpush1.xpose.msra.mxu0 0.0
    %5988 = vmatprep.subr.mxu0 0.0
    %5989 = vmatpush1.xpose.msra.mxu0 0.0
    %5990 = vmatprep.subr.mxu0 0.0
    %5991 = vmatpush1.xpose.msra.mxu0 0.0
    %5992 = vmatprep.subr.mxu0 0.0
    %5993 = vmatpush1.xpose.msra.mxu0 0.0
    %5994 = vmatprep.subr.mxu0 0.0
    %5995 = vmatpush1.xpose.msra.mxu0 0.0
    %5996 = vmatprep.subr.mxu0 0.0
    %5997 = vmatpush1.xpose.msra.mxu0 0.0
    %5998 = vmatprep.subr.mxu0 0.0
    %5999 = vmatpush1.xpose.msra.mxu0 0.0
    %6000 = vmatprep.subr.mxu0 0.0
    %6001 = vmatpush1.xpose.msra.mxu0 0.0
    %6002 = vmatprep.subr.mxu0 0.0
    %6003 = vmatpush1.xpose.msra.mxu0 0.0
    %6004 = vmatprep.subr.mxu0 0.0
    %6005 = vmatpush1.xpose.msra.mxu0 0.0
    %6006 = vmatprep.subr.mxu0 0.0
    %6007 = vmatpush1.xpose.msra.mxu0 0.0
    %6008 = vmatprep.subr.mxu0 0.0
    %6009 = vmatpush1.xpose.msra.mxu0 0.0
    %6010 = vmatprep.subr.mxu0 0.0
    %6011 = vmatpush1.xpose.msra.mxu0 0.0
    %6012 = vmatprep.subr.mxu0 0.0
    %6013 = vmatpush1.xpose.msra.mxu0 0.0
    %6014 = vmatprep.subr.mxu0 0.0
    %6015 = vmatpush1.xpose.msra.mxu0 0.0
    %6016 = vmatprep.subr.mxu0 0.0
    %6017 = vmatpush1.xpose.msra.mxu0 0.0
    %6018 = vmatprep.subr.mxu0 0.0
    %6019 = vmatpush1.xpose.msra.mxu0 0.0
    %6020 = vmatprep.subr.mxu0 0.0
    %6021 = vmatpush1.xpose.msra.mxu0 0.0
    %6022 = vmatprep.subr.mxu0 0.0
    %6023 = vmatpush1.xpose.msra.mxu0 0.0
    %6024 = vmatprep.subr.mxu0 0.0
    %6025 = vmatpush1.xpose.msra.mxu0 0.0
    %6026 = vmatprep.mubr.f32.mxu0 0.0
    %6027 = vmatmul.mubr.f32.gmra.mrb[0].mxu0 %v5957
    %v6028 = vpop.f32.mrb[0].mxu0
    %v6029 = vadd.f32 %v5955, %v6028
    %v6030 = vpop.f32.mrb[0].mxu0
    %6031 = vdwg.mxu0
    %v6032 = vmul.f32 %v5660, 0.35355338
    %v6033 = vmul.f32 %v5783, 0.35355338
    %v6034 = vmul.f32 %v5906, 0.35355338
    %v6035 = vmul.f32 %v6029, 0.35355338
    %v6036 = vsel %vm1789, %v6032, -inf
    %6037 = vmax.xlane.f32.xlu0 %v6036
    %v6038 = vpop.xlane.xlu0 %6037
    %v6039 = vsel %vm1789, %v6033, -inf
    %6040 = vmax.xlane.f32.xlu0 %v6039
    %v6041 = vpop.xlane.xlu0 %6040
    %v6042 = vsel %vm1789, %v6034, -inf
    %6043 = vmax.xlane.f32.xlu0 %v6042
    %v6044 = vpop.xlane.xlu0 %6043
    %v6045 = vsel %vm1789, %v6035, -inf
    %6046 = vmax.xlane.f32.xlu0 %v6045
    %v6047 = vpop.xlane.xlu0 %6046
    %v6048 = vsub.f32 %v6032, %v6038
    %v6049 = vsub.f32 %v6033, %v6041
    %v6050 = vsub.f32 %v6034, %v6044
    %v6051 = vsub.f32 %v6035, %v6047
    %v6052 = vmul.f32 %v6048, 1.442695
    %v6053 = vpow.pop %v6052
    %v6054 = vmul.f32 %v6049, 1.442695
    %v6055 = vpow.pop %v6054
    %v6056 = vmul.f32 %v6050, 1.442695
    %v6057 = vpow.pop %v6056
    %v6058 = vmul.f32 %v6051, 1.442695
    %v6059 = vpow.pop %v6058
    %v6060 = vsel %vm1789, %v6053, 0.0
    %6061 = vadd.xlane.f32.xlu0 %v6060
    %v6062 = vpop.xlane.xlu0 %6061
    %v6063 = vsel %vm1789, %v6055, 0.0
    %6064 = vadd.xlane.f32.xlu0 %v6063
    %v6065 = vpop.xlane.xlu0 %6064
    %v6066 = vsel %vm1789, %v6057, 0.0
    %6067 = vadd.xlane.f32.xlu0 %v6066
    %v6068 = vpop.xlane.xlu0 %6067
    %v6069 = vsel %vm1789, %v6059, 0.0
    %6070 = vadd.xlane.f32.xlu0 %v6069
    %v6071 = vpop.xlane.xlu0 %6070
    %v6072 = vrcp.pop %v6062
    %v6073 = vrcp.pop %v6065
    %v6074 = vrcp.pop %v6068
    %v6075 = vrcp.pop %v6071
    %v6076 = vmul.f32 %v6053, %v6072
    %v6077 = vmul.f32 %v6055, %v6073
    %v6078 = vmul.f32 %v6057, %v6074
    %v6079 = vmul.f32 %v6059, %v6075
    %v6080 = vlaneseq
    %v6081 = vshrl.u32 %v6080, 7
    %v6082 = vsub.s32 0, %v6081
    %v6083 = vrot.slane %v6076, %v6082
    %6085 = vbcast.lane.b32.xlu0 %v6083, 256
    %v6086 = vpop.permute.xlu0 %6085
    %v6087 = vlaneseq
    %v6088 = vshrl.u32 %v6087, 7
    %v6089 = vsub.s32 1, %v6088
    %v6090 = vrot.slane %v6076, %v6089
    %6092 = vbcast.lane.b32.xlu0 %v6090, 256
    %v6093 = vpop.permute.xlu0 %6092
    %v6094 = vlaneseq
    %v6095 = vshrl.u32 %v6094, 7
    %v6096 = vsub.s32 2, %v6095
    %v6097 = vrot.slane %v6076, %v6096
    %6099 = vbcast.lane.b32.xlu0 %v6097, 256
    %v6100 = vpop.permute.xlu0 %6099
    %v6101 = vlaneseq
    %v6102 = vshrl.u32 %v6101, 7
    %v6103 = vsub.s32 3, %v6102
    %v6104 = vrot.slane %v6076, %v6103
    %6106 = vbcast.lane.b32.xlu0 %v6104, 256
    %v6107 = vpop.permute.xlu0 %6106
    %v6108 = vlaneseq
    %v6109 = vshrl.u32 %v6108, 7
    %v6110 = vsub.s32 4, %v6109
    %v6111 = vrot.slane %v6076, %v6110
    %6113 = vbcast.lane.b32.xlu0 %v6111, 256
    %v6114 = vpop.permute.xlu0 %6113
    %v6115 = vlaneseq
    %v6116 = vshrl.u32 %v6115, 7
    %v6117 = vsub.s32 5, %v6116
    %v6118 = vrot.slane %v6076, %v6117
    %6120 = vbcast.lane.b32.xlu0 %v6118, 256
    %v6121 = vpop.permute.xlu0 %6120
    %v6122 = vlaneseq
    %v6123 = vshrl.u32 %v6122, 7
    %v6124 = vsub.s32 6, %v6123
    %v6125 = vrot.slane %v6076, %v6124
    %6127 = vbcast.lane.b32.xlu0 %v6125, 256
    %v6128 = vpop.permute.xlu0 %6127
    %v6129 = vlaneseq
    %v6130 = vshrl.u32 %v6129, 7
    %v6131 = vsub.s32 7, %v6130
    %v6132 = vrot.slane %v6076, %v6131
    %6134 = vbcast.lane.b32.xlu0 %v6132, 256
    %v6135 = vpop.permute.xlu0 %6134
    %v6136 = vlaneseq
    %v6137 = vshrl.u32 %v6136, 7
    %v6138 = vsub.s32 0, %v6137
    %v6139 = vrot.slane %v6077, %v6138
    %6141 = vbcast.lane.b32.xlu0 %v6139, 256
    %v6142 = vpop.permute.xlu0 %6141
    %v6143 = vlaneseq
    %v6144 = vshrl.u32 %v6143, 7
    %v6145 = vsub.s32 1, %v6144
    %v6146 = vrot.slane %v6077, %v6145
    %6148 = vbcast.lane.b32.xlu0 %v6146, 256
    %v6149 = vpop.permute.xlu0 %6148
    %v6150 = vlaneseq
    %v6151 = vshrl.u32 %v6150, 7
    %v6152 = vsub.s32 2, %v6151
    %v6153 = vrot.slane %v6077, %v6152
    %6155 = vbcast.lane.b32.xlu0 %v6153, 256
    %v6156 = vpop.permute.xlu0 %6155
    %v6157 = vlaneseq
    %v6158 = vshrl.u32 %v6157, 7
    %v6159 = vsub.s32 3, %v6158
    %v6160 = vrot.slane %v6077, %v6159
    %6162 = vbcast.lane.b32.xlu0 %v6160, 256
    %v6163 = vpop.permute.xlu0 %6162
    %v6164 = vlaneseq
    %v6165 = vshrl.u32 %v6164, 7
    %v6166 = vsub.s32 4, %v6165
    %v6167 = vrot.slane %v6077, %v6166
    %6169 = vbcast.lane.b32.xlu0 %v6167, 256
    %v6170 = vpop.permute.xlu0 %6169
    %v6171 = vlaneseq
    %v6172 = vshrl.u32 %v6171, 7
    %v6173 = vsub.s32 5, %v6172
    %v6174 = vrot.slane %v6077, %v6173
    %6176 = vbcast.lane.b32.xlu0 %v6174, 256
    %v6177 = vpop.permute.xlu0 %6176
    %v6178 = vlaneseq
    %v6179 = vshrl.u32 %v6178, 7
    %v6180 = vsub.s32 6, %v6179
    %v6181 = vrot.slane %v6077, %v6180
    %6183 = vbcast.lane.b32.xlu0 %v6181, 256
    %v6184 = vpop.permute.xlu0 %6183
    %v6185 = vlaneseq
    %v6186 = vshrl.u32 %v6185, 7
    %v6187 = vsub.s32 7, %v6186
    %v6188 = vrot.slane %v6077, %v6187
    %6190 = vbcast.lane.b32.xlu0 %v6188, 256
    %v6191 = vpop.permute.xlu0 %6190
    %v6192 = vlaneseq
    %v6193 = vshrl.u32 %v6192, 7
    %v6194 = vsub.s32 0, %v6193
    %v6195 = vrot.slane %v6078, %v6194
    %6197 = vbcast.lane.b32.xlu0 %v6195, 256
    %v6198 = vpop.permute.xlu0 %6197
    %v6199 = vlaneseq
    %v6200 = vshrl.u32 %v6199, 7
    %v6201 = vsub.s32 1, %v6200
    %v6202 = vrot.slane %v6078, %v6201
    %6204 = vbcast.lane.b32.xlu0 %v6202, 256
    %v6205 = vpop.permute.xlu0 %6204
    %v6206 = vlaneseq
    %v6207 = vshrl.u32 %v6206, 7
    %v6208 = vsub.s32 2, %v6207
    %v6209 = vrot.slane %v6078, %v6208
    %6211 = vbcast.lane.b32.xlu0 %v6209, 256
    %v6212 = vpop.permute.xlu0 %6211
    %v6213 = vlaneseq
    %v6214 = vshrl.u32 %v6213, 7
    %v6215 = vsub.s32 3, %v6214
    %v6216 = vrot.slane %v6078, %v6215
    %6218 = vbcast.lane.b32.xlu0 %v6216, 256
    %v6219 = vpop.permute.xlu0 %6218
    %v6220 = vlaneseq
    %v6221 = vshrl.u32 %v6220, 7
    %v6222 = vsub.s32 4, %v6221
    %v6223 = vrot.slane %v6078, %v6222
    %6225 = vbcast.lane.b32.xlu0 %v6223, 256
    %v6226 = vpop.permute.xlu0 %6225
    %v6227 = vlaneseq
    %v6228 = vshrl.u32 %v6227, 7
    %v6229 = vsub.s32 5, %v6228
    %v6230 = vrot.slane %v6078, %v6229
    %6232 = vbcast.lane.b32.xlu0 %v6230, 256
    %v6233 = vpop.permute.xlu0 %6232
    %v6234 = vlaneseq
    %v6235 = vshrl.u32 %v6234, 7
    %v6236 = vsub.s32 6, %v6235
    %v6237 = vrot.slane %v6078, %v6236
    %6239 = vbcast.lane.b32.xlu0 %v6237, 256
    %v6240 = vpop.permute.xlu0 %6239
    %v6241 = vlaneseq
    %v6242 = vshrl.u32 %v6241, 7
    %v6243 = vsub.s32 7, %v6242
    %v6244 = vrot.slane %v6078, %v6243
    %6246 = vbcast.lane.b32.xlu0 %v6244, 256
    %v6247 = vpop.permute.xlu0 %6246
    %v6248 = vlaneseq
    %v6249 = vshrl.u32 %v6248, 7
    %v6250 = vsub.s32 0, %v6249
    %v6251 = vrot.slane %v6079, %v6250
    %6253 = vbcast.lane.b32.xlu0 %v6251, 256
    %v6254 = vpop.permute.xlu0 %6253
    %v6255 = vlaneseq
    %v6256 = vshrl.u32 %v6255, 7
    %v6257 = vsub.s32 1, %v6256
    %v6258 = vrot.slane %v6079, %v6257
    %6260 = vbcast.lane.b32.xlu0 %v6258, 256
    %v6261 = vpop.permute.xlu0 %6260
    %v6262 = vlaneseq
    %v6263 = vshrl.u32 %v6262, 7
    %v6264 = vsub.s32 2, %v6263
    %v6265 = vrot.slane %v6079, %v6264
    %6267 = vbcast.lane.b32.xlu0 %v6265, 256
    %v6268 = vpop.permute.xlu0 %6267
    %v6269 = vlaneseq
    %v6270 = vshrl.u32 %v6269, 7
    %v6271 = vsub.s32 3, %v6270
    %v6272 = vrot.slane %v6079, %v6271
    %6274 = vbcast.lane.b32.xlu0 %v6272, 256
    %v6275 = vpop.permute.xlu0 %6274
    %v6276 = vlaneseq
    %v6277 = vshrl.u32 %v6276, 7
    %v6278 = vsub.s32 4, %v6277
    %v6279 = vrot.slane %v6079, %v6278
    %6281 = vbcast.lane.b32.xlu0 %v6279, 256
    %v6282 = vpop.permute.xlu0 %6281
    %v6283 = vlaneseq
    %v6284 = vshrl.u32 %v6283, 7
    %v6285 = vsub.s32 5, %v6284
    %v6286 = vrot.slane %v6079, %v6285
    %6288 = vbcast.lane.b32.xlu0 %v6286, 256
    %v6289 = vpop.permute.xlu0 %6288
    %v6290 = vlaneseq
    %v6291 = vshrl.u32 %v6290, 7
    %v6292 = vsub.s32 6, %v6291
    %v6293 = vrot.slane %v6079, %v6292
    %6295 = vbcast.lane.b32.xlu0 %v6293, 256
    %v6296 = vpop.permute.xlu0 %6295
    %v6297 = vlaneseq
    %v6298 = vshrl.u32 %v6297, 7
    %v6299 = vsub.s32 7, %v6298
    %v6300 = vrot.slane %v6079, %v6299
    %6302 = vbcast.lane.b32.xlu0 %v6300, 256
    %v6303 = vpop.permute.xlu0 %6302
    %v6304 = vmul.f32 %v6086, %v3998
    %v6305 = vmul.f32 %v6093, %v4003
    %v6306 = vmul.f32 %v6100, %v4008
    %v6307 = vmul.f32 %v6107, %v4013
    %v6308 = vmul.f32 %v6114, %v4018
    %v6309 = vmul.f32 %v6121, %v4023
    %v6310 = vmul.f32 %v6128, %v4028
    %v6311 = vmul.f32 %v6135, %v4033
    %v6312 = vmul.f32 %v6142, %v3998
    %v6313 = vmul.f32 %v6149, %v4003
    %v6314 = vmul.f32 %v6156, %v4008
    %v6315 = vmul.f32 %v6163, %v4013
    %v6316 = vmul.f32 %v6170, %v4018
    %v6317 = vmul.f32 %v6177, %v4023
    %v6318 = vmul.f32 %v6184, %v4028
    %v6319 = vmul.f32 %v6191, %v4033
    %v6320 = vmul.f32 %v6198, %v3998
    %v6321 = vmul.f32 %v6205, %v4003
    %v6322 = vmul.f32 %v6212, %v4008
    %v6323 = vmul.f32 %v6219, %v4013
    %v6324 = vmul.f32 %v6226, %v4018
    %v6325 = vmul.f32 %v6233, %v4023
    %v6326 = vmul.f32 %v6240, %v4028
    %v6327 = vmul.f32 %v6247, %v4033
    %v6328 = vmul.f32 %v6254, %v3998
    %v6329 = vmul.f32 %v6261, %v4003
    %v6330 = vmul.f32 %v6268, %v4008
    %v6331 = vmul.f32 %v6275, %v4013
    %v6332 = vmul.f32 %v6282, %v4018
    %v6333 = vmul.f32 %v6289, %v4023
    %v6334 = vmul.f32 %v6296, %v4028
    %v6335 = vmul.f32 %v6303, %v4033
    %v6336 = vsel %vm1789, %v6304, 0.0
    %v6337 = vrot.slane %v6336, 4
    %v6338 = vadd.f32 %v6336, %v6337
    %v6339 = vrot.slane %v6338, 2
    %v6340 = vadd.f32 %v6338, %v6339
    %v6341 = vrot.slane %v6340, 1
    %v6342 = vadd.f32 %v6340, %v6341
    %v6343 = vsel %vm1789, %v6305, 0.0
    %v6344 = vrot.slane %v6343, 4
    %v6345 = vadd.f32 %v6343, %v6344
    %v6346 = vrot.slane %v6345, 2
    %v6347 = vadd.f32 %v6345, %v6346
    %v6348 = vrot.slane %v6347, 1
    %v6349 = vadd.f32 %v6347, %v6348
    %v6350 = vsel %vm1789, %v6306, 0.0
    %v6351 = vrot.slane %v6350, 4
    %v6352 = vadd.f32 %v6350, %v6351
    %v6353 = vrot.slane %v6352, 2
    %v6354 = vadd.f32 %v6352, %v6353
    %v6355 = vrot.slane %v6354, 1
    %v6356 = vadd.f32 %v6354, %v6355
    %v6357 = vsel %vm1789, %v6307, 0.0
    %v6358 = vrot.slane %v6357, 4
    %v6359 = vadd.f32 %v6357, %v6358
    %v6360 = vrot.slane %v6359, 2
    %v6361 = vadd.f32 %v6359, %v6360
    %v6362 = vrot.slane %v6361, 1
    %v6363 = vadd.f32 %v6361, %v6362
    %v6364 = vsel %vm1789, %v6308, 0.0
    %v6365 = vrot.slane %v6364, 4
    %v6366 = vadd.f32 %v6364, %v6365
    %v6367 = vrot.slane %v6366, 2
    %v6368 = vadd.f32 %v6366, %v6367
    %v6369 = vrot.slane %v6368, 1
    %v6370 = vadd.f32 %v6368, %v6369
    %v6371 = vsel %vm1789, %v6309, 0.0
    %v6372 = vrot.slane %v6371, 4
    %v6373 = vadd.f32 %v6371, %v6372
    %v6374 = vrot.slane %v6373, 2
    %v6375 = vadd.f32 %v6373, %v6374
    %v6376 = vrot.slane %v6375, 1
    %v6377 = vadd.f32 %v6375, %v6376
    %v6378 = vsel %vm1789, %v6310, 0.0
    %v6379 = vrot.slane %v6378, 4
    %v6380 = vadd.f32 %v6378, %v6379
    %v6381 = vrot.slane %v6380, 2
    %v6382 = vadd.f32 %v6380, %v6381
    %v6383 = vrot.slane %v6382, 1
    %v6384 = vadd.f32 %v6382, %v6383
    %v6385 = vsel %vm1789, %v6311, 0.0
    %v6386 = vrot.slane %v6385, 4
    %v6387 = vadd.f32 %v6385, %v6386
    %v6388 = vrot.slane %v6387, 2
    %v6389 = vadd.f32 %v6387, %v6388
    %v6390 = vrot.slane %v6389, 1
    %v6391 = vadd.f32 %v6389, %v6390
    %v6392 = vsel %vm1789, %v6312, 0.0
    %v6393 = vrot.slane %v6392, 4
    %v6394 = vadd.f32 %v6392, %v6393
    %v6395 = vrot.slane %v6394, 2
    %v6396 = vadd.f32 %v6394, %v6395
    %v6397 = vrot.slane %v6396, 1
    %v6398 = vadd.f32 %v6396, %v6397
    %v6399 = vsel %vm1789, %v6313, 0.0
    %v6400 = vrot.slane %v6399, 4
    %v6401 = vadd.f32 %v6399, %v6400
    %v6402 = vrot.slane %v6401, 2
    %v6403 = vadd.f32 %v6401, %v6402
    %v6404 = vrot.slane %v6403, 1
    %v6405 = vadd.f32 %v6403, %v6404
    %v6406 = vsel %vm1789, %v6314, 0.0
    %v6407 = vrot.slane %v6406, 4
    %v6408 = vadd.f32 %v6406, %v6407
    %v6409 = vrot.slane %v6408, 2
    %v6410 = vadd.f32 %v6408, %v6409
    %v6411 = vrot.slane %v6410, 1
    %v6412 = vadd.f32 %v6410, %v6411
    %v6413 = vsel %vm1789, %v6315, 0.0
    %v6414 = vrot.slane %v6413, 4
    %v6415 = vadd.f32 %v6413, %v6414
    %v6416 = vrot.slane %v6415, 2
    %v6417 = vadd.f32 %v6415, %v6416
    %v6418 = vrot.slane %v6417, 1
    %v6419 = vadd.f32 %v6417, %v6418
    %v6420 = vsel %vm1789, %v6316, 0.0
    %v6421 = vrot.slane %v6420, 4
    %v6422 = vadd.f32 %v6420, %v6421
    %v6423 = vrot.slane %v6422, 2
    %v6424 = vadd.f32 %v6422, %v6423
    %v6425 = vrot.slane %v6424, 1
    %v6426 = vadd.f32 %v6424, %v6425
    %v6427 = vsel %vm1789, %v6317, 0.0
    %v6428 = vrot.slane %v6427, 4
    %v6429 = vadd.f32 %v6427, %v6428
    %v6430 = vrot.slane %v6429, 2
    %v6431 = vadd.f32 %v6429, %v6430
    %v6432 = vrot.slane %v6431, 1
    %v6433 = vadd.f32 %v6431, %v6432
    %v6434 = vsel %vm1789, %v6318, 0.0
    %v6435 = vrot.slane %v6434, 4
    %v6436 = vadd.f32 %v6434, %v6435
    %v6437 = vrot.slane %v6436, 2
    %v6438 = vadd.f32 %v6436, %v6437
    %v6439 = vrot.slane %v6438, 1
    %v6440 = vadd.f32 %v6438, %v6439
    %v6441 = vsel %vm1789, %v6319, 0.0
    %v6442 = vrot.slane %v6441, 4
    %v6443 = vadd.f32 %v6441, %v6442
    %v6444 = vrot.slane %v6443, 2
    %v6445 = vadd.f32 %v6443, %v6444
    %v6446 = vrot.slane %v6445, 1
    %v6447 = vadd.f32 %v6445, %v6446
    %v6448 = vsel %vm1789, %v6320, 0.0
    %v6449 = vrot.slane %v6448, 4
    %v6450 = vadd.f32 %v6448, %v6449
    %v6451 = vrot.slane %v6450, 2
    %v6452 = vadd.f32 %v6450, %v6451
    %v6453 = vrot.slane %v6452, 1
    %v6454 = vadd.f32 %v6452, %v6453
    %v6455 = vsel %vm1789, %v6321, 0.0
    %v6456 = vrot.slane %v6455, 4
    %v6457 = vadd.f32 %v6455, %v6456
    %v6458 = vrot.slane %v6457, 2
    %v6459 = vadd.f32 %v6457, %v6458
    %v6460 = vrot.slane %v6459, 1
    %v6461 = vadd.f32 %v6459, %v6460
    %v6462 = vsel %vm1789, %v6322, 0.0
    %v6463 = vrot.slane %v6462, 4
    %v6464 = vadd.f32 %v6462, %v6463
    %v6465 = vrot.slane %v6464, 2
    %v6466 = vadd.f32 %v6464, %v6465
    %v6467 = vrot.slane %v6466, 1
    %v6468 = vadd.f32 %v6466, %v6467
    %v6469 = vsel %vm1789, %v6323, 0.0
    %v6470 = vrot.slane %v6469, 4
    %v6471 = vadd.f32 %v6469, %v6470
    %v6472 = vrot.slane %v6471, 2
    %v6473 = vadd.f32 %v6471, %v6472
    %v6474 = vrot.slane %v6473, 1
    %v6475 = vadd.f32 %v6473, %v6474
    %v6476 = vsel %vm1789, %v6324, 0.0
    %v6477 = vrot.slane %v6476, 4
    %v6478 = vadd.f32 %v6476, %v6477
    %v6479 = vrot.slane %v6478, 2
    %v6480 = vadd.f32 %v6478, %v6479
    %v6481 = vrot.slane %v6480, 1
    %v6482 = vadd.f32 %v6480, %v6481
    %v6483 = vsel %vm1789, %v6325, 0.0
    %v6484 = vrot.slane %v6483, 4
    %v6485 = vadd.f32 %v6483, %v6484
    %v6486 = vrot.slane %v6485, 2
    %v6487 = vadd.f32 %v6485, %v6486
    %v6488 = vrot.slane %v6487, 1
    %v6489 = vadd.f32 %v6487, %v6488
    %v6490 = vsel %vm1789, %v6326, 0.0
    %v6491 = vrot.slane %v6490, 4
    %v6492 = vadd.f32 %v6490, %v6491
    %v6493 = vrot.slane %v6492, 2
    %v6494 = vadd.f32 %v6492, %v6493
    %v6495 = vrot.slane %v6494, 1
    %v6496 = vadd.f32 %v6494, %v6495
    %v6497 = vsel %vm1789, %v6327, 0.0
    %v6498 = vrot.slane %v6497, 4
    %v6499 = vadd.f32 %v6497, %v6498
    %v6500 = vrot.slane %v6499, 2
    %v6501 = vadd.f32 %v6499, %v6500
    %v6502 = vrot.slane %v6501, 1
    %v6503 = vadd.f32 %v6501, %v6502
    %v6504 = vsel %vm1789, %v6328, 0.0
    %v6505 = vrot.slane %v6504, 4
    %v6506 = vadd.f32 %v6504, %v6505
    %v6507 = vrot.slane %v6506, 2
    %v6508 = vadd.f32 %v6506, %v6507
    %v6509 = vrot.slane %v6508, 1
    %v6510 = vadd.f32 %v6508, %v6509
    %v6511 = vsel %vm1789, %v6329, 0.0
    %v6512 = vrot.slane %v6511, 4
    %v6513 = vadd.f32 %v6511, %v6512
    %v6514 = vrot.slane %v6513, 2
    %v6515 = vadd.f32 %v6513, %v6514
    %v6516 = vrot.slane %v6515, 1
    %v6517 = vadd.f32 %v6515, %v6516
    %v6518 = vsel %vm1789, %v6330, 0.0
    %v6519 = vrot.slane %v6518, 4
    %v6520 = vadd.f32 %v6518, %v6519
    %v6521 = vrot.slane %v6520, 2
    %v6522 = vadd.f32 %v6520, %v6521
    %v6523 = vrot.slane %v6522, 1
    %v6524 = vadd.f32 %v6522, %v6523
    %v6525 = vsel %vm1789, %v6331, 0.0
    %v6526 = vrot.slane %v6525, 4
    %v6527 = vadd.f32 %v6525, %v6526
    %v6528 = vrot.slane %v6527, 2
    %v6529 = vadd.f32 %v6527, %v6528
    %v6530 = vrot.slane %v6529, 1
    %v6531 = vadd.f32 %v6529, %v6530
    %v6532 = vsel %vm1789, %v6332, 0.0
    %v6533 = vrot.slane %v6532, 4
    %v6534 = vadd.f32 %v6532, %v6533
    %v6535 = vrot.slane %v6534, 2
    %v6536 = vadd.f32 %v6534, %v6535
    %v6537 = vrot.slane %v6536, 1
    %v6538 = vadd.f32 %v6536, %v6537
    %v6539 = vsel %vm1789, %v6333, 0.0
    %v6540 = vrot.slane %v6539, 4
    %v6541 = vadd.f32 %v6539, %v6540
    %v6542 = vrot.slane %v6541, 2
    %v6543 = vadd.f32 %v6541, %v6542
    %v6544 = vrot.slane %v6543, 1
    %v6545 = vadd.f32 %v6543, %v6544
    %v6546 = vsel %vm1789, %v6334, 0.0
    %v6547 = vrot.slane %v6546, 4
    %v6548 = vadd.f32 %v6546, %v6547
    %v6549 = vrot.slane %v6548, 2
    %v6550 = vadd.f32 %v6548, %v6549
    %v6551 = vrot.slane %v6550, 1
    %v6552 = vadd.f32 %v6550, %v6551
    %v6553 = vsel %vm1789, %v6335, 0.0
    %v6554 = vrot.slane %v6553, 4
    %v6555 = vadd.f32 %v6553, %v6554
    %v6556 = vrot.slane %v6555, 2
    %v6557 = vadd.f32 %v6555, %v6556
    %v6558 = vrot.slane %v6557, 1
    %v6559 = vadd.f32 %v6557, %v6558
    %v6568 = vsel %vm1926, %v6349, %v6342
    %v6569 = vsel %vm1928, %v6356, %v6568
    %v6570 = vsel %vm1930, %v6363, %v6569
    %v6571 = vsel %vm1932, %v6370, %v6570
    %v6572 = vsel %vm1934, %v6377, %v6571
    %v6573 = vsel %vm1936, %v6384, %v6572
    %v6574 = vsel %vm1938, %v6391, %v6573
    %v6577 = vsel %vm1789, %v6076, 0
    %6579 = vmatprep.subr.mxu0 0.0
    %6580 = vmatpush1.msra.mxu0 %v4839
    %6581 = vmatprep.subr.mxu0 0.0
    %6582 = vmatpush1.msra.mxu0 0.0
    %6583 = vmatprep.subr.mxu0 0.0
    %6584 = vmatpush1.msra.mxu0 0.0
    %6585 = vmatprep.subr.mxu0 0.0
    %6586 = vmatpush1.msra.mxu0 0.0
    %6587 = vmatprep.subr.mxu0 0.0
    %6588 = vmatpush1.msra.mxu0 0.0
    %6589 = vmatprep.subr.mxu0 0.0
    %6590 = vmatpush1.msra.mxu0 0.0
    %6591 = vmatprep.subr.mxu0 0.0
    %6592 = vmatpush1.msra.mxu0 0.0
    %6593 = vmatprep.subr.mxu0 0.0
    %6594 = vmatpush1.msra.mxu0 0.0
    %6595 = vmatprep.subr.mxu0 0.0
    %6596 = vmatpush1.msra.mxu0 0.0
    %6597 = vmatprep.subr.mxu0 0.0
    %6598 = vmatpush1.msra.mxu0 0.0
    %6599 = vmatprep.subr.mxu0 0.0
    %6600 = vmatpush1.msra.mxu0 0.0
    %6601 = vmatprep.subr.mxu0 0.0
    %6602 = vmatpush1.msra.mxu0 0.0
    %6603 = vmatprep.subr.mxu0 0.0
    %6604 = vmatpush1.msra.mxu0 0.0
    %6605 = vmatprep.subr.mxu0 0.0
    %6606 = vmatpush1.msra.mxu0 0.0
    %6607 = vmatprep.subr.mxu0 0.0
    %6608 = vmatpush1.msra.mxu0 0.0
    %6609 = vmatprep.subr.mxu0 0.0
    %6610 = vmatpush1.msra.mxu0 0.0
    %6611 = vmatprep.subr.mxu0 0.0
    %6612 = vmatpush1.msra.mxu0 0.0
    %6613 = vmatprep.subr.mxu0 0.0
    %6614 = vmatpush1.msra.mxu0 0.0
    %6615 = vmatprep.subr.mxu0 0.0
    %6616 = vmatpush1.msra.mxu0 0.0
    %6617 = vmatprep.subr.mxu0 0.0
    %6618 = vmatpush1.msra.mxu0 0.0
    %6619 = vmatprep.subr.mxu0 0.0
    %6620 = vmatpush1.msra.mxu0 0.0
    %6621 = vmatprep.subr.mxu0 0.0
    %6622 = vmatpush1.msra.mxu0 0.0
    %6623 = vmatprep.subr.mxu0 0.0
    %6624 = vmatpush1.msra.mxu0 0.0
    %6625 = vmatprep.subr.mxu0 0.0
    %6626 = vmatpush1.msra.mxu0 0.0
    %6627 = vmatprep.subr.mxu0 0.0
    %6628 = vmatpush1.msra.mxu0 0.0
    %6629 = vmatprep.subr.mxu0 0.0
    %6630 = vmatpush1.msra.mxu0 0.0
    %6631 = vmatprep.subr.mxu0 0.0
    %6632 = vmatpush1.msra.mxu0 0.0
    %6633 = vmatprep.subr.mxu0 0.0
    %6634 = vmatpush1.msra.mxu0 0.0
    %6635 = vmatprep.subr.mxu0 0.0
    %6636 = vmatpush1.msra.mxu0 0.0
    %6637 = vmatprep.subr.mxu0 0.0
    %6638 = vmatpush1.msra.mxu0 0.0
    %6639 = vmatprep.subr.mxu0 0.0
    %6640 = vmatpush1.msra.mxu0 0.0
    %6641 = vmatprep.subr.mxu0 0.0
    %6642 = vmatpush1.msra.mxu0 0.0
    %6643 = vmatprep.mubr.f32.mxu0 0.0
    %6644 = vmatmul.mubr.f32.gmra.mrb[0].mxu0 %v6577
    %v6645 = vpop.f32.mrb[0].mxu0
    %v6646 = vadd.f32 %v6574, %v6645
    %v6647 = vpop.f32.mrb[0].mxu0
    %6648 = vdwg.mxu0
    %v6657 = vsel %vm1926, %v6405, %v6398
    %v6658 = vsel %vm1928, %v6412, %v6657
    %v6659 = vsel %vm1930, %v6419, %v6658
    %v6660 = vsel %vm1932, %v6426, %v6659
    %v6661 = vsel %vm1934, %v6433, %v6660
    %v6662 = vsel %vm1936, %v6440, %v6661
    %v6663 = vsel %vm1938, %v6447, %v6662
    %v6666 = vsel %vm1789, %v6077, 0
    %6668 = vmatprep.subr.mxu0 0.0
    %6669 = vmatpush1.msra.mxu0 %v4909
    %6670 = vmatprep.subr.mxu0 0.0
    %6671 = vmatpush1.msra.mxu0 0.0
    %6672 = vmatprep.subr.mxu0 0.0
    %6673 = vmatpush1.msra.mxu0 0.0
    %6674 = vmatprep.subr.mxu0 0.0
    %6675 = vmatpush1.msra.mxu0 0.0
    %6676 = vmatprep.subr.mxu0 0.0
    %6677 = vmatpush1.msra.mxu0 0.0
    %6678 = vmatprep.subr.mxu0 0.0
    %6679 = vmatpush1.msra.mxu0 0.0
    %6680 = vmatprep.subr.mxu0 0.0
    %6681 = vmatpush1.msra.mxu0 0.0
    %6682 = vmatprep.subr.mxu0 0.0
    %6683 = vmatpush1.msra.mxu0 0.0
    %6684 = vmatprep.subr.mxu0 0.0
    %6685 = vmatpush1.msra.mxu0 0.0
    %6686 = vmatprep.subr.mxu0 0.0
    %6687 = vmatpush1.msra.mxu0 0.0
    %6688 = vmatprep.subr.mxu0 0.0
    %6689 = vmatpush1.msra.mxu0 0.0
    %6690 = vmatprep.subr.mxu0 0.0
    %6691 = vmatpush1.msra.mxu0 0.0
    %6692 = vmatprep.subr.mxu0 0.0
    %6693 = vmatpush1.msra.mxu0 0.0
    %6694 = vmatprep.subr.mxu0 0.0
    %6695 = vmatpush1.msra.mxu0 0.0
    %6696 = vmatprep.subr.mxu0 0.0
    %6697 = vmatpush1.msra.mxu0 0.0
    %6698 = vmatprep.subr.mxu0 0.0
    %6699 = vmatpush1.msra.mxu0 0.0
    %6700 = vmatprep.subr.mxu0 0.0
    %6701 = vmatpush1.msra.mxu0 0.0
    %6702 = vmatprep.subr.mxu0 0.0
    %6703 = vmatpush1.msra.mxu0 0.0
    %6704 = vmatprep.subr.mxu0 0.0
    %6705 = vmatpush1.msra.mxu0 0.0
    %6706 = vmatprep.subr.mxu0 0.0
    %6707 = vmatpush1.msra.mxu0 0.0
    %6708 = vmatprep.subr.mxu0 0.0
    %6709 = vmatpush1.msra.mxu0 0.0
    %6710 = vmatprep.subr.mxu0 0.0
    %6711 = vmatpush1.msra.mxu0 0.0
    %6712 = vmatprep.subr.mxu0 0.0
    %6713 = vmatpush1.msra.mxu0 0.0
    %6714 = vmatprep.subr.mxu0 0.0
    %6715 = vmatpush1.msra.mxu0 0.0
    %6716 = vmatprep.subr.mxu0 0.0
    %6717 = vmatpush1.msra.mxu0 0.0
    %6718 = vmatprep.subr.mxu0 0.0
    %6719 = vmatpush1.msra.mxu0 0.0
    %6720 = vmatprep.subr.mxu0 0.0
    %6721 = vmatpush1.msra.mxu0 0.0
    %6722 = vmatprep.subr.mxu0 0.0
    %6723 = vmatpush1.msra.mxu0 0.0
    %6724 = vmatprep.subr.mxu0 0.0
    %6725 = vmatpush1.msra.mxu0 0.0
    %6726 = vmatprep.subr.mxu0 0.0
    %6727 = vmatpush1.msra.mxu0 0.0
    %6728 = vmatprep.subr.mxu0 0.0
    %6729 = vmatpush1.msra.mxu0 0.0
    %6730 = vmatprep.subr.mxu0 0.0
    %6731 = vmatpush1.msra.mxu0 0.0
    %6732 = vmatprep.mubr.f32.mxu0 0.0
    %6733 = vmatmul.mubr.f32.gmra.mrb[0].mxu0 %v6666
    %v6734 = vpop.f32.mrb[0].mxu0
    %v6735 = vadd.f32 %v6663, %v6734
    %v6736 = vpop.f32.mrb[0].mxu0
    %6737 = vdwg.mxu0
    %v6746 = vsel %vm1926, %v6461, %v6454
    %v6747 = vsel %vm1928, %v6468, %v6746
    %v6748 = vsel %vm1930, %v6475, %v6747
    %v6749 = vsel %vm1932, %v6482, %v6748
    %v6750 = vsel %vm1934, %v6489, %v6749
    %v6751 = vsel %vm1936, %v6496, %v6750
    %v6752 = vsel %vm1938, %v6503, %v6751
    %v6755 = vsel %vm1789, %v6078, 0
    %6757 = vmatprep.subr.mxu0 0.0
    %6758 = vmatpush1.msra.mxu0 %v4979
    %6759 = vmatprep.subr.mxu0 0.0
    %6760 = vmatpush1.msra.mxu0 0.0
    %6761 = vmatprep.subr.mxu0 0.0
    %6762 = vmatpush1.msra.mxu0 0.0
    %6763 = vmatprep.subr.mxu0 0.0
    %6764 = vmatpush1.msra.mxu0 0.0
    %6765 = vmatprep.subr.mxu0 0.0
    %6766 = vmatpush1.msra.mxu0 0.0
    %6767 = vmatprep.subr.mxu0 0.0
    %6768 = vmatpush1.msra.mxu0 0.0
    %6769 = vmatprep.subr.mxu0 0.0
    %6770 = vmatpush1.msra.mxu0 0.0
    %6771 = vmatprep.subr.mxu0 0.0
    %6772 = vmatpush1.msra.mxu0 0.0
    %6773 = vmatprep.subr.mxu0 0.0
    %6774 = vmatpush1.msra.mxu0 0.0
    %6775 = vmatprep.subr.mxu0 0.0
    %6776 = vmatpush1.msra.mxu0 0.0
    %6777 = vmatprep.subr.mxu0 0.0
    %6778 = vmatpush1.msra.mxu0 0.0
    %6779 = vmatprep.subr.mxu0 0.0
    %6780 = vmatpush1.msra.mxu0 0.0
    %6781 = vmatprep.subr.mxu0 0.0
    %6782 = vmatpush1.msra.mxu0 0.0
    %6783 = vmatprep.subr.mxu0 0.0
    %6784 = vmatpush1.msra.mxu0 0.0
    %6785 = vmatprep.subr.mxu0 0.0
    %6786 = vmatpush1.msra.mxu0 0.0
    %6787 = vmatprep.subr.mxu0 0.0
    %6788 = vmatpush1.msra.mxu0 0.0
    %6789 = vmatprep.subr.mxu0 0.0
    %6790 = vmatpush1.msra.mxu0 0.0
    %6791 = vmatprep.subr.mxu0 0.0
    %6792 = vmatpush1.msra.mxu0 0.0
    %6793 = vmatprep.subr.mxu0 0.0
    %6794 = vmatpush1.msra.mxu0 0.0
    %6795 = vmatprep.subr.mxu0 0.0
    %6796 = vmatpush1.msra.mxu0 0.0
    %6797 = vmatprep.subr.mxu0 0.0
    %6798 = vmatpush1.msra.mxu0 0.0
    %6799 = vmatprep.subr.mxu0 0.0
    %6800 = vmatpush1.msra.mxu0 0.0
    %6801 = vmatprep.subr.mxu0 0.0
    %6802 = vmatpush1.msra.mxu0 0.0
    %6803 = vmatprep.subr.mxu0 0.0
    %6804 = vmatpush1.msra.mxu0 0.0
    %6805 = vmatprep.subr.mxu0 0.0
    %6806 = vmatpush1.msra.mxu0 0.0
    %6807 = vmatprep.subr.mxu0 0.0
    %6808 = vmatpush1.msra.mxu0 0.0
    %6809 = vmatprep.subr.mxu0 0.0
    %6810 = vmatpush1.msra.mxu0 0.0
    %6811 = vmatprep.subr.mxu0 0.0
    %6812 = vmatpush1.msra.mxu0 0.0
    %6813 = vmatprep.subr.mxu0 0.0
    %6814 = vmatpush1.msra.mxu0 0.0
    %6815 = vmatprep.subr.mxu0 0.0
    %6816 = vmatpush1.msra.mxu0 0.0
    %6817 = vmatprep.subr.mxu0 0.0
    %6818 = vmatpush1.msra.mxu0 0.0
    %6819 = vmatprep.subr.mxu0 0.0
    %6820 = vmatpush1.msra.mxu0 0.0
    %6821 = vmatprep.mubr.f32.mxu0 0.0
    %6822 = vmatmul.mubr.f32.gmra.mrb[0].mxu0 %v6755
    %v6823 = vpop.f32.mrb[0].mxu0
    %v6824 = vadd.f32 %v6752, %v6823
    %v6825 = vpop.f32.mrb[0].mxu0
    %6826 = vdwg.mxu0
    %v6835 = vsel %vm1926, %v6517, %v6510
    %v6836 = vsel %vm1928, %v6524, %v6835
    %v6837 = vsel %vm1930, %v6531, %v6836
    %v6838 = vsel %vm1932, %v6538, %v6837
    %v6839 = vsel %vm1934, %v6545, %v6838
    %v6840 = vsel %vm1936, %v6552, %v6839
    %v6841 = vsel %vm1938, %v6559, %v6840
    %v6844 = vsel %vm1789, %v6079, 0
    %6846 = vmatprep.subr.mxu0 0.0
    %6847 = vmatpush1.msra.mxu0 %v5049
    %6848 = vmatprep.subr.mxu0 0.0
    %6849 = vmatpush1.msra.mxu0 0.0
    %6850 = vmatprep.subr.mxu0 0.0
    %6851 = vmatpush1.msra.mxu0 0.0
    %6852 = vmatprep.subr.mxu0 0.0
    %6853 = vmatpush1.msra.mxu0 0.0
    %6854 = vmatprep.subr.mxu0 0.0
    %6855 = vmatpush1.msra.mxu0 0.0
    %6856 = vmatprep.subr.mxu0 0.0
    %6857 = vmatpush1.msra.mxu0 0.0
    %6858 = vmatprep.subr.mxu0 0.0
    %6859 = vmatpush1.msra.mxu0 0.0
    %6860 = vmatprep.subr.mxu0 0.0
    %6861 = vmatpush1.msra.mxu0 0.0
    %6862 = vmatprep.subr.mxu0 0.0
    %6863 = vmatpush1.msra.mxu0 0.0
    %6864 = vmatprep.subr.mxu0 0.0
    %6865 = vmatpush1.msra.mxu0 0.0
    %6866 = vmatprep.subr.mxu0 0.0
    %6867 = vmatpush1.msra.mxu0 0.0
    %6868 = vmatprep.subr.mxu0 0.0
    %6869 = vmatpush1.msra.mxu0 0.0
    %6870 = vmatprep.subr.mxu0 0.0
    %6871 = vmatpush1.msra.mxu0 0.0
    %6872 = vmatprep.subr.mxu0 0.0
    %6873 = vmatpush1.msra.mxu0 0.0
    %6874 = vmatprep.subr.mxu0 0.0
    %6875 = vmatpush1.msra.mxu0 0.0
    %6876 = vmatprep.subr.mxu0 0.0
    %6877 = vmatpush1.msra.mxu0 0.0
    %6878 = vmatprep.subr.mxu0 0.0
    %6879 = vmatpush1.msra.mxu0 0.0
    %6880 = vmatprep.subr.mxu0 0.0
    %6881 = vmatpush1.msra.mxu0 0.0
    %6882 = vmatprep.subr.mxu0 0.0
    %6883 = vmatpush1.msra.mxu0 0.0
    %6884 = vmatprep.subr.mxu0 0.0
    %6885 = vmatpush1.msra.mxu0 0.0
    %6886 = vmatprep.subr.mxu0 0.0
    %6887 = vmatpush1.msra.mxu0 0.0
    %6888 = vmatprep.subr.mxu0 0.0
    %6889 = vmatpush1.msra.mxu0 0.0
    %6890 = vmatprep.subr.mxu0 0.0
    %6891 = vmatpush1.msra.mxu0 0.0
    %6892 = vmatprep.subr.mxu0 0.0
    %6893 = vmatpush1.msra.mxu0 0.0
    %6894 = vmatprep.subr.mxu0 0.0
    %6895 = vmatpush1.msra.mxu0 0.0
    %6896 = vmatprep.subr.mxu0 0.0
    %6897 = vmatpush1.msra.mxu0 0.0
    %6898 = vmatprep.subr.mxu0 0.0
    %6899 = vmatpush1.msra.mxu0 0.0
    %6900 = vmatprep.subr.mxu0 0.0
    %6901 = vmatpush1.msra.mxu0 0.0
    %6902 = vmatprep.subr.mxu0 0.0
    %6903 = vmatpush1.msra.mxu0 0.0
    %6904 = vmatprep.subr.mxu0 0.0
    %6905 = vmatpush1.msra.mxu0 0.0
    %6906 = vmatprep.subr.mxu0 0.0
    %6907 = vmatpush1.msra.mxu0 0.0
    %6908 = vmatprep.subr.mxu0 0.0
    %6909 = vmatpush1.msra.mxu0 0.0
    %6910 = vmatprep.mubr.f32.mxu0 0.0
    %6911 = vmatmul.mubr.f32.gmra.mrb[0].mxu0 %v6844
    %v6912 = vpop.f32.mrb[0].mxu0
    %v6913 = vadd.f32 %v6841, %v6912
    %v6914 = vpop.f32.mrb[0].mxu0
    %6915 = vdwg.mxu0
    %v6917 = vsel %vm1789, %v6646, 0
    %v6920 = vsel %vm1789, %v4108, 0
    %v6923 = vsel %vm1789, %v4109, 0
    %v6926 = vsel %vm1789, %v4110, 0
    %v6929 = vsel %vm1789, %v4111, 0
    %6931 = vmatprep.subr.mxu0 0.0
    %6932 = vmatpush1.xpose.msra.mxu0 %v6920
    %6933 = vmatprep.subr.mxu0 0.0
    %6934 = vmatpush1.xpose.msra.mxu0 %v6923
    %6935 = vmatprep.subr.mxu0 0.0
    %6936 = vmatpush1.xpose.msra.mxu0 %v6926
    %6937 = vmatprep.subr.mxu0 0.0
    %6938 = vmatpush1.xpose.msra.mxu0 %v6929
    %6939 = vmatprep.subr.mxu0 0.0
    %6940 = vmatpush1.xpose.msra.mxu0 0.0
    %6941 = vmatprep.subr.mxu0 0.0
    %6942 = vmatpush1.xpose.msra.mxu0 0.0
    %6943 = vmatprep.subr.mxu0 0.0
    %6944 = vmatpush1.xpose.msra.mxu0 0.0
    %6945 = vmatprep.subr.mxu0 0.0
    %6946 = vmatpush1.xpose.msra.mxu0 0.0
    %6947 = vmatprep.subr.mxu0 0.0
    %6948 = vmatpush1.xpose.msra.mxu0 0.0
    %6949 = vmatprep.subr.mxu0 0.0
    %6950 = vmatpush1.xpose.msra.mxu0 0.0
    %6951 = vmatprep.subr.mxu0 0.0
    %6952 = vmatpush1.xpose.msra.mxu0 0.0
    %6953 = vmatprep.subr.mxu0 0.0
    %6954 = vmatpush1.xpose.msra.mxu0 0.0
    %6955 = vmatprep.subr.mxu0 0.0
    %6956 = vmatpush1.xpose.msra.mxu0 0.0
    %6957 = vmatprep.subr.mxu0 0.0
    %6958 = vmatpush1.xpose.msra.mxu0 0.0
    %6959 = vmatprep.subr.mxu0 0.0
    %6960 = vmatpush1.xpose.msra.mxu0 0.0
    %6961 = vmatprep.subr.mxu0 0.0
    %6962 = vmatpush1.xpose.msra.mxu0 0.0
    %6963 = vmatprep.subr.mxu0 0.0
    %6964 = vmatpush1.xpose.msra.mxu0 0.0
    %6965 = vmatprep.subr.mxu0 0.0
    %6966 = vmatpush1.xpose.msra.mxu0 0.0
    %6967 = vmatprep.subr.mxu0 0.0
    %6968 = vmatpush1.xpose.msra.mxu0 0.0
    %6969 = vmatprep.subr.mxu0 0.0
    %6970 = vmatpush1.xpose.msra.mxu0 0.0
    %6971 = vmatprep.subr.mxu0 0.0
    %6972 = vmatpush1.xpose.msra.mxu0 0.0
    %6973 = vmatprep.subr.mxu0 0.0
    %6974 = vmatpush1.xpose.msra.mxu0 0.0
    %6975 = vmatprep.subr.mxu0 0.0
    %6976 = vmatpush1.xpose.msra.mxu0 0.0
    %6977 = vmatprep.subr.mxu0 0.0
    %6978 = vmatpush1.xpose.msra.mxu0 0.0
    %6979 = vmatprep.subr.mxu0 0.0
    %6980 = vmatpush1.xpose.msra.mxu0 0.0
    %6981 = vmatprep.subr.mxu0 0.0
    %6982 = vmatpush1.xpose.msra.mxu0 0.0
    %6983 = vmatprep.subr.mxu0 0.0
    %6984 = vmatpush1.xpose.msra.mxu0 0.0
    %6985 = vmatprep.subr.mxu0 0.0
    %6986 = vmatpush1.xpose.msra.mxu0 0.0
    %6987 = vmatprep.subr.mxu0 0.0
    %6988 = vmatpush1.xpose.msra.mxu0 0.0
    %6989 = vmatprep.subr.mxu0 0.0
    %6990 = vmatpush1.xpose.msra.mxu0 0.0
    %6991 = vmatprep.subr.mxu0 0.0
    %6992 = vmatpush1.xpose.msra.mxu0 0.0
    %6993 = vmatprep.subr.mxu0 0.0
    %6994 = vmatpush1.xpose.msra.mxu0 0.0
    %6995 = vmatprep.mubr.f32.mxu0 0.0
    %6996 = vmatmul.mubr.f32.gmra.mrb[0].mxu0 %v6917
    %v6997 = vpop.f32.mrb[0].mxu0
    %v6998 = vadd.f32 0.0, %v6997
    %v6999 = vpop.f32.mrb[0].mxu0
    %7000 = vdwg.mxu0
    %v7002 = vsel %vm1789, %v6735, 0
    %v7005 = vsel %vm1789, %v4112, 0
    %v7008 = vsel %vm1789, %v4113, 0
    %v7011 = vsel %vm1789, %v4114, 0
    %v7014 = vsel %vm1789, %v4115, 0
    %7016 = vmatprep.subr.mxu0 0.0
    %7017 = vmatpush1.xpose.msra.mxu0 %v7005
    %7018 = vmatprep.subr.mxu0 0.0
    %7019 = vmatpush1.xpose.msra.mxu0 %v7008
    %7020 = vmatprep.subr.mxu0 0.0
    %7021 = vmatpush1.xpose.msra.mxu0 %v7011
    %7022 = vmatprep.subr.mxu0 0.0
    %7023 = vmatpush1.xpose.msra.mxu0 %v7014
    %7024 = vmatprep.subr.mxu0 0.0
    %7025 = vmatpush1.xpose.msra.mxu0 0.0
    %7026 = vmatprep.subr.mxu0 0.0
    %7027 = vmatpush1.xpose.msra.mxu0 0.0
    %7028 = vmatprep.subr.mxu0 0.0
    %7029 = vmatpush1.xpose.msra.mxu0 0.0
    %7030 = vmatprep.subr.mxu0 0.0
    %7031 = vmatpush1.xpose.msra.mxu0 0.0
    %7032 = vmatprep.subr.mxu0 0.0
    %7033 = vmatpush1.xpose.msra.mxu0 0.0
    %7034 = vmatprep.subr.mxu0 0.0
    %7035 = vmatpush1.xpose.msra.mxu0 0.0
    %7036 = vmatprep.subr.mxu0 0.0
    %7037 = vmatpush1.xpose.msra.mxu0 0.0
    %7038 = vmatprep.subr.mxu0 0.0
    %7039 = vmatpush1.xpose.msra.mxu0 0.0
    %7040 = vmatprep.subr.mxu0 0.0
    %7041 = vmatpush1.xpose.msra.mxu0 0.0
    %7042 = vmatprep.subr.mxu0 0.0
    %7043 = vmatpush1.xpose.msra.mxu0 0.0
    %7044 = vmatprep.subr.mxu0 0.0
    %7045 = vmatpush1.xpose.msra.mxu0 0.0
    %7046 = vmatprep.subr.mxu0 0.0
    %7047 = vmatpush1.xpose.msra.mxu0 0.0
    %7048 = vmatprep.subr.mxu0 0.0
    %7049 = vmatpush1.xpose.msra.mxu0 0.0
    %7050 = vmatprep.subr.mxu0 0.0
    %7051 = vmatpush1.xpose.msra.mxu0 0.0
    %7052 = vmatprep.subr.mxu0 0.0
    %7053 = vmatpush1.xpose.msra.mxu0 0.0
    %7054 = vmatprep.subr.mxu0 0.0
    %7055 = vmatpush1.xpose.msra.mxu0 0.0
    %7056 = vmatprep.subr.mxu0 0.0
    %7057 = vmatpush1.xpose.msra.mxu0 0.0
    %7058 = vmatprep.subr.mxu0 0.0
    %7059 = vmatpush1.xpose.msra.mxu0 0.0
    %7060 = vmatprep.subr.mxu0 0.0
    %7061 = vmatpush1.xpose.msra.mxu0 0.0
    %7062 = vmatprep.subr.mxu0 0.0
    %7063 = vmatpush1.xpose.msra.mxu0 0.0
    %7064 = vmatprep.subr.mxu0 0.0
    %7065 = vmatpush1.xpose.msra.mxu0 0.0
    %7066 = vmatprep.subr.mxu0 0.0
    %7067 = vmatpush1.xpose.msra.mxu0 0.0
    %7068 = vmatprep.subr.mxu0 0.0
    %7069 = vmatpush1.xpose.msra.mxu0 0.0
    %7070 = vmatprep.subr.mxu0 0.0
    %7071 = vmatpush1.xpose.msra.mxu0 0.0
    %7072 = vmatprep.subr.mxu0 0.0
    %7073 = vmatpush1.xpose.msra.mxu0 0.0
    %7074 = vmatprep.subr.mxu0 0.0
    %7075 = vmatpush1.xpose.msra.mxu0 0.0
    %7076 = vmatprep.subr.mxu0 0.0
    %7077 = vmatpush1.xpose.msra.mxu0 0.0
    %7078 = vmatprep.subr.mxu0 0.0
    %7079 = vmatpush1.xpose.msra.mxu0 0.0
    %7080 = vmatprep.mubr.f32.mxu0 0.0
    %7081 = vmatmul.mubr.f32.gmra.mrb[0].mxu0 %v7002
    %v7082 = vpop.f32.mrb[0].mxu0
    %v7083 = vadd.f32 0.0, %v7082
    %v7084 = vpop.f32.mrb[0].mxu0
    %7085 = vdwg.mxu0
    %v7087 = vsel %vm1789, %v6824, 0
    %v7090 = vsel %vm1789, %v4116, 0
    %v7093 = vsel %vm1789, %v4117, 0
    %v7096 = vsel %vm1789, %v4118, 0
    %v7099 = vsel %vm1789, %v4119, 0
    %7101 = vmatprep.subr.mxu0 0.0
    %7102 = vmatpush1.xpose.msra.mxu0 %v7090
    %7103 = vmatprep.subr.mxu0 0.0
    %7104 = vmatpush1.xpose.msra.mxu0 %v7093
    %7105 = vmatprep.subr.mxu0 0.0
    %7106 = vmatpush1.xpose.msra.mxu0 %v7096
    %7107 = vmatprep.subr.mxu0 0.0
    %7108 = vmatpush1.xpose.msra.mxu0 %v7099
    %7109 = vmatprep.subr.mxu0 0.0
    %7110 = vmatpush1.xpose.msra.mxu0 0.0
    %7111 = vmatprep.subr.mxu0 0.0
    %7112 = vmatpush1.xpose.msra.mxu0 0.0
    %7113 = vmatprep.subr.mxu0 0.0
    %7114 = vmatpush1.xpose.msra.mxu0 0.0
    %7115 = vmatprep.subr.mxu0 0.0
    %7116 = vmatpush1.xpose.msra.mxu0 0.0
    %7117 = vmatprep.subr.mxu0 0.0
    %7118 = vmatpush1.xpose.msra.mxu0 0.0
    %7119 = vmatprep.subr.mxu0 0.0
    %7120 = vmatpush1.xpose.msra.mxu0 0.0
    %7121 = vmatprep.subr.mxu0 0.0
    %7122 = vmatpush1.xpose.msra.mxu0 0.0
    %7123 = vmatprep.subr.mxu0 0.0
    %7124 = vmatpush1.xpose.msra.mxu0 0.0
    %7125 = vmatprep.subr.mxu0 0.0
    %7126 = vmatpush1.xpose.msra.mxu0 0.0
    %7127 = vmatprep.subr.mxu0 0.0
    %7128 = vmatpush1.xpose.msra.mxu0 0.0
    %7129 = vmatprep.subr.mxu0 0.0
    %7130 = vmatpush1.xpose.msra.mxu0 0.0
    %7131 = vmatprep.subr.mxu0 0.0
    %7132 = vmatpush1.xpose.msra.mxu0 0.0
    %7133 = vmatprep.subr.mxu0 0.0
    %7134 = vmatpush1.xpose.msra.mxu0 0.0
    %7135 = vmatprep.subr.mxu0 0.0
    %7136 = vmatpush1.xpose.msra.mxu0 0.0
    %7137 = vmatprep.subr.mxu0 0.0
    %7138 = vmatpush1.xpose.msra.mxu0 0.0
    %7139 = vmatprep.subr.mxu0 0.0
    %7140 = vmatpush1.xpose.msra.mxu0 0.0
    %7141 = vmatprep.subr.mxu0 0.0
    %7142 = vmatpush1.xpose.msra.mxu0 0.0
    %7143 = vmatprep.subr.mxu0 0.0
    %7144 = vmatpush1.xpose.msra.mxu0 0.0
    %7145 = vmatprep.subr.mxu0 0.0
    %7146 = vmatpush1.xpose.msra.mxu0 0.0
    %7147 = vmatprep.subr.mxu0 0.0
    %7148 = vmatpush1.xpose.msra.mxu0 0.0
    %7149 = vmatprep.subr.mxu0 0.0
    %7150 = vmatpush1.xpose.msra.mxu0 0.0
    %7151 = vmatprep.subr.mxu0 0.0
    %7152 = vmatpush1.xpose.msra.mxu0 0.0
    %7153 = vmatprep.subr.mxu0 0.0
    %7154 = vmatpush1.xpose.msra.mxu0 0.0
    %7155 = vmatprep.subr.mxu0 0.0
    %7156 = vmatpush1.xpose.msra.mxu0 0.0
    %7157 = vmatprep.subr.mxu0 0.0
    %7158 = vmatpush1.xpose.msra.mxu0 0.0
    %7159 = vmatprep.subr.mxu0 0.0
    %7160 = vmatpush1.xpose.msra.mxu0 0.0
    %7161 = vmatprep.subr.mxu0 0.0
    %7162 = vmatpush1.xpose.msra.mxu0 0.0
    %7163 = vmatprep.subr.mxu0 0.0
    %7164 = vmatpush1.xpose.msra.mxu0 0.0
    %7165 = vmatprep.mubr.f32.mxu0 0.0
    %7166 = vmatmul.mubr.f32.gmra.mrb[0].mxu0 %v7087
    %v7167 = vpop.f32.mrb[0].mxu0
    %v7168 = vadd.f32 0.0, %v7167
    %v7169 = vpop.f32.mrb[0].mxu0
    %7170 = vdwg.mxu0
    %v7172 = vsel %vm1789, %v6913, 0
    %v7175 = vsel %vm1789, %v4120, 0
    %v7178 = vsel %vm1789, %v4121, 0
    %v7181 = vsel %vm1789, %v4122, 0
    %v7184 = vsel %vm1789, %v4123, 0
    %7186 = vmatprep.subr.mxu0 0.0
    %7187 = vmatpush1.xpose.msra.mxu0 %v7175
    %7188 = vmatprep.subr.mxu0 0.0
    %7189 = vmatpush1.xpose.msra.mxu0 %v7178
    %7190 = vmatprep.subr.mxu0 0.0
    %7191 = vmatpush1.xpose.msra.mxu0 %v7181
    %7192 = vmatprep.subr.mxu0 0.0
    %7193 = vmatpush1.xpose.msra.mxu0 %v7184
    %7194 = vmatprep.subr.mxu0 0.0
    %7195 = vmatpush1.xpose.msra.mxu0 0.0
    %7196 = vmatprep.subr.mxu0 0.0
    %7197 = vmatpush1.xpose.msra.mxu0 0.0
    %7198 = vmatprep.subr.mxu0 0.0
    %7199 = vmatpush1.xpose.msra.mxu0 0.0
    %7200 = vmatprep.subr.mxu0 0.0
    %7201 = vmatpush1.xpose.msra.mxu0 0.0
    %7202 = vmatprep.subr.mxu0 0.0
    %7203 = vmatpush1.xpose.msra.mxu0 0.0
    %7204 = vmatprep.subr.mxu0 0.0
    %7205 = vmatpush1.xpose.msra.mxu0 0.0
    %7206 = vmatprep.subr.mxu0 0.0
    %7207 = vmatpush1.xpose.msra.mxu0 0.0
    %7208 = vmatprep.subr.mxu0 0.0
    %7209 = vmatpush1.xpose.msra.mxu0 0.0
    %7210 = vmatprep.subr.mxu0 0.0
    %7211 = vmatpush1.xpose.msra.mxu0 0.0
    %7212 = vmatprep.subr.mxu0 0.0
    %7213 = vmatpush1.xpose.msra.mxu0 0.0
    %7214 = vmatprep.subr.mxu0 0.0
    %7215 = vmatpush1.xpose.msra.mxu0 0.0
    %7216 = vmatprep.subr.mxu0 0.0
    %7217 = vmatpush1.xpose.msra.mxu0 0.0
    %7218 = vmatprep.subr.mxu0 0.0
    %7219 = vmatpush1.xpose.msra.mxu0 0.0
    %7220 = vmatprep.subr.mxu0 0.0
    %7221 = vmatpush1.xpose.msra.mxu0 0.0
    %7222 = vmatprep.subr.mxu0 0.0
    %7223 = vmatpush1.xpose.msra.mxu0 0.0
    %7224 = vmatprep.subr.mxu0 0.0
    %7225 = vmatpush1.xpose.msra.mxu0 0.0
    %7226 = vmatprep.subr.mxu0 0.0
    %7227 = vmatpush1.xpose.msra.mxu0 0.0
    %7228 = vmatprep.subr.mxu0 0.0
    %7229 = vmatpush1.xpose.msra.mxu0 0.0
    %7230 = vmatprep.subr.mxu0 0.0
    %7231 = vmatpush1.xpose.msra.mxu0 0.0
    %7232 = vmatprep.subr.mxu0 0.0
    %7233 = vmatpush1.xpose.msra.mxu0 0.0
    %7234 = vmatprep.subr.mxu0 0.0
    %7235 = vmatpush1.xpose.msra.mxu0 0.0
    %7236 = vmatprep.subr.mxu0 0.0
    %7237 = vmatpush1.xpose.msra.mxu0 0.0
    %7238 = vmatprep.subr.mxu0 0.0
    %7239 = vmatpush1.xpose.msra.mxu0 0.0
    %7240 = vmatprep.subr.mxu0 0.0
    %7241 = vmatpush1.xpose.msra.mxu0 0.0
    %7242 = vmatprep.subr.mxu0 0.0
    %7243 = vmatpush1.xpose.msra.mxu0 0.0
    %7244 = vmatprep.subr.mxu0 0.0
    %7245 = vmatpush1.xpose.msra.mxu0 0.0
    %7246 = vmatprep.subr.mxu0 0.0
    %7247 = vmatpush1.xpose.msra.mxu0 0.0
    %7248 = vmatprep.subr.mxu0 0.0
    %7249 = vmatpush1.xpose.msra.mxu0 0.0
    %7250 = vmatprep.mubr.f32.mxu0 0.0
    %7251 = vmatmul.mubr.f32.gmra.mrb[0].mxu0 %v7172
    %v7252 = vpop.f32.mrb[0].mxu0
    %v7253 = vadd.f32 0.0, %v7252
    %v7254 = vpop.f32.mrb[0].mxu0
    %7255 = vdwg.mxu0
    %v7256 = vsel %vm381, %v6998, 0.0
    %v7257 = vsel %vm381, %v7083, 0.0
    %v7258 = vadd.f32 %v7256, %v7257
    %v7259 = vsel %vm381, %v7168, 0.0
    %v7260 = vadd.f32 %v7258, %v7259
    %v7261 = vsel %vm381, %v7253, 0.0
    %v7262 = vadd.f32 %v7260, %v7261
    %v7263 = vadd.f32 %v3818, %v7262
    %v7264 = vlaneseq
    %v7265 = vshrl.u32 %v7264, 7
    %v7266 = vsub.s32 2, %v7265
    %v7267 = vrot.slane %v3820, %v7266
    %v7268 = vadd.f32 %v7263, %v7267
    %v7269 = vsel %vm381, %v7268, 0.0
    %7270 = vadd.xlane.f32.xlu0 %v7269
    %v7271 = vpop.xlane.xlu0 %7270
    %v7272 = vmul.f32 %v7271, %v385
    %v7273 = vsub.f32 %v7268, %v7272
    %v7274 = vmul.f32 %v7273, %v7273
    %v7275 = vsel %vm381, %v7274, 0.0
    %7276 = vadd.xlane.f32.xlu0 %v7275
    %v7277 = vpop.xlane.xlu0 %7276
    %v7278 = vmul.f32 %v7277, %v385
    %v7279 = vlaneseq
    %v7280 = vshrl.u32 %v7279, 7
    %v7281 = vsub.s32 3, %v7280
    %v7282 = vrot.slane %v3820, %v7281
    %v7283 = vmul.f32 %v7282, %v7273
    %v7284 = vadd.f32 %v7278, 1e-05
    %v7285 = vrsqrt.pop %v7284
    %v7286 = vmul.f32 %v7283, %v7285
    %v7287 = vlaneseq
    %v7288 = vshrl.u32 %v7287, 7
    %v7289 = vsub.s32 4, %v7288
    %v7290 = vrot.slane %v3820, %v7289
    %v7291 = vadd.f32 %v7286, %v7290
    %s7292 = scalar_lea.vmem %s5, 32
    %v7293 = vld [vmem:[%s7292] sm:$0xff]
    %v7294 = vld [vmem:[%s7292 + $0x8] sm:$0xff]
    %v7295 = vld [vmem:[%s7292 + $0x10] sm:$0xff]
    %v7296 = vld [vmem:[%s7292 + $0x18] sm:$0xff]
    %v7297 = vlaneseq
    %v7298 = vshrl.u32 %v7297, 7
    %v7299 = vsub.s32 6, %v7298
    %v7300 = vrot.slane %v3820, %v7299
    %v7302 = vsel %vm381, %v7291, 0
    %7304 = vmatprep.subr.mxu0 0.0
    %7305 = vmatpush1.msra.mxu0 %v7293
    %7306 = vmatprep.subr.mxu0 0.0
    %7307 = vmatpush1.msra.mxu0 %v7294
    %7308 = vmatprep.subr.mxu0 0.0
    %7309 = vmatpush1.msra.mxu0 %v7295
    %7310 = vmatprep.subr.mxu0 0.0
    %7311 = vmatpush1.msra.mxu0 %v7296
    %7312 = vmatprep.subr.mxu0 0.0
    %7313 = vmatpush1.msra.mxu0 0.0
    %7314 = vmatprep.subr.mxu0 0.0
    %7315 = vmatpush1.msra.mxu0 0.0
    %7316 = vmatprep.subr.mxu0 0.0
    %7317 = vmatpush1.msra.mxu0 0.0
    %7318 = vmatprep.subr.mxu0 0.0
    %7319 = vmatpush1.msra.mxu0 0.0
    %7320 = vmatprep.subr.mxu0 0.0
    %7321 = vmatpush1.msra.mxu0 0.0
    %7322 = vmatprep.subr.mxu0 0.0
    %7323 = vmatpush1.msra.mxu0 0.0
    %7324 = vmatprep.subr.mxu0 0.0
    %7325 = vmatpush1.msra.mxu0 0.0
    %7326 = vmatprep.subr.mxu0 0.0
    %7327 = vmatpush1.msra.mxu0 0.0
    %7328 = vmatprep.subr.mxu0 0.0
    %7329 = vmatpush1.msra.mxu0 0.0
    %7330 = vmatprep.subr.mxu0 0.0
    %7331 = vmatpush1.msra.mxu0 0.0
    %7332 = vmatprep.subr.mxu0 0.0
    %7333 = vmatpush1.msra.mxu0 0.0
    %7334 = vmatprep.subr.mxu0 0.0
    %7335 = vmatpush1.msra.mxu0 0.0
    %7336 = vmatprep.subr.mxu0 0.0
    %7337 = vmatpush1.msra.mxu0 0.0
    %7338 = vmatprep.subr.mxu0 0.0
    %7339 = vmatpush1.msra.mxu0 0.0
    %7340 = vmatprep.subr.mxu0 0.0
    %7341 = vmatpush1.msra.mxu0 0.0
    %7342 = vmatprep.subr.mxu0 0.0
    %7343 = vmatpush1.msra.mxu0 0.0
    %7344 = vmatprep.subr.mxu0 0.0
    %7345 = vmatpush1.msra.mxu0 0.0
    %7346 = vmatprep.subr.mxu0 0.0
    %7347 = vmatpush1.msra.mxu0 0.0
    %7348 = vmatprep.subr.mxu0 0.0
    %7349 = vmatpush1.msra.mxu0 0.0
    %7350 = vmatprep.subr.mxu0 0.0
    %7351 = vmatpush1.msra.mxu0 0.0
    %7352 = vmatprep.subr.mxu0 0.0
    %7353 = vmatpush1.msra.mxu0 0.0
    %7354 = vmatprep.subr.mxu0 0.0
    %7355 = vmatpush1.msra.mxu0 0.0
    %7356 = vmatprep.subr.mxu0 0.0
    %7357 = vmatpush1.msra.mxu0 0.0
    %7358 = vmatprep.subr.mxu0 0.0
    %7359 = vmatpush1.msra.mxu0 0.0
    %7360 = vmatprep.subr.mxu0 0.0
    %7361 = vmatpush1.msra.mxu0 0.0
    %7362 = vmatprep.subr.mxu0 0.0
    %7363 = vmatpush1.msra.mxu0 0.0
    %7364 = vmatprep.subr.mxu0 0.0
    %7365 = vmatpush1.msra.mxu0 0.0
    %7366 = vmatprep.subr.mxu0 0.0
    %7367 = vmatpush1.msra.mxu0 0.0
    %7368 = vmatprep.mubr.f32.mxu0 0.0
    %7369 = vmatmul.mubr.f32.gmra.mrb[0].mxu0 %v7302
    %v7370 = vpop.f32.mrb[0].mxu0
    %v7371 = vadd.f32 %v7300, %v7370
    %v7372 = vpop.f32.mrb[0].mxu0
    %7373 = vdwg.mxu0
    %v7374 = vmax.f32 %v7371, 0.0
    %s7375 = scalar_lea.vmem [#allocation4], 128
    %v7376 = vld [vmem:[%s7375] sm:$0xff]
    %v7377 = vld [vmem:[%s7375 + $0x8] sm:$0xff]
    %v7378 = vld [vmem:[%s7375 + $0x10] sm:$0xff]
    %v7379 = vld [vmem:[%s7375 + $0x18] sm:$0xff]
    %v7380 = vld [vmem:[%s7375 + $0x20] sm:$0xff]
    %v7381 = vld [vmem:[%s7375 + $0x28] sm:$0xff]
    %v7382 = vld [vmem:[%s7375 + $0x30] sm:$0xff]
    %v7383 = vld [vmem:[%s7375 + $0x38] sm:$0xff]
    %v7384 = vld [vmem:[%s7375 + $0x40] sm:$0xff]
    %v7385 = vld [vmem:[%s7375 + $0x48] sm:$0xff]
    %v7386 = vld [vmem:[%s7375 + $0x50] sm:$0xff]
    %v7387 = vld [vmem:[%s7375 + $0x58] sm:$0xff]
    %v7388 = vld [vmem:[%s7375 + $0x60] sm:$0xff]
    %v7389 = vld [vmem:[%s7375 + $0x68] sm:$0xff]
    %v7390 = vld [vmem:[%s7375 + $0x70] sm:$0xff]
    %v7391 = vld [vmem:[%s7375 + $0x78] sm:$0xff]
    %7392 = vmatprep.subr.mxu0 0.0
    %7393 = vmatpush1.msra.mxu0 %v7376
    %7394 = vmatprep.subr.mxu0 0.0
    %7395 = vmatpush1.msra.mxu0 %v7377
    %7396 = vmatprep.subr.mxu0 0.0
    %7397 = vmatpush1.msra.mxu0 %v7378
    %7398 = vmatprep.subr.mxu0 0.0
    %7399 = vmatpush1.msra.mxu0 %v7379
    %7400 = vmatprep.subr.mxu0 0.0
    %7401 = vmatpush1.msra.mxu0 %v7380
    %7402 = vmatprep.subr.mxu0 0.0
    %7403 = vmatpush1.msra.mxu0 %v7381
    %7404 = vmatprep.subr.mxu0 0.0
    %7405 = vmatpush1.msra.mxu0 %v7382
    %7406 = vmatprep.subr.mxu0 0.0
    %7407 = vmatpush1.msra.mxu0 %v7383
    %7408 = vmatprep.subr.mxu0 0.0
    %7409 = vmatpush1.msra.mxu0 %v7384
    %7410 = vmatprep.subr.mxu0 0.0
    %7411 = vmatpush1.msra.mxu0 %v7385
    %7412 = vmatprep.subr.mxu0 0.0
    %7413 = vmatpush1.msra.mxu0 %v7386
    %7414 = vmatprep.subr.mxu0 0.0
    %7415 = vmatpush1.msra.mxu0 %v7387
    %7416 = vmatprep.subr.mxu0 0.0
    %7417 = vmatpush1.msra.mxu0 %v7388
    %7418 = vmatprep.subr.mxu0 0.0
    %7419 = vmatpush1.msra.mxu0 %v7389
    %7420 = vmatprep.subr.mxu0 0.0
    %7421 = vmatpush1.msra.mxu0 %v7390
    %7422 = vmatprep.subr.mxu0 0.0
    %7423 = vmatpush1.msra.mxu0 %v7391
    %7424 = vmatprep.subr.mxu0 0.0
    %7425 = vmatpush1.msra.mxu0 0.0
    %7426 = vmatprep.subr.mxu0 0.0
    %7427 = vmatpush1.msra.mxu0 0.0
    %7428 = vmatprep.subr.mxu0 0.0
    %7429 = vmatpush1.msra.mxu0 0.0
    %7430 = vmatprep.subr.mxu0 0.0
    %7431 = vmatpush1.msra.mxu0 0.0
    %7432 = vmatprep.subr.mxu0 0.0
    %7433 = vmatpush1.msra.mxu0 0.0
    %7434 = vmatprep.subr.mxu0 0.0
    %7435 = vmatpush1.msra.mxu0 0.0
    %7436 = vmatprep.subr.mxu0 0.0
    %7437 = vmatpush1.msra.mxu0 0.0
    %7438 = vmatprep.subr.mxu0 0.0
    %7439 = vmatpush1.msra.mxu0 0.0
    %7440 = vmatprep.subr.mxu0 0.0
    %7441 = vmatpush1.msra.mxu0 0.0
    %7442 = vmatprep.subr.mxu0 0.0
    %7443 = vmatpush1.msra.mxu0 0.0
    %7444 = vmatprep.subr.mxu0 0.0
    %7445 = vmatpush1.msra.mxu0 0.0
    %7446 = vmatprep.subr.mxu0 0.0
    %7447 = vmatpush1.msra.mxu0 0.0
    %7448 = vmatprep.subr.mxu0 0.0
    %7449 = vmatpush1.msra.mxu0 0.0
    %7450 = vmatprep.subr.mxu0 0.0
    %7451 = vmatpush1.msra.mxu0 0.0
    %7452 = vmatprep.subr.mxu0 0.0
    %7453 = vmatpush1.msra.mxu0 0.0
    %7454 = vmatprep.subr.mxu0 0.0
    %7455 = vmatpush1.msra.mxu0 0.0
    %7456 = vmatprep.mubr.f32.mxu0 0.0
    %7457 = vmatmul.mubr.f32.gmra.mrb[0].mxu0 %v7374
    %v7458 = vpop.f32.mrb[0].mxu0
    %v7459 = vadd.f32 0.0, %v7458
    %v7460 = vpop.f32.mrb[0].mxu0
    %7461 = vdwg.mxu0
    %v7462 = vadd.f32 %v7268, %v7459
    %v7463 = vlaneseq
    %v7464 = vshrl.u32 %v7463, 7
    %v7465 = vsub.s32 5, %v7464
    %v7466 = vrot.slane %v3820, %v7465
    %v7467 = vadd.f32 %v7462, %v7466
    %s7468 = scalar_lea.vmem %s7, 16
    %v7469 = vld [vmem:[%s7468] sm:$0xff]
    %v7470 = vsel %vm381, %v7467, 0.0
    %7471 = vadd.xlane.f32.xlu0 %v7470
    %v7472 = vpop.xlane.xlu0 %7471
    %v7473 = vmul.f32 %v7472, %v385
    %v7474 = vsub.f32 %v7467, %v7473
    %v7475 = vmul.f32 %v7474, %v7474
    %v7476 = vsel %vm381, %v7475, 0.0
    %7477 = vadd.xlane.f32.xlu0 %v7476
    %v7478 = vpop.xlane.xlu0 %7477
    %v7479 = vmul.f32 %v7478, %v385
    %v7480 = vlaneseq
    %v7481 = vshrl.u32 %v7480, 7
    %v7482 = vsub.s32 0, %v7481
    %v7483 = vrot.slane %v7469, %v7482
    %v7484 = vmul.f32 %v7483, %v7474
    %v7485 = vadd.f32 %v7479, 1e-05
    %v7486 = vrsqrt.pop %v7485
    %v7487 = vmul.f32 %v7484, %v7486
    %v7488 = vlaneseq
    %v7489 = vshrl.u32 %v7488, 7
    %v7490 = vsub.s32 1, %v7489
    %v7491 = vrot.slane %v7469, %v7490
    %v7492 = vadd.f32 %v7487, %v7491
    %7493 = vst.msk [vmem:[%s8] sm:$0xff] %vm381, %v7492
    // Predicated region
    $region42: #{rat_forward.1} parent=1 // pred_check
      _
    $region43: #{rat_forward.1} parent=1 // pred_check_branch
      %7495 = sbr.rel (0) target = $region45
    $region44: #{rat_forward.1} parent=1 // pred_region
      _
    $region45: #{rat_forward.1} parent=1 // pred_fallthru
      _
    // Predicated region
    $region46: #{rat_forward.1} parent=1 // pred_check
      _
    $region47: #{rat_forward.1} parent=1 // pred_check_branch
      %7497 = sbr.rel (0) target = $region49
    $region48: #{rat_forward.1} parent=1 // pred_region
      _
    $region49: #{rat_forward.1} parent=1 // pred_fallthru
      _
    %7498 = vsyncpa [#allocation3], 1
    %7499 = vsyncpa [#allocation5], 1

</llo_original>
